<compile_context>
chip_gen: v7x
topology: tpu7x:2x2x1
jax: 0.10.0
libtpu: 0.0.40
codegen_flags: <defaults>
</compile_context>

<pallas_src>
import functools

import jax
import jax.numpy as jnp
from jax import lax
from jax.experimental import pallas as pl
from jax.experimental.pallas import tpu as pltpu

BN_EPS = 1e-5
LANE = 128


def _relu6(x):
    return jnp.minimum(jnp.maximum(x, 0.0), 6.0)


def _bn_train(h, bn, count, scale=None):
    """Training-mode BatchNorm on the lane-dense (channels, Rp) layout.

    h must be exactly zero at padded positions so a fused single-pass
    sum / sum-of-squares over the padded row equals the statistics over the
    `count` real positions.  bn: (channels, 2), col 0 = gamma, col 1 = beta.
    `scale` (the architecture weight) is folded into gamma/beta here instead of
    scaling the full-size activation later.
    """
    gamma = bn[:, 0:1]
    beta = bn[:, 1:2]
    if scale is not None:
        gamma = gamma * scale
        beta = beta * scale
    inv_n = 1.0 / count
    s = jnp.sum(h, axis=1, keepdims=True)
    ss = jnp.sum(h * h, axis=1, keepdims=True)
    mean = s * inv_n
    var = ss * inv_n - mean * mean
    return (h - mean) * lax.rsqrt(var + BN_EPS) * gamma + beta


def _pw_conv(w_t, act):
    """1x1 conv as exact-f32 broadcast-FMAs on the VPU.

    w_t: (out_ch, in_ch), act: (in_ch, Rp) -> (out_ch, Rp).  in_ch is tiny
    (4 / 12 / 24), so the unrolled loop is cheap, stays off the MXU and keeps
    exact f32 accuracy.  Zero inputs stay exactly zero (needed by the BN trick).
    """
    out = w_t[:, 0:1] * act[0:1, :]
    for c in range(1, w_t.shape[1]):
        out = out + w_t[:, c:c + 1] * act[c:c + 1, :]
    return out


def _inverted_residual(x, mask, pw1t, bn1, dwt, bn2, pw2t, bn3, pad_ref, *,
                       K, hidden, scale, margin, rp_pad, r_real,
                       row_stride, n_stride):
    """Inverted residual (stride 1, C_in == C_out) without the residual term
    (folded into the caller's x coefficient); arch weight `scale` folded into
    the final BN's gamma/beta.

    x    : (C, Rp)  spatially padded, lane-dense activations
    mask : (1, Rp)  1.0 at real (interior) positions, 0.0 at halo / tail
    pad_ref: VMEM scratch (rows >= hidden, margin + Rp + margin); the two
             margin stripes are pre-zeroed by the caller.
    """
    p = K // 2

    # pointwise expand + BN + ReLU6.  The halo stays exactly 0 through the
    # matmul; BN's beta leaks in, so re-zero it with one mask multiply.
    h = _pw_conv(pw1t, x)                                   # (hidden, Rp)
    h = _relu6(_bn_train(h, bn1, r_real)) * mask

    # depthwise KxK: every spatial tap is a constant shift of the flattened
    # padded index.  Stash h in the margin-padded scratch so every shifted read
    # is in bounds — no per-tap validity masking.
    pad_ref[0:hidden, margin:margin + rp_pad] = h
    center = p * K + p
    acc = dwt[:, center:center + 1] * h                     # centre tap from regs
    for kh in range(K):
        for kw in range(K):
            if kh == p and kw == p:
                continue
            off = (kh - p) * row_stride + (kw - p) * n_stride
            t = kh * K + kw
            acc = acc + dwt[:, t:t + 1] * pad_ref[
                0:hidden, margin + off:margin + off + rp_pad]

    # halo lanes of acc read neighbours / margins: mask them out before the
    # batch statistics and again after BN's beta.
    am = acc * mask
    d = _relu6(_bn_train(am, bn2, r_real)) * mask

    # pointwise linear projection + BN (arch weight folded into gamma/beta).
    y = _pw_conv(pw2t, d)                                   # (C, Rp), 0 at halo
    return _bn_train(y, bn3, r_real, scale=scale)


def mixedop_kernel(w_ref, mask_ref, x_ref,
                   pw1a_ref, bn1a_ref, dwa_ref, bn2a_ref, pw2a_ref, bn3a_ref,
                   pw1b_ref, bn1b_ref, dwb_ref, bn2b_ref, pw2b_ref, bn3b_ref,
                   out_ref, pad_ref, *, h1, h2, margin, rp_pad, r_real,
                   row_stride, n_stride):
    x = x_ref[...]                      # (C, Rp) lane-dense, spatially padded
    mask = mask_ref[...]                # (1, Rp)
    w0 = w_ref[0, 0]
    w1 = w_ref[0, 1]
    w2 = w_ref[0, 2]

    # identity op and both residual connections collapse into one scalar
    # coefficient on x (terms with w_i == 0 contribute exactly 0 either way).
    out_ref[...] = ((w0 + w1 + w2) * x).astype(out_ref.dtype)

    # zero only the scratch halo margins; the interior is overwritten by h.
    zeros_m = jnp.zeros((pad_ref.shape[0], margin), jnp.float32)
    pad_ref[:, 0:margin] = zeros_m
    pad_ref[:, margin + rp_pad:margin + rp_pad + margin] = zeros_m

    @pl.when(w1 != 0.0)
    def _():
        y1 = _inverted_residual(
            x, mask, pw1a_ref[...], bn1a_ref[...], dwa_ref[...], bn2a_ref[...],
            pw2a_ref[...], bn3a_ref[...], pad_ref, K=3, hidden=h1, scale=w1,
            margin=margin, rp_pad=rp_pad, r_real=r_real,
            row_stride=row_stride, n_stride=n_stride)
        out_ref[...] = out_ref[...] + y1

    @pl.when(w2 != 0.0)
    def _():
        y2 = _inverted_residual(
            x, mask, pw1b_ref[...], bn1b_ref[...], dwb_ref[...], bn2b_ref[...],
            pw2b_ref[...], bn3b_ref[...], pad_ref, K=5, hidden=h2, scale=w2,
            margin=margin, rp_pad=rp_pad, r_real=r_real,
            row_stride=row_stride, n_stride=n_stride)
        out_ref[...] = out_ref[...] + y2


def mixed_op_forward(x_nchw, weights, choice_block_id, params):
    """MixedOp forward. x_nchw: (N, C, H, W) like PyTorch; weights: (blocks, 3)."""
    N, C, H, W = x_nchw.shape
    P = 2                                  # max K//2 over candidate ops (5x5)
    Hp, Wp = H + 2 * P, W + 2 * P
    rp = Hp * Wp * N
    rp_pad = ((rp + LANE - 1) // LANE) * LANE
    r_real = N * H * W
    h1 = params["pw1a"].shape[1]
    h2 = params["pw1b"].shape[1]

    # NCHW -> zero-pad H and W -> (C, Hp, Wp, N) -> lane-dense (C, Rp_pad).
    xp = jnp.pad(x_nchw.astype(jnp.float32), ((0, 0), (0, 0), (P, P), (P, P)))
    x2d = jnp.transpose(xp, (1, 2, 3, 0)).reshape(C, rp)
    x2d = jnp.pad(x2d, ((0, 0), (0, rp_pad - rp)))

    # interior mask: 1.0 at real (h, w) positions, 0.0 at halo / lane tail.
    mhw = jnp.zeros((Hp, Wp), jnp.float32).at[P:P + H, P:P + W].set(1.0)
    mask = jnp.broadcast_to(mhw[:, :, None], (Hp, Wp, N)).reshape(1, rp)
    mask = jnp.pad(mask, ((0, 0), (0, rp_pad - rp)))

    w_sel = weights[choice_block_id].reshape(1, 3).astype(jnp.float32)

    f32 = lambda a: a.astype(jnp.float32)
    args = (
        w_sel, mask, x2d,
        f32(params["pw1a"]).T, f32(params["bn1a"]).T, f32(params["dwa"]).T,
        f32(params["bn2a"]).T, f32(params["pw2a"]).T, f32(params["bn3a"]).T,
        f32(params["pw1b"]).T, f32(params["bn1b"]).T, f32(params["dwb"]).T,
        f32(params["bn2b"]).T, f32(params["pw2b"]).T, f32(params["bn3b"]).T,
    )

    # scratch: enough rows for the wider hidden dim, halo margin >= largest tap
    # offset (P * (Wp*N + N)), rounded up to a full lane tile.
    pad_rows = ((max(h1, h2) + 7) // 8) * 8
    margin = ((P * (Wp * N + N) + LANE - 1) // LANE) * LANE

    kernel = functools.partial(
        mixedop_kernel, h1=h1, h2=h2, margin=margin, rp_pad=rp_pad,
        r_real=r_real, row_stride=Wp * N, n_stride=N)

    out2d = pl.pallas_call(
        kernel,
        out_shape=jax.ShapeDtypeStruct((C, rp_pad), jnp.float32),
        in_specs=[pl.BlockSpec(memory_space=pltpu.MemorySpace.SMEM)]   # w_sel
                 + [pl.BlockSpec(memory_space=pltpu.MemorySpace.VMEM)] * 14,
        out_specs=pl.BlockSpec(memory_space=pltpu.MemorySpace.VMEM),
        scratch_shapes=[
            pltpu.VMEM((pad_rows, margin + rp_pad + margin), jnp.float32)],
    )(*args)

    # (C, Rp_pad) -> crop spatial halo -> NCHW
    out = out2d[:, :rp].reshape(C, Hp, Wp, N)[:, P:P + H, P:P + W, :]
    return jnp.transpose(out, (3, 0, 1, 2))


# ----------------------------- pure-JAX reference -----------------------------
def _ref_bn(x, bn):
    gamma = bn[0].reshape(1, -1, 1, 1)
    beta = bn[1].reshape(1, -1, 1, 1)
    mean = jnp.mean(x, axis=(0, 2, 3), keepdims=True)
    var = jnp.mean((x - mean) ** 2, axis=(0, 2, 3), keepdims=True)
    return (x - mean) * lax.rsqrt(var + BN_EPS) * gamma + beta


def _ref_ir(x, pw1, bn1, dwk, bn2, pw2, bn3, K):
    C = x.shape[1]
    hid = pw1.shape[1]
    dn = ("NCHW", "OIHW", "NCHW")
    p = K // 2
    w1 = jnp.transpose(pw1, (1, 0)).reshape(hid, C, 1, 1)
    h = lax.conv_general_dilated(x, w1, (1, 1), "VALID", dimension_numbers=dn,
                                 precision=lax.Precision.HIGHEST)
    h = _relu6(_ref_bn(h, bn1))
    wd = jnp.transpose(dwk, (1, 0)).reshape(hid, 1, K, K)
    d = lax.conv_general_dilated(h, wd, (1, 1), [(p, p), (p, p)],
                                 feature_group_count=hid, dimension_numbers=dn,
                                 precision=lax.Precision.HIGHEST)
    d = _relu6(_ref_bn(d, bn2))
    w2 = jnp.transpose(pw2, (1, 0)).reshape(C, hid, 1, 1)
    y = lax.conv_general_dilated(d, w2, (1, 1), "VALID", dimension_numbers=dn,
                                 precision=lax.Precision.HIGHEST)
    y = _ref_bn(y, bn3)
    return x + y


def mixed_op_reference(x, weights, choice_block_id, params):
    w = weights[choice_block_id]
    g = jnp.where(w == 0.0, 0.0, 1.0)
    ret = w[0] * (x * g[0])
    ret = ret + w[1] * _ref_ir(x * g[1], params["pw1a"], params["bn1a"],
                               params["dwa"], params["bn2a"], params["pw2a"],
                               params["bn3a"], 3)
    ret = ret + w[2] * _ref_ir(x * g[2], params["pw1b"], params["bn1b"],
                               params["dwb"], params["bn2b"], params["pw2b"],
                               params["bn3b"], 5)
    return ret


if __name__ == "__main__":
    N, C, H, W = 2, 4, 16, 16        # stride=1, C_in == C_out
    # TODO(synk): stride=2 / C_in != C_out op variants (downsampling 'id') are
    #             not implemented for this configuration.

    h1 = round(C * 3)                # ir_3x3_t3 hidden dim
    h2 = round(C * 6)                # ir_5x5_t6 hidden dim

    key = jax.random.PRNGKey(0)
    ks = jax.random.split(key, 8)

    def conv_init(k, shape, fan_in):
        return jax.random.normal(k, shape, jnp.float32) * (2.0 / fan_in) ** 0.5

    def bn_init(ch):                 # [gamma; beta] (PyTorch default init)
        return jnp.concatenate([jnp.ones((1, ch), jnp.float32),
                                jnp.zeros((1, ch), jnp.float32)], axis=0)

    params = {
        "pw1a": conv_init(ks[0], (C, h1), C),
        "bn1a": bn_init(h1),
        "dwa":  conv_init(ks[1], (3 * 3, h1), 3 * 3),
        "bn2a": bn_init(h1),
        "pw2a": conv_init(ks[2], (h1, C), h1),
        "bn3a": bn_init(C),
        "pw1b": conv_init(ks[3], (C, h2), C),
        "bn1b": bn_init(h2),
        "dwb":  conv_init(ks[4], (5 * 5, h2), 5 * 5),
        "bn2b": bn_init(h2),
        "pw2b": conv_init(ks[5], (h2, C), h2),
        "bn3b": bn_init(C),
    }

    x = jax.random.normal(ks[6], (N, C, H, W), jnp.float32)   # PyTorch NCHW input
    # architecture weights: row 0 exercises the pl.when skip of a zero-weight
    # IR branch; row 1 exercises the zero-weight identity term.
    weights = jnp.array([[0.2, 0.0, 0.8],
                         [0.0, 0.6, 0.4]], jnp.float32)

    for choice_block_id in (0, 1):
        out = mixed_op_forward(x, weights, choice_block_id, params)
        out = jax.block_until_ready(out)
        ref = mixed_op_reference(x, weights, choice_block_id, params)
        assert out.shape == (N, C, H, W)
        assert bool(jnp.all(jnp.isfinite(out)))
        if not jnp.allclose(out, ref, atol=2e-3, rtol=2e-3):
            raise AssertionError(
                f"choice {choice_block_id}: mismatch vs reference, "
                f"max abs err = {jnp.max(jnp.abs(out - ref))}")
    print("KERNEL_OK")
</pallas_src>

<mosaic_0001>
module attributes {stable_mosaic.version = 11 : i64} {
  func.func @mixedop_kernel(%arg0: memref<1x3xf32, #tpu.memory_space<smem>>, %arg1: memref<1x896xf32, #tpu.memory_space<vmem>>, %arg2: memref<4x896xf32, #tpu.memory_space<vmem>>, %arg3: memref<12x4xf32, #tpu.memory_space<vmem>>, %arg4: memref<12x2xf32, #tpu.memory_space<vmem>>, %arg5: memref<12x9xf32, #tpu.memory_space<vmem>>, %arg6: memref<12x2xf32, #tpu.memory_space<vmem>>, %arg7: memref<4x12xf32, #tpu.memory_space<vmem>>, %arg8: memref<4x2xf32, #tpu.memory_space<vmem>>, %arg9: memref<24x4xf32, #tpu.memory_space<vmem>>, %arg10: memref<24x2xf32, #tpu.memory_space<vmem>>, %arg11: memref<24x25xf32, #tpu.memory_space<vmem>>, %arg12: memref<24x2xf32, #tpu.memory_space<vmem>>, %arg13: memref<4x24xf32, #tpu.memory_space<vmem>>, %arg14: memref<4x2xf32, #tpu.memory_space<vmem>>, %arg15: memref<4x896xf32, #tpu.memory_space<vmem>>, %arg16: memref<24x1152xf32, #tpu.memory_space<vmem>>) attributes {dimension_semantics = [], scalar_prefetch = 0 : i64, scratch_operands = 1 : i64, tpu.core_type = #tpu.core_type<tc>} {
    %c0 = arith.constant 0 : index
    %c0_0 = arith.constant 0 : index
    %0 = vector.load %arg2[%c0, %c0_0] : memref<4x896xf32, #tpu.memory_space<vmem>>, vector<4x896xf32>
    %c0_1 = arith.constant 0 : index
    %c0_2 = arith.constant 0 : index
    %1 = vector.load %arg1[%c0_1, %c0_2] : memref<1x896xf32, #tpu.memory_space<vmem>>, vector<1x896xf32>
    %c0_3 = arith.constant 0 : index
    %c0_4 = arith.constant 0 : index
    %2 = memref.load %arg0[%c0_3, %c0_4] : memref<1x3xf32, #tpu.memory_space<smem>>
    %c0_5 = arith.constant 0 : index
    %c1 = arith.constant 1 : index
    %3 = memref.load %arg0[%c0_5, %c1] : memref<1x3xf32, #tpu.memory_space<smem>>
    %c0_6 = arith.constant 0 : index
    %c2 = arith.constant 2 : index
    %4 = memref.load %arg0[%c0_6, %c2] : memref<1x3xf32, #tpu.memory_space<smem>>
    %5 = arith.addf %2, %3 : f32
    %6 = arith.addf %5, %4 : f32
    %7 = vector.broadcast %6 : f32 to vector<4x896xf32>
    %8 = arith.mulf %7, %0 : vector<4x896xf32>
    %c0_7 = arith.constant 0 : index
    %c0_8 = arith.constant 0 : index
    %9 = vector.load %arg15[%c0_7, %c0_8] : memref<4x896xf32, #tpu.memory_space<vmem>>, vector<4x896xf32>
    tpu.vector_store %arg15[%c0_7, %c0_8], %8 {strides = array<i32>} : memref<4x896xf32, #tpu.memory_space<vmem>>, vector<4x896xf32>,
    %cst = arith.constant 0.000000e+00 : f32
    %10 = vector.broadcast %cst : f32 to vector<24x128xf32>
    %c0_9 = arith.constant 0 : index
    %c0_10 = arith.constant 0 : index
    %11 = vector.load %arg16[%c0_9, %c0_10] : memref<24x1152xf32, #tpu.memory_space<vmem>>, vector<24x128xf32>
    tpu.vector_store %arg16[%c0_9, %c0_10], %10 {strides = array<i32>} : memref<24x1152xf32, #tpu.memory_space<vmem>>, vector<24x128xf32>,
    %c0_11 = arith.constant 0 : index
    %c1024 = arith.constant 1024 : index
    %12 = vector.load %arg16[%c0_11, %c1024] : memref<24x1152xf32, #tpu.memory_space<vmem>>, vector<24x128xf32>
    tpu.vector_store %arg16[%c0_11, %c1024], %10 {strides = array<i32>} : memref<24x1152xf32, #tpu.memory_space<vmem>>, vector<24x128xf32>,
    %cst_12 = arith.constant 0.000000e+00 : f32
    %13 = arith.cmpf one, %3, %cst_12 : f32
    %14 = arith.extui %13 : i1 to i32
    %c0_i32 = arith.constant 0 : i32
    %15 = arith.cmpi ne, %14, %c0_i32 : i32
    scf.if %15 {
      %c0_15 = arith.constant 0 : index
      %c0_16 = arith.constant 0 : index
      %19 = vector.load %arg3[%c0_15, %c0_16] : memref<12x4xf32, #tpu.memory_space<vmem>>, vector<12x4xf32>
      %c0_17 = arith.constant 0 : index
      %c0_18 = arith.constant 0 : index
      %20 = vector.load %arg4[%c0_17, %c0_18] : memref<12x2xf32, #tpu.memory_space<vmem>>, vector<12x2xf32>
      %c0_19 = arith.constant 0 : index
      %c0_20 = arith.constant 0 : index
      %21 = vector.load %arg5[%c0_19, %c0_20] : memref<12x9xf32, #tpu.memory_space<vmem>>, vector<12x9xf32>
      %c0_21 = arith.constant 0 : index
      %c0_22 = arith.constant 0 : index
      %22 = vector.load %arg6[%c0_21, %c0_22] : memref<12x2xf32, #tpu.memory_space<vmem>>, vector<12x2xf32>
      %c0_23 = arith.constant 0 : index
      %c0_24 = arith.constant 0 : index
      %23 = vector.load %arg7[%c0_23, %c0_24] : memref<4x12xf32, #tpu.memory_space<vmem>>, vector<4x12xf32>
      %c0_25 = arith.constant 0 : index
      %c0_26 = arith.constant 0 : index
      %24 = vector.load %arg8[%c0_25, %c0_26] : memref<4x2xf32, #tpu.memory_space<vmem>>, vector<4x2xf32>
      %25 = vector.extract_strided_slice %19 {offsets = [0, 0], sizes = [12, 1], strides = [1, 1]} : vector<12x4xf32> to vector<12x1xf32>
      %26 = vector.extract_strided_slice %0 {offsets = [0, 0], sizes = [1, 896], strides = [1, 1]} : vector<4x896xf32> to vector<1x896xf32>
      %27 = vector.broadcast %25 : vector<12x1xf32> to vector<12x896xf32>
      %28 = vector.broadcast %26 : vector<1x896xf32> to vector<12x896xf32>
      %29 = arith.mulf %27, %28 : vector<12x896xf32>
      %30 = vector.extract_strided_slice %19 {offsets = [0, 1], sizes = [12, 1], strides = [1, 1]} : vector<12x4xf32> to vector<12x1xf32>
      %31 = vector.extract_strided_slice %0 {offsets = [1, 0], sizes = [1, 896], strides = [1, 1]} : vector<4x896xf32> to vector<1x896xf32>
      %32 = vector.broadcast %30 : vector<12x1xf32> to vector<12x896xf32>
      %33 = vector.broadcast %31 : vector<1x896xf32> to vector<12x896xf32>
      %34 = arith.mulf %32, %33 : vector<12x896xf32>
      %35 = arith.addf %29, %34 : vector<12x896xf32>
      %36 = vector.extract_strided_slice %19 {offsets = [0, 2], sizes = [12, 1], strides = [1, 1]} : vector<12x4xf32> to vector<12x1xf32>
      %37 = vector.extract_strided_slice %0 {offsets = [2, 0], sizes = [1, 896], strides = [1, 1]} : vector<4x896xf32> to vector<1x896xf32>
      %38 = vector.broadcast %36 : vector<12x1xf32> to vector<12x896xf32>
      %39 = vector.broadcast %37 : vector<1x896xf32> to vector<12x896xf32>
      %40 = arith.mulf %38, %39 : vector<12x896xf32>
      %41 = arith.addf %35, %40 : vector<12x896xf32>
      %42 = vector.extract_strided_slice %19 {offsets = [0, 3], sizes = [12, 1], strides = [1, 1]} : vector<12x4xf32> to vector<12x1xf32>
      %43 = vector.extract_strided_slice %0 {offsets = [3, 0], sizes = [1, 896], strides = [1, 1]} : vector<4x896xf32> to vector<1x896xf32>
      %44 = vector.broadcast %42 : vector<12x1xf32> to vector<12x896xf32>
      %45 = vector.broadcast %43 : vector<1x896xf32> to vector<12x896xf32>
      %46 = arith.mulf %44, %45 : vector<12x896xf32>
      %47 = arith.addf %41, %46 : vector<12x896xf32>
      %48 = vector.extract_strided_slice %20 {offsets = [0, 0], sizes = [12, 1], strides = [1, 1]} : vector<12x2xf32> to vector<12x1xf32>
      %49 = vector.extract_strided_slice %20 {offsets = [0, 1], sizes = [12, 1], strides = [1, 1]} : vector<12x2xf32> to vector<12x1xf32>
      %cst_27 = arith.constant dense<0.000000e+00> : vector<12xf32>
      %50 = vector.multi_reduction <add>, %47, %cst_27 [1] : vector<12x896xf32> to vector<12xf32>
      %51 = vector.shape_cast %50 : vector<12xf32> to vector<12x1xf32>
      %52 = arith.mulf %47, %47 : vector<12x896xf32>
      %cst_28 = arith.constant dense<0.000000e+00> : vector<12xf32>
      %53 = vector.multi_reduction <add>, %52, %cst_28 [1] : vector<12x896xf32> to vector<12xf32>
      %54 = vector.shape_cast %53 : vector<12xf32> to vector<12x1xf32>
      %cst_29 = arith.constant 0.001953125 : f32
      %55 = vector.broadcast %cst_29 : f32 to vector<12x1xf32>
      %56 = arith.mulf %51, %55 : vector<12x1xf32>
      %cst_30 = arith.constant 0.001953125 : f32
      %57 = vector.broadcast %cst_30 : f32 to vector<12x1xf32>
      %58 = arith.mulf %54, %57 : vector<12x1xf32>
      %59 = arith.mulf %56, %56 : vector<12x1xf32>
      %60 = arith.subf %58, %59 : vector<12x1xf32>
      %61 = vector.broadcast %56 : vector<12x1xf32> to vector<12x896xf32>
      %62 = arith.subf %47, %61 : vector<12x896xf32>
      %cst_31 = arith.constant 9.99999974E-6 : f32
      %63 = vector.broadcast %cst_31 : f32 to vector<12x1xf32>
      %64 = arith.addf %60, %63 : vector<12x1xf32>
      %65 = math.rsqrt %64 : vector<12x1xf32>
      %66 = vector.broadcast %65 : vector<12x1xf32> to vector<12x896xf32>
      %67 = arith.mulf %62, %66 : vector<12x896xf32>
      %68 = vector.broadcast %48 : vector<12x1xf32> to vector<12x896xf32>
      %69 = arith.mulf %67, %68 : vector<12x896xf32>
      %70 = vector.broadcast %49 : vector<12x1xf32> to vector<12x896xf32>
      %71 = arith.addf %69, %70 : vector<12x896xf32>
      %cst_32 = arith.constant 0.000000e+00 : f32
      %72 = vector.broadcast %cst_32 : f32 to vector<12x896xf32>
      %73 = arith.maximumf %71, %72 : vector<12x896xf32>
      %cst_33 = arith.constant 6.000000e+00 : f32
      %74 = vector.broadcast %cst_33 : f32 to vector<12x896xf32>
      %75 = arith.minimumf %73, %74 : vector<12x896xf32>
      %76 = vector.broadcast %1 : vector<1x896xf32> to vector<12x896xf32>
      %77 = arith.mulf %75, %76 : vector<12x896xf32>
      %c0_34 = arith.constant 0 : index
      %c128 = arith.constant 128 : index
      %78 = vector.load %arg16[%c0_34, %c128] : memref<24x1152xf32, #tpu.memory_space<vmem>>, vector<12x896xf32>
      tpu.vector_store %arg16[%c0_34, %c128], %77 {strides = array<i32>} : memref<24x1152xf32, #tpu.memory_space<vmem>>, vector<12x896xf32>,
      %79 = vector.extract_strided_slice %21 {offsets = [0, 4], sizes = [12, 1], strides = [1, 1]} : vector<12x9xf32> to vector<12x1xf32>
      %80 = vector.broadcast %79 : vector<12x1xf32> to vector<12x896xf32>
      %81 = arith.mulf %80, %77 : vector<12x896xf32>
      %82 = vector.extract_strided_slice %21 {offsets = [0, 0], sizes = [12, 1], strides = [1, 1]} : vector<12x9xf32> to vector<12x1xf32>
      %c0_35 = arith.constant 0 : index
      %c86 = arith.constant 86 : index
      %83 = vector.load %arg16[%c0_35, %c86] : memref<24x1152xf32, #tpu.memory_space<vmem>>, vector<12x896xf32>
      %84 = vector.broadcast %82 : vector<12x1xf32> to vector<12x896xf32>
      %85 = arith.mulf %84, %83 : vector<12x896xf32>
      %86 = arith.addf %81, %85 : vector<12x896xf32>
      %87 = vector.extract_strided_slice %21 {offsets = [0, 1], sizes = [12, 1], strides = [1, 1]} : vector<12x9xf32> to vector<12x1xf32>
      %c0_36 = arith.constant 0 : index
      %c88 = arith.constant 88 : index
      %88 = vector.load %arg16[%c0_36, %c88] : memref<24x1152xf32, #tpu.memory_space<vmem>>, vector<12x896xf32>
      %89 = vector.broadcast %87 : vector<12x1xf32> to vector<12x896xf32>
      %90 = arith.mulf %89, %88 : vector<12x896xf32>
      %91 = arith.addf %86, %90 : vector<12x896xf32>
      %92 = vector.extract_strided_slice %21 {offsets = [0, 2], sizes = [12, 1], strides = [1, 1]} : vector<12x9xf32> to vector<12x1xf32>
      %c0_37 = arith.constant 0 : index
      %c90 = arith.constant 90 : index
      %93 = vector.load %arg16[%c0_37, %c90] : memref<24x1152xf32, #tpu.memory_space<vmem>>, vector<12x896xf32>
      %94 = vector.broadcast %92 : vector<12x1xf32> to vector<12x896xf32>
      %95 = arith.mulf %94, %93 : vector<12x896xf32>
      %96 = arith.addf %91, %95 : vector<12x896xf32>
      %97 = vector.extract_strided_slice %21 {offsets = [0, 3], sizes = [12, 1], strides = [1, 1]} : vector<12x9xf32> to vector<12x1xf32>
      %c0_38 = arith.constant 0 : index
      %c126 = arith.constant 126 : index
      %98 = vector.load %arg16[%c0_38, %c126] : memref<24x1152xf32, #tpu.memory_space<vmem>>, vector<12x896xf32>
      %99 = vector.broadcast %97 : vector<12x1xf32> to vector<12x896xf32>
      %100 = arith.mulf %99, %98 : vector<12x896xf32>
      %101 = arith.addf %96, %100 : vector<12x896xf32>
      %102 = vector.extract_strided_slice %21 {offsets = [0, 5], sizes = [12, 1], strides = [1, 1]} : vector<12x9xf32> to vector<12x1xf32>
      %c0_39 = arith.constant 0 : index
      %c130 = arith.constant 130 : index
      %103 = vector.load %arg16[%c0_39, %c130] : memref<24x1152xf32, #tpu.memory_space<vmem>>, vector<12x896xf32>
      %104 = vector.broadcast %102 : vector<12x1xf32> to vector<12x896xf32>
      %105 = arith.mulf %104, %103 : vector<12x896xf32>
      %106 = arith.addf %101, %105 : vector<12x896xf32>
      %107 = vector.extract_strided_slice %21 {offsets = [0, 6], sizes = [12, 1], strides = [1, 1]} : vector<12x9xf32> to vector<12x1xf32>
      %c0_40 = arith.constant 0 : index
      %c166 = arith.constant 166 : index
      %108 = vector.load %arg16[%c0_40, %c166] : memref<24x1152xf32, #tpu.memory_space<vmem>>, vector<12x896xf32>
      %109 = vector.broadcast %107 : vector<12x1xf32> to vector<12x896xf32>
      %110 = arith.mulf %109, %108 : vector<12x896xf32>
      %111 = arith.addf %106, %110 : vector<12x896xf32>
      %112 = vector.extract_strided_slice %21 {offsets = [0, 7], sizes = [12, 1], strides = [1, 1]} : vector<12x9xf32> to vector<12x1xf32>
      %c0_41 = arith.constant 0 : index
      %c168 = arith.constant 168 : index
      %113 = vector.load %arg16[%c0_41, %c168] : memref<24x1152xf32, #tpu.memory_space<vmem>>, vector<12x896xf32>
      %114 = vector.broadcast %112 : vector<12x1xf32> to vector<12x896xf32>
      %115 = arith.mulf %114, %113 : vector<12x896xf32>
      %116 = arith.addf %111, %115 : vector<12x896xf32>
      %117 = vector.extract_strided_slice %21 {offsets = [0, 8], sizes = [12, 1], strides = [1, 1]} : vector<12x9xf32> to vector<12x1xf32>
      %c0_42 = arith.constant 0 : index
      %c170 = arith.constant 170 : index
      %118 = vector.load %arg16[%c0_42, %c170] : memref<24x1152xf32, #tpu.memory_space<vmem>>, vector<12x896xf32>
      %119 = vector.broadcast %117 : vector<12x1xf32> to vector<12x896xf32>
      %120 = arith.mulf %119, %118 : vector<12x896xf32>
      %121 = arith.addf %116, %120 : vector<12x896xf32>
      %122 = vector.broadcast %1 : vector<1x896xf32> to vector<12x896xf32>
      %123 = arith.mulf %121, %122 : vector<12x896xf32>
      %124 = vector.extract_strided_slice %22 {offsets = [0, 0], sizes = [12, 1], strides = [1, 1]} : vector<12x2xf32> to vector<12x1xf32>
      %125 = vector.extract_strided_slice %22 {offsets = [0, 1], sizes = [12, 1], strides = [1, 1]} : vector<12x2xf32> to vector<12x1xf32>
      %cst_43 = arith.constant dense<0.000000e+00> : vector<12xf32>
      %126 = vector.multi_reduction <add>, %123, %cst_43 [1] : vector<12x896xf32> to vector<12xf32>
      %127 = vector.shape_cast %126 : vector<12xf32> to vector<12x1xf32>
      %128 = arith.mulf %123, %123 : vector<12x896xf32>
      %cst_44 = arith.constant dense<0.000000e+00> : vector<12xf32>
      %129 = vector.multi_reduction <add>, %128, %cst_44 [1] : vector<12x896xf32> to vector<12xf32>
      %130 = vector.shape_cast %129 : vector<12xf32> to vector<12x1xf32>
      %cst_45 = arith.constant 0.001953125 : f32
      %131 = vector.broadcast %cst_45 : f32 to vector<12x1xf32>
      %132 = arith.mulf %127, %131 : vector<12x1xf32>
      %cst_46 = arith.constant 0.001953125 : f32
      %133 = vector.broadcast %cst_46 : f32 to vector<12x1xf32>
      %134 = arith.mulf %130, %133 : vector<12x1xf32>
      %135 = arith.mulf %132, %132 : vector<12x1xf32>
      %136 = arith.subf %134, %135 : vector<12x1xf32>
      %137 = vector.broadcast %132 : vector<12x1xf32> to vector<12x896xf32>
      %138 = arith.subf %123, %137 : vector<12x896xf32>
      %cst_47 = arith.constant 9.99999974E-6 : f32
      %139 = vector.broadcast %cst_47 : f32 to vector<12x1xf32>
      %140 = arith.addf %136, %139 : vector<12x1xf32>
      %141 = math.rsqrt %140 : vector<12x1xf32>
      %142 = vector.broadcast %141 : vector<12x1xf32> to vector<12x896xf32>
      %143 = arith.mulf %138, %142 : vector<12x896xf32>
      %144 = vector.broadcast %124 : vector<12x1xf32> to vector<12x896xf32>
      %145 = arith.mulf %143, %144 : vector<12x896xf32>
      %146 = vector.broadcast %125 : vector<12x1xf32> to vector<12x896xf32>
      %147 = arith.addf %145, %146 : vector<12x896xf32>
      %cst_48 = arith.constant 0.000000e+00 : f32
      %148 = vector.broadcast %cst_48 : f32 to vector<12x896xf32>
      %149 = arith.maximumf %147, %148 : vector<12x896xf32>
      %cst_49 = arith.constant 6.000000e+00 : f32
      %150 = vector.broadcast %cst_49 : f32 to vector<12x896xf32>
      %151 = arith.minimumf %149, %150 : vector<12x896xf32>
      %152 = vector.broadcast %1 : vector<1x896xf32> to vector<12x896xf32>
      %153 = arith.mulf %151, %152 : vector<12x896xf32>
      %154 = vector.extract_strided_slice %23 {offsets = [0, 0], sizes = [4, 1], strides = [1, 1]} : vector<4x12xf32> to vector<4x1xf32>
      %155 = vector.extract_strided_slice %153 {offsets = [0, 0], sizes = [1, 896], strides = [1, 1]} : vector<12x896xf32> to vector<1x896xf32>
      %156 = vector.broadcast %154 : vector<4x1xf32> to vector<4x896xf32>
      %157 = vector.broadcast %155 : vector<1x896xf32> to vector<4x896xf32>
      %158 = arith.mulf %156, %157 : vector<4x896xf32>
      %159 = vector.extract_strided_slice %23 {offsets = [0, 1], sizes = [4, 1], strides = [1, 1]} : vector<4x12xf32> to vector<4x1xf32>
      %160 = vector.extract_strided_slice %153 {offsets = [1, 0], sizes = [1, 896], strides = [1, 1]} : vector<12x896xf32> to vector<1x896xf32>
      %161 = vector.broadcast %159 : vector<4x1xf32> to vector<4x896xf32>
      %162 = vector.broadcast %160 : vector<1x896xf32> to vector<4x896xf32>
      %163 = arith.mulf %161, %162 : vector<4x896xf32>
      %164 = arith.addf %158, %163 : vector<4x896xf32>
      %165 = vector.extract_strided_slice %23 {offsets = [0, 2], sizes = [4, 1], strides = [1, 1]} : vector<4x12xf32> to vector<4x1xf32>
      %166 = vector.extract_strided_slice %153 {offsets = [2, 0], sizes = [1, 896], strides = [1, 1]} : vector<12x896xf32> to vector<1x896xf32>
      %167 = vector.broadcast %165 : vector<4x1xf32> to vector<4x896xf32>
      %168 = vector.broadcast %166 : vector<1x896xf32> to vector<4x896xf32>
      %169 = arith.mulf %167, %168 : vector<4x896xf32>
      %170 = arith.addf %164, %169 : vector<4x896xf32>
      %171 = vector.extract_strided_slice %23 {offsets = [0, 3], sizes = [4, 1], strides = [1, 1]} : vector<4x12xf32> to vector<4x1xf32>
      %172 = vector.extract_strided_slice %153 {offsets = [3, 0], sizes = [1, 896], strides = [1, 1]} : vector<12x896xf32> to vector<1x896xf32>
      %173 = vector.broadcast %171 : vector<4x1xf32> to vector<4x896xf32>
      %174 = vector.broadcast %172 : vector<1x896xf32> to vector<4x896xf32>
      %175 = arith.mulf %173, %174 : vector<4x896xf32>
      %176 = arith.addf %170, %175 : vector<4x896xf32>
      %177 = vector.extract_strided_slice %23 {offsets = [0, 4], sizes = [4, 1], strides = [1, 1]} : vector<4x12xf32> to vector<4x1xf32>
      %178 = vector.extract_strided_slice %153 {offsets = [4, 0], sizes = [1, 896], strides = [1, 1]} : vector<12x896xf32> to vector<1x896xf32>
      %179 = vector.broadcast %177 : vector<4x1xf32> to vector<4x896xf32>
      %180 = vector.broadcast %178 : vector<1x896xf32> to vector<4x896xf32>
      %181 = arith.mulf %179, %180 : vector<4x896xf32>
      %182 = arith.addf %176, %181 : vector<4x896xf32>
      %183 = vector.extract_strided_slice %23 {offsets = [0, 5], sizes = [4, 1], strides = [1, 1]} : vector<4x12xf32> to vector<4x1xf32>
      %184 = vector.extract_strided_slice %153 {offsets = [5, 0], sizes = [1, 896], strides = [1, 1]} : vector<12x896xf32> to vector<1x896xf32>
      %185 = vector.broadcast %183 : vector<4x1xf32> to vector<4x896xf32>
      %186 = vector.broadcast %184 : vector<1x896xf32> to vector<4x896xf32>
      %187 = arith.mulf %185, %186 : vector<4x896xf32>
      %188 = arith.addf %182, %187 : vector<4x896xf32>
      %189 = vector.extract_strided_slice %23 {offsets = [0, 6], sizes = [4, 1], strides = [1, 1]} : vector<4x12xf32> to vector<4x1xf32>
      %190 = vector.extract_strided_slice %153 {offsets = [6, 0], sizes = [1, 896], strides = [1, 1]} : vector<12x896xf32> to vector<1x896xf32>
      %191 = vector.broadcast %189 : vector<4x1xf32> to vector<4x896xf32>
      %192 = vector.broadcast %190 : vector<1x896xf32> to vector<4x896xf32>
      %193 = arith.mulf %191, %192 : vector<4x896xf32>
      %194 = arith.addf %188, %193 : vector<4x896xf32>
      %195 = vector.extract_strided_slice %23 {offsets = [0, 7], sizes = [4, 1], strides = [1, 1]} : vector<4x12xf32> to vector<4x1xf32>
      %196 = vector.extract_strided_slice %153 {offsets = [7, 0], sizes = [1, 896], strides = [1, 1]} : vector<12x896xf32> to vector<1x896xf32>
      %197 = vector.broadcast %195 : vector<4x1xf32> to vector<4x896xf32>
      %198 = vector.broadcast %196 : vector<1x896xf32> to vector<4x896xf32>
      %199 = arith.mulf %197, %198 : vector<4x896xf32>
      %200 = arith.addf %194, %199 : vector<4x896xf32>
      %201 = vector.extract_strided_slice %23 {offsets = [0, 8], sizes = [4, 1], strides = [1, 1]} : vector<4x12xf32> to vector<4x1xf32>
      %202 = vector.extract_strided_slice %153 {offsets = [8, 0], sizes = [1, 896], strides = [1, 1]} : vector<12x896xf32> to vector<1x896xf32>
      %203 = vector.broadcast %201 : vector<4x1xf32> to vector<4x896xf32>
      %204 = vector.broadcast %202 : vector<1x896xf32> to vector<4x896xf32>
      %205 = arith.mulf %203, %204 : vector<4x896xf32>
      %206 = arith.addf %200, %205 : vector<4x896xf32>
      %207 = vector.extract_strided_slice %23 {offsets = [0, 9], sizes = [4, 1], strides = [1, 1]} : vector<4x12xf32> to vector<4x1xf32>
      %208 = vector.extract_strided_slice %153 {offsets = [9, 0], sizes = [1, 896], strides = [1, 1]} : vector<12x896xf32> to vector<1x896xf32>
      %209 = vector.broadcast %207 : vector<4x1xf32> to vector<4x896xf32>
      %210 = vector.broadcast %208 : vector<1x896xf32> to vector<4x896xf32>
      %211 = arith.mulf %209, %210 : vector<4x896xf32>
      %212 = arith.addf %206, %211 : vector<4x896xf32>
      %213 = vector.extract_strided_slice %23 {offsets = [0, 10], sizes = [4, 1], strides = [1, 1]} : vector<4x12xf32> to vector<4x1xf32>
      %214 = vector.extract_strided_slice %153 {offsets = [10, 0], sizes = [1, 896], strides = [1, 1]} : vector<12x896xf32> to vector<1x896xf32>
      %215 = vector.broadcast %213 : vector<4x1xf32> to vector<4x896xf32>
      %216 = vector.broadcast %214 : vector<1x896xf32> to vector<4x896xf32>
      %217 = arith.mulf %215, %216 : vector<4x896xf32>
      %218 = arith.addf %212, %217 : vector<4x896xf32>
      %219 = vector.extract_strided_slice %23 {offsets = [0, 11], sizes = [4, 1], strides = [1, 1]} : vector<4x12xf32> to vector<4x1xf32>
      %220 = vector.extract_strided_slice %153 {offsets = [11, 0], sizes = [1, 896], strides = [1, 1]} : vector<12x896xf32> to vector<1x896xf32>
      %221 = vector.broadcast %219 : vector<4x1xf32> to vector<4x896xf32>
      %222 = vector.broadcast %220 : vector<1x896xf32> to vector<4x896xf32>
      %223 = arith.mulf %221, %222 : vector<4x896xf32>
      %224 = arith.addf %218, %223 : vector<4x896xf32>
      %225 = vector.extract_strided_slice %24 {offsets = [0, 0], sizes = [4, 1], strides = [1, 1]} : vector<4x2xf32> to vector<4x1xf32>
      %226 = vector.extract_strided_slice %24 {offsets = [0, 1], sizes = [4, 1], strides = [1, 1]} : vector<4x2xf32> to vector<4x1xf32>
      %227 = vector.broadcast %3 : f32 to vector<4x1xf32>
      %228 = arith.mulf %225, %227 : vector<4x1xf32>
      %229 = vector.broadcast %3 : f32 to vector<4x1xf32>
      %230 = arith.mulf %226, %229 : vector<4x1xf32>
      %cst_50 = arith.constant dense<0.000000e+00> : vector<4xf32>
      %231 = vector.multi_reduction <add>, %224, %cst_50 [1] : vector<4x896xf32> to vector<4xf32>
      %232 = vector.shape_cast %231 : vector<4xf32> to vector<4x1xf32>
      %233 = arith.mulf %224, %224 : vector<4x896xf32>
      %cst_51 = arith.constant dense<0.000000e+00> : vector<4xf32>
      %234 = vector.multi_reduction <add>, %233, %cst_51 [1] : vector<4x896xf32> to vector<4xf32>
      %235 = vector.shape_cast %234 : vector<4xf32> to vector<4x1xf32>
      %cst_52 = arith.constant 0.001953125 : f32
      %236 = vector.broadcast %cst_52 : f32 to vector<4x1xf32>
      %237 = arith.mulf %232, %236 : vector<4x1xf32>
      %cst_53 = arith.constant 0.001953125 : f32
      %238 = vector.broadcast %cst_53 : f32 to vector<4x1xf32>
      %239 = arith.mulf %235, %238 : vector<4x1xf32>
      %240 = arith.mulf %237, %237 : vector<4x1xf32>
      %241 = arith.subf %239, %240 : vector<4x1xf32>
      %242 = vector.broadcast %237 : vector<4x1xf32> to vector<4x896xf32>
      %243 = arith.subf %224, %242 : vector<4x896xf32>
      %cst_54 = arith.constant 9.99999974E-6 : f32
      %244 = vector.broadcast %cst_54 : f32 to vector<4x1xf32>
      %245 = arith.addf %241, %244 : vector<4x1xf32>
      %246 = math.rsqrt %245 : vector<4x1xf32>
      %247 = vector.broadcast %246 : vector<4x1xf32> to vector<4x896xf32>
      %248 = arith.mulf %243, %247 : vector<4x896xf32>
      %249 = vector.broadcast %228 : vector<4x1xf32> to vector<4x896xf32>
      %250 = arith.mulf %248, %249 : vector<4x896xf32>
      %251 = vector.broadcast %230 : vector<4x1xf32> to vector<4x896xf32>
      %252 = arith.addf %250, %251 : vector<4x896xf32>
      %c0_55 = arith.constant 0 : index
      %c0_56 = arith.constant 0 : index
      %253 = vector.load %arg15[%c0_55, %c0_56] : memref<4x896xf32, #tpu.memory_space<vmem>>, vector<4x896xf32>
      %254 = arith.addf %253, %252 : vector<4x896xf32>
      %c0_57 = arith.constant 0 : index
      %c0_58 = arith.constant 0 : index
      %255 = vector.load %arg15[%c0_57, %c0_58] : memref<4x896xf32, #tpu.memory_space<vmem>>, vector<4x896xf32>
      tpu.vector_store %arg15[%c0_57, %c0_58], %254 {strides = array<i32>} : memref<4x896xf32, #tpu.memory_space<vmem>>, vector<4x896xf32>,
    } else {
    }
    %cst_13 = arith.constant 0.000000e+00 : f32
    %16 = arith.cmpf one, %4, %cst_13 : f32
    %17 = arith.extui %16 : i1 to i32
    %c0_i32_14 = arith.constant 0 : i32
    %18 = arith.cmpi ne, %17, %c0_i32_14 : i32
    scf.if %18 {
      %c0_15 = arith.constant 0 : index
      %c0_16 = arith.constant 0 : index
      %19 = vector.load %arg9[%c0_15, %c0_16] : memref<24x4xf32, #tpu.memory_space<vmem>>, vector<24x4xf32>
      %c0_17 = arith.constant 0 : index
      %c0_18 = arith.constant 0 : index
      %20 = vector.load %arg10[%c0_17, %c0_18] : memref<24x2xf32, #tpu.memory_space<vmem>>, vector<24x2xf32>
      %c0_19 = arith.constant 0 : index
      %c0_20 = arith.constant 0 : index
      %21 = vector.load %arg11[%c0_19, %c0_20] : memref<24x25xf32, #tpu.memory_space<vmem>>, vector<24x25xf32>
      %c0_21 = arith.constant 0 : index
      %c0_22 = arith.constant 0 : index
      %22 = vector.load %arg12[%c0_21, %c0_22] : memref<24x2xf32, #tpu.memory_space<vmem>>, vector<24x2xf32>
      %c0_23 = arith.constant 0 : index
      %c0_24 = arith.constant 0 : index
      %23 = vector.load %arg13[%c0_23, %c0_24] : memref<4x24xf32, #tpu.memory_space<vmem>>, vector<4x24xf32>
      %c0_25 = arith.constant 0 : index
      %c0_26 = arith.constant 0 : index
      %24 = vector.load %arg14[%c0_25, %c0_26] : memref<4x2xf32, #tpu.memory_space<vmem>>, vector<4x2xf32>
      %25 = vector.extract_strided_slice %19 {offsets = [0, 0], sizes = [24, 1], strides = [1, 1]} : vector<24x4xf32> to vector<24x1xf32>
      %26 = vector.extract_strided_slice %0 {offsets = [0, 0], sizes = [1, 896], strides = [1, 1]} : vector<4x896xf32> to vector<1x896xf32>
      %27 = vector.broadcast %25 : vector<24x1xf32> to vector<24x896xf32>
      %28 = vector.broadcast %26 : vector<1x896xf32> to vector<24x896xf32>
      %29 = arith.mulf %27, %28 : vector<24x896xf32>
      %30 = vector.extract_strided_slice %19 {offsets = [0, 1], sizes = [24, 1], strides = [1, 1]} : vector<24x4xf32> to vector<24x1xf32>
      %31 = vector.extract_strided_slice %0 {offsets = [1, 0], sizes = [1, 896], strides = [1, 1]} : vector<4x896xf32> to vector<1x896xf32>
      %32 = vector.broadcast %30 : vector<24x1xf32> to vector<24x896xf32>
      %33 = vector.broadcast %31 : vector<1x896xf32> to vector<24x896xf32>
      %34 = arith.mulf %32, %33 : vector<24x896xf32>
      %35 = arith.addf %29, %34 : vector<24x896xf32>
      %36 = vector.extract_strided_slice %19 {offsets = [0, 2], sizes = [24, 1], strides = [1, 1]} : vector<24x4xf32> to vector<24x1xf32>
      %37 = vector.extract_strided_slice %0 {offsets = [2, 0], sizes = [1, 896], strides = [1, 1]} : vector<4x896xf32> to vector<1x896xf32>
      %38 = vector.broadcast %36 : vector<24x1xf32> to vector<24x896xf32>
      %39 = vector.broadcast %37 : vector<1x896xf32> to vector<24x896xf32>
      %40 = arith.mulf %38, %39 : vector<24x896xf32>
      %41 = arith.addf %35, %40 : vector<24x896xf32>
      %42 = vector.extract_strided_slice %19 {offsets = [0, 3], sizes = [24, 1], strides = [1, 1]} : vector<24x4xf32> to vector<24x1xf32>
      %43 = vector.extract_strided_slice %0 {offsets = [3, 0], sizes = [1, 896], strides = [1, 1]} : vector<4x896xf32> to vector<1x896xf32>
      %44 = vector.broadcast %42 : vector<24x1xf32> to vector<24x896xf32>
      %45 = vector.broadcast %43 : vector<1x896xf32> to vector<24x896xf32>
      %46 = arith.mulf %44, %45 : vector<24x896xf32>
      %47 = arith.addf %41, %46 : vector<24x896xf32>
      %48 = vector.extract_strided_slice %20 {offsets = [0, 0], sizes = [24, 1], strides = [1, 1]} : vector<24x2xf32> to vector<24x1xf32>
      %49 = vector.extract_strided_slice %20 {offsets = [0, 1], sizes = [24, 1], strides = [1, 1]} : vector<24x2xf32> to vector<24x1xf32>
      %cst_27 = arith.constant dense<0.000000e+00> : vector<24xf32>
      %50 = vector.multi_reduction <add>, %47, %cst_27 [1] : vector<24x896xf32> to vector<24xf32>
      %51 = vector.shape_cast %50 : vector<24xf32> to vector<24x1xf32>
      %52 = arith.mulf %47, %47 : vector<24x896xf32>
      %cst_28 = arith.constant dense<0.000000e+00> : vector<24xf32>
      %53 = vector.multi_reduction <add>, %52, %cst_28 [1] : vector<24x896xf32> to vector<24xf32>
      %54 = vector.shape_cast %53 : vector<24xf32> to vector<24x1xf32>
      %cst_29 = arith.constant 0.001953125 : f32
      %55 = vector.broadcast %cst_29 : f32 to vector<24x1xf32>
      %56 = arith.mulf %51, %55 : vector<24x1xf32>
      %cst_30 = arith.constant 0.001953125 : f32
      %57 = vector.broadcast %cst_30 : f32 to vector<24x1xf32>
      %58 = arith.mulf %54, %57 : vector<24x1xf32>
      %59 = arith.mulf %56, %56 : vector<24x1xf32>
      %60 = arith.subf %58, %59 : vector<24x1xf32>
      %61 = vector.broadcast %56 : vector<24x1xf32> to vector<24x896xf32>
      %62 = arith.subf %47, %61 : vector<24x896xf32>
      %cst_31 = arith.constant 9.99999974E-6 : f32
      %63 = vector.broadcast %cst_31 : f32 to vector<24x1xf32>
      %64 = arith.addf %60, %63 : vector<24x1xf32>
      %65 = math.rsqrt %64 : vector<24x1xf32>
      %66 = vector.broadcast %65 : vector<24x1xf32> to vector<24x896xf32>
      %67 = arith.mulf %62, %66 : vector<24x896xf32>
      %68 = vector.broadcast %48 : vector<24x1xf32> to vector<24x896xf32>
      %69 = arith.mulf %67, %68 : vector<24x896xf32>
      %70 = vector.broadcast %49 : vector<24x1xf32> to vector<24x896xf32>
      %71 = arith.addf %69, %70 : vector<24x896xf32>
      %cst_32 = arith.constant 0.000000e+00 : f32
      %72 = vector.broadcast %cst_32 : f32 to vector<24x896xf32>
      %73 = arith.maximumf %71, %72 : vector<24x896xf32>
      %cst_33 = arith.constant 6.000000e+00 : f32
      %74 = vector.broadcast %cst_33 : f32 to vector<24x896xf32>
      %75 = arith.minimumf %73, %74 : vector<24x896xf32>
      %76 = vector.broadcast %1 : vector<1x896xf32> to vector<24x896xf32>
      %77 = arith.mulf %75, %76 : vector<24x896xf32>
      %c0_34 = arith.constant 0 : index
      %c128 = arith.constant 128 : index
      %78 = vector.load %arg16[%c0_34, %c128] : memref<24x1152xf32, #tpu.memory_space<vmem>>, vector<24x896xf32>
      tpu.vector_store %arg16[%c0_34, %c128], %77 {strides = array<i32>} : memref<24x1152xf32, #tpu.memory_space<vmem>>, vector<24x896xf32>,
      %79 = vector.extract_strided_slice %21 {offsets = [0, 12], sizes = [24, 1], strides = [1, 1]} : vector<24x25xf32> to vector<24x1xf32>
      %80 = vector.broadcast %79 : vector<24x1xf32> to vector<24x896xf32>
      %81 = arith.mulf %80, %77 : vector<24x896xf32>
      %82 = vector.extract_strided_slice %21 {offsets = [0, 0], sizes = [24, 1], strides = [1, 1]} : vector<24x25xf32> to vector<24x1xf32>
      %c0_35 = arith.constant 0 : index
      %c44 = arith.constant 44 : index
      %83 = vector.load %arg16[%c0_35, %c44] : memref<24x1152xf32, #tpu.memory_space<vmem>>, vector<24x896xf32>
      %84 = vector.broadcast %82 : vector<24x1xf32> to vector<24x896xf32>
      %85 = arith.mulf %84, %83 : vector<24x896xf32>
      %86 = arith.addf %81, %85 : vector<24x896xf32>
      %87 = vector.extract_strided_slice %21 {offsets = [0, 1], sizes = [24, 1], strides = [1, 1]} : vector<24x25xf32> to vector<24x1xf32>
      %c0_36 = arith.constant 0 : index
      %c46 = arith.constant 46 : index
      %88 = vector.load %arg16[%c0_36, %c46] : memref<24x1152xf32, #tpu.memory_space<vmem>>, vector<24x896xf32>
      %89 = vector.broadcast %87 : vector<24x1xf32> to vector<24x896xf32>
      %90 = arith.mulf %89, %88 : vector<24x896xf32>
      %91 = arith.addf %86, %90 : vector<24x896xf32>
      %92 = vector.extract_strided_slice %21 {offsets = [0, 2], sizes = [24, 1], strides = [1, 1]} : vector<24x25xf32> to vector<24x1xf32>
      %c0_37 = arith.constant 0 : index
      %c48 = arith.constant 48 : index
      %93 = vector.load %arg16[%c0_37, %c48] : memref<24x1152xf32, #tpu.memory_space<vmem>>, vector<24x896xf32>
      %94 = vector.broadcast %92 : vector<24x1xf32> to vector<24x896xf32>
      %95 = arith.mulf %94, %93 : vector<24x896xf32>
      %96 = arith.addf %91, %95 : vector<24x896xf32>
      %97 = vector.extract_strided_slice %21 {offsets = [0, 3], sizes = [24, 1], strides = [1, 1]} : vector<24x25xf32> to vector<24x1xf32>
      %c0_38 = arith.constant 0 : index
      %c50 = arith.constant 50 : index
      %98 = vector.load %arg16[%c0_38, %c50] : memref<24x1152xf32, #tpu.memory_space<vmem>>, vector<24x896xf32>
      %99 = vector.broadcast %97 : vector<24x1xf32> to vector<24x896xf32>
      %100 = arith.mulf %99, %98 : vector<24x896xf32>
      %101 = arith.addf %96, %100 : vector<24x896xf32>
      %102 = vector.extract_strided_slice %21 {offsets = [0, 4], sizes = [24, 1], strides = [1, 1]} : vector<24x25xf32> to vector<24x1xf32>
      %c0_39 = arith.constant 0 : index
      %c52 = arith.constant 52 : index
      %103 = vector.load %arg16[%c0_39, %c52] : memref<24x1152xf32, #tpu.memory_space<vmem>>, vector<24x896xf32>
      %104 = vector.broadcast %102 : vector<24x1xf32> to vector<24x896xf32>
      %105 = arith.mulf %104, %103 : vector<24x896xf32>
      %106 = arith.addf %101, %105 : vector<24x896xf32>
      %107 = vector.extract_strided_slice %21 {offsets = [0, 5], sizes = [24, 1], strides = [1, 1]} : vector<24x25xf32> to vector<24x1xf32>
      %c0_40 = arith.constant 0 : index
      %c84 = arith.constant 84 : index
      %108 = vector.load %arg16[%c0_40, %c84] : memref<24x1152xf32, #tpu.memory_space<vmem>>, vector<24x896xf32>
      %109 = vector.broadcast %107 : vector<24x1xf32> to vector<24x896xf32>
      %110 = arith.mulf %109, %108 : vector<24x896xf32>
      %111 = arith.addf %106, %110 : vector<24x896xf32>
      %112 = vector.extract_strided_slice %21 {offsets = [0, 6], sizes = [24, 1], strides = [1, 1]} : vector<24x25xf32> to vector<24x1xf32>
      %c0_41 = arith.constant 0 : index
      %c86 = arith.constant 86 : index
      %113 = vector.load %arg16[%c0_41, %c86] : memref<24x1152xf32, #tpu.memory_space<vmem>>, vector<24x896xf32>
      %114 = vector.broadcast %112 : vector<24x1xf32> to vector<24x896xf32>
      %115 = arith.mulf %114, %113 : vector<24x896xf32>
      %116 = arith.addf %111, %115 : vector<24x896xf32>
      %117 = vector.extract_strided_slice %21 {offsets = [0, 7], sizes = [24, 1], strides = [1, 1]} : vector<24x25xf32> to vector<24x1xf32>
      %c0_42 = arith.constant 0 : index
      %c88 = arith.constant 88 : index
      %118 = vector.load %arg16[%c0_42, %c88] : memref<24x1152xf32, #tpu.memory_space<vmem>>, vector<24x896xf32>
      %119 = vector.broadcast %117 : vector<24x1xf32> to vector<24x896xf32>
      %120 = arith.mulf %119, %118 : vector<24x896xf32>
      %121 = arith.addf %116, %120 : vector<24x896xf32>
      %122 = vector.extract_strided_slice %21 {offsets = [0, 8], sizes = [24, 1], strides = [1, 1]} : vector<24x25xf32> to vector<24x1xf32>
      %c0_43 = arith.constant 0 : index
      %c90 = arith.constant 90 : index
      %123 = vector.load %arg16[%c0_43, %c90] : memref<24x1152xf32, #tpu.memory_space<vmem>>, vector<24x896xf32>
      %124 = vector.broadcast %122 : vector<24x1xf32> to vector<24x896xf32>
      %125 = arith.mulf %124, %123 : vector<24x896xf32>
      %126 = arith.addf %121, %125 : vector<24x896xf32>
      %127 = vector.extract_strided_slice %21 {offsets = [0, 9], sizes = [24, 1], strides = [1, 1]} : vector<24x25xf32> to vector<24x1xf32>
      %c0_44 = arith.constant 0 : index
      %c92 = arith.constant 92 : index
      %128 = vector.load %arg16[%c0_44, %c92] : memref<24x1152xf32, #tpu.memory_space<vmem>>, vector<24x896xf32>
      %129 = vector.broadcast %127 : vector<24x1xf32> to vector<24x896xf32>
      %130 = arith.mulf %129, %128 : vector<24x896xf32>
      %131 = arith.addf %126, %130 : vector<24x896xf32>
      %132 = vector.extract_strided_slice %21 {offsets = [0, 10], sizes = [24, 1], strides = [1, 1]} : vector<24x25xf32> to vector<24x1xf32>
      %c0_45 = arith.constant 0 : index
      %c124 = arith.constant 124 : index
      %133 = vector.load %arg16[%c0_45, %c124] : memref<24x1152xf32, #tpu.memory_space<vmem>>, vector<24x896xf32>
      %134 = vector.broadcast %132 : vector<24x1xf32> to vector<24x896xf32>
      %135 = arith.mulf %134, %133 : vector<24x896xf32>
      %136 = arith.addf %131, %135 : vector<24x896xf32>
      %137 = vector.extract_strided_slice %21 {offsets = [0, 11], sizes = [24, 1], strides = [1, 1]} : vector<24x25xf32> to vector<24x1xf32>
      %c0_46 = arith.constant 0 : index
      %c126 = arith.constant 126 : index
      %138 = vector.load %arg16[%c0_46, %c126] : memref<24x1152xf32, #tpu.memory_space<vmem>>, vector<24x896xf32>
      %139 = vector.broadcast %137 : vector<24x1xf32> to vector<24x896xf32>
      %140 = arith.mulf %139, %138 : vector<24x896xf32>
      %141 = arith.addf %136, %140 : vector<24x896xf32>
      %142 = vector.extract_strided_slice %21 {offsets = [0, 13], sizes = [24, 1], strides = [1, 1]} : vector<24x25xf32> to vector<24x1xf32>
      %c0_47 = arith.constant 0 : index
      %c130 = arith.constant 130 : index
      %143 = vector.load %arg16[%c0_47, %c130] : memref<24x1152xf32, #tpu.memory_space<vmem>>, vector<24x896xf32>
      %144 = vector.broadcast %142 : vector<24x1xf32> to vector<24x896xf32>
      %145 = arith.mulf %144, %143 : vector<24x896xf32>
      %146 = arith.addf %141, %145 : vector<24x896xf32>
      %147 = vector.extract_strided_slice %21 {offsets = [0, 14], sizes = [24, 1], strides = [1, 1]} : vector<24x25xf32> to vector<24x1xf32>
      %c0_48 = arith.constant 0 : index
      %c132 = arith.constant 132 : index
      %148 = vector.load %arg16[%c0_48, %c132] : memref<24x1152xf32, #tpu.memory_space<vmem>>, vector<24x896xf32>
      %149 = vector.broadcast %147 : vector<24x1xf32> to vector<24x896xf32>
      %150 = arith.mulf %149, %148 : vector<24x896xf32>
      %151 = arith.addf %146, %150 : vector<24x896xf32>
      %152 = vector.extract_strided_slice %21 {offsets = [0, 15], sizes = [24, 1], strides = [1, 1]} : vector<24x25xf32> to vector<24x1xf32>
      %c0_49 = arith.constant 0 : index
      %c164 = arith.constant 164 : index
      %153 = vector.load %arg16[%c0_49, %c164] : memref<24x1152xf32, #tpu.memory_space<vmem>>, vector<24x896xf32>
      %154 = vector.broadcast %152 : vector<24x1xf32> to vector<24x896xf32>
      %155 = arith.mulf %154, %153 : vector<24x896xf32>
      %156 = arith.addf %151, %155 : vector<24x896xf32>
      %157 = vector.extract_strided_slice %21 {offsets = [0, 16], sizes = [24, 1], strides = [1, 1]} : vector<24x25xf32> to vector<24x1xf32>
      %c0_50 = arith.constant 0 : index
      %c166 = arith.constant 166 : index
      %158 = vector.load %arg16[%c0_50, %c166] : memref<24x1152xf32, #tpu.memory_space<vmem>>, vector<24x896xf32>
      %159 = vector.broadcast %157 : vector<24x1xf32> to vector<24x896xf32>
      %160 = arith.mulf %159, %158 : vector<24x896xf32>
      %161 = arith.addf %156, %160 : vector<24x896xf32>
      %162 = vector.extract_strided_slice %21 {offsets = [0, 17], sizes = [24, 1], strides = [1, 1]} : vector<24x25xf32> to vector<24x1xf32>
      %c0_51 = arith.constant 0 : index
      %c168 = arith.constant 168 : index
      %163 = vector.load %arg16[%c0_51, %c168] : memref<24x1152xf32, #tpu.memory_space<vmem>>, vector<24x896xf32>
      %164 = vector.broadcast %162 : vector<24x1xf32> to vector<24x896xf32>
      %165 = arith.mulf %164, %163 : vector<24x896xf32>
      %166 = arith.addf %161, %165 : vector<24x896xf32>
      %167 = vector.extract_strided_slice %21 {offsets = [0, 18], sizes = [24, 1], strides = [1, 1]} : vector<24x25xf32> to vector<24x1xf32>
      %c0_52 = arith.constant 0 : index
      %c170 = arith.constant 170 : index
      %168 = vector.load %arg16[%c0_52, %c170] : memref<24x1152xf32, #tpu.memory_space<vmem>>, vector<24x896xf32>
      %169 = vector.broadcast %167 : vector<24x1xf32> to vector<24x896xf32>
      %170 = arith.mulf %169, %168 : vector<24x896xf32>
      %171 = arith.addf %166, %170 : vector<24x896xf32>
      %172 = vector.extract_strided_slice %21 {offsets = [0, 19], sizes = [24, 1], strides = [1, 1]} : vector<24x25xf32> to vector<24x1xf32>
      %c0_53 = arith.constant 0 : index
      %c172 = arith.constant 172 : index
      %173 = vector.load %arg16[%c0_53, %c172] : memref<24x1152xf32, #tpu.memory_space<vmem>>, vector<24x896xf32>
      %174 = vector.broadcast %172 : vector<24x1xf32> to vector<24x896xf32>
      %175 = arith.mulf %174, %173 : vector<24x896xf32>
      %176 = arith.addf %171, %175 : vector<24x896xf32>
      %177 = vector.extract_strided_slice %21 {offsets = [0, 20], sizes = [24, 1], strides = [1, 1]} : vector<24x25xf32> to vector<24x1xf32>
      %c0_54 = arith.constant 0 : index
      %c204 = arith.constant 204 : index
      %178 = vector.load %arg16[%c0_54, %c204] : memref<24x1152xf32, #tpu.memory_space<vmem>>, vector<24x896xf32>
      %179 = vector.broadcast %177 : vector<24x1xf32> to vector<24x896xf32>
      %180 = arith.mulf %179, %178 : vector<24x896xf32>
      %181 = arith.addf %176, %180 : vector<24x896xf32>
      %182 = vector.extract_strided_slice %21 {offsets = [0, 21], sizes = [24, 1], strides = [1, 1]} : vector<24x25xf32> to vector<24x1xf32>
      %c0_55 = arith.constant 0 : index
      %c206 = arith.constant 206 : index
      %183 = vector.load %arg16[%c0_55, %c206] : memref<24x1152xf32, #tpu.memory_space<vmem>>, vector<24x896xf32>
      %184 = vector.broadcast %182 : vector<24x1xf32> to vector<24x896xf32>
      %185 = arith.mulf %184, %183 : vector<24x896xf32>
      %186 = arith.addf %181, %185 : vector<24x896xf32>
      %187 = vector.extract_strided_slice %21 {offsets = [0, 22], sizes = [24, 1], strides = [1, 1]} : vector<24x25xf32> to vector<24x1xf32>
      %c0_56 = arith.constant 0 : index
      %c208 = arith.constant 208 : index
      %188 = vector.load %arg16[%c0_56, %c208] : memref<24x1152xf32, #tpu.memory_space<vmem>>, vector<24x896xf32>
      %189 = vector.broadcast %187 : vector<24x1xf32> to vector<24x896xf32>
      %190 = arith.mulf %189, %188 : vector<24x896xf32>
      %191 = arith.addf %186, %190 : vector<24x896xf32>
      %192 = vector.extract_strided_slice %21 {offsets = [0, 23], sizes = [24, 1], strides = [1, 1]} : vector<24x25xf32> to vector<24x1xf32>
      %c0_57 = arith.constant 0 : index
      %c210 = arith.constant 210 : index
      %193 = vector.load %arg16[%c0_57, %c210] : memref<24x1152xf32, #tpu.memory_space<vmem>>, vector<24x896xf32>
      %194 = vector.broadcast %192 : vector<24x1xf32> to vector<24x896xf32>
      %195 = arith.mulf %194, %193 : vector<24x896xf32>
      %196 = arith.addf %191, %195 : vector<24x896xf32>
      %197 = vector.extract_strided_slice %21 {offsets = [0, 24], sizes = [24, 1], strides = [1, 1]} : vector<24x25xf32> to vector<24x1xf32>
      %c0_58 = arith.constant 0 : index
      %c212 = arith.constant 212 : index
      %198 = vector.load %arg16[%c0_58, %c212] : memref<24x1152xf32, #tpu.memory_space<vmem>>, vector<24x896xf32>
      %199 = vector.broadcast %197 : vector<24x1xf32> to vector<24x896xf32>
      %200 = arith.mulf %199, %198 : vector<24x896xf32>
      %201 = arith.addf %196, %200 : vector<24x896xf32>
      %202 = vector.broadcast %1 : vector<1x896xf32> to vector<24x896xf32>
      %203 = arith.mulf %201, %202 : vector<24x896xf32>
      %204 = vector.extract_strided_slice %22 {offsets = [0, 0], sizes = [24, 1], strides = [1, 1]} : vector<24x2xf32> to vector<24x1xf32>
      %205 = vector.extract_strided_slice %22 {offsets = [0, 1], sizes = [24, 1], strides = [1, 1]} : vector<24x2xf32> to vector<24x1xf32>
      %cst_59 = arith.constant dense<0.000000e+00> : vector<24xf32>
      %206 = vector.multi_reduction <add>, %203, %cst_59 [1] : vector<24x896xf32> to vector<24xf32>
      %207 = vector.shape_cast %206 : vector<24xf32> to vector<24x1xf32>
      %208 = arith.mulf %203, %203 : vector<24x896xf32>
      %cst_60 = arith.constant dense<0.000000e+00> : vector<24xf32>
      %209 = vector.multi_reduction <add>, %208, %cst_60 [1] : vector<24x896xf32> to vector<24xf32>
      %210 = vector.shape_cast %209 : vector<24xf32> to vector<24x1xf32>
      %cst_61 = arith.constant 0.001953125 : f32
      %211 = vector.broadcast %cst_61 : f32 to vector<24x1xf32>
      %212 = arith.mulf %207, %211 : vector<24x1xf32>
      %cst_62 = arith.constant 0.001953125 : f32
      %213 = vector.broadcast %cst_62 : f32 to vector<24x1xf32>
      %214 = arith.mulf %210, %213 : vector<24x1xf32>
      %215 = arith.mulf %212, %212 : vector<24x1xf32>
      %216 = arith.subf %214, %215 : vector<24x1xf32>
      %217 = vector.broadcast %212 : vector<24x1xf32> to vector<24x896xf32>
      %218 = arith.subf %203, %217 : vector<24x896xf32>
      %cst_63 = arith.constant 9.99999974E-6 : f32
      %219 = vector.broadcast %cst_63 : f32 to vector<24x1xf32>
      %220 = arith.addf %216, %219 : vector<24x1xf32>
      %221 = math.rsqrt %220 : vector<24x1xf32>
      %222 = vector.broadcast %221 : vector<24x1xf32> to vector<24x896xf32>
      %223 = arith.mulf %218, %222 : vector<24x896xf32>
      %224 = vector.broadcast %204 : vector<24x1xf32> to vector<24x896xf32>
      %225 = arith.mulf %223, %224 : vector<24x896xf32>
      %226 = vector.broadcast %205 : vector<24x1xf32> to vector<24x896xf32>
      %227 = arith.addf %225, %226 : vector<24x896xf32>
      %cst_64 = arith.constant 0.000000e+00 : f32
      %228 = vector.broadcast %cst_64 : f32 to vector<24x896xf32>
      %229 = arith.maximumf %227, %228 : vector<24x896xf32>
      %cst_65 = arith.constant 6.000000e+00 : f32
      %230 = vector.broadcast %cst_65 : f32 to vector<24x896xf32>
      %231 = arith.minimumf %229, %230 : vector<24x896xf32>
      %232 = vector.broadcast %1 : vector<1x896xf32> to vector<24x896xf32>
      %233 = arith.mulf %231, %232 : vector<24x896xf32>
      %234 = vector.extract_strided_slice %23 {offsets = [0, 0], sizes = [4, 1], strides = [1, 1]} : vector<4x24xf32> to vector<4x1xf32>
      %235 = vector.extract_strided_slice %233 {offsets = [0, 0], sizes = [1, 896], strides = [1, 1]} : vector<24x896xf32> to vector<1x896xf32>
      %236 = vector.broadcast %234 : vector<4x1xf32> to vector<4x896xf32>
      %237 = vector.broadcast %235 : vector<1x896xf32> to vector<4x896xf32>
      %238 = arith.mulf %236, %237 : vector<4x896xf32>
      %239 = vector.extract_strided_slice %23 {offsets = [0, 1], sizes = [4, 1], strides = [1, 1]} : vector<4x24xf32> to vector<4x1xf32>
      %240 = vector.extract_strided_slice %233 {offsets = [1, 0], sizes = [1, 896], strides = [1, 1]} : vector<24x896xf32> to vector<1x896xf32>
      %241 = vector.broadcast %239 : vector<4x1xf32> to vector<4x896xf32>
      %242 = vector.broadcast %240 : vector<1x896xf32> to vector<4x896xf32>
      %243 = arith.mulf %241, %242 : vector<4x896xf32>
      %244 = arith.addf %238, %243 : vector<4x896xf32>
      %245 = vector.extract_strided_slice %23 {offsets = [0, 2], sizes = [4, 1], strides = [1, 1]} : vector<4x24xf32> to vector<4x1xf32>
      %246 = vector.extract_strided_slice %233 {offsets = [2, 0], sizes = [1, 896], strides = [1, 1]} : vector<24x896xf32> to vector<1x896xf32>
      %247 = vector.broadcast %245 : vector<4x1xf32> to vector<4x896xf32>
      %248 = vector.broadcast %246 : vector<1x896xf32> to vector<4x896xf32>
      %249 = arith.mulf %247, %248 : vector<4x896xf32>
      %250 = arith.addf %244, %249 : vector<4x896xf32>
      %251 = vector.extract_strided_slice %23 {offsets = [0, 3], sizes = [4, 1], strides = [1, 1]} : vector<4x24xf32> to vector<4x1xf32>
      %252 = vector.extract_strided_slice %233 {offsets = [3, 0], sizes = [1, 896], strides = [1, 1]} : vector<24x896xf32> to vector<1x896xf32>
      %253 = vector.broadcast %251 : vector<4x1xf32> to vector<4x896xf32>
      %254 = vector.broadcast %252 : vector<1x896xf32> to vector<4x896xf32>
      %255 = arith.mulf %253, %254 : vector<4x896xf32>
      %256 = arith.addf %250, %255 : vector<4x896xf32>
      %257 = vector.extract_strided_slice %23 {offsets = [0, 4], sizes = [4, 1], strides = [1, 1]} : vector<4x24xf32> to vector<4x1xf32>
      %258 = vector.extract_strided_slice %233 {offsets = [4, 0], sizes = [1, 896], strides = [1, 1]} : vector<24x896xf32> to vector<1x896xf32>
      %259 = vector.broadcast %257 : vector<4x1xf32> to vector<4x896xf32>
      %260 = vector.broadcast %258 : vector<1x896xf32> to vector<4x896xf32>
      %261 = arith.mulf %259, %260 : vector<4x896xf32>
      %262 = arith.addf %256, %261 : vector<4x896xf32>
      %263 = vector.extract_strided_slice %23 {offsets = [0, 5], sizes = [4, 1], strides = [1, 1]} : vector<4x24xf32> to vector<4x1xf32>
      %264 = vector.extract_strided_slice %233 {offsets = [5, 0], sizes = [1, 896], strides = [1, 1]} : vector<24x896xf32> to vector<1x896xf32>
      %265 = vector.broadcast %263 : vector<4x1xf32> to vector<4x896xf32>
      %266 = vector.broadcast %264 : vector<1x896xf32> to vector<4x896xf32>
      %267 = arith.mulf %265, %266 : vector<4x896xf32>
      %268 = arith.addf %262, %267 : vector<4x896xf32>
      %269 = vector.extract_strided_slice %23 {offsets = [0, 6], sizes = [4, 1], strides = [1, 1]} : vector<4x24xf32> to vector<4x1xf32>
      %270 = vector.extract_strided_slice %233 {offsets = [6, 0], sizes = [1, 896], strides = [1, 1]} : vector<24x896xf32> to vector<1x896xf32>
      %271 = vector.broadcast %269 : vector<4x1xf32> to vector<4x896xf32>
      %272 = vector.broadcast %270 : vector<1x896xf32> to vector<4x896xf32>
      %273 = arith.mulf %271, %272 : vector<4x896xf32>
      %274 = arith.addf %268, %273 : vector<4x896xf32>
      %275 = vector.extract_strided_slice %23 {offsets = [0, 7], sizes = [4, 1], strides = [1, 1]} : vector<4x24xf32> to vector<4x1xf32>
      %276 = vector.extract_strided_slice %233 {offsets = [7, 0], sizes = [1, 896], strides = [1, 1]} : vector<24x896xf32> to vector<1x896xf32>
      %277 = vector.broadcast %275 : vector<4x1xf32> to vector<4x896xf32>
      %278 = vector.broadcast %276 : vector<1x896xf32> to vector<4x896xf32>
      %279 = arith.mulf %277, %278 : vector<4x896xf32>
      %280 = arith.addf %274, %279 : vector<4x896xf32>
      %281 = vector.extract_strided_slice %23 {offsets = [0, 8], sizes = [4, 1], strides = [1, 1]} : vector<4x24xf32> to vector<4x1xf32>
      %282 = vector.extract_strided_slice %233 {offsets = [8, 0], sizes = [1, 896], strides = [1, 1]} : vector<24x896xf32> to vector<1x896xf32>
      %283 = vector.broadcast %281 : vector<4x1xf32> to vector<4x896xf32>
      %284 = vector.broadcast %282 : vector<1x896xf32> to vector<4x896xf32>
      %285 = arith.mulf %283, %284 : vector<4x896xf32>
      %286 = arith.addf %280, %285 : vector<4x896xf32>
      %287 = vector.extract_strided_slice %23 {offsets = [0, 9], sizes = [4, 1], strides = [1, 1]} : vector<4x24xf32> to vector<4x1xf32>
      %288 = vector.extract_strided_slice %233 {offsets = [9, 0], sizes = [1, 896], strides = [1, 1]} : vector<24x896xf32> to vector<1x896xf32>
      %289 = vector.broadcast %287 : vector<4x1xf32> to vector<4x896xf32>
      %290 = vector.broadcast %288 : vector<1x896xf32> to vector<4x896xf32>
      %291 = arith.mulf %289, %290 : vector<4x896xf32>
      %292 = arith.addf %286, %291 : vector<4x896xf32>
      %293 = vector.extract_strided_slice %23 {offsets = [0, 10], sizes = [4, 1], strides = [1, 1]} : vector<4x24xf32> to vector<4x1xf32>
      %294 = vector.extract_strided_slice %233 {offsets = [10, 0], sizes = [1, 896], strides = [1, 1]} : vector<24x896xf32> to vector<1x896xf32>
      %295 = vector.broadcast %293 : vector<4x1xf32> to vector<4x896xf32>
      %296 = vector.broadcast %294 : vector<1x896xf32> to vector<4x896xf32>
      %297 = arith.mulf %295, %296 : vector<4x896xf32>
      %298 = arith.addf %292, %297 : vector<4x896xf32>
      %299 = vector.extract_strided_slice %23 {offsets = [0, 11], sizes = [4, 1], strides = [1, 1]} : vector<4x24xf32> to vector<4x1xf32>
      %300 = vector.extract_strided_slice %233 {offsets = [11, 0], sizes = [1, 896], strides = [1, 1]} : vector<24x896xf32> to vector<1x896xf32>
      %301 = vector.broadcast %299 : vector<4x1xf32> to vector<4x896xf32>
      %302 = vector.broadcast %300 : vector<1x896xf32> to vector<4x896xf32>
      %303 = arith.mulf %301, %302 : vector<4x896xf32>
      %304 = arith.addf %298, %303 : vector<4x896xf32>
      %305 = vector.extract_strided_slice %23 {offsets = [0, 12], sizes = [4, 1], strides = [1, 1]} : vector<4x24xf32> to vector<4x1xf32>
      %306 = vector.extract_strided_slice %233 {offsets = [12, 0], sizes = [1, 896], strides = [1, 1]} : vector<24x896xf32> to vector<1x896xf32>
      %307 = vector.broadcast %305 : vector<4x1xf32> to vector<4x896xf32>
      %308 = vector.broadcast %306 : vector<1x896xf32> to vector<4x896xf32>
      %309 = arith.mulf %307, %308 : vector<4x896xf32>
      %310 = arith.addf %304, %309 : vector<4x896xf32>
      %311 = vector.extract_strided_slice %23 {offsets = [0, 13], sizes = [4, 1], strides = [1, 1]} : vector<4x24xf32> to vector<4x1xf32>
      %312 = vector.extract_strided_slice %233 {offsets = [13, 0], sizes = [1, 896], strides = [1, 1]} : vector<24x896xf32> to vector<1x896xf32>
      %313 = vector.broadcast %311 : vector<4x1xf32> to vector<4x896xf32>
      %314 = vector.broadcast %312 : vector<1x896xf32> to vector<4x896xf32>
      %315 = arith.mulf %313, %314 : vector<4x896xf32>
      %316 = arith.addf %310, %315 : vector<4x896xf32>
      %317 = vector.extract_strided_slice %23 {offsets = [0, 14], sizes = [4, 1], strides = [1, 1]} : vector<4x24xf32> to vector<4x1xf32>
      %318 = vector.extract_strided_slice %233 {offsets = [14, 0], sizes = [1, 896], strides = [1, 1]} : vector<24x896xf32> to vector<1x896xf32>
      %319 = vector.broadcast %317 : vector<4x1xf32> to vector<4x896xf32>
      %320 = vector.broadcast %318 : vector<1x896xf32> to vector<4x896xf32>
      %321 = arith.mulf %319, %320 : vector<4x896xf32>
      %322 = arith.addf %316, %321 : vector<4x896xf32>
      %323 = vector.extract_strided_slice %23 {offsets = [0, 15], sizes = [4, 1], strides = [1, 1]} : vector<4x24xf32> to vector<4x1xf32>
      %324 = vector.extract_strided_slice %233 {offsets = [15, 0], sizes = [1, 896], strides = [1, 1]} : vector<24x896xf32> to vector<1x896xf32>
      %325 = vector.broadcast %323 : vector<4x1xf32> to vector<4x896xf32>
      %326 = vector.broadcast %324 : vector<1x896xf32> to vector<4x896xf32>
      %327 = arith.mulf %325, %326 : vector<4x896xf32>
      %328 = arith.addf %322, %327 : vector<4x896xf32>
      %329 = vector.extract_strided_slice %23 {offsets = [0, 16], sizes = [4, 1], strides = [1, 1]} : vector<4x24xf32> to vector<4x1xf32>
      %330 = vector.extract_strided_slice %233 {offsets = [16, 0], sizes = [1, 896], strides = [1, 1]} : vector<24x896xf32> to vector<1x896xf32>
      %331 = vector.broadcast %329 : vector<4x1xf32> to vector<4x896xf32>
      %332 = vector.broadcast %330 : vector<1x896xf32> to vector<4x896xf32>
      %333 = arith.mulf %331, %332 : vector<4x896xf32>
      %334 = arith.addf %328, %333 : vector<4x896xf32>
      %335 = vector.extract_strided_slice %23 {offsets = [0, 17], sizes = [4, 1], strides = [1, 1]} : vector<4x24xf32> to vector<4x1xf32>
      %336 = vector.extract_strided_slice %233 {offsets = [17, 0], sizes = [1, 896], strides = [1, 1]} : vector<24x896xf32> to vector<1x896xf32>
      %337 = vector.broadcast %335 : vector<4x1xf32> to vector<4x896xf32>
      %338 = vector.broadcast %336 : vector<1x896xf32> to vector<4x896xf32>
      %339 = arith.mulf %337, %338 : vector<4x896xf32>
      %340 = arith.addf %334, %339 : vector<4x896xf32>
      %341 = vector.extract_strided_slice %23 {offsets = [0, 18], sizes = [4, 1], strides = [1, 1]} : vector<4x24xf32> to vector<4x1xf32>
      %342 = vector.extract_strided_slice %233 {offsets = [18, 0], sizes = [1, 896], strides = [1, 1]} : vector<24x896xf32> to vector<1x896xf32>
      %343 = vector.broadcast %341 : vector<4x1xf32> to vector<4x896xf32>
      %344 = vector.broadcast %342 : vector<1x896xf32> to vector<4x896xf32>
      %345 = arith.mulf %343, %344 : vector<4x896xf32>
      %346 = arith.addf %340, %345 : vector<4x896xf32>
      %347 = vector.extract_strided_slice %23 {offsets = [0, 19], sizes = [4, 1], strides = [1, 1]} : vector<4x24xf32> to vector<4x1xf32>
      %348 = vector.extract_strided_slice %233 {offsets = [19, 0], sizes = [1, 896], strides = [1, 1]} : vector<24x896xf32> to vector<1x896xf32>
      %349 = vector.broadcast %347 : vector<4x1xf32> to vector<4x896xf32>
      %350 = vector.broadcast %348 : vector<1x896xf32> to vector<4x896xf32>
      %351 = arith.mulf %349, %350 : vector<4x896xf32>
      %352 = arith.addf %346, %351 : vector<4x896xf32>
      %353 = vector.extract_strided_slice %23 {offsets = [0, 20], sizes = [4, 1], strides = [1, 1]} : vector<4x24xf32> to vector<4x1xf32>
      %354 = vector.extract_strided_slice %233 {offsets = [20, 0], sizes = [1, 896], strides = [1, 1]} : vector<24x896xf32> to vector<1x896xf32>
      %355 = vector.broadcast %353 : vector<4x1xf32> to vector<4x896xf32>
      %356 = vector.broadcast %354 : vector<1x896xf32> to vector<4x896xf32>
      %357 = arith.mulf %355, %356 : vector<4x896xf32>
      %358 = arith.addf %352, %357 : vector<4x896xf32>
      %359 = vector.extract_strided_slice %23 {offsets = [0, 21], sizes = [4, 1], strides = [1, 1]} : vector<4x24xf32> to vector<4x1xf32>
      %360 = vector.extract_strided_slice %233 {offsets = [21, 0], sizes = [1, 896], strides = [1, 1]} : vector<24x896xf32> to vector<1x896xf32>
      %361 = vector.broadcast %359 : vector<4x1xf32> to vector<4x896xf32>
      %362 = vector.broadcast %360 : vector<1x896xf32> to vector<4x896xf32>
      %363 = arith.mulf %361, %362 : vector<4x896xf32>
      %364 = arith.addf %358, %363 : vector<4x896xf32>
      %365 = vector.extract_strided_slice %23 {offsets = [0, 22], sizes = [4, 1], strides = [1, 1]} : vector<4x24xf32> to vector<4x1xf32>
      %366 = vector.extract_strided_slice %233 {offsets = [22, 0], sizes = [1, 896], strides = [1, 1]} : vector<24x896xf32> to vector<1x896xf32>
      %367 = vector.broadcast %365 : vector<4x1xf32> to vector<4x896xf32>
      %368 = vector.broadcast %366 : vector<1x896xf32> to vector<4x896xf32>
      %369 = arith.mulf %367, %368 : vector<4x896xf32>
      %370 = arith.addf %364, %369 : vector<4x896xf32>
      %371 = vector.extract_strided_slice %23 {offsets = [0, 23], sizes = [4, 1], strides = [1, 1]} : vector<4x24xf32> to vector<4x1xf32>
      %372 = vector.extract_strided_slice %233 {offsets = [23, 0], sizes = [1, 896], strides = [1, 1]} : vector<24x896xf32> to vector<1x896xf32>
      %373 = vector.broadcast %371 : vector<4x1xf32> to vector<4x896xf32>
      %374 = vector.broadcast %372 : vector<1x896xf32> to vector<4x896xf32>
      %375 = arith.mulf %373, %374 : vector<4x896xf32>
      %376 = arith.addf %370, %375 : vector<4x896xf32>
      %377 = vector.extract_strided_slice %24 {offsets = [0, 0], sizes = [4, 1], strides = [1, 1]} : vector<4x2xf32> to vector<4x1xf32>
      %378 = vector.extract_strided_slice %24 {offsets = [0, 1], sizes = [4, 1], strides = [1, 1]} : vector<4x2xf32> to vector<4x1xf32>
      %379 = vector.broadcast %4 : f32 to vector<4x1xf32>
      %380 = arith.mulf %377, %379 : vector<4x1xf32>
      %381 = vector.broadcast %4 : f32 to vector<4x1xf32>
      %382 = arith.mulf %378, %381 : vector<4x1xf32>
      %cst_66 = arith.constant dense<0.000000e+00> : vector<4xf32>
      %383 = vector.multi_reduction <add>, %376, %cst_66 [1] : vector<4x896xf32> to vector<4xf32>
      %384 = vector.shape_cast %383 : vector<4xf32> to vector<4x1xf32>
      %385 = arith.mulf %376, %376 : vector<4x896xf32>
      %cst_67 = arith.constant dense<0.000000e+00> : vector<4xf32>
      %386 = vector.multi_reduction <add>, %385, %cst_67 [1] : vector<4x896xf32> to vector<4xf32>
      %387 = vector.shape_cast %386 : vector<4xf32> to vector<4x1xf32>
      %cst_68 = arith.constant 0.001953125 : f32
      %388 = vector.broadcast %cst_68 : f32 to vector<4x1xf32>
      %389 = arith.mulf %384, %388 : vector<4x1xf32>
      %cst_69 = arith.constant 0.001953125 : f32
      %390 = vector.broadcast %cst_69 : f32 to vector<4x1xf32>
      %391 = arith.mulf %387, %390 : vector<4x1xf32>
      %392 = arith.mulf %389, %389 : vector<4x1xf32>
      %393 = arith.subf %391, %392 : vector<4x1xf32>
      %394 = vector.broadcast %389 : vector<4x1xf32> to vector<4x896xf32>
      %395 = arith.subf %376, %394 : vector<4x896xf32>
      %cst_70 = arith.constant 9.99999974E-6 : f32
      %396 = vector.broadcast %cst_70 : f32 to vector<4x1xf32>
      %397 = arith.addf %393, %396 : vector<4x1xf32>
      %398 = math.rsqrt %397 : vector<4x1xf32>
      %399 = vector.broadcast %398 : vector<4x1xf32> to vector<4x896xf32>
      %400 = arith.mulf %395, %399 : vector<4x896xf32>
      %401 = vector.broadcast %380 : vector<4x1xf32> to vector<4x896xf32>
      %402 = arith.mulf %400, %401 : vector<4x896xf32>
      %403 = vector.broadcast %382 : vector<4x1xf32> to vector<4x896xf32>
      %404 = arith.addf %402, %403 : vector<4x896xf32>
      %c0_71 = arith.constant 0 : index
      %c0_72 = arith.constant 0 : index
      %405 = vector.load %arg15[%c0_71, %c0_72] : memref<4x896xf32, #tpu.memory_space<vmem>>, vector<4x896xf32>
      %406 = arith.addf %405, %404 : vector<4x896xf32>
      %c0_73 = arith.constant 0 : index
      %c0_74 = arith.constant 0 : index
      %407 = vector.load %arg15[%c0_73, %c0_74] : memref<4x896xf32, #tpu.memory_space<vmem>>, vector<4x896xf32>
      tpu.vector_store %arg15[%c0_73, %c0_74], %406 {strides = array<i32>} : memref<4x896xf32, #tpu.memory_space<vmem>>, vector<4x896xf32>,
    } else {
    }
    return
  }
}

</mosaic_0001>

<llo_original>
// kernel: tpu_custom_call.1
$region0: #{tpu_custom_call.1}
  #allocation0 [shape = 'u32[]', space=smem, size = 0x4, offset = 0x4, fixed_abs, tag = 'smem constant byte address 0x4 - core index']
  #allocation1 [shape = 'u32[144,128]{1,0:T(1,128)}', space=vmem, size = 0x12000, scoped, tag = 'internal scratch']
  #allocation2 [shape = 'f32[24,1152]{1,0:T(8,128)}', space=vmem, size = 0x1b000, scoped, tag = 'scratch operand']
  %s0 = inlined_call_operand.vmem [shape: f32[1,3], index: 0, kind: input, shape index: {}]
  %s1 = inlined_call_operand.vmem [shape: f32[1,896], index: 1, kind: input, shape index: {}]
  %s2 = inlined_call_operand.vmem [shape: f32[4,896], index: 2, kind: input, shape index: {}]
  %s3 = inlined_call_operand.vmem [shape: f32[12,4], index: 3, kind: input, shape index: {}]
  %s4 = inlined_call_operand.vmem [shape: f32[12,2], index: 4, kind: input, shape index: {}]
  %s5 = inlined_call_operand.vmem [shape: f32[12,9], index: 5, kind: input, shape index: {}]
  %s6 = inlined_call_operand.vmem [shape: f32[12,2], index: 6, kind: input, shape index: {}]
  %s7 = inlined_call_operand.vmem [shape: f32[4,12], index: 7, kind: input, shape index: {}]
  %s8 = inlined_call_operand.vmem [shape: f32[4,2], index: 8, kind: input, shape index: {}]
  %s9 = inlined_call_operand.vmem [shape: f32[24,4], index: 9, kind: input, shape index: {}]
  %s10 = inlined_call_operand.vmem [shape: f32[24,2], index: 10, kind: input, shape index: {}]
  %s11 = inlined_call_operand.vmem [shape: f32[24,25], index: 11, kind: input, shape index: {}]
  %s12 = inlined_call_operand.vmem [shape: f32[24,2], index: 12, kind: input, shape index: {}]
  %s13 = inlined_call_operand.vmem [shape: f32[4,24], index: 13, kind: input, shape index: {}]
  %s14 = inlined_call_operand.vmem [shape: f32[4,2], index: 14, kind: input, shape index: {}]
  %s15 = inlined_call_operand.hbm [shape: f32[4,896], index: 15, kind: output, shape index: {}]
  %s16 = sld [smem:[#allocation0]]
  $region82: #{tpu_custom_call.1} parent=0
    _
  %s18 = ssub.s32 1, %s16
  %s19 = scalar_select 0, %s18, %s16
  $region1: #{tpu_custom_call.1} parent=0
    #allocation3 [shape = 'u8[512]{0}', space=smem, size = 0x200, scoped, tag = 'input window, operand 0, single buffered']
    #allocation4 [shape = 's32[1]{0}', space=sflag, size = 0x4, scoped, tag = 'scoped memory for tpu_custom_call.1']
    #allocation5 [shape = 's32[1]{0}', space=sflag, size = 0x4, scoped, tag = 'scoped memory for tpu_custom_call.1']
    #allocation6 [shape = 'u8[14336]{0}', space=vmem, size = 0x3800, scoped, tag = 'output window, operand 0, single buffered']
    %20 = vsyncpa [#allocation5], 0
    %21 = vsyncpa [#allocation4], 0
    // Predicated region
    $region2: #{tpu_custom_call.1} parent=1 // pred_check
      _
    $region3: #{tpu_custom_call.1} parent=1 // pred_check_branch
      %23 = sbr.rel (0) target = $region5
    $region4: #{tpu_custom_call.1} parent=1 // pred_region
      %s25 = ssub.s32 16, 16
      %26 = vsyncadd [#allocation5], %s25
      %s28 = sshll.u32 %s0, 4
      %s29 = int_to_ptr.vmem [resolvable:$true] %s28
      %31 = dma.vmem_to_smem %s29, 16, [#allocation3], [#allocation5]
    $region5: #{tpu_custom_call.1} parent=1 // pred_fallthru
      _
    // Predicated region
    $region6: #{tpu_custom_call.1} parent=1 // pred_check
      _
    $region7: #{tpu_custom_call.1} parent=1 // pred_check_branch
      %33 = sbr.rel (0) target = $region9
    $region8: #{tpu_custom_call.1} parent=1 // pred_region
      _
    $region9: #{tpu_custom_call.1} parent=1 // pred_fallthru
      _
    // Predicated region
    $region10: #{tpu_custom_call.1} parent=1 // pred_check
      _
    $region11: #{tpu_custom_call.1} parent=1 // pred_check_branch
      %35 = sbr.rel (0) target = $region13
    $region12: #{tpu_custom_call.1} parent=1 // pred_region
      _
    $region13: #{tpu_custom_call.1} parent=1 // pred_fallthru
      _
    // Predicated region
    $region14: #{tpu_custom_call.1} parent=1 // pred_check
      _
    $region15: #{tpu_custom_call.1} parent=1 // pred_check_branch
      %37 = sbr.rel (0) target = $region17
    $region16: #{tpu_custom_call.1} parent=1 // pred_region
      _
    $region17: #{tpu_custom_call.1} parent=1 // pred_fallthru
      _
    // Predicated region
    $region18: #{tpu_custom_call.1} parent=1 // pred_check
      _
    $region19: #{tpu_custom_call.1} parent=1 // pred_check_branch
      %39 = sbr.rel (0) target = $region21
    $region20: #{tpu_custom_call.1} parent=1 // pred_region
      _
    $region21: #{tpu_custom_call.1} parent=1 // pred_fallthru
      _
    // Predicated region
    $region22: #{tpu_custom_call.1} parent=1 // pred_check
      _
    $region23: #{tpu_custom_call.1} parent=1 // pred_check_branch
      %41 = sbr.rel (0) target = $region25
    $region24: #{tpu_custom_call.1} parent=1 // pred_region
      _
    $region25: #{tpu_custom_call.1} parent=1 // pred_fallthru
      _
    // Predicated region
    $region26: #{tpu_custom_call.1} parent=1 // pred_check
      _
    $region27: #{tpu_custom_call.1} parent=1 // pred_check_branch
      %43 = sbr.rel (0) target = $region29
    $region28: #{tpu_custom_call.1} parent=1 // pred_region
      _
    $region29: #{tpu_custom_call.1} parent=1 // pred_fallthru
      _
    // Predicated region
    $region30: #{tpu_custom_call.1} parent=1 // pred_check
      _
    $region31: #{tpu_custom_call.1} parent=1 // pred_check_branch
      %45 = sbr.rel (0) target = $region33
    $region32: #{tpu_custom_call.1} parent=1 // pred_region
      _
    $region33: #{tpu_custom_call.1} parent=1 // pred_fallthru
      _
    // Predicated region
    $region34: #{tpu_custom_call.1} parent=1 // pred_check
      _
    $region35: #{tpu_custom_call.1} parent=1 // pred_check_branch
      %47 = sbr.rel (0) target = $region37
    $region36: #{tpu_custom_call.1} parent=1 // pred_region
      _
    $region37: #{tpu_custom_call.1} parent=1 // pred_fallthru
      _
    // Predicated region
    $region38: #{tpu_custom_call.1} parent=1 // pred_check
      _
    $region39: #{tpu_custom_call.1} parent=1 // pred_check_branch
      %49 = sbr.rel (0) target = $region41
    $region40: #{tpu_custom_call.1} parent=1 // pred_region
      _
    $region41: #{tpu_custom_call.1} parent=1 // pred_fallthru
      _
    // Predicated region
    $region42: #{tpu_custom_call.1} parent=1 // pred_check
      _
    $region43: #{tpu_custom_call.1} parent=1 // pred_check_branch
      %51 = sbr.rel (0) target = $region45
    $region44: #{tpu_custom_call.1} parent=1 // pred_region
      _
    $region45: #{tpu_custom_call.1} parent=1 // pred_fallthru
      _
    // Predicated region
    $region46: #{tpu_custom_call.1} parent=1 // pred_check
      _
    $region47: #{tpu_custom_call.1} parent=1 // pred_check_branch
      %53 = sbr.rel (0) target = $region49
    $region48: #{tpu_custom_call.1} parent=1 // pred_region
      _
    $region49: #{tpu_custom_call.1} parent=1 // pred_fallthru
      _
    // Predicated region
    $region50: #{tpu_custom_call.1} parent=1 // pred_check
      _
    $region51: #{tpu_custom_call.1} parent=1 // pred_check_branch
      %55 = sbr.rel (0) target = $region53
    $region52: #{tpu_custom_call.1} parent=1 // pred_region
      _
    $region53: #{tpu_custom_call.1} parent=1 // pred_fallthru
      _
    // Predicated region
    $region54: #{tpu_custom_call.1} parent=1 // pred_check
      _
    $region55: #{tpu_custom_call.1} parent=1 // pred_check_branch
      %57 = sbr.rel (0) target = $region57
    $region56: #{tpu_custom_call.1} parent=1 // pred_region
      _
    $region57: #{tpu_custom_call.1} parent=1 // pred_fallthru
      _
    // Predicated region
    $region58: #{tpu_custom_call.1} parent=1 // pred_check
      _
    $region59: #{tpu_custom_call.1} parent=1 // pred_check_branch
      %59 = sbr.rel (0) target = $region61
    $region60: #{tpu_custom_call.1} parent=1 // pred_region
      _
    $region61: #{tpu_custom_call.1} parent=1 // pred_fallthru
      _
    // Predicated region
    $region62: #{tpu_custom_call.1} parent=1 // pred_check
      _
    $region63: #{tpu_custom_call.1} parent=1 // pred_check_branch
      %61 = sbr.rel (0) target = $region65
    $region64: #{tpu_custom_call.1} parent=1 // pred_region
      %62 = dma.done [#allocation5], 16
    $region65: #{tpu_custom_call.1} parent=1 // pred_fallthru
      _
    %63 = sfence
    %v64 = vld [vmem:[%s2] sm:$0xff]
    %v65 = vld [vmem:[%s2 + $0x8] sm:$0xff]
    %v66 = vld [vmem:[%s2 + $0x10] sm:$0xff]
    %v67 = vld [vmem:[%s2 + $0x18] sm:$0xf]
    %v68 = vld [vmem:[%s1] sm:$0xff]
    %s69 = sld [smem:[#allocation3]]
    %s70 = sld [smem:[#allocation3 + $0x1]]
    %s71 = sld [smem:[#allocation3 + $0x2]]
    %s72 = sadd.f32 %s69, %s70
    %s73 = sadd.f32 %s72, %s71
    %v74 = vstv %s73
    %v75 = vmul.f32 %v74, %v64
    %v76 = vmul.f32 %v74, %v65
    %v77 = vmul.f32 %v74, %v66
    %v78 = vmul.f32 %v74, %v67
    %79 = vst [vmem:[#allocation6] sm:$0xff] %v75
    %80 = vst [vmem:[#allocation6 + $0x8] sm:$0xff] %v76
    %81 = vst [vmem:[#allocation6 + $0x10] sm:$0xff] %v77
    %82 = vst [vmem:[#allocation6 + $0x18] sm:$0xf] %v78
    %83 = vst [vmem:[#allocation2] sm:$0xff] 0.0
    %84 = vst [vmem:[#allocation2 + $0x48] sm:$0xff] 0.0
    %85 = vst [vmem:[#allocation2 + $0x90] sm:$0xff] 0.0
    %86 = vst [vmem:[#allocation2 + $0x40] sm:$0xff] 0.0
    %87 = vst [vmem:[#allocation2 + $0x88] sm:$0xff] 0.0
    %88 = vst [vmem:[#allocation2 + $0xd0] sm:$0xff] 0.0
    %p89 = scmp.ne.f32.partialorder %s70, 0.0
    // Predicated region
    $region66: #{tpu_custom_call.1} parent=1 // pred_check
      %p90 = pneg %p89
    $region67: #{tpu_custom_call.1} parent=1 // pred_check_branch
      %92 = sbr.rel (%p90) target = $region69
    $region68: #{tpu_custom_call.1} parent=1 // pred_region
      %v93 = vld [vmem:[%s3] sm:$0xff]
      %v94 = vld [vmem:[%s3 + $0x8] sm:$0xf]
      %v95 = vld [vmem:[%s4] sm:$0xff]
      %v96 = vld [vmem:[%s4 + $0x8] sm:$0xf]
      %v97 = vld [vmem:[%s5] sm:$0xff]
      %v98 = vld [vmem:[%s5 + $0x8] sm:$0xf]
      %v99 = vld [vmem:[%s6] sm:$0xff]
      %v100 = vld [vmem:[%s6 + $0x8] sm:$0xf]
      %v101 = vld [vmem:[%s7] sm:$0xf]
      %v102 = vld [vmem:[%s8] sm:$0xf]
      %104 = vset.pattern.permute.xlu0 0
      %105 = vperm.xlu0 %104, %v93
      %v106 = vpop.permute.xlu0 %105
      %109 = vset.pattern.permute.xlu0 0
      %110 = vperm.xlu0 %109, %v94
      %v111 = vpop.permute.xlu0 %110
      %v117 = vlaneseq
      %v118 = vshrl.u32 %v117, 7
      %v119 = vsub.s32 0, %v118
      %v120 = vrot.slane %v64, %v119
      %v121 = vlaneseq
      %v122 = vshrl.u32 %v121, 7
      %v123 = vsub.s32 4, %v122
      %v124 = vrot.slane %v64, %v123
      %v125 = vlaneseq
      %v126 = vshrl.u32 %v125, 7
      %v127 = vsub.s32 0, %v126
      %v128 = vrot.slane %v65, %v127
      %v129 = vlaneseq
      %v130 = vshrl.u32 %v129, 7
      %v131 = vsub.s32 4, %v130
      %v132 = vrot.slane %v65, %v131
      %v133 = vlaneseq
      %v134 = vshrl.u32 %v133, 7
      %v135 = vsub.s32 0, %v134
      %v136 = vrot.slane %v66, %v135
      %v137 = vlaneseq
      %v138 = vshrl.u32 %v137, 7
      %v139 = vsub.s32 4, %v138
      %v140 = vrot.slane %v66, %v139
      %v141 = vlaneseq
      %v142 = vshrl.u32 %v141, 7
      %v143 = vsub.s32 0, %v142
      %v144 = vrot.slane %v67, %v143
      %v152 = vlaneseq
      %v153 = vshrl.u32 %v152, 7
      %v154 = vsub.s32 0, %v153
      %v155 = vrot.slane %v120, %v154
      %v156 = vlaneseq
      %v157 = vshrl.u32 %v156, 7
      %v158 = vsub.s32 0, %v157
      %v159 = vrot.slane %v124, %v158
      %v160 = vlaneseq
      %v161 = vshrl.u32 %v160, 7
      %v162 = vsub.s32 0, %v161
      %v163 = vrot.slane %v128, %v162
      %v164 = vlaneseq
      %v165 = vshrl.u32 %v164, 7
      %v166 = vsub.s32 0, %v165
      %v167 = vrot.slane %v132, %v166
      %v168 = vlaneseq
      %v169 = vshrl.u32 %v168, 7
      %v170 = vsub.s32 0, %v169
      %v171 = vrot.slane %v136, %v170
      %v172 = vlaneseq
      %v173 = vshrl.u32 %v172, 7
      %v174 = vsub.s32 0, %v173
      %v175 = vrot.slane %v140, %v174
      %v176 = vlaneseq
      %v177 = vshrl.u32 %v176, 7
      %v178 = vsub.s32 0, %v177
      %v179 = vrot.slane %v144, %v178
      %v180 = vmul.f32 %v106, %v155
      %v181 = vmul.f32 %v106, %v159
      %v182 = vmul.f32 %v106, %v163
      %v183 = vmul.f32 %v106, %v167
      %v184 = vmul.f32 %v106, %v171
      %v185 = vmul.f32 %v106, %v175
      %v186 = vmul.f32 %v106, %v179
      %v187 = vmul.f32 %v111, %v155
      %v188 = vmul.f32 %v111, %v159
      %v189 = vmul.f32 %v111, %v163
      %v190 = vmul.f32 %v111, %v167
      %v191 = vmul.f32 %v111, %v171
      %v192 = vmul.f32 %v111, %v175
      %v193 = vmul.f32 %v111, %v179
      %194 = vset.pattern.permute.xlu0 1
      %195 = vperm.xlu0 %194, %v93
      %v196 = vpop.permute.xlu0 %195
      %198 = vset.pattern.permute.xlu0 1
      %199 = vperm.xlu0 %198, %v94
      %v200 = vpop.permute.xlu0 %199
      %v202 = vlaneseq
      %v203 = vshrl.u32 %v202, 7
      %v204 = vsub.s32 1, %v203
      %v205 = vrot.slane %v64, %v204
      %v206 = vlaneseq
      %v207 = vshrl.u32 %v206, 7
      %v208 = vsub.s32 5, %v207
      %v209 = vrot.slane %v64, %v208
      %v210 = vlaneseq
      %v211 = vshrl.u32 %v210, 7
      %v212 = vsub.s32 1, %v211
      %v213 = vrot.slane %v65, %v212
      %v214 = vlaneseq
      %v215 = vshrl.u32 %v214, 7
      %v216 = vsub.s32 5, %v215
      %v217 = vrot.slane %v65, %v216
      %v218 = vlaneseq
      %v219 = vshrl.u32 %v218, 7
      %v220 = vsub.s32 1, %v219
      %v221 = vrot.slane %v66, %v220
      %v222 = vlaneseq
      %v223 = vshrl.u32 %v222, 7
      %v224 = vsub.s32 5, %v223
      %v225 = vrot.slane %v66, %v224
      %v226 = vlaneseq
      %v227 = vshrl.u32 %v226, 7
      %v228 = vsub.s32 1, %v227
      %v229 = vrot.slane %v67, %v228
      %v237 = vlaneseq
      %v238 = vshrl.u32 %v237, 7
      %v239 = vsub.s32 1, %v238
      %v240 = vrot.slane %v205, %v239
      %v241 = vlaneseq
      %v242 = vshrl.u32 %v241, 7
      %v243 = vsub.s32 1, %v242
      %v244 = vrot.slane %v209, %v243
      %v245 = vlaneseq
      %v246 = vshrl.u32 %v245, 7
      %v247 = vsub.s32 1, %v246
      %v248 = vrot.slane %v213, %v247
      %v249 = vlaneseq
      %v250 = vshrl.u32 %v249, 7
      %v251 = vsub.s32 1, %v250
      %v252 = vrot.slane %v217, %v251
      %v253 = vlaneseq
      %v254 = vshrl.u32 %v253, 7
      %v255 = vsub.s32 1, %v254
      %v256 = vrot.slane %v221, %v255
      %v257 = vlaneseq
      %v258 = vshrl.u32 %v257, 7
      %v259 = vsub.s32 1, %v258
      %v260 = vrot.slane %v225, %v259
      %v261 = vlaneseq
      %v262 = vshrl.u32 %v261, 7
      %v263 = vsub.s32 1, %v262
      %v264 = vrot.slane %v229, %v263
      %v265 = vmul.f32 %v196, %v240
      %v266 = vmul.f32 %v196, %v244
      %v267 = vmul.f32 %v196, %v248
      %v268 = vmul.f32 %v196, %v252
      %v269 = vmul.f32 %v196, %v256
      %v270 = vmul.f32 %v196, %v260
      %v271 = vmul.f32 %v196, %v264
      %v272 = vmul.f32 %v200, %v240
      %v273 = vmul.f32 %v200, %v244
      %v274 = vmul.f32 %v200, %v248
      %v275 = vmul.f32 %v200, %v252
      %v276 = vmul.f32 %v200, %v256
      %v277 = vmul.f32 %v200, %v260
      %v278 = vmul.f32 %v200, %v264
      %v279 = vadd.f32 %v180, %v265
      %v280 = vadd.f32 %v181, %v266
      %v281 = vadd.f32 %v182, %v267
      %v282 = vadd.f32 %v183, %v268
      %v283 = vadd.f32 %v184, %v269
      %v284 = vadd.f32 %v185, %v270
      %v285 = vadd.f32 %v186, %v271
      %v286 = vadd.f32 %v187, %v272
      %v287 = vadd.f32 %v188, %v273
      %v288 = vadd.f32 %v189, %v274
      %v289 = vadd.f32 %v190, %v275
      %v290 = vadd.f32 %v191, %v276
      %v291 = vadd.f32 %v192, %v277
      %v292 = vadd.f32 %v193, %v278
      %293 = vset.pattern.permute.xlu0 2
      %294 = vperm.xlu0 %293, %v93
      %v295 = vpop.permute.xlu0 %294
      %297 = vset.pattern.permute.xlu0 2
      %298 = vperm.xlu0 %297, %v94
      %v299 = vpop.permute.xlu0 %298
      %v301 = vlaneseq
      %v302 = vshrl.u32 %v301, 7
      %v303 = vsub.s32 2, %v302
      %v304 = vrot.slane %v64, %v303
      %v305 = vlaneseq
      %v306 = vshrl.u32 %v305, 7
      %v307 = vsub.s32 6, %v306
      %v308 = vrot.slane %v64, %v307
      %v309 = vlaneseq
      %v310 = vshrl.u32 %v309, 7
      %v311 = vsub.s32 2, %v310
      %v312 = vrot.slane %v65, %v311
      %v313 = vlaneseq
      %v314 = vshrl.u32 %v313, 7
      %v315 = vsub.s32 6, %v314
      %v316 = vrot.slane %v65, %v315
      %v317 = vlaneseq
      %v318 = vshrl.u32 %v317, 7
      %v319 = vsub.s32 2, %v318
      %v320 = vrot.slane %v66, %v319
      %v321 = vlaneseq
      %v322 = vshrl.u32 %v321, 7
      %v323 = vsub.s32 6, %v322
      %v324 = vrot.slane %v66, %v323
      %v325 = vlaneseq
      %v326 = vshrl.u32 %v325, 7
      %v327 = vsub.s32 2, %v326
      %v328 = vrot.slane %v67, %v327
      %v336 = vlaneseq
      %v337 = vshrl.u32 %v336, 7
      %v338 = vsub.s32 2, %v337
      %v339 = vrot.slane %v304, %v338
      %v340 = vlaneseq
      %v341 = vshrl.u32 %v340, 7
      %v342 = vsub.s32 2, %v341
      %v343 = vrot.slane %v308, %v342
      %v344 = vlaneseq
      %v345 = vshrl.u32 %v344, 7
      %v346 = vsub.s32 2, %v345
      %v347 = vrot.slane %v312, %v346
      %v348 = vlaneseq
      %v349 = vshrl.u32 %v348, 7
      %v350 = vsub.s32 2, %v349
      %v351 = vrot.slane %v316, %v350
      %v352 = vlaneseq
      %v353 = vshrl.u32 %v352, 7
      %v354 = vsub.s32 2, %v353
      %v355 = vrot.slane %v320, %v354
      %v356 = vlaneseq
      %v357 = vshrl.u32 %v356, 7
      %v358 = vsub.s32 2, %v357
      %v359 = vrot.slane %v324, %v358
      %v360 = vlaneseq
      %v361 = vshrl.u32 %v360, 7
      %v362 = vsub.s32 2, %v361
      %v363 = vrot.slane %v328, %v362
      %v364 = vmul.f32 %v295, %v339
      %v365 = vmul.f32 %v295, %v343
      %v366 = vmul.f32 %v295, %v347
      %v367 = vmul.f32 %v295, %v351
      %v368 = vmul.f32 %v295, %v355
      %v369 = vmul.f32 %v295, %v359
      %v370 = vmul.f32 %v295, %v363
      %v371 = vmul.f32 %v299, %v339
      %v372 = vmul.f32 %v299, %v343
      %v373 = vmul.f32 %v299, %v347
      %v374 = vmul.f32 %v299, %v351
      %v375 = vmul.f32 %v299, %v355
      %v376 = vmul.f32 %v299, %v359
      %v377 = vmul.f32 %v299, %v363
      %v378 = vadd.f32 %v279, %v364
      %v379 = vadd.f32 %v280, %v365
      %v380 = vadd.f32 %v281, %v366
      %v381 = vadd.f32 %v282, %v367
      %v382 = vadd.f32 %v283, %v368
      %v383 = vadd.f32 %v284, %v369
      %v384 = vadd.f32 %v285, %v370
      %v385 = vadd.f32 %v286, %v371
      %v386 = vadd.f32 %v287, %v372
      %v387 = vadd.f32 %v288, %v373
      %v388 = vadd.f32 %v289, %v374
      %v389 = vadd.f32 %v290, %v375
      %v390 = vadd.f32 %v291, %v376
      %v391 = vadd.f32 %v292, %v377
      %392 = vset.pattern.permute.xlu0 3
      %393 = vperm.xlu0 %392, %v93
      %v394 = vpop.permute.xlu0 %393
      %396 = vset.pattern.permute.xlu0 3
      %397 = vperm.xlu0 %396, %v94
      %v398 = vpop.permute.xlu0 %397
      %v400 = vlaneseq
      %v401 = vshrl.u32 %v400, 7
      %v402 = vsub.s32 3, %v401
      %v403 = vrot.slane %v64, %v402
      %v404 = vlaneseq
      %v405 = vshrl.u32 %v404, 7
      %v406 = vsub.s32 7, %v405
      %v407 = vrot.slane %v64, %v406
      %v408 = vlaneseq
      %v409 = vshrl.u32 %v408, 7
      %v410 = vsub.s32 3, %v409
      %v411 = vrot.slane %v65, %v410
      %v412 = vlaneseq
      %v413 = vshrl.u32 %v412, 7
      %v414 = vsub.s32 7, %v413
      %v415 = vrot.slane %v65, %v414
      %v416 = vlaneseq
      %v417 = vshrl.u32 %v416, 7
      %v418 = vsub.s32 3, %v417
      %v419 = vrot.slane %v66, %v418
      %v420 = vlaneseq
      %v421 = vshrl.u32 %v420, 7
      %v422 = vsub.s32 7, %v421
      %v423 = vrot.slane %v66, %v422
      %v424 = vlaneseq
      %v425 = vshrl.u32 %v424, 7
      %v426 = vsub.s32 3, %v425
      %v427 = vrot.slane %v67, %v426
      %v435 = vlaneseq
      %v436 = vshrl.u32 %v435, 7
      %v437 = vsub.s32 3, %v436
      %v438 = vrot.slane %v403, %v437
      %v439 = vlaneseq
      %v440 = vshrl.u32 %v439, 7
      %v441 = vsub.s32 3, %v440
      %v442 = vrot.slane %v407, %v441
      %v443 = vlaneseq
      %v444 = vshrl.u32 %v443, 7
      %v445 = vsub.s32 3, %v444
      %v446 = vrot.slane %v411, %v445
      %v447 = vlaneseq
      %v448 = vshrl.u32 %v447, 7
      %v449 = vsub.s32 3, %v448
      %v450 = vrot.slane %v415, %v449
      %v451 = vlaneseq
      %v452 = vshrl.u32 %v451, 7
      %v453 = vsub.s32 3, %v452
      %v454 = vrot.slane %v419, %v453
      %v455 = vlaneseq
      %v456 = vshrl.u32 %v455, 7
      %v457 = vsub.s32 3, %v456
      %v458 = vrot.slane %v423, %v457
      %v459 = vlaneseq
      %v460 = vshrl.u32 %v459, 7
      %v461 = vsub.s32 3, %v460
      %v462 = vrot.slane %v427, %v461
      %v463 = vmul.f32 %v394, %v438
      %v464 = vmul.f32 %v394, %v442
      %v465 = vmul.f32 %v394, %v446
      %v466 = vmul.f32 %v394, %v450
      %v467 = vmul.f32 %v394, %v454
      %v468 = vmul.f32 %v394, %v458
      %v469 = vmul.f32 %v394, %v462
      %v470 = vmul.f32 %v398, %v438
      %v471 = vmul.f32 %v398, %v442
      %v472 = vmul.f32 %v398, %v446
      %v473 = vmul.f32 %v398, %v450
      %v474 = vmul.f32 %v398, %v454
      %v475 = vmul.f32 %v398, %v458
      %v476 = vmul.f32 %v398, %v462
      %v477 = vadd.f32 %v378, %v463
      %v478 = vadd.f32 %v379, %v464
      %v479 = vadd.f32 %v380, %v465
      %v480 = vadd.f32 %v381, %v466
      %v481 = vadd.f32 %v382, %v467
      %v482 = vadd.f32 %v383, %v468
      %v483 = vadd.f32 %v384, %v469
      %v484 = vadd.f32 %v385, %v470
      %v485 = vadd.f32 %v386, %v471
      %v486 = vadd.f32 %v387, %v472
      %v487 = vadd.f32 %v388, %v473
      %v488 = vadd.f32 %v389, %v474
      %v489 = vadd.f32 %v390, %v475
      %v490 = vadd.f32 %v391, %v476
      %v491 = vadd.f32 %v477, %v478
      %v492 = vadd.f32 %v491, %v479
      %v493 = vadd.f32 %v492, %v480
      %v494 = vadd.f32 %v493, %v481
      %v495 = vadd.f32 %v494, %v482
      %v496 = vadd.f32 %v495, %v483
      %497 = vadd.xlane.f32.xlu0 %v496
      %v498 = vpop.xlane.xlu0 %497
      %vm499 = vcmask 1043456
      %v500 = vsel %vm499, %v484, 0.0
      %v501 = vsel %vm499, %v485, 0.0
      %v502 = vadd.f32 %v500, %v501
      %v503 = vsel %vm499, %v486, 0.0
      %v504 = vadd.f32 %v502, %v503
      %v505 = vsel %vm499, %v487, 0.0
      %v506 = vadd.f32 %v504, %v505
      %v507 = vsel %vm499, %v488, 0.0
      %v508 = vadd.f32 %v506, %v507
      %v509 = vsel %vm499, %v489, 0.0
      %v510 = vadd.f32 %v508, %v509
      %v511 = vsel %vm499, %v490, 0.0
      %v512 = vadd.f32 %v510, %v511
      %513 = vadd.xlane.f32.xlu0 %v512
      %v514 = vpop.xlane.xlu0 %513
      %v515 = vmul.f32 %v477, %v477
      %v516 = vmul.f32 %v478, %v478
      %v517 = vmul.f32 %v479, %v479
      %v518 = vmul.f32 %v480, %v480
      %v519 = vmul.f32 %v481, %v481
      %v520 = vmul.f32 %v482, %v482
      %v521 = vmul.f32 %v483, %v483
      %v522 = vmul.f32 %v484, %v484
      %v523 = vmul.f32 %v485, %v485
      %v524 = vmul.f32 %v486, %v486
      %v525 = vmul.f32 %v487, %v487
      %v526 = vmul.f32 %v488, %v488
      %v527 = vmul.f32 %v489, %v489
      %v528 = vmul.f32 %v490, %v490
      %v529 = vadd.f32 %v515, %v516
      %v530 = vadd.f32 %v529, %v517
      %v531 = vadd.f32 %v530, %v518
      %v532 = vadd.f32 %v531, %v519
      %v533 = vadd.f32 %v532, %v520
      %v534 = vadd.f32 %v533, %v521
      %535 = vadd.xlane.f32.xlu0 %v534
      %v536 = vpop.xlane.xlu0 %535
      %v537 = vsel %vm499, %v522, 0.0
      %v538 = vsel %vm499, %v523, 0.0
      %v539 = vadd.f32 %v537, %v538
      %v540 = vsel %vm499, %v524, 0.0
      %v541 = vadd.f32 %v539, %v540
      %v542 = vsel %vm499, %v525, 0.0
      %v543 = vadd.f32 %v541, %v542
      %v544 = vsel %vm499, %v526, 0.0
      %v545 = vadd.f32 %v543, %v544
      %v546 = vsel %vm499, %v527, 0.0
      %v547 = vadd.f32 %v545, %v546
      %v548 = vsel %vm499, %v528, 0.0
      %v549 = vadd.f32 %v547, %v548
      %550 = vadd.xlane.f32.xlu0 %v549
      %v551 = vpop.xlane.xlu0 %550
      %v552 = vmul.f32 %v498, 0.001953125
      %v553 = vmul.f32 %v514, 0.001953125
      %v554 = vmul.f32 %v536, 0.001953125
      %v555 = vmul.f32 %v551, 0.001953125
      %v556 = vmul.f32 %v552, %v552
      %v557 = vmul.f32 %v553, %v553
      %v558 = vsub.f32 %v554, %v556
      %v559 = vsub.f32 %v555, %v557
      %v560 = vsub.f32 %v477, %v552
      %v561 = vsub.f32 %v478, %v552
      %v562 = vsub.f32 %v479, %v552
      %v563 = vsub.f32 %v480, %v552
      %v564 = vsub.f32 %v481, %v552
      %v565 = vsub.f32 %v482, %v552
      %v566 = vsub.f32 %v483, %v552
      %v567 = vsub.f32 %v484, %v553
      %v568 = vsub.f32 %v485, %v553
      %v569 = vsub.f32 %v486, %v553
      %v570 = vsub.f32 %v487, %v553
      %v571 = vsub.f32 %v488, %v553
      %v572 = vsub.f32 %v489, %v553
      %v573 = vsub.f32 %v490, %v553
      %v574 = vadd.f32 %v558, 1e-05
      %v575 = vadd.f32 %v559, 1e-05
      %v576 = vrsqrt.pop %v574
      %v577 = vrsqrt.pop %v575
      %v578 = vmul.f32 %v560, %v576
      %v579 = vmul.f32 %v561, %v576
      %v580 = vmul.f32 %v562, %v576
      %v581 = vmul.f32 %v563, %v576
      %v582 = vmul.f32 %v564, %v576
      %v583 = vmul.f32 %v565, %v576
      %v584 = vmul.f32 %v566, %v576
      %v585 = vmul.f32 %v567, %v577
      %v586 = vmul.f32 %v568, %v577
      %v587 = vmul.f32 %v569, %v577
      %v588 = vmul.f32 %v570, %v577
      %v589 = vmul.f32 %v571, %v577
      %v590 = vmul.f32 %v572, %v577
      %v591 = vmul.f32 %v573, %v577
      %593 = vset.pattern.permute.xlu0 0
      %594 = vperm.xlu0 %593, %v95
      %v595 = vpop.permute.xlu0 %594
      %598 = vset.pattern.permute.xlu0 0
      %599 = vperm.xlu0 %598, %v96
      %v600 = vpop.permute.xlu0 %599
      %v602 = vmul.f32 %v578, %v595
      %v603 = vmul.f32 %v579, %v595
      %v604 = vmul.f32 %v580, %v595
      %v605 = vmul.f32 %v581, %v595
      %v606 = vmul.f32 %v582, %v595
      %v607 = vmul.f32 %v583, %v595
      %v608 = vmul.f32 %v584, %v595
      %v609 = vmul.f32 %v585, %v600
      %v610 = vmul.f32 %v586, %v600
      %v611 = vmul.f32 %v587, %v600
      %v612 = vmul.f32 %v588, %v600
      %v613 = vmul.f32 %v589, %v600
      %v614 = vmul.f32 %v590, %v600
      %v615 = vmul.f32 %v591, %v600
      %616 = vset.pattern.permute.xlu0 1
      %617 = vperm.xlu0 %616, %v95
      %v618 = vpop.permute.xlu0 %617
      %620 = vset.pattern.permute.xlu0 1
      %621 = vperm.xlu0 %620, %v96
      %v622 = vpop.permute.xlu0 %621
      %v624 = vadd.f32 %v602, %v618
      %v625 = vadd.f32 %v603, %v618
      %v626 = vadd.f32 %v604, %v618
      %v627 = vadd.f32 %v605, %v618
      %v628 = vadd.f32 %v606, %v618
      %v629 = vadd.f32 %v607, %v618
      %v630 = vadd.f32 %v608, %v618
      %v631 = vadd.f32 %v609, %v622
      %v632 = vadd.f32 %v610, %v622
      %v633 = vadd.f32 %v611, %v622
      %v634 = vadd.f32 %v612, %v622
      %v635 = vadd.f32 %v613, %v622
      %v636 = vadd.f32 %v614, %v622
      %v637 = vadd.f32 %v615, %v622
      %v638 = vmax.f32 %v624, 0.0
      %v639 = vmax.f32 %v625, 0.0
      %v640 = vmax.f32 %v626, 0.0
      %v641 = vmax.f32 %v627, 0.0
      %v642 = vmax.f32 %v628, 0.0
      %v643 = vmax.f32 %v629, 0.0
      %v644 = vmax.f32 %v630, 0.0
      %v645 = vmax.f32 %v631, 0.0
      %v646 = vmax.f32 %v632, 0.0
      %v647 = vmax.f32 %v633, 0.0
      %v648 = vmax.f32 %v634, 0.0
      %v649 = vmax.f32 %v635, 0.0
      %v650 = vmax.f32 %v636, 0.0
      %v651 = vmax.f32 %v637, 0.0
      %v652 = vmin.f32 %v638, 6.0
      %v653 = vmin.f32 %v639, 6.0
      %v654 = vmin.f32 %v640, 6.0
      %v655 = vmin.f32 %v641, 6.0
      %v656 = vmin.f32 %v642, 6.0
      %v657 = vmin.f32 %v643, 6.0
      %v658 = vmin.f32 %v644, 6.0
      %v659 = vmin.f32 %v645, 6.0
      %v660 = vmin.f32 %v646, 6.0
      %v661 = vmin.f32 %v647, 6.0
      %v662 = vmin.f32 %v648, 6.0
      %v663 = vmin.f32 %v649, 6.0
      %v664 = vmin.f32 %v650, 6.0
      %v665 = vmin.f32 %v651, 6.0
      %v667 = vlaneseq
      %v668 = vshrl.u32 %v667, 7
      %v669 = vsub.s32 0, %v668
      %v670 = vrot.slane %v68, %v669
      %v671 = vlaneseq
      %v672 = vshrl.u32 %v671, 7
      %v673 = vsub.s32 1, %v672
      %v674 = vrot.slane %v68, %v673
      %v675 = vlaneseq
      %v676 = vshrl.u32 %v675, 7
      %v677 = vsub.s32 2, %v676
      %v678 = vrot.slane %v68, %v677
      %v679 = vlaneseq
      %v680 = vshrl.u32 %v679, 7
      %v681 = vsub.s32 3, %v680
      %v682 = vrot.slane %v68, %v681
      %v683 = vlaneseq
      %v684 = vshrl.u32 %v683, 7
      %v685 = vsub.s32 4, %v684
      %v686 = vrot.slane %v68, %v685
      %v687 = vlaneseq
      %v688 = vshrl.u32 %v687, 7
      %v689 = vsub.s32 5, %v688
      %v690 = vrot.slane %v68, %v689
      %v691 = vlaneseq
      %v692 = vshrl.u32 %v691, 7
      %v693 = vsub.s32 6, %v692
      %v694 = vrot.slane %v68, %v693
      %v702 = vmul.f32 %v652, %v670
      %v703 = vmul.f32 %v653, %v674
      %v704 = vmul.f32 %v654, %v678
      %v705 = vmul.f32 %v655, %v682
      %v706 = vmul.f32 %v656, %v686
      %v707 = vmul.f32 %v657, %v690
      %v708 = vmul.f32 %v658, %v694
      %v709 = vmul.f32 %v659, %v670
      %v710 = vmul.f32 %v660, %v674
      %v711 = vmul.f32 %v661, %v678
      %v712 = vmul.f32 %v662, %v682
      %v713 = vmul.f32 %v663, %v686
      %v714 = vmul.f32 %v664, %v690
      %v715 = vmul.f32 %v665, %v694
      %716 = vst [vmem:[#allocation2 + $0x8] sm:$0xff] %v702
      %717 = vst [vmem:[#allocation2 + $0x10] sm:$0xff] %v703
      %718 = vst [vmem:[#allocation2 + $0x18] sm:$0xff] %v704
      %719 = vst [vmem:[#allocation2 + $0x20] sm:$0xff] %v705
      %720 = vst [vmem:[#allocation2 + $0x28] sm:$0xff] %v706
      %721 = vst [vmem:[#allocation2 + $0x30] sm:$0xff] %v707
      %722 = vst [vmem:[#allocation2 + $0x38] sm:$0xff] %v708
      %723 = vst [vmem:[#allocation2 + $0x50] sm:$0xf] %v709
      %724 = vst [vmem:[#allocation2 + $0x58] sm:$0xf] %v710
      %725 = vst [vmem:[#allocation2 + $0x60] sm:$0xf] %v711
      %726 = vst [vmem:[#allocation2 + $0x68] sm:$0xf] %v712
      %727 = vst [vmem:[#allocation2 + $0x70] sm:$0xf] %v713
      %728 = vst [vmem:[#allocation2 + $0x78] sm:$0xf] %v714
      %729 = vst [vmem:[#allocation2 + $0x80] sm:$0xf] %v715
      %731 = vset.pattern.permute.xlu0 4
      %732 = vperm.xlu0 %731, %v97
      %v733 = vpop.permute.xlu0 %732
      %736 = vset.pattern.permute.xlu0 4
      %737 = vperm.xlu0 %736, %v98
      %v738 = vpop.permute.xlu0 %737
      %v740 = vmul.f32 %v733, %v702
      %v741 = vmul.f32 %v733, %v703
      %v742 = vmul.f32 %v733, %v704
      %v743 = vmul.f32 %v733, %v705
      %v744 = vmul.f32 %v733, %v706
      %v745 = vmul.f32 %v733, %v707
      %v746 = vmul.f32 %v733, %v708
      %v747 = vmul.f32 %v738, %v709
      %v748 = vmul.f32 %v738, %v710
      %v749 = vmul.f32 %v738, %v711
      %v750 = vmul.f32 %v738, %v712
      %v751 = vmul.f32 %v738, %v713
      %v752 = vmul.f32 %v738, %v714
      %v753 = vmul.f32 %v738, %v715
      %v754 = vld [vmem:[#allocation2] sm:$0xff]
      %v755 = vld [vmem:[#allocation2 + $0x8] sm:$0xff]
      %v756 = vld [vmem:[#allocation2 + $0x10] sm:$0xff]
      %v757 = vld [vmem:[#allocation2 + $0x18] sm:$0xff]
      %v758 = vld [vmem:[#allocation2 + $0x20] sm:$0xff]
      %v759 = vld [vmem:[#allocation2 + $0x28] sm:$0xff]
      %v760 = vld [vmem:[#allocation2 + $0x30] sm:$0xff]
      %v761 = vld [vmem:[#allocation2 + $0x38] sm:$0xff]
      %v762 = vld [vmem:[#allocation2 + $0x48] sm:$0xf]
      %v763 = vld [vmem:[#allocation2 + $0x50] sm:$0xf]
      %v764 = vld [vmem:[#allocation2 + $0x58] sm:$0xf]
      %v765 = vld [vmem:[#allocation2 + $0x60] sm:$0xf]
      %v766 = vld [vmem:[#allocation2 + $0x68] sm:$0xf]
      %v767 = vld [vmem:[#allocation2 + $0x70] sm:$0xf]
      %v768 = vld [vmem:[#allocation2 + $0x78] sm:$0xf]
      %v769 = vld [vmem:[#allocation2 + $0x80] sm:$0xf]
      %770 = vset.pattern.permute.xlu0 0
      %771 = vperm.xlu0 %770, %v97
      %v772 = vpop.permute.xlu0 %771
      %774 = vset.pattern.permute.xlu0 0
      %775 = vperm.xlu0 %774, %v98
      %v776 = vpop.permute.xlu0 %775
      %v778 = vmul.f32 %v772, %v754
      %v779 = vmul.f32 %v772, %v755
      %v780 = vmul.f32 %v772, %v756
      %v781 = vmul.f32 %v772, %v757
      %v782 = vmul.f32 %v772, %v758
      %v783 = vmul.f32 %v772, %v759
      %v784 = vmul.f32 %v772, %v760
      %v785 = vmul.f32 %v772, %v761
      %v786 = vmul.f32 %v776, %v762
      %v787 = vmul.f32 %v776, %v763
      %v788 = vmul.f32 %v776, %v764
      %v789 = vmul.f32 %v776, %v765
      %v790 = vmul.f32 %v776, %v766
      %v791 = vmul.f32 %v776, %v767
      %v792 = vmul.f32 %v776, %v768
      %v793 = vmul.f32 %v776, %v769
      %810 = vrot.lane.b32.xlu0 %v778, 42
      %v811 = vpop.permute.xlu0 %810
      %812 = vrot.lane.b32.xlu0 %v779, 42
      %v813 = vpop.permute.xlu0 %812
      %814 = vrot.lane.b32.xlu0 %v780, 42
      %v815 = vpop.permute.xlu0 %814
      %816 = vrot.lane.b32.xlu0 %v781, 42
      %v817 = vpop.permute.xlu0 %816
      %818 = vrot.lane.b32.xlu0 %v782, 42
      %v819 = vpop.permute.xlu0 %818
      %820 = vrot.lane.b32.xlu0 %v783, 42
      %v821 = vpop.permute.xlu0 %820
      %822 = vrot.lane.b32.xlu0 %v784, 42
      %v823 = vpop.permute.xlu0 %822
      %824 = vrot.lane.b32.xlu0 %v785, 42
      %v825 = vpop.permute.xlu0 %824
      %826 = vrot.lane.b32.xlu0 %v786, 42
      %v827 = vpop.permute.xlu0 %826
      %828 = vrot.lane.b32.xlu0 %v787, 42
      %v829 = vpop.permute.xlu0 %828
      %830 = vrot.lane.b32.xlu0 %v788, 42
      %v831 = vpop.permute.xlu0 %830
      %832 = vrot.lane.b32.xlu0 %v789, 42
      %v833 = vpop.permute.xlu0 %832
      %834 = vrot.lane.b32.xlu0 %v790, 42
      %v835 = vpop.permute.xlu0 %834
      %836 = vrot.lane.b32.xlu0 %v791, 42
      %v837 = vpop.permute.xlu0 %836
      %838 = vrot.lane.b32.xlu0 %v792, 42
      %v839 = vpop.permute.xlu0 %838
      %840 = vrot.lane.b32.xlu0 %v793, 42
      %v841 = vpop.permute.xlu0 %840
      %vm842 = vcmask 343040
      %v843 = vsel %vm842, %v811, %v813
      %v844 = vsel %vm842, %v813, %v815
      %v845 = vsel %vm842, %v815, %v817
      %v846 = vsel %vm842, %v817, %v819
      %v847 = vsel %vm842, %v819, %v821
      %v848 = vsel %vm842, %v821, %v823
      %v849 = vsel %vm842, %v823, %v825
      %v850 = vsel %vm842, %v827, %v829
      %v851 = vsel %vm842, %v829, %v831
      %v852 = vsel %vm842, %v831, %v833
      %v853 = vsel %vm842, %v833, %v835
      %v854 = vsel %vm842, %v835, %v837
      %v855 = vsel %vm842, %v837, %v839
      %v856 = vsel %vm842, %v839, %v841
      %v871 = vadd.f32 %v740, %v843
      %v872 = vadd.f32 %v741, %v844
      %v873 = vadd.f32 %v742, %v845
      %v874 = vadd.f32 %v743, %v846
      %v875 = vadd.f32 %v744, %v847
      %v876 = vadd.f32 %v745, %v848
      %v877 = vadd.f32 %v746, %v849
      %v878 = vadd.f32 %v747, %v850
      %v879 = vadd.f32 %v748, %v851
      %v880 = vadd.f32 %v749, %v852
      %v881 = vadd.f32 %v750, %v853
      %v882 = vadd.f32 %v751, %v854
      %v883 = vadd.f32 %v752, %v855
      %v884 = vadd.f32 %v753, %v856
      %885 = vset.pattern.permute.xlu0 1
      %886 = vperm.xlu0 %885, %v97
      %v887 = vpop.permute.xlu0 %886
      %889 = vset.pattern.permute.xlu0 1
      %890 = vperm.xlu0 %889, %v98
      %v891 = vpop.permute.xlu0 %890
      %v893 = vmul.f32 %v887, %v754
      %v894 = vmul.f32 %v887, %v755
      %v895 = vmul.f32 %v887, %v756
      %v896 = vmul.f32 %v887, %v757
      %v897 = vmul.f32 %v887, %v758
      %v898 = vmul.f32 %v887, %v759
      %v899 = vmul.f32 %v887, %v760
      %v900 = vmul.f32 %v887, %v761
      %v901 = vmul.f32 %v891, %v762
      %v902 = vmul.f32 %v891, %v763
      %v903 = vmul.f32 %v891, %v764
      %v904 = vmul.f32 %v891, %v765
      %v905 = vmul.f32 %v891, %v766
      %v906 = vmul.f32 %v891, %v767
      %v907 = vmul.f32 %v891, %v768
      %v908 = vmul.f32 %v891, %v769
      %925 = vrot.lane.b32.xlu0 %v893, 40
      %v926 = vpop.permute.xlu0 %925
      %927 = vrot.lane.b32.xlu0 %v894, 40
      %v928 = vpop.permute.xlu0 %927
      %929 = vrot.lane.b32.xlu0 %v895, 40
      %v930 = vpop.permute.xlu0 %929
      %931 = vrot.lane.b32.xlu0 %v896, 40
      %v932 = vpop.permute.xlu0 %931
      %933 = vrot.lane.b32.xlu0 %v897, 40
      %v934 = vpop.permute.xlu0 %933
      %935 = vrot.lane.b32.xlu0 %v898, 40
      %v936 = vpop.permute.xlu0 %935
      %937 = vrot.lane.b32.xlu0 %v899, 40
      %v938 = vpop.permute.xlu0 %937
      %939 = vrot.lane.b32.xlu0 %v900, 40
      %v940 = vpop.permute.xlu0 %939
      %941 = vrot.lane.b32.xlu0 %v901, 40
      %v942 = vpop.permute.xlu0 %941
      %943 = vrot.lane.b32.xlu0 %v902, 40
      %v944 = vpop.permute.xlu0 %943
      %945 = vrot.lane.b32.xlu0 %v903, 40
      %v946 = vpop.permute.xlu0 %945
      %947 = vrot.lane.b32.xlu0 %v904, 40
      %v948 = vpop.permute.xlu0 %947
      %949 = vrot.lane.b32.xlu0 %v905, 40
      %v950 = vpop.permute.xlu0 %949
      %951 = vrot.lane.b32.xlu0 %v906, 40
      %v952 = vpop.permute.xlu0 %951
      %953 = vrot.lane.b32.xlu0 %v907, 40
      %v954 = vpop.permute.xlu0 %953
      %955 = vrot.lane.b32.xlu0 %v908, 40
      %v956 = vpop.permute.xlu0 %955
      %vm957 = vcmask 326656
      %v958 = vsel %vm957, %v926, %v928
      %v959 = vsel %vm957, %v928, %v930
      %v960 = vsel %vm957, %v930, %v932
      %v961 = vsel %vm957, %v932, %v934
      %v962 = vsel %vm957, %v934, %v936
      %v963 = vsel %vm957, %v936, %v938
      %v964 = vsel %vm957, %v938, %v940
      %v965 = vsel %vm957, %v942, %v944
      %v966 = vsel %vm957, %v944, %v946
      %v967 = vsel %vm957, %v946, %v948
      %v968 = vsel %vm957, %v948, %v950
      %v969 = vsel %vm957, %v950, %v952
      %v970 = vsel %vm957, %v952, %v954
      %v971 = vsel %vm957, %v954, %v956
      %v986 = vadd.f32 %v871, %v958
      %v987 = vadd.f32 %v872, %v959
      %v988 = vadd.f32 %v873, %v960
      %v989 = vadd.f32 %v874, %v961
      %v990 = vadd.f32 %v875, %v962
      %v991 = vadd.f32 %v876, %v963
      %v992 = vadd.f32 %v877, %v964
      %v993 = vadd.f32 %v878, %v965
      %v994 = vadd.f32 %v879, %v966
      %v995 = vadd.f32 %v880, %v967
      %v996 = vadd.f32 %v881, %v968
      %v997 = vadd.f32 %v882, %v969
      %v998 = vadd.f32 %v883, %v970
      %v999 = vadd.f32 %v884, %v971
      %1000 = vset.pattern.permute.xlu0 2
      %1001 = vperm.xlu0 %1000, %v97
      %v1002 = vpop.permute.xlu0 %1001
      %1004 = vset.pattern.permute.xlu0 2
      %1005 = vperm.xlu0 %1004, %v98
      %v1006 = vpop.permute.xlu0 %1005
      %v1008 = vmul.f32 %v1002, %v754
      %v1009 = vmul.f32 %v1002, %v755
      %v1010 = vmul.f32 %v1002, %v756
      %v1011 = vmul.f32 %v1002, %v757
      %v1012 = vmul.f32 %v1002, %v758
      %v1013 = vmul.f32 %v1002, %v759
      %v1014 = vmul.f32 %v1002, %v760
      %v1015 = vmul.f32 %v1002, %v761
      %v1016 = vmul.f32 %v1006, %v762
      %v1017 = vmul.f32 %v1006, %v763
      %v1018 = vmul.f32 %v1006, %v764
      %v1019 = vmul.f32 %v1006, %v765
      %v1020 = vmul.f32 %v1006, %v766
      %v1021 = vmul.f32 %v1006, %v767
      %v1022 = vmul.f32 %v1006, %v768
      %v1023 = vmul.f32 %v1006, %v769
      %1040 = vrot.lane.b32.xlu0 %v1008, 38
      %v1041 = vpop.permute.xlu0 %1040
      %1042 = vrot.lane.b32.xlu0 %v1009, 38
      %v1043 = vpop.permute.xlu0 %1042
      %1044 = vrot.lane.b32.xlu0 %v1010, 38
      %v1045 = vpop.permute.xlu0 %1044
      %1046 = vrot.lane.b32.xlu0 %v1011, 38
      %v1047 = vpop.permute.xlu0 %1046
      %1048 = vrot.lane.b32.xlu0 %v1012, 38
      %v1049 = vpop.permute.xlu0 %1048
      %1050 = vrot.lane.b32.xlu0 %v1013, 38
      %v1051 = vpop.permute.xlu0 %1050
      %1052 = vrot.lane.b32.xlu0 %v1014, 38
      %v1053 = vpop.permute.xlu0 %1052
      %1054 = vrot.lane.b32.xlu0 %v1015, 38
      %v1055 = vpop.permute.xlu0 %1054
      %1056 = vrot.lane.b32.xlu0 %v1016, 38
      %v1057 = vpop.permute.xlu0 %1056
      %1058 = vrot.lane.b32.xlu0 %v1017, 38
      %v1059 = vpop.permute.xlu0 %1058
      %1060 = vrot.lane.b32.xlu0 %v1018, 38
      %v1061 = vpop.permute.xlu0 %1060
      %1062 = vrot.lane.b32.xlu0 %v1019, 38
      %v1063 = vpop.permute.xlu0 %1062
      %1064 = vrot.lane.b32.xlu0 %v1020, 38
      %v1065 = vpop.permute.xlu0 %1064
      %1066 = vrot.lane.b32.xlu0 %v1021, 38
      %v1067 = vpop.permute.xlu0 %1066
      %1068 = vrot.lane.b32.xlu0 %v1022, 38
      %v1069 = vpop.permute.xlu0 %1068
      %1070 = vrot.lane.b32.xlu0 %v1023, 38
      %v1071 = vpop.permute.xlu0 %1070
      %vm1072 = vcmask 310272
      %v1073 = vsel %vm1072, %v1041, %v1043
      %v1074 = vsel %vm1072, %v1043, %v1045
      %v1075 = vsel %vm1072, %v1045, %v1047
      %v1076 = vsel %vm1072, %v1047, %v1049
      %v1077 = vsel %vm1072, %v1049, %v1051
      %v1078 = vsel %vm1072, %v1051, %v1053
      %v1079 = vsel %vm1072, %v1053, %v1055
      %v1080 = vsel %vm1072, %v1057, %v1059
      %v1081 = vsel %vm1072, %v1059, %v1061
      %v1082 = vsel %vm1072, %v1061, %v1063
      %v1083 = vsel %vm1072, %v1063, %v1065
      %v1084 = vsel %vm1072, %v1065, %v1067
      %v1085 = vsel %vm1072, %v1067, %v1069
      %v1086 = vsel %vm1072, %v1069, %v1071
      %v1101 = vadd.f32 %v986, %v1073
      %v1102 = vadd.f32 %v987, %v1074
      %v1103 = vadd.f32 %v988, %v1075
      %v1104 = vadd.f32 %v989, %v1076
      %v1105 = vadd.f32 %v990, %v1077
      %v1106 = vadd.f32 %v991, %v1078
      %v1107 = vadd.f32 %v992, %v1079
      %v1108 = vadd.f32 %v993, %v1080
      %v1109 = vadd.f32 %v994, %v1081
      %v1110 = vadd.f32 %v995, %v1082
      %v1111 = vadd.f32 %v996, %v1083
      %v1112 = vadd.f32 %v997, %v1084
      %v1113 = vadd.f32 %v998, %v1085
      %v1114 = vadd.f32 %v999, %v1086
      %1115 = vset.pattern.permute.xlu0 3
      %1116 = vperm.xlu0 %1115, %v97
      %v1117 = vpop.permute.xlu0 %1116
      %1119 = vset.pattern.permute.xlu0 3
      %1120 = vperm.xlu0 %1119, %v98
      %v1121 = vpop.permute.xlu0 %1120
      %v1123 = vmul.f32 %v1117, %v754
      %v1124 = vmul.f32 %v1117, %v755
      %v1125 = vmul.f32 %v1117, %v756
      %v1126 = vmul.f32 %v1117, %v757
      %v1127 = vmul.f32 %v1117, %v758
      %v1128 = vmul.f32 %v1117, %v759
      %v1129 = vmul.f32 %v1117, %v760
      %v1130 = vmul.f32 %v1117, %v761
      %v1131 = vmul.f32 %v1121, %v762
      %v1132 = vmul.f32 %v1121, %v763
      %v1133 = vmul.f32 %v1121, %v764
      %v1134 = vmul.f32 %v1121, %v765
      %v1135 = vmul.f32 %v1121, %v766
      %v1136 = vmul.f32 %v1121, %v767
      %v1137 = vmul.f32 %v1121, %v768
      %v1138 = vmul.f32 %v1121, %v769
      %1155 = vrot.lane.b32.xlu0 %v1123, 2
      %v1156 = vpop.permute.xlu0 %1155
      %1157 = vrot.lane.b32.xlu0 %v1124, 2
      %v1158 = vpop.permute.xlu0 %1157
      %1159 = vrot.lane.b32.xlu0 %v1125, 2
      %v1160 = vpop.permute.xlu0 %1159
      %1161 = vrot.lane.b32.xlu0 %v1126, 2
      %v1162 = vpop.permute.xlu0 %1161
      %1163 = vrot.lane.b32.xlu0 %v1127, 2
      %v1164 = vpop.permute.xlu0 %1163
      %1165 = vrot.lane.b32.xlu0 %v1128, 2
      %v1166 = vpop.permute.xlu0 %1165
      %1167 = vrot.lane.b32.xlu0 %v1129, 2
      %v1168 = vpop.permute.xlu0 %1167
      %1169 = vrot.lane.b32.xlu0 %v1130, 2
      %v1170 = vpop.permute.xlu0 %1169
      %1171 = vrot.lane.b32.xlu0 %v1131, 2
      %v1172 = vpop.permute.xlu0 %1171
      %1173 = vrot.lane.b32.xlu0 %v1132, 2
      %v1174 = vpop.permute.xlu0 %1173
      %1175 = vrot.lane.b32.xlu0 %v1133, 2
      %v1176 = vpop.permute.xlu0 %1175
      %1177 = vrot.lane.b32.xlu0 %v1134, 2
      %v1178 = vpop.permute.xlu0 %1177
      %1179 = vrot.lane.b32.xlu0 %v1135, 2
      %v1180 = vpop.permute.xlu0 %1179
      %1181 = vrot.lane.b32.xlu0 %v1136, 2
      %v1182 = vpop.permute.xlu0 %1181
      %1183 = vrot.lane.b32.xlu0 %v1137, 2
      %v1184 = vpop.permute.xlu0 %1183
      %1185 = vrot.lane.b32.xlu0 %v1138, 2
      %v1186 = vpop.permute.xlu0 %1185
      %vm1187 = vcmask 15360
      %v1188 = vsel %vm1187, %v1156, %v1158
      %v1189 = vsel %vm1187, %v1158, %v1160
      %v1190 = vsel %vm1187, %v1160, %v1162
      %v1191 = vsel %vm1187, %v1162, %v1164
      %v1192 = vsel %vm1187, %v1164, %v1166
      %v1193 = vsel %vm1187, %v1166, %v1168
      %v1194 = vsel %vm1187, %v1168, %v1170
      %v1195 = vsel %vm1187, %v1172, %v1174
      %v1196 = vsel %vm1187, %v1174, %v1176
      %v1197 = vsel %vm1187, %v1176, %v1178
      %v1198 = vsel %vm1187, %v1178, %v1180
      %v1199 = vsel %vm1187, %v1180, %v1182
      %v1200 = vsel %vm1187, %v1182, %v1184
      %v1201 = vsel %vm1187, %v1184, %v1186
      %v1216 = vadd.f32 %v1101, %v1188
      %v1217 = vadd.f32 %v1102, %v1189
      %v1218 = vadd.f32 %v1103, %v1190
      %v1219 = vadd.f32 %v1104, %v1191
      %v1220 = vadd.f32 %v1105, %v1192
      %v1221 = vadd.f32 %v1106, %v1193
      %v1222 = vadd.f32 %v1107, %v1194
      %v1223 = vadd.f32 %v1108, %v1195
      %v1224 = vadd.f32 %v1109, %v1196
      %v1225 = vadd.f32 %v1110, %v1197
      %v1226 = vadd.f32 %v1111, %v1198
      %v1227 = vadd.f32 %v1112, %v1199
      %v1228 = vadd.f32 %v1113, %v1200
      %v1229 = vadd.f32 %v1114, %v1201
      %v1230 = vld [vmem:[#allocation2 + $0x8] sm:$0xff]
      %v1231 = vld [vmem:[#allocation2 + $0x10] sm:$0xff]
      %v1232 = vld [vmem:[#allocation2 + $0x18] sm:$0xff]
      %v1233 = vld [vmem:[#allocation2 + $0x20] sm:$0xff]
      %v1234 = vld [vmem:[#allocation2 + $0x28] sm:$0xff]
      %v1235 = vld [vmem:[#allocation2 + $0x30] sm:$0xff]
      %v1236 = vld [vmem:[#allocation2 + $0x38] sm:$0xff]
      %v1237 = vld [vmem:[#allocation2 + $0x40] sm:$0xff]
      %v1238 = vld [vmem:[#allocation2 + $0x50] sm:$0xf]
      %v1239 = vld [vmem:[#allocation2 + $0x58] sm:$0xf]
      %v1240 = vld [vmem:[#allocation2 + $0x60] sm:$0xf]
      %v1241 = vld [vmem:[#allocation2 + $0x68] sm:$0xf]
      %v1242 = vld [vmem:[#allocation2 + $0x70] sm:$0xf]
      %v1243 = vld [vmem:[#allocation2 + $0x78] sm:$0xf]
      %v1244 = vld [vmem:[#allocation2 + $0x80] sm:$0xf]
      %v1245 = vld [vmem:[#allocation2 + $0x88] sm:$0xf]
      %1246 = vset.pattern.permute.xlu0 5
      %1247 = vperm.xlu0 %1246, %v97
      %v1248 = vpop.permute.xlu0 %1247
      %1250 = vset.pattern.permute.xlu0 5
      %1251 = vperm.xlu0 %1250, %v98
      %v1252 = vpop.permute.xlu0 %1251
      %v1254 = vmul.f32 %v1248, %v1230
      %v1255 = vmul.f32 %v1248, %v1231
      %v1256 = vmul.f32 %v1248, %v1232
      %v1257 = vmul.f32 %v1248, %v1233
      %v1258 = vmul.f32 %v1248, %v1234
      %v1259 = vmul.f32 %v1248, %v1235
      %v1260 = vmul.f32 %v1248, %v1236
      %v1261 = vmul.f32 %v1248, %v1237
      %v1262 = vmul.f32 %v1252, %v1238
      %v1263 = vmul.f32 %v1252, %v1239
      %v1264 = vmul.f32 %v1252, %v1240
      %v1265 = vmul.f32 %v1252, %v1241
      %v1266 = vmul.f32 %v1252, %v1242
      %v1267 = vmul.f32 %v1252, %v1243
      %v1268 = vmul.f32 %v1252, %v1244
      %v1269 = vmul.f32 %v1252, %v1245
      %1286 = vrot.lane.b32.xlu0 %v1254, 126
      %v1287 = vpop.permute.xlu0 %1286
      %1288 = vrot.lane.b32.xlu0 %v1255, 126
      %v1289 = vpop.permute.xlu0 %1288
      %1290 = vrot.lane.b32.xlu0 %v1256, 126
      %v1291 = vpop.permute.xlu0 %1290
      %1292 = vrot.lane.b32.xlu0 %v1257, 126
      %v1293 = vpop.permute.xlu0 %1292
      %1294 = vrot.lane.b32.xlu0 %v1258, 126
      %v1295 = vpop.permute.xlu0 %1294
      %1296 = vrot.lane.b32.xlu0 %v1259, 126
      %v1297 = vpop.permute.xlu0 %1296
      %1298 = vrot.lane.b32.xlu0 %v1260, 126
      %v1299 = vpop.permute.xlu0 %1298
      %1300 = vrot.lane.b32.xlu0 %v1261, 126
      %v1301 = vpop.permute.xlu0 %1300
      %1302 = vrot.lane.b32.xlu0 %v1262, 126
      %v1303 = vpop.permute.xlu0 %1302
      %1304 = vrot.lane.b32.xlu0 %v1263, 126
      %v1305 = vpop.permute.xlu0 %1304
      %1306 = vrot.lane.b32.xlu0 %v1264, 126
      %v1307 = vpop.permute.xlu0 %1306
      %1308 = vrot.lane.b32.xlu0 %v1265, 126
      %v1309 = vpop.permute.xlu0 %1308
      %1310 = vrot.lane.b32.xlu0 %v1266, 126
      %v1311 = vpop.permute.xlu0 %1310
      %1312 = vrot.lane.b32.xlu0 %v1267, 126
      %v1313 = vpop.permute.xlu0 %1312
      %1314 = vrot.lane.b32.xlu0 %v1268, 126
      %v1315 = vpop.permute.xlu0 %1314
      %1316 = vrot.lane.b32.xlu0 %v1269, 126
      %v1317 = vpop.permute.xlu0 %1316
      %vm1318 = vcmask 1031168
      %v1319 = vsel %vm1318, %v1287, %v1289
      %v1320 = vsel %vm1318, %v1289, %v1291
      %v1321 = vsel %vm1318, %v1291, %v1293
      %v1322 = vsel %vm1318, %v1293, %v1295
      %v1323 = vsel %vm1318, %v1295, %v1297
      %v1324 = vsel %vm1318, %v1297, %v1299
      %v1325 = vsel %vm1318, %v1299, %v1301
      %v1326 = vsel %vm1318, %v1303, %v1305
      %v1327 = vsel %vm1318, %v1305, %v1307
      %v1328 = vsel %vm1318, %v1307, %v1309
      %v1329 = vsel %vm1318, %v1309, %v1311
      %v1330 = vsel %vm1318, %v1311, %v1313
      %v1331 = vsel %vm1318, %v1313, %v1315
      %v1332 = vsel %vm1318, %v1315, %v1317
      %v1347 = vadd.f32 %v1216, %v1319
      %v1348 = vadd.f32 %v1217, %v1320
      %v1349 = vadd.f32 %v1218, %v1321
      %v1350 = vadd.f32 %v1219, %v1322
      %v1351 = vadd.f32 %v1220, %v1323
      %v1352 = vadd.f32 %v1221, %v1324
      %v1353 = vadd.f32 %v1222, %v1325
      %v1354 = vadd.f32 %v1223, %v1326
      %v1355 = vadd.f32 %v1224, %v1327
      %v1356 = vadd.f32 %v1225, %v1328
      %v1357 = vadd.f32 %v1226, %v1329
      %v1358 = vadd.f32 %v1227, %v1330
      %v1359 = vadd.f32 %v1228, %v1331
      %v1360 = vadd.f32 %v1229, %v1332
      %1361 = vset.pattern.permute.xlu0 6
      %1362 = vperm.xlu0 %1361, %v97
      %v1363 = vpop.permute.xlu0 %1362
      %1365 = vset.pattern.permute.xlu0 6
      %1366 = vperm.xlu0 %1365, %v98
      %v1367 = vpop.permute.xlu0 %1366
      %v1369 = vmul.f32 %v1363, %v1230
      %v1370 = vmul.f32 %v1363, %v1231
      %v1371 = vmul.f32 %v1363, %v1232
      %v1372 = vmul.f32 %v1363, %v1233
      %v1373 = vmul.f32 %v1363, %v1234
      %v1374 = vmul.f32 %v1363, %v1235
      %v1375 = vmul.f32 %v1363, %v1236
      %v1376 = vmul.f32 %v1363, %v1237
      %v1377 = vmul.f32 %v1367, %v1238
      %v1378 = vmul.f32 %v1367, %v1239
      %v1379 = vmul.f32 %v1367, %v1240
      %v1380 = vmul.f32 %v1367, %v1241
      %v1381 = vmul.f32 %v1367, %v1242
      %v1382 = vmul.f32 %v1367, %v1243
      %v1383 = vmul.f32 %v1367, %v1244
      %v1384 = vmul.f32 %v1367, %v1245
      %1401 = vrot.lane.b32.xlu0 %v1369, 90
      %v1402 = vpop.permute.xlu0 %1401
      %1403 = vrot.lane.b32.xlu0 %v1370, 90
      %v1404 = vpop.permute.xlu0 %1403
      %1405 = vrot.lane.b32.xlu0 %v1371, 90
      %v1406 = vpop.permute.xlu0 %1405
      %1407 = vrot.lane.b32.xlu0 %v1372, 90
      %v1408 = vpop.permute.xlu0 %1407
      %1409 = vrot.lane.b32.xlu0 %v1373, 90
      %v1410 = vpop.permute.xlu0 %1409
      %1411 = vrot.lane.b32.xlu0 %v1374, 90
      %v1412 = vpop.permute.xlu0 %1411
      %1413 = vrot.lane.b32.xlu0 %v1375, 90
      %v1414 = vpop.permute.xlu0 %1413
      %1415 = vrot.lane.b32.xlu0 %v1376, 90
      %v1416 = vpop.permute.xlu0 %1415
      %1417 = vrot.lane.b32.xlu0 %v1377, 90
      %v1418 = vpop.permute.xlu0 %1417
      %1419 = vrot.lane.b32.xlu0 %v1378, 90
      %v1420 = vpop.permute.xlu0 %1419
      %1421 = vrot.lane.b32.xlu0 %v1379, 90
      %v1422 = vpop.permute.xlu0 %1421
      %1423 = vrot.lane.b32.xlu0 %v1380, 90
      %v1424 = vpop.permute.xlu0 %1423
      %1425 = vrot.lane.b32.xlu0 %v1381, 90
      %v1426 = vpop.permute.xlu0 %1425
      %1427 = vrot.lane.b32.xlu0 %v1382, 90
      %v1428 = vpop.permute.xlu0 %1427
      %1429 = vrot.lane.b32.xlu0 %v1383, 90
      %v1430 = vpop.permute.xlu0 %1429
      %1431 = vrot.lane.b32.xlu0 %v1384, 90
      %v1432 = vpop.permute.xlu0 %1431
      %vm1433 = vcmask 736256
      %v1434 = vsel %vm1433, %v1402, %v1404
      %v1435 = vsel %vm1433, %v1404, %v1406
      %v1436 = vsel %vm1433, %v1406, %v1408
      %v1437 = vsel %vm1433, %v1408, %v1410
      %v1438 = vsel %vm1433, %v1410, %v1412
      %v1439 = vsel %vm1433, %v1412, %v1414
      %v1440 = vsel %vm1433, %v1414, %v1416
      %v1441 = vsel %vm1433, %v1418, %v1420
      %v1442 = vsel %vm1433, %v1420, %v1422
      %v1443 = vsel %vm1433, %v1422, %v1424
      %v1444 = vsel %vm1433, %v1424, %v1426
      %v1445 = vsel %vm1433, %v1426, %v1428
      %v1446 = vsel %vm1433, %v1428, %v1430
      %v1447 = vsel %vm1433, %v1430, %v1432
      %v1462 = vadd.f32 %v1347, %v1434
      %v1463 = vadd.f32 %v1348, %v1435
      %v1464 = vadd.f32 %v1349, %v1436
      %v1465 = vadd.f32 %v1350, %v1437
      %v1466 = vadd.f32 %v1351, %v1438
      %v1467 = vadd.f32 %v1352, %v1439
      %v1468 = vadd.f32 %v1353, %v1440
      %v1469 = vadd.f32 %v1354, %v1441
      %v1470 = vadd.f32 %v1355, %v1442
      %v1471 = vadd.f32 %v1356, %v1443
      %v1472 = vadd.f32 %v1357, %v1444
      %v1473 = vadd.f32 %v1358, %v1445
      %v1474 = vadd.f32 %v1359, %v1446
      %v1475 = vadd.f32 %v1360, %v1447
      %1476 = vset.pattern.permute.xlu0 7
      %1477 = vperm.xlu0 %1476, %v97
      %v1478 = vpop.permute.xlu0 %1477
      %1480 = vset.pattern.permute.xlu0 7
      %1481 = vperm.xlu0 %1480, %v98
      %v1482 = vpop.permute.xlu0 %1481
      %v1484 = vmul.f32 %v1478, %v1230
      %v1485 = vmul.f32 %v1478, %v1231
      %v1486 = vmul.f32 %v1478, %v1232
      %v1487 = vmul.f32 %v1478, %v1233
      %v1488 = vmul.f32 %v1478, %v1234
      %v1489 = vmul.f32 %v1478, %v1235
      %v1490 = vmul.f32 %v1478, %v1236
      %v1491 = vmul.f32 %v1478, %v1237
      %v1492 = vmul.f32 %v1482, %v1238
      %v1493 = vmul.f32 %v1482, %v1239
      %v1494 = vmul.f32 %v1482, %v1240
      %v1495 = vmul.f32 %v1482, %v1241
      %v1496 = vmul.f32 %v1482, %v1242
      %v1497 = vmul.f32 %v1482, %v1243
      %v1498 = vmul.f32 %v1482, %v1244
      %v1499 = vmul.f32 %v1482, %v1245
      %1516 = vrot.lane.b32.xlu0 %v1484, 88
      %v1517 = vpop.permute.xlu0 %1516
      %1518 = vrot.lane.b32.xlu0 %v1485, 88
      %v1519 = vpop.permute.xlu0 %1518
      %1520 = vrot.lane.b32.xlu0 %v1486, 88
      %v1521 = vpop.permute.xlu0 %1520
      %1522 = vrot.lane.b32.xlu0 %v1487, 88
      %v1523 = vpop.permute.xlu0 %1522
      %1524 = vrot.lane.b32.xlu0 %v1488, 88
      %v1525 = vpop.permute.xlu0 %1524
      %1526 = vrot.lane.b32.xlu0 %v1489, 88
      %v1527 = vpop.permute.xlu0 %1526
      %1528 = vrot.lane.b32.xlu0 %v1490, 88
      %v1529 = vpop.permute.xlu0 %1528
      %1530 = vrot.lane.b32.xlu0 %v1491, 88
      %v1531 = vpop.permute.xlu0 %1530
      %1532 = vrot.lane.b32.xlu0 %v1492, 88
      %v1533 = vpop.permute.xlu0 %1532
      %1534 = vrot.lane.b32.xlu0 %v1493, 88
      %v1535 = vpop.permute.xlu0 %1534
      %1536 = vrot.lane.b32.xlu0 %v1494, 88
      %v1537 = vpop.permute.xlu0 %1536
      %1538 = vrot.lane.b32.xlu0 %v1495, 88
      %v1539 = vpop.permute.xlu0 %1538
      %1540 = vrot.lane.b32.xlu0 %v1496, 88
      %v1541 = vpop.permute.xlu0 %1540
      %1542 = vrot.lane.b32.xlu0 %v1497, 88
      %v1543 = vpop.permute.xlu0 %1542
      %1544 = vrot.lane.b32.xlu0 %v1498, 88
      %v1545 = vpop.permute.xlu0 %1544
      %1546 = vrot.lane.b32.xlu0 %v1499, 88
      %v1547 = vpop.permute.xlu0 %1546
      %vm1548 = vcmask 719872
      %v1549 = vsel %vm1548, %v1517, %v1519
      %v1550 = vsel %vm1548, %v1519, %v1521
      %v1551 = vsel %vm1548, %v1521, %v1523
      %v1552 = vsel %vm1548, %v1523, %v1525
      %v1553 = vsel %vm1548, %v1525, %v1527
      %v1554 = vsel %vm1548, %v1527, %v1529
      %v1555 = vsel %vm1548, %v1529, %v1531
      %v1556 = vsel %vm1548, %v1533, %v1535
      %v1557 = vsel %vm1548, %v1535, %v1537
      %v1558 = vsel %vm1548, %v1537, %v1539
      %v1559 = vsel %vm1548, %v1539, %v1541
      %v1560 = vsel %vm1548, %v1541, %v1543
      %v1561 = vsel %vm1548, %v1543, %v1545
      %v1562 = vsel %vm1548, %v1545, %v1547
      %v1577 = vadd.f32 %v1462, %v1549
      %v1578 = vadd.f32 %v1463, %v1550
      %v1579 = vadd.f32 %v1464, %v1551
      %v1580 = vadd.f32 %v1465, %v1552
      %v1581 = vadd.f32 %v1466, %v1553
      %v1582 = vadd.f32 %v1467, %v1554
      %v1583 = vadd.f32 %v1468, %v1555
      %v1584 = vadd.f32 %v1469, %v1556
      %v1585 = vadd.f32 %v1470, %v1557
      %v1586 = vadd.f32 %v1471, %v1558
      %v1587 = vadd.f32 %v1472, %v1559
      %v1588 = vadd.f32 %v1473, %v1560
      %v1589 = vadd.f32 %v1474, %v1561
      %v1590 = vadd.f32 %v1475, %v1562
      %1591 = vset.pattern.permute.xlu0 8
      %1592 = vperm.xlu0 %1591, %v97
      %v1593 = vpop.permute.xlu0 %1592
      %1595 = vset.pattern.permute.xlu0 8
      %1596 = vperm.xlu0 %1595, %v98
      %v1597 = vpop.permute.xlu0 %1596
      %v1599 = vmul.f32 %v1593, %v1230
      %v1600 = vmul.f32 %v1593, %v1231
      %v1601 = vmul.f32 %v1593, %v1232
      %v1602 = vmul.f32 %v1593, %v1233
      %v1603 = vmul.f32 %v1593, %v1234
      %v1604 = vmul.f32 %v1593, %v1235
      %v1605 = vmul.f32 %v1593, %v1236
      %v1606 = vmul.f32 %v1593, %v1237
      %v1607 = vmul.f32 %v1597, %v1238
      %v1608 = vmul.f32 %v1597, %v1239
      %v1609 = vmul.f32 %v1597, %v1240
      %v1610 = vmul.f32 %v1597, %v1241
      %v1611 = vmul.f32 %v1597, %v1242
      %v1612 = vmul.f32 %v1597, %v1243
      %v1613 = vmul.f32 %v1597, %v1244
      %v1614 = vmul.f32 %v1597, %v1245
      %1631 = vrot.lane.b32.xlu0 %v1599, 86
      %v1632 = vpop.permute.xlu0 %1631
      %1633 = vrot.lane.b32.xlu0 %v1600, 86
      %v1634 = vpop.permute.xlu0 %1633
      %1635 = vrot.lane.b32.xlu0 %v1601, 86
      %v1636 = vpop.permute.xlu0 %1635
      %1637 = vrot.lane.b32.xlu0 %v1602, 86
      %v1638 = vpop.permute.xlu0 %1637
      %1639 = vrot.lane.b32.xlu0 %v1603, 86
      %v1640 = vpop.permute.xlu0 %1639
      %1641 = vrot.lane.b32.xlu0 %v1604, 86
      %v1642 = vpop.permute.xlu0 %1641
      %1643 = vrot.lane.b32.xlu0 %v1605, 86
      %v1644 = vpop.permute.xlu0 %1643
      %1645 = vrot.lane.b32.xlu0 %v1606, 86
      %v1646 = vpop.permute.xlu0 %1645
      %1647 = vrot.lane.b32.xlu0 %v1607, 86
      %v1648 = vpop.permute.xlu0 %1647
      %1649 = vrot.lane.b32.xlu0 %v1608, 86
      %v1650 = vpop.permute.xlu0 %1649
      %1651 = vrot.lane.b32.xlu0 %v1609, 86
      %v1652 = vpop.permute.xlu0 %1651
      %1653 = vrot.lane.b32.xlu0 %v1610, 86
      %v1654 = vpop.permute.xlu0 %1653
      %1655 = vrot.lane.b32.xlu0 %v1611, 86
      %v1656 = vpop.permute.xlu0 %1655
      %1657 = vrot.lane.b32.xlu0 %v1612, 86
      %v1658 = vpop.permute.xlu0 %1657
      %1659 = vrot.lane.b32.xlu0 %v1613, 86
      %v1660 = vpop.permute.xlu0 %1659
      %1661 = vrot.lane.b32.xlu0 %v1614, 86
      %v1662 = vpop.permute.xlu0 %1661
      %vm1663 = vcmask 703488
      %v1664 = vsel %vm1663, %v1632, %v1634
      %v1665 = vsel %vm1663, %v1634, %v1636
      %v1666 = vsel %vm1663, %v1636, %v1638
      %v1667 = vsel %vm1663, %v1638, %v1640
      %v1668 = vsel %vm1663, %v1640, %v1642
      %v1669 = vsel %vm1663, %v1642, %v1644
      %v1670 = vsel %vm1663, %v1644, %v1646
      %v1671 = vsel %vm1663, %v1648, %v1650
      %v1672 = vsel %vm1663, %v1650, %v1652
      %v1673 = vsel %vm1663, %v1652, %v1654
      %v1674 = vsel %vm1663, %v1654, %v1656
      %v1675 = vsel %vm1663, %v1656, %v1658
      %v1676 = vsel %vm1663, %v1658, %v1660
      %v1677 = vsel %vm1663, %v1660, %v1662
      %v1692 = vadd.f32 %v1577, %v1664
      %v1693 = vadd.f32 %v1578, %v1665
      %v1694 = vadd.f32 %v1579, %v1666
      %v1695 = vadd.f32 %v1580, %v1667
      %v1696 = vadd.f32 %v1581, %v1668
      %v1697 = vadd.f32 %v1582, %v1669
      %v1698 = vadd.f32 %v1583, %v1670
      %v1699 = vadd.f32 %v1584, %v1671
      %v1700 = vadd.f32 %v1585, %v1672
      %v1701 = vadd.f32 %v1586, %v1673
      %v1702 = vadd.f32 %v1587, %v1674
      %v1703 = vadd.f32 %v1588, %v1675
      %v1704 = vadd.f32 %v1589, %v1676
      %v1705 = vadd.f32 %v1590, %v1677
      %v1706 = vmul.f32 %v1692, %v670
      %v1707 = vmul.f32 %v1693, %v674
      %v1708 = vmul.f32 %v1694, %v678
      %v1709 = vmul.f32 %v1695, %v682
      %v1710 = vmul.f32 %v1696, %v686
      %v1711 = vmul.f32 %v1697, %v690
      %v1712 = vmul.f32 %v1698, %v694
      %v1713 = vmul.f32 %v1699, %v670
      %v1714 = vmul.f32 %v1700, %v674
      %v1715 = vmul.f32 %v1701, %v678
      %v1716 = vmul.f32 %v1702, %v682
      %v1717 = vmul.f32 %v1703, %v686
      %v1718 = vmul.f32 %v1704, %v690
      %v1719 = vmul.f32 %v1705, %v694
      %v1720 = vadd.f32 %v1706, %v1707
      %v1721 = vadd.f32 %v1720, %v1708
      %v1722 = vadd.f32 %v1721, %v1709
      %v1723 = vadd.f32 %v1722, %v1710
      %v1724 = vadd.f32 %v1723, %v1711
      %v1725 = vadd.f32 %v1724, %v1712
      %1726 = vadd.xlane.f32.xlu0 %v1725
      %v1727 = vpop.xlane.xlu0 %1726
      %v1728 = vsel %vm499, %v1713, 0.0
      %v1729 = vsel %vm499, %v1714, 0.0
      %v1730 = vadd.f32 %v1728, %v1729
      %v1731 = vsel %vm499, %v1715, 0.0
      %v1732 = vadd.f32 %v1730, %v1731
      %v1733 = vsel %vm499, %v1716, 0.0
      %v1734 = vadd.f32 %v1732, %v1733
      %v1735 = vsel %vm499, %v1717, 0.0
      %v1736 = vadd.f32 %v1734, %v1735
      %v1737 = vsel %vm499, %v1718, 0.0
      %v1738 = vadd.f32 %v1736, %v1737
      %v1739 = vsel %vm499, %v1719, 0.0
      %v1740 = vadd.f32 %v1738, %v1739
      %1741 = vadd.xlane.f32.xlu0 %v1740
      %v1742 = vpop.xlane.xlu0 %1741
      %v1743 = vmul.f32 %v1706, %v1706
      %v1744 = vmul.f32 %v1707, %v1707
      %v1745 = vmul.f32 %v1708, %v1708
      %v1746 = vmul.f32 %v1709, %v1709
      %v1747 = vmul.f32 %v1710, %v1710
      %v1748 = vmul.f32 %v1711, %v1711
      %v1749 = vmul.f32 %v1712, %v1712
      %v1750 = vmul.f32 %v1713, %v1713
      %v1751 = vmul.f32 %v1714, %v1714
      %v1752 = vmul.f32 %v1715, %v1715
      %v1753 = vmul.f32 %v1716, %v1716
      %v1754 = vmul.f32 %v1717, %v1717
      %v1755 = vmul.f32 %v1718, %v1718
      %v1756 = vmul.f32 %v1719, %v1719
      %v1757 = vadd.f32 %v1743, %v1744
      %v1758 = vadd.f32 %v1757, %v1745
      %v1759 = vadd.f32 %v1758, %v1746
      %v1760 = vadd.f32 %v1759, %v1747
      %v1761 = vadd.f32 %v1760, %v1748
      %v1762 = vadd.f32 %v1761, %v1749
      %1763 = vadd.xlane.f32.xlu0 %v1762
      %v1764 = vpop.xlane.xlu0 %1763
      %v1765 = vsel %vm499, %v1750, 0.0
      %v1766 = vsel %vm499, %v1751, 0.0
      %v1767 = vadd.f32 %v1765, %v1766
      %v1768 = vsel %vm499, %v1752, 0.0
      %v1769 = vadd.f32 %v1767, %v1768
      %v1770 = vsel %vm499, %v1753, 0.0
      %v1771 = vadd.f32 %v1769, %v1770
      %v1772 = vsel %vm499, %v1754, 0.0
      %v1773 = vadd.f32 %v1771, %v1772
      %v1774 = vsel %vm499, %v1755, 0.0
      %v1775 = vadd.f32 %v1773, %v1774
      %v1776 = vsel %vm499, %v1756, 0.0
      %v1777 = vadd.f32 %v1775, %v1776
      %1778 = vadd.xlane.f32.xlu0 %v1777
      %v1779 = vpop.xlane.xlu0 %1778
      %v1780 = vmul.f32 %v1727, 0.001953125
      %v1781 = vmul.f32 %v1742, 0.001953125
      %v1782 = vmul.f32 %v1764, 0.001953125
      %v1783 = vmul.f32 %v1779, 0.001953125
      %v1784 = vmul.f32 %v1780, %v1780
      %v1785 = vmul.f32 %v1781, %v1781
      %v1786 = vsub.f32 %v1782, %v1784
      %v1787 = vsub.f32 %v1783, %v1785
      %v1788 = vsub.f32 %v1706, %v1780
      %v1789 = vsub.f32 %v1707, %v1780
      %v1790 = vsub.f32 %v1708, %v1780
      %v1791 = vsub.f32 %v1709, %v1780
      %v1792 = vsub.f32 %v1710, %v1780
      %v1793 = vsub.f32 %v1711, %v1780
      %v1794 = vsub.f32 %v1712, %v1780
      %v1795 = vsub.f32 %v1713, %v1781
      %v1796 = vsub.f32 %v1714, %v1781
      %v1797 = vsub.f32 %v1715, %v1781
      %v1798 = vsub.f32 %v1716, %v1781
      %v1799 = vsub.f32 %v1717, %v1781
      %v1800 = vsub.f32 %v1718, %v1781
      %v1801 = vsub.f32 %v1719, %v1781
      %v1802 = vadd.f32 %v1786, 1e-05
      %v1803 = vadd.f32 %v1787, 1e-05
      %v1804 = vrsqrt.pop %v1802
      %v1805 = vrsqrt.pop %v1803
      %v1806 = vmul.f32 %v1788, %v1804
      %v1807 = vmul.f32 %v1789, %v1804
      %v1808 = vmul.f32 %v1790, %v1804
      %v1809 = vmul.f32 %v1791, %v1804
      %v1810 = vmul.f32 %v1792, %v1804
      %v1811 = vmul.f32 %v1793, %v1804
      %v1812 = vmul.f32 %v1794, %v1804
      %v1813 = vmul.f32 %v1795, %v1805
      %v1814 = vmul.f32 %v1796, %v1805
      %v1815 = vmul.f32 %v1797, %v1805
      %v1816 = vmul.f32 %v1798, %v1805
      %v1817 = vmul.f32 %v1799, %v1805
      %v1818 = vmul.f32 %v1800, %v1805
      %v1819 = vmul.f32 %v1801, %v1805
      %1821 = vset.pattern.permute.xlu0 0
      %1822 = vperm.xlu0 %1821, %v99
      %v1823 = vpop.permute.xlu0 %1822
      %1826 = vset.pattern.permute.xlu0 0
      %1827 = vperm.xlu0 %1826, %v100
      %v1828 = vpop.permute.xlu0 %1827
      %v1830 = vmul.f32 %v1806, %v1823
      %v1831 = vmul.f32 %v1807, %v1823
      %v1832 = vmul.f32 %v1808, %v1823
      %v1833 = vmul.f32 %v1809, %v1823
      %v1834 = vmul.f32 %v1810, %v1823
      %v1835 = vmul.f32 %v1811, %v1823
      %v1836 = vmul.f32 %v1812, %v1823
      %v1837 = vmul.f32 %v1813, %v1828
      %v1838 = vmul.f32 %v1814, %v1828
      %v1839 = vmul.f32 %v1815, %v1828
      %v1840 = vmul.f32 %v1816, %v1828
      %v1841 = vmul.f32 %v1817, %v1828
      %v1842 = vmul.f32 %v1818, %v1828
      %v1843 = vmul.f32 %v1819, %v1828
      %1844 = vset.pattern.permute.xlu0 1
      %1845 = vperm.xlu0 %1844, %v99
      %v1846 = vpop.permute.xlu0 %1845
      %1848 = vset.pattern.permute.xlu0 1
      %1849 = vperm.xlu0 %1848, %v100
      %v1850 = vpop.permute.xlu0 %1849
      %v1852 = vadd.f32 %v1830, %v1846
      %v1853 = vadd.f32 %v1831, %v1846
      %v1854 = vadd.f32 %v1832, %v1846
      %v1855 = vadd.f32 %v1833, %v1846
      %v1856 = vadd.f32 %v1834, %v1846
      %v1857 = vadd.f32 %v1835, %v1846
      %v1858 = vadd.f32 %v1836, %v1846
      %v1859 = vadd.f32 %v1837, %v1850
      %v1860 = vadd.f32 %v1838, %v1850
      %v1861 = vadd.f32 %v1839, %v1850
      %v1862 = vadd.f32 %v1840, %v1850
      %v1863 = vadd.f32 %v1841, %v1850
      %v1864 = vadd.f32 %v1842, %v1850
      %v1865 = vadd.f32 %v1843, %v1850
      %v1866 = vmax.f32 %v1852, 0.0
      %v1867 = vmax.f32 %v1853, 0.0
      %v1868 = vmax.f32 %v1854, 0.0
      %v1869 = vmax.f32 %v1855, 0.0
      %v1870 = vmax.f32 %v1856, 0.0
      %v1871 = vmax.f32 %v1857, 0.0
      %v1872 = vmax.f32 %v1858, 0.0
      %v1873 = vmax.f32 %v1859, 0.0
      %v1874 = vmax.f32 %v1860, 0.0
      %v1875 = vmax.f32 %v1861, 0.0
      %v1876 = vmax.f32 %v1862, 0.0
      %v1877 = vmax.f32 %v1863, 0.0
      %v1878 = vmax.f32 %v1864, 0.0
      %v1879 = vmax.f32 %v1865, 0.0
      %v1880 = vmin.f32 %v1866, 6.0
      %v1881 = vmin.f32 %v1867, 6.0
      %v1882 = vmin.f32 %v1868, 6.0
      %v1883 = vmin.f32 %v1869, 6.0
      %v1884 = vmin.f32 %v1870, 6.0
      %v1885 = vmin.f32 %v1871, 6.0
      %v1886 = vmin.f32 %v1872, 6.0
      %v1887 = vmin.f32 %v1873, 6.0
      %v1888 = vmin.f32 %v1874, 6.0
      %v1889 = vmin.f32 %v1875, 6.0
      %v1890 = vmin.f32 %v1876, 6.0
      %v1891 = vmin.f32 %v1877, 6.0
      %v1892 = vmin.f32 %v1878, 6.0
      %v1893 = vmin.f32 %v1879, 6.0
      %v1894 = vmul.f32 %v1880, %v670
      %v1895 = vmul.f32 %v1881, %v674
      %v1896 = vmul.f32 %v1882, %v678
      %v1897 = vmul.f32 %v1883, %v682
      %v1898 = vmul.f32 %v1884, %v686
      %v1899 = vmul.f32 %v1885, %v690
      %v1900 = vmul.f32 %v1886, %v694
      %v1901 = vmul.f32 %v1887, %v670
      %v1902 = vmul.f32 %v1888, %v674
      %v1903 = vmul.f32 %v1889, %v678
      %v1904 = vmul.f32 %v1890, %v682
      %v1905 = vmul.f32 %v1891, %v686
      %v1906 = vmul.f32 %v1892, %v690
      %v1907 = vmul.f32 %v1893, %v694
      %1909 = vset.pattern.permute.xlu0 0
      %1910 = vperm.xlu0 %1909, %v101
      %v1911 = vpop.permute.xlu0 %1910
      %v1913 = vlaneseq
      %v1914 = vshrl.u32 %v1913, 7
      %v1915 = vsub.s32 0, %v1914
      %v1916 = vrot.slane %v1894, %v1915
      %v1917 = vlaneseq
      %v1918 = vshrl.u32 %v1917, 7
      %v1919 = vsub.s32 0, %v1918
      %v1920 = vrot.slane %v1895, %v1919
      %v1921 = vlaneseq
      %v1922 = vshrl.u32 %v1921, 7
      %v1923 = vsub.s32 0, %v1922
      %v1924 = vrot.slane %v1896, %v1923
      %v1925 = vlaneseq
      %v1926 = vshrl.u32 %v1925, 7
      %v1927 = vsub.s32 0, %v1926
      %v1928 = vrot.slane %v1897, %v1927
      %v1929 = vlaneseq
      %v1930 = vshrl.u32 %v1929, 7
      %v1931 = vsub.s32 0, %v1930
      %v1932 = vrot.slane %v1898, %v1931
      %v1933 = vlaneseq
      %v1934 = vshrl.u32 %v1933, 7
      %v1935 = vsub.s32 0, %v1934
      %v1936 = vrot.slane %v1899, %v1935
      %v1937 = vlaneseq
      %v1938 = vshrl.u32 %v1937, 7
      %v1939 = vsub.s32 0, %v1938
      %v1940 = vrot.slane %v1900, %v1939
      %v1941 = vmul.f32 %v1911, %v1916
      %v1942 = vmul.f32 %v1911, %v1920
      %v1943 = vmul.f32 %v1911, %v1924
      %v1944 = vmul.f32 %v1911, %v1928
      %v1945 = vmul.f32 %v1911, %v1932
      %v1946 = vmul.f32 %v1911, %v1936
      %v1947 = vmul.f32 %v1911, %v1940
      %1948 = vset.pattern.permute.xlu0 1
      %1949 = vperm.xlu0 %1948, %v101
      %v1950 = vpop.permute.xlu0 %1949
      %v1952 = vlaneseq
      %v1953 = vshrl.u32 %v1952, 7
      %v1954 = vsub.s32 1, %v1953
      %v1955 = vrot.slane %v1894, %v1954
      %v1956 = vlaneseq
      %v1957 = vshrl.u32 %v1956, 7
      %v1958 = vsub.s32 1, %v1957
      %v1959 = vrot.slane %v1895, %v1958
      %v1960 = vlaneseq
      %v1961 = vshrl.u32 %v1960, 7
      %v1962 = vsub.s32 1, %v1961
      %v1963 = vrot.slane %v1896, %v1962
      %v1964 = vlaneseq
      %v1965 = vshrl.u32 %v1964, 7
      %v1966 = vsub.s32 1, %v1965
      %v1967 = vrot.slane %v1897, %v1966
      %v1968 = vlaneseq
      %v1969 = vshrl.u32 %v1968, 7
      %v1970 = vsub.s32 1, %v1969
      %v1971 = vrot.slane %v1898, %v1970
      %v1972 = vlaneseq
      %v1973 = vshrl.u32 %v1972, 7
      %v1974 = vsub.s32 1, %v1973
      %v1975 = vrot.slane %v1899, %v1974
      %v1976 = vlaneseq
      %v1977 = vshrl.u32 %v1976, 7
      %v1978 = vsub.s32 1, %v1977
      %v1979 = vrot.slane %v1900, %v1978
      %v1980 = vmul.f32 %v1950, %v1955
      %v1981 = vmul.f32 %v1950, %v1959
      %v1982 = vmul.f32 %v1950, %v1963
      %v1983 = vmul.f32 %v1950, %v1967
      %v1984 = vmul.f32 %v1950, %v1971
      %v1985 = vmul.f32 %v1950, %v1975
      %v1986 = vmul.f32 %v1950, %v1979
      %v1987 = vadd.f32 %v1941, %v1980
      %v1988 = vadd.f32 %v1942, %v1981
      %v1989 = vadd.f32 %v1943, %v1982
      %v1990 = vadd.f32 %v1944, %v1983
      %v1991 = vadd.f32 %v1945, %v1984
      %v1992 = vadd.f32 %v1946, %v1985
      %v1993 = vadd.f32 %v1947, %v1986
      %1994 = vset.pattern.permute.xlu0 2
      %1995 = vperm.xlu0 %1994, %v101
      %v1996 = vpop.permute.xlu0 %1995
      %v1998 = vlaneseq
      %v1999 = vshrl.u32 %v1998, 7
      %v2000 = vsub.s32 2, %v1999
      %v2001 = vrot.slane %v1894, %v2000
      %v2002 = vlaneseq
      %v2003 = vshrl.u32 %v2002, 7
      %v2004 = vsub.s32 2, %v2003
      %v2005 = vrot.slane %v1895, %v2004
      %v2006 = vlaneseq
      %v2007 = vshrl.u32 %v2006, 7
      %v2008 = vsub.s32 2, %v2007
      %v2009 = vrot.slane %v1896, %v2008
      %v2010 = vlaneseq
      %v2011 = vshrl.u32 %v2010, 7
      %v2012 = vsub.s32 2, %v2011
      %v2013 = vrot.slane %v1897, %v2012
      %v2014 = vlaneseq
      %v2015 = vshrl.u32 %v2014, 7
      %v2016 = vsub.s32 2, %v2015
      %v2017 = vrot.slane %v1898, %v2016
      %v2018 = vlaneseq
      %v2019 = vshrl.u32 %v2018, 7
      %v2020 = vsub.s32 2, %v2019
      %v2021 = vrot.slane %v1899, %v2020
      %v2022 = vlaneseq
      %v2023 = vshrl.u32 %v2022, 7
      %v2024 = vsub.s32 2, %v2023
      %v2025 = vrot.slane %v1900, %v2024
      %v2026 = vmul.f32 %v1996, %v2001
      %v2027 = vmul.f32 %v1996, %v2005
      %v2028 = vmul.f32 %v1996, %v2009
      %v2029 = vmul.f32 %v1996, %v2013
      %v2030 = vmul.f32 %v1996, %v2017
      %v2031 = vmul.f32 %v1996, %v2021
      %v2032 = vmul.f32 %v1996, %v2025
      %v2033 = vadd.f32 %v1987, %v2026
      %v2034 = vadd.f32 %v1988, %v2027
      %v2035 = vadd.f32 %v1989, %v2028
      %v2036 = vadd.f32 %v1990, %v2029
      %v2037 = vadd.f32 %v1991, %v2030
      %v2038 = vadd.f32 %v1992, %v2031
      %v2039 = vadd.f32 %v1993, %v2032
      %2040 = vset.pattern.permute.xlu0 3
      %2041 = vperm.xlu0 %2040, %v101
      %v2042 = vpop.permute.xlu0 %2041
      %v2044 = vlaneseq
      %v2045 = vshrl.u32 %v2044, 7
      %v2046 = vsub.s32 3, %v2045
      %v2047 = vrot.slane %v1894, %v2046
      %v2048 = vlaneseq
      %v2049 = vshrl.u32 %v2048, 7
      %v2050 = vsub.s32 3, %v2049
      %v2051 = vrot.slane %v1895, %v2050
      %v2052 = vlaneseq
      %v2053 = vshrl.u32 %v2052, 7
      %v2054 = vsub.s32 3, %v2053
      %v2055 = vrot.slane %v1896, %v2054
      %v2056 = vlaneseq
      %v2057 = vshrl.u32 %v2056, 7
      %v2058 = vsub.s32 3, %v2057
      %v2059 = vrot.slane %v1897, %v2058
      %v2060 = vlaneseq
      %v2061 = vshrl.u32 %v2060, 7
      %v2062 = vsub.s32 3, %v2061
      %v2063 = vrot.slane %v1898, %v2062
      %v2064 = vlaneseq
      %v2065 = vshrl.u32 %v2064, 7
      %v2066 = vsub.s32 3, %v2065
      %v2067 = vrot.slane %v1899, %v2066
      %v2068 = vlaneseq
      %v2069 = vshrl.u32 %v2068, 7
      %v2070 = vsub.s32 3, %v2069
      %v2071 = vrot.slane %v1900, %v2070
      %v2072 = vmul.f32 %v2042, %v2047
      %v2073 = vmul.f32 %v2042, %v2051
      %v2074 = vmul.f32 %v2042, %v2055
      %v2075 = vmul.f32 %v2042, %v2059
      %v2076 = vmul.f32 %v2042, %v2063
      %v2077 = vmul.f32 %v2042, %v2067
      %v2078 = vmul.f32 %v2042, %v2071
      %v2079 = vadd.f32 %v2033, %v2072
      %v2080 = vadd.f32 %v2034, %v2073
      %v2081 = vadd.f32 %v2035, %v2074
      %v2082 = vadd.f32 %v2036, %v2075
      %v2083 = vadd.f32 %v2037, %v2076
      %v2084 = vadd.f32 %v2038, %v2077
      %v2085 = vadd.f32 %v2039, %v2078
      %2086 = vset.pattern.permute.xlu0 4
      %2087 = vperm.xlu0 %2086, %v101
      %v2088 = vpop.permute.xlu0 %2087
      %v2090 = vlaneseq
      %v2091 = vshrl.u32 %v2090, 7
      %v2092 = vsub.s32 4, %v2091
      %v2093 = vrot.slane %v1894, %v2092
      %v2094 = vlaneseq
      %v2095 = vshrl.u32 %v2094, 7
      %v2096 = vsub.s32 4, %v2095
      %v2097 = vrot.slane %v1895, %v2096
      %v2098 = vlaneseq
      %v2099 = vshrl.u32 %v2098, 7
      %v2100 = vsub.s32 4, %v2099
      %v2101 = vrot.slane %v1896, %v2100
      %v2102 = vlaneseq
      %v2103 = vshrl.u32 %v2102, 7
      %v2104 = vsub.s32 4, %v2103
      %v2105 = vrot.slane %v1897, %v2104
      %v2106 = vlaneseq
      %v2107 = vshrl.u32 %v2106, 7
      %v2108 = vsub.s32 4, %v2107
      %v2109 = vrot.slane %v1898, %v2108
      %v2110 = vlaneseq
      %v2111 = vshrl.u32 %v2110, 7
      %v2112 = vsub.s32 4, %v2111
      %v2113 = vrot.slane %v1899, %v2112
      %v2114 = vlaneseq
      %v2115 = vshrl.u32 %v2114, 7
      %v2116 = vsub.s32 4, %v2115
      %v2117 = vrot.slane %v1900, %v2116
      %v2118 = vmul.f32 %v2088, %v2093
      %v2119 = vmul.f32 %v2088, %v2097
      %v2120 = vmul.f32 %v2088, %v2101
      %v2121 = vmul.f32 %v2088, %v2105
      %v2122 = vmul.f32 %v2088, %v2109
      %v2123 = vmul.f32 %v2088, %v2113
      %v2124 = vmul.f32 %v2088, %v2117
      %v2125 = vadd.f32 %v2079, %v2118
      %v2126 = vadd.f32 %v2080, %v2119
      %v2127 = vadd.f32 %v2081, %v2120
      %v2128 = vadd.f32 %v2082, %v2121
      %v2129 = vadd.f32 %v2083, %v2122
      %v2130 = vadd.f32 %v2084, %v2123
      %v2131 = vadd.f32 %v2085, %v2124
      %2132 = vset.pattern.permute.xlu0 5
      %2133 = vperm.xlu0 %2132, %v101
      %v2134 = vpop.permute.xlu0 %2133
      %v2136 = vlaneseq
      %v2137 = vshrl.u32 %v2136, 7
      %v2138 = vsub.s32 5, %v2137
      %v2139 = vrot.slane %v1894, %v2138
      %v2140 = vlaneseq
      %v2141 = vshrl.u32 %v2140, 7
      %v2142 = vsub.s32 5, %v2141
      %v2143 = vrot.slane %v1895, %v2142
      %v2144 = vlaneseq
      %v2145 = vshrl.u32 %v2144, 7
      %v2146 = vsub.s32 5, %v2145
      %v2147 = vrot.slane %v1896, %v2146
      %v2148 = vlaneseq
      %v2149 = vshrl.u32 %v2148, 7
      %v2150 = vsub.s32 5, %v2149
      %v2151 = vrot.slane %v1897, %v2150
      %v2152 = vlaneseq
      %v2153 = vshrl.u32 %v2152, 7
      %v2154 = vsub.s32 5, %v2153
      %v2155 = vrot.slane %v1898, %v2154
      %v2156 = vlaneseq
      %v2157 = vshrl.u32 %v2156, 7
      %v2158 = vsub.s32 5, %v2157
      %v2159 = vrot.slane %v1899, %v2158
      %v2160 = vlaneseq
      %v2161 = vshrl.u32 %v2160, 7
      %v2162 = vsub.s32 5, %v2161
      %v2163 = vrot.slane %v1900, %v2162
      %v2164 = vmul.f32 %v2134, %v2139
      %v2165 = vmul.f32 %v2134, %v2143
      %v2166 = vmul.f32 %v2134, %v2147
      %v2167 = vmul.f32 %v2134, %v2151
      %v2168 = vmul.f32 %v2134, %v2155
      %v2169 = vmul.f32 %v2134, %v2159
      %v2170 = vmul.f32 %v2134, %v2163
      %v2171 = vadd.f32 %v2125, %v2164
      %v2172 = vadd.f32 %v2126, %v2165
      %v2173 = vadd.f32 %v2127, %v2166
      %v2174 = vadd.f32 %v2128, %v2167
      %v2175 = vadd.f32 %v2129, %v2168
      %v2176 = vadd.f32 %v2130, %v2169
      %v2177 = vadd.f32 %v2131, %v2170
      %2178 = vset.pattern.permute.xlu0 6
      %2179 = vperm.xlu0 %2178, %v101
      %v2180 = vpop.permute.xlu0 %2179
      %v2182 = vlaneseq
      %v2183 = vshrl.u32 %v2182, 7
      %v2184 = vsub.s32 6, %v2183
      %v2185 = vrot.slane %v1894, %v2184
      %v2186 = vlaneseq
      %v2187 = vshrl.u32 %v2186, 7
      %v2188 = vsub.s32 6, %v2187
      %v2189 = vrot.slane %v1895, %v2188
      %v2190 = vlaneseq
      %v2191 = vshrl.u32 %v2190, 7
      %v2192 = vsub.s32 6, %v2191
      %v2193 = vrot.slane %v1896, %v2192
      %v2194 = vlaneseq
      %v2195 = vshrl.u32 %v2194, 7
      %v2196 = vsub.s32 6, %v2195
      %v2197 = vrot.slane %v1897, %v2196
      %v2198 = vlaneseq
      %v2199 = vshrl.u32 %v2198, 7
      %v2200 = vsub.s32 6, %v2199
      %v2201 = vrot.slane %v1898, %v2200
      %v2202 = vlaneseq
      %v2203 = vshrl.u32 %v2202, 7
      %v2204 = vsub.s32 6, %v2203
      %v2205 = vrot.slane %v1899, %v2204
      %v2206 = vlaneseq
      %v2207 = vshrl.u32 %v2206, 7
      %v2208 = vsub.s32 6, %v2207
      %v2209 = vrot.slane %v1900, %v2208
      %v2210 = vmul.f32 %v2180, %v2185
      %v2211 = vmul.f32 %v2180, %v2189
      %v2212 = vmul.f32 %v2180, %v2193
      %v2213 = vmul.f32 %v2180, %v2197
      %v2214 = vmul.f32 %v2180, %v2201
      %v2215 = vmul.f32 %v2180, %v2205
      %v2216 = vmul.f32 %v2180, %v2209
      %v2217 = vadd.f32 %v2171, %v2210
      %v2218 = vadd.f32 %v2172, %v2211
      %v2219 = vadd.f32 %v2173, %v2212
      %v2220 = vadd.f32 %v2174, %v2213
      %v2221 = vadd.f32 %v2175, %v2214
      %v2222 = vadd.f32 %v2176, %v2215
      %v2223 = vadd.f32 %v2177, %v2216
      %2224 = vset.pattern.permute.xlu0 7
      %2225 = vperm.xlu0 %2224, %v101
      %v2226 = vpop.permute.xlu0 %2225
      %v2228 = vlaneseq
      %v2229 = vshrl.u32 %v2228, 7
      %v2230 = vsub.s32 7, %v2229
      %v2231 = vrot.slane %v1894, %v2230
      %v2232 = vlaneseq
      %v2233 = vshrl.u32 %v2232, 7
      %v2234 = vsub.s32 7, %v2233
      %v2235 = vrot.slane %v1895, %v2234
      %v2236 = vlaneseq
      %v2237 = vshrl.u32 %v2236, 7
      %v2238 = vsub.s32 7, %v2237
      %v2239 = vrot.slane %v1896, %v2238
      %v2240 = vlaneseq
      %v2241 = vshrl.u32 %v2240, 7
      %v2242 = vsub.s32 7, %v2241
      %v2243 = vrot.slane %v1897, %v2242
      %v2244 = vlaneseq
      %v2245 = vshrl.u32 %v2244, 7
      %v2246 = vsub.s32 7, %v2245
      %v2247 = vrot.slane %v1898, %v2246
      %v2248 = vlaneseq
      %v2249 = vshrl.u32 %v2248, 7
      %v2250 = vsub.s32 7, %v2249
      %v2251 = vrot.slane %v1899, %v2250
      %v2252 = vlaneseq
      %v2253 = vshrl.u32 %v2252, 7
      %v2254 = vsub.s32 7, %v2253
      %v2255 = vrot.slane %v1900, %v2254
      %v2256 = vmul.f32 %v2226, %v2231
      %v2257 = vmul.f32 %v2226, %v2235
      %v2258 = vmul.f32 %v2226, %v2239
      %v2259 = vmul.f32 %v2226, %v2243
      %v2260 = vmul.f32 %v2226, %v2247
      %v2261 = vmul.f32 %v2226, %v2251
      %v2262 = vmul.f32 %v2226, %v2255
      %v2263 = vadd.f32 %v2217, %v2256
      %v2264 = vadd.f32 %v2218, %v2257
      %v2265 = vadd.f32 %v2219, %v2258
      %v2266 = vadd.f32 %v2220, %v2259
      %v2267 = vadd.f32 %v2221, %v2260
      %v2268 = vadd.f32 %v2222, %v2261
      %v2269 = vadd.f32 %v2223, %v2262
      %2270 = vset.pattern.permute.xlu0 8
      %2271 = vperm.xlu0 %2270, %v101
      %v2272 = vpop.permute.xlu0 %2271
      %v2274 = vlaneseq
      %v2275 = vshrl.u32 %v2274, 7
      %v2276 = vsub.s32 0, %v2275
      %v2277 = vrot.slane %v1901, %v2276
      %v2278 = vlaneseq
      %v2279 = vshrl.u32 %v2278, 7
      %v2280 = vsub.s32 0, %v2279
      %v2281 = vrot.slane %v1902, %v2280
      %v2282 = vlaneseq
      %v2283 = vshrl.u32 %v2282, 7
      %v2284 = vsub.s32 0, %v2283
      %v2285 = vrot.slane %v1903, %v2284
      %v2286 = vlaneseq
      %v2287 = vshrl.u32 %v2286, 7
      %v2288 = vsub.s32 0, %v2287
      %v2289 = vrot.slane %v1904, %v2288
      %v2290 = vlaneseq
      %v2291 = vshrl.u32 %v2290, 7
      %v2292 = vsub.s32 0, %v2291
      %v2293 = vrot.slane %v1905, %v2292
      %v2294 = vlaneseq
      %v2295 = vshrl.u32 %v2294, 7
      %v2296 = vsub.s32 0, %v2295
      %v2297 = vrot.slane %v1906, %v2296
      %v2298 = vlaneseq
      %v2299 = vshrl.u32 %v2298, 7
      %v2300 = vsub.s32 0, %v2299
      %v2301 = vrot.slane %v1907, %v2300
      %v2302 = vmul.f32 %v2272, %v2277
      %v2303 = vmul.f32 %v2272, %v2281
      %v2304 = vmul.f32 %v2272, %v2285
      %v2305 = vmul.f32 %v2272, %v2289
      %v2306 = vmul.f32 %v2272, %v2293
      %v2307 = vmul.f32 %v2272, %v2297
      %v2308 = vmul.f32 %v2272, %v2301
      %v2309 = vadd.f32 %v2263, %v2302
      %v2310 = vadd.f32 %v2264, %v2303
      %v2311 = vadd.f32 %v2265, %v2304
      %v2312 = vadd.f32 %v2266, %v2305
      %v2313 = vadd.f32 %v2267, %v2306
      %v2314 = vadd.f32 %v2268, %v2307
      %v2315 = vadd.f32 %v2269, %v2308
      %2316 = vset.pattern.permute.xlu0 9
      %2317 = vperm.xlu0 %2316, %v101
      %v2318 = vpop.permute.xlu0 %2317
      %v2320 = vlaneseq
      %v2321 = vshrl.u32 %v2320, 7
      %v2322 = vsub.s32 1, %v2321
      %v2323 = vrot.slane %v1901, %v2322
      %v2324 = vlaneseq
      %v2325 = vshrl.u32 %v2324, 7
      %v2326 = vsub.s32 1, %v2325
      %v2327 = vrot.slane %v1902, %v2326
      %v2328 = vlaneseq
      %v2329 = vshrl.u32 %v2328, 7
      %v2330 = vsub.s32 1, %v2329
      %v2331 = vrot.slane %v1903, %v2330
      %v2332 = vlaneseq
      %v2333 = vshrl.u32 %v2332, 7
      %v2334 = vsub.s32 1, %v2333
      %v2335 = vrot.slane %v1904, %v2334
      %v2336 = vlaneseq
      %v2337 = vshrl.u32 %v2336, 7
      %v2338 = vsub.s32 1, %v2337
      %v2339 = vrot.slane %v1905, %v2338
      %v2340 = vlaneseq
      %v2341 = vshrl.u32 %v2340, 7
      %v2342 = vsub.s32 1, %v2341
      %v2343 = vrot.slane %v1906, %v2342
      %v2344 = vlaneseq
      %v2345 = vshrl.u32 %v2344, 7
      %v2346 = vsub.s32 1, %v2345
      %v2347 = vrot.slane %v1907, %v2346
      %v2348 = vmul.f32 %v2318, %v2323
      %v2349 = vmul.f32 %v2318, %v2327
      %v2350 = vmul.f32 %v2318, %v2331
      %v2351 = vmul.f32 %v2318, %v2335
      %v2352 = vmul.f32 %v2318, %v2339
      %v2353 = vmul.f32 %v2318, %v2343
      %v2354 = vmul.f32 %v2318, %v2347
      %v2355 = vadd.f32 %v2309, %v2348
      %v2356 = vadd.f32 %v2310, %v2349
      %v2357 = vadd.f32 %v2311, %v2350
      %v2358 = vadd.f32 %v2312, %v2351
      %v2359 = vadd.f32 %v2313, %v2352
      %v2360 = vadd.f32 %v2314, %v2353
      %v2361 = vadd.f32 %v2315, %v2354
      %2362 = vset.pattern.permute.xlu0 10
      %2363 = vperm.xlu0 %2362, %v101
      %v2364 = vpop.permute.xlu0 %2363
      %v2366 = vlaneseq
      %v2367 = vshrl.u32 %v2366, 7
      %v2368 = vsub.s32 2, %v2367
      %v2369 = vrot.slane %v1901, %v2368
      %v2370 = vlaneseq
      %v2371 = vshrl.u32 %v2370, 7
      %v2372 = vsub.s32 2, %v2371
      %v2373 = vrot.slane %v1902, %v2372
      %v2374 = vlaneseq
      %v2375 = vshrl.u32 %v2374, 7
      %v2376 = vsub.s32 2, %v2375
      %v2377 = vrot.slane %v1903, %v2376
      %v2378 = vlaneseq
      %v2379 = vshrl.u32 %v2378, 7
      %v2380 = vsub.s32 2, %v2379
      %v2381 = vrot.slane %v1904, %v2380
      %v2382 = vlaneseq
      %v2383 = vshrl.u32 %v2382, 7
      %v2384 = vsub.s32 2, %v2383
      %v2385 = vrot.slane %v1905, %v2384
      %v2386 = vlaneseq
      %v2387 = vshrl.u32 %v2386, 7
      %v2388 = vsub.s32 2, %v2387
      %v2389 = vrot.slane %v1906, %v2388
      %v2390 = vlaneseq
      %v2391 = vshrl.u32 %v2390, 7
      %v2392 = vsub.s32 2, %v2391
      %v2393 = vrot.slane %v1907, %v2392
      %v2394 = vmul.f32 %v2364, %v2369
      %v2395 = vmul.f32 %v2364, %v2373
      %v2396 = vmul.f32 %v2364, %v2377
      %v2397 = vmul.f32 %v2364, %v2381
      %v2398 = vmul.f32 %v2364, %v2385
      %v2399 = vmul.f32 %v2364, %v2389
      %v2400 = vmul.f32 %v2364, %v2393
      %v2401 = vadd.f32 %v2355, %v2394
      %v2402 = vadd.f32 %v2356, %v2395
      %v2403 = vadd.f32 %v2357, %v2396
      %v2404 = vadd.f32 %v2358, %v2397
      %v2405 = vadd.f32 %v2359, %v2398
      %v2406 = vadd.f32 %v2360, %v2399
      %v2407 = vadd.f32 %v2361, %v2400
      %2408 = vset.pattern.permute.xlu0 11
      %2409 = vperm.xlu0 %2408, %v101
      %v2410 = vpop.permute.xlu0 %2409
      %v2412 = vlaneseq
      %v2413 = vshrl.u32 %v2412, 7
      %v2414 = vsub.s32 3, %v2413
      %v2415 = vrot.slane %v1901, %v2414
      %v2416 = vlaneseq
      %v2417 = vshrl.u32 %v2416, 7
      %v2418 = vsub.s32 3, %v2417
      %v2419 = vrot.slane %v1902, %v2418
      %v2420 = vlaneseq
      %v2421 = vshrl.u32 %v2420, 7
      %v2422 = vsub.s32 3, %v2421
      %v2423 = vrot.slane %v1903, %v2422
      %v2424 = vlaneseq
      %v2425 = vshrl.u32 %v2424, 7
      %v2426 = vsub.s32 3, %v2425
      %v2427 = vrot.slane %v1904, %v2426
      %v2428 = vlaneseq
      %v2429 = vshrl.u32 %v2428, 7
      %v2430 = vsub.s32 3, %v2429
      %v2431 = vrot.slane %v1905, %v2430
      %v2432 = vlaneseq
      %v2433 = vshrl.u32 %v2432, 7
      %v2434 = vsub.s32 3, %v2433
      %v2435 = vrot.slane %v1906, %v2434
      %v2436 = vlaneseq
      %v2437 = vshrl.u32 %v2436, 7
      %v2438 = vsub.s32 3, %v2437
      %v2439 = vrot.slane %v1907, %v2438
      %v2440 = vmul.f32 %v2410, %v2415
      %v2441 = vmul.f32 %v2410, %v2419
      %v2442 = vmul.f32 %v2410, %v2423
      %v2443 = vmul.f32 %v2410, %v2427
      %v2444 = vmul.f32 %v2410, %v2431
      %v2445 = vmul.f32 %v2410, %v2435
      %v2446 = vmul.f32 %v2410, %v2439
      %v2447 = vadd.f32 %v2401, %v2440
      %v2448 = vadd.f32 %v2402, %v2441
      %v2449 = vadd.f32 %v2403, %v2442
      %v2450 = vadd.f32 %v2404, %v2443
      %v2451 = vadd.f32 %v2405, %v2444
      %v2452 = vadd.f32 %v2406, %v2445
      %v2453 = vadd.f32 %v2407, %v2446
      %v2454 = vstv %s70
      %v2455 = vmul.f32 %v102, %v2454
      %v2456 = vsel %vm499, %v2447, 0.0
      %v2457 = vsel %vm499, %v2448, 0.0
      %v2458 = vadd.f32 %v2456, %v2457
      %v2459 = vsel %vm499, %v2449, 0.0
      %v2460 = vadd.f32 %v2458, %v2459
      %v2461 = vsel %vm499, %v2450, 0.0
      %v2462 = vadd.f32 %v2460, %v2461
      %v2463 = vsel %vm499, %v2451, 0.0
      %v2464 = vadd.f32 %v2462, %v2463
      %v2465 = vsel %vm499, %v2452, 0.0
      %v2466 = vadd.f32 %v2464, %v2465
      %v2467 = vsel %vm499, %v2453, 0.0
      %v2468 = vadd.f32 %v2466, %v2467
      %2469 = vadd.xlane.f32.xlu0 %v2468
      %v2470 = vpop.xlane.xlu0 %2469
      %v2471 = vmul.f32 %v2447, %v2447
      %v2472 = vmul.f32 %v2448, %v2448
      %v2473 = vmul.f32 %v2449, %v2449
      %v2474 = vmul.f32 %v2450, %v2450
      %v2475 = vmul.f32 %v2451, %v2451
      %v2476 = vmul.f32 %v2452, %v2452
      %v2477 = vmul.f32 %v2453, %v2453
      %v2478 = vsel %vm499, %v2471, 0.0
      %v2479 = vsel %vm499, %v2472, 0.0
      %v2480 = vadd.f32 %v2478, %v2479
      %v2481 = vsel %vm499, %v2473, 0.0
      %v2482 = vadd.f32 %v2480, %v2481
      %v2483 = vsel %vm499, %v2474, 0.0
      %v2484 = vadd.f32 %v2482, %v2483
      %v2485 = vsel %vm499, %v2475, 0.0
      %v2486 = vadd.f32 %v2484, %v2485
      %v2487 = vsel %vm499, %v2476, 0.0
      %v2488 = vadd.f32 %v2486, %v2487
      %v2489 = vsel %vm499, %v2477, 0.0
      %v2490 = vadd.f32 %v2488, %v2489
      %2491 = vadd.xlane.f32.xlu0 %v2490
      %v2492 = vpop.xlane.xlu0 %2491
      %v2493 = vmul.f32 %v2470, 0.001953125
      %v2494 = vmul.f32 %v2492, 0.001953125
      %v2495 = vmul.f32 %v2493, %v2493
      %v2496 = vsub.f32 %v2494, %v2495
      %v2497 = vsub.f32 %v2447, %v2493
      %v2498 = vsub.f32 %v2448, %v2493
      %v2499 = vsub.f32 %v2449, %v2493
      %v2500 = vsub.f32 %v2450, %v2493
      %v2501 = vsub.f32 %v2451, %v2493
      %v2502 = vsub.f32 %v2452, %v2493
      %v2503 = vsub.f32 %v2453, %v2493
      %v2504 = vadd.f32 %v2496, 1e-05
      %v2505 = vrsqrt.pop %v2504
      %v2506 = vmul.f32 %v2497, %v2505
      %v2507 = vmul.f32 %v2498, %v2505
      %v2508 = vmul.f32 %v2499, %v2505
      %v2509 = vmul.f32 %v2500, %v2505
      %v2510 = vmul.f32 %v2501, %v2505
      %v2511 = vmul.f32 %v2502, %v2505
      %v2512 = vmul.f32 %v2503, %v2505
      %2514 = vset.pattern.permute.xlu0 0
      %2515 = vperm.xlu0 %2514, %v2455
      %v2516 = vpop.permute.xlu0 %2515
      %v2518 = vmul.f32 %v2506, %v2516
      %v2519 = vmul.f32 %v2507, %v2516
      %v2520 = vmul.f32 %v2508, %v2516
      %v2521 = vmul.f32 %v2509, %v2516
      %v2522 = vmul.f32 %v2510, %v2516
      %v2523 = vmul.f32 %v2511, %v2516
      %v2524 = vmul.f32 %v2512, %v2516
      %2525 = vset.pattern.permute.xlu0 1
      %2526 = vperm.xlu0 %2525, %v2455
      %v2527 = vpop.permute.xlu0 %2526
      %v2529 = vadd.f32 %v2518, %v2527
      %v2530 = vadd.f32 %v2519, %v2527
      %v2531 = vadd.f32 %v2520, %v2527
      %v2532 = vadd.f32 %v2521, %v2527
      %v2533 = vadd.f32 %v2522, %v2527
      %v2534 = vadd.f32 %v2523, %v2527
      %v2535 = vadd.f32 %v2524, %v2527
      %v2536 = vld [vmem:[#allocation6] sm:$0xff]
      %v2537 = vld [vmem:[#allocation6 + $0x8] sm:$0xff]
      %v2538 = vld [vmem:[#allocation6 + $0x10] sm:$0xff]
      %v2539 = vld [vmem:[#allocation6 + $0x18] sm:$0xf]
      %v2546 = vcombine.low %v2529, %v2530
      %v2547 = vcombine.low %v2531, %v2532
      %v2548 = vcombine.low %v2533, %v2534
      %v2552 = vadd.f32 %v2536, %v2546
      %v2553 = vadd.f32 %v2537, %v2547
      %v2554 = vadd.f32 %v2538, %v2548
      %v2555 = vadd.f32 %v2539, %v2535
      %2556 = vst [vmem:[#allocation6] sm:$0xff] %v2552
      %2557 = vst [vmem:[#allocation6 + $0x8] sm:$0xff] %v2553
      %2558 = vst [vmem:[#allocation6 + $0x10] sm:$0xff] %v2554
      %2559 = vst [vmem:[#allocation6 + $0x18] sm:$0xf] %v2555
    $region69: #{tpu_custom_call.1} parent=1 // pred_fallthru
      _
    %p2560 = scmp.ne.f32.partialorder %s71, 0.0
    // Predicated region
    $region70: #{tpu_custom_call.1} parent=1 // pred_check
      %p2561 = pneg %p2560
    $region71: #{tpu_custom_call.1} parent=1 // pred_check_branch
      %2563 = sbr.rel (%p2561) target = $region73
    $region72: #{tpu_custom_call.1} parent=1 // pred_region
      %v2564 = vld [vmem:[%s9] sm:$0xff]
      %v2565 = vld [vmem:[%s9 + $0x8] sm:$0xff]
      %v2566 = vld [vmem:[%s9 + $0x10] sm:$0xff]
      %v2567 = vld [vmem:[%s10] sm:$0xff]
      %v2568 = vld [vmem:[%s10 + $0x8] sm:$0xff]
      %v2569 = vld [vmem:[%s10 + $0x10] sm:$0xff]
      %v2570 = vld [vmem:[%s11] sm:$0xff]
      %v2571 = vld [vmem:[%s11 + $0x8] sm:$0xff]
      %v2572 = vld [vmem:[%s11 + $0x10] sm:$0xff]
      %v2573 = vld [vmem:[%s12] sm:$0xff]
      %v2574 = vld [vmem:[%s12 + $0x8] sm:$0xff]
      %v2575 = vld [vmem:[%s12 + $0x10] sm:$0xff]
      %v2576 = vld [vmem:[%s13] sm:$0xf]
      %v2577 = vld [vmem:[%s14] sm:$0xf]
      %2579 = vset.pattern.permute.xlu0 0
      %2580 = vperm.xlu0 %2579, %v2564
      %v2581 = vpop.permute.xlu0 %2580
      %2584 = vset.pattern.permute.xlu0 0
      %2585 = vperm.xlu0 %2584, %v2565
      %v2586 = vpop.permute.xlu0 %2585
      %2589 = vset.pattern.permute.xlu0 0
      %2590 = vperm.xlu0 %2589, %v2566
      %v2591 = vpop.permute.xlu0 %2590
      %v2597 = vlaneseq
      %v2598 = vshrl.u32 %v2597, 7
      %v2599 = vsub.s32 0, %v2598
      %v2600 = vrot.slane %v64, %v2599
      %v2601 = vlaneseq
      %v2602 = vshrl.u32 %v2601, 7
      %v2603 = vsub.s32 4, %v2602
      %v2604 = vrot.slane %v64, %v2603
      %v2605 = vlaneseq
      %v2606 = vshrl.u32 %v2605, 7
      %v2607 = vsub.s32 0, %v2606
      %v2608 = vrot.slane %v65, %v2607
      %v2609 = vlaneseq
      %v2610 = vshrl.u32 %v2609, 7
      %v2611 = vsub.s32 4, %v2610
      %v2612 = vrot.slane %v65, %v2611
      %v2613 = vlaneseq
      %v2614 = vshrl.u32 %v2613, 7
      %v2615 = vsub.s32 0, %v2614
      %v2616 = vrot.slane %v66, %v2615
      %v2617 = vlaneseq
      %v2618 = vshrl.u32 %v2617, 7
      %v2619 = vsub.s32 4, %v2618
      %v2620 = vrot.slane %v66, %v2619
      %v2621 = vlaneseq
      %v2622 = vshrl.u32 %v2621, 7
      %v2623 = vsub.s32 0, %v2622
      %v2624 = vrot.slane %v67, %v2623
      %v2632 = vlaneseq
      %v2633 = vshrl.u32 %v2632, 7
      %v2634 = vsub.s32 0, %v2633
      %v2635 = vrot.slane %v2600, %v2634
      %v2636 = vlaneseq
      %v2637 = vshrl.u32 %v2636, 7
      %v2638 = vsub.s32 0, %v2637
      %v2639 = vrot.slane %v2604, %v2638
      %v2640 = vlaneseq
      %v2641 = vshrl.u32 %v2640, 7
      %v2642 = vsub.s32 0, %v2641
      %v2643 = vrot.slane %v2608, %v2642
      %v2644 = vlaneseq
      %v2645 = vshrl.u32 %v2644, 7
      %v2646 = vsub.s32 0, %v2645
      %v2647 = vrot.slane %v2612, %v2646
      %v2648 = vlaneseq
      %v2649 = vshrl.u32 %v2648, 7
      %v2650 = vsub.s32 0, %v2649
      %v2651 = vrot.slane %v2616, %v2650
      %v2652 = vlaneseq
      %v2653 = vshrl.u32 %v2652, 7
      %v2654 = vsub.s32 0, %v2653
      %v2655 = vrot.slane %v2620, %v2654
      %v2656 = vlaneseq
      %v2657 = vshrl.u32 %v2656, 7
      %v2658 = vsub.s32 0, %v2657
      %v2659 = vrot.slane %v2624, %v2658
      %v2660 = vmul.f32 %v2581, %v2635
      %v2661 = vmul.f32 %v2581, %v2639
      %v2662 = vmul.f32 %v2581, %v2643
      %v2663 = vmul.f32 %v2581, %v2647
      %v2664 = vmul.f32 %v2581, %v2651
      %v2665 = vmul.f32 %v2581, %v2655
      %v2666 = vmul.f32 %v2581, %v2659
      %v2667 = vmul.f32 %v2586, %v2635
      %v2668 = vmul.f32 %v2586, %v2639
      %v2669 = vmul.f32 %v2586, %v2643
      %v2670 = vmul.f32 %v2586, %v2647
      %v2671 = vmul.f32 %v2586, %v2651
      %v2672 = vmul.f32 %v2586, %v2655
      %v2673 = vmul.f32 %v2586, %v2659
      %v2674 = vmul.f32 %v2591, %v2635
      %v2675 = vmul.f32 %v2591, %v2639
      %v2676 = vmul.f32 %v2591, %v2643
      %v2677 = vmul.f32 %v2591, %v2647
      %v2678 = vmul.f32 %v2591, %v2651
      %v2679 = vmul.f32 %v2591, %v2655
      %v2680 = vmul.f32 %v2591, %v2659
      %2681 = vset.pattern.permute.xlu0 1
      %2682 = vperm.xlu0 %2681, %v2564
      %v2683 = vpop.permute.xlu0 %2682
      %2685 = vset.pattern.permute.xlu0 1
      %2686 = vperm.xlu0 %2685, %v2565
      %v2687 = vpop.permute.xlu0 %2686
      %2689 = vset.pattern.permute.xlu0 1
      %2690 = vperm.xlu0 %2689, %v2566
      %v2691 = vpop.permute.xlu0 %2690
      %v2693 = vlaneseq
      %v2694 = vshrl.u32 %v2693, 7
      %v2695 = vsub.s32 1, %v2694
      %v2696 = vrot.slane %v64, %v2695
      %v2697 = vlaneseq
      %v2698 = vshrl.u32 %v2697, 7
      %v2699 = vsub.s32 5, %v2698
      %v2700 = vrot.slane %v64, %v2699
      %v2701 = vlaneseq
      %v2702 = vshrl.u32 %v2701, 7
      %v2703 = vsub.s32 1, %v2702
      %v2704 = vrot.slane %v65, %v2703
      %v2705 = vlaneseq
      %v2706 = vshrl.u32 %v2705, 7
      %v2707 = vsub.s32 5, %v2706
      %v2708 = vrot.slane %v65, %v2707
      %v2709 = vlaneseq
      %v2710 = vshrl.u32 %v2709, 7
      %v2711 = vsub.s32 1, %v2710
      %v2712 = vrot.slane %v66, %v2711
      %v2713 = vlaneseq
      %v2714 = vshrl.u32 %v2713, 7
      %v2715 = vsub.s32 5, %v2714
      %v2716 = vrot.slane %v66, %v2715
      %v2717 = vlaneseq
      %v2718 = vshrl.u32 %v2717, 7
      %v2719 = vsub.s32 1, %v2718
      %v2720 = vrot.slane %v67, %v2719
      %v2728 = vlaneseq
      %v2729 = vshrl.u32 %v2728, 7
      %v2730 = vsub.s32 1, %v2729
      %v2731 = vrot.slane %v2696, %v2730
      %v2732 = vlaneseq
      %v2733 = vshrl.u32 %v2732, 7
      %v2734 = vsub.s32 1, %v2733
      %v2735 = vrot.slane %v2700, %v2734
      %v2736 = vlaneseq
      %v2737 = vshrl.u32 %v2736, 7
      %v2738 = vsub.s32 1, %v2737
      %v2739 = vrot.slane %v2704, %v2738
      %v2740 = vlaneseq
      %v2741 = vshrl.u32 %v2740, 7
      %v2742 = vsub.s32 1, %v2741
      %v2743 = vrot.slane %v2708, %v2742
      %v2744 = vlaneseq
      %v2745 = vshrl.u32 %v2744, 7
      %v2746 = vsub.s32 1, %v2745
      %v2747 = vrot.slane %v2712, %v2746
      %v2748 = vlaneseq
      %v2749 = vshrl.u32 %v2748, 7
      %v2750 = vsub.s32 1, %v2749
      %v2751 = vrot.slane %v2716, %v2750
      %v2752 = vlaneseq
      %v2753 = vshrl.u32 %v2752, 7
      %v2754 = vsub.s32 1, %v2753
      %v2755 = vrot.slane %v2720, %v2754
      %v2756 = vmul.f32 %v2683, %v2731
      %v2757 = vmul.f32 %v2683, %v2735
      %v2758 = vmul.f32 %v2683, %v2739
      %v2759 = vmul.f32 %v2683, %v2743
      %v2760 = vmul.f32 %v2683, %v2747
      %v2761 = vmul.f32 %v2683, %v2751
      %v2762 = vmul.f32 %v2683, %v2755
      %v2763 = vmul.f32 %v2687, %v2731
      %v2764 = vmul.f32 %v2687, %v2735
      %v2765 = vmul.f32 %v2687, %v2739
      %v2766 = vmul.f32 %v2687, %v2743
      %v2767 = vmul.f32 %v2687, %v2747
      %v2768 = vmul.f32 %v2687, %v2751
      %v2769 = vmul.f32 %v2687, %v2755
      %v2770 = vmul.f32 %v2691, %v2731
      %v2771 = vmul.f32 %v2691, %v2735
      %v2772 = vmul.f32 %v2691, %v2739
      %v2773 = vmul.f32 %v2691, %v2743
      %v2774 = vmul.f32 %v2691, %v2747
      %v2775 = vmul.f32 %v2691, %v2751
      %v2776 = vmul.f32 %v2691, %v2755
      %v2777 = vadd.f32 %v2660, %v2756
      %v2778 = vadd.f32 %v2661, %v2757
      %v2779 = vadd.f32 %v2662, %v2758
      %v2780 = vadd.f32 %v2663, %v2759
      %v2781 = vadd.f32 %v2664, %v2760
      %v2782 = vadd.f32 %v2665, %v2761
      %v2783 = vadd.f32 %v2666, %v2762
      %v2784 = vadd.f32 %v2667, %v2763
      %v2785 = vadd.f32 %v2668, %v2764
      %v2786 = vadd.f32 %v2669, %v2765
      %v2787 = vadd.f32 %v2670, %v2766
      %v2788 = vadd.f32 %v2671, %v2767
      %v2789 = vadd.f32 %v2672, %v2768
      %v2790 = vadd.f32 %v2673, %v2769
      %v2791 = vadd.f32 %v2674, %v2770
      %v2792 = vadd.f32 %v2675, %v2771
      %v2793 = vadd.f32 %v2676, %v2772
      %v2794 = vadd.f32 %v2677, %v2773
      %v2795 = vadd.f32 %v2678, %v2774
      %v2796 = vadd.f32 %v2679, %v2775
      %v2797 = vadd.f32 %v2680, %v2776
      %2798 = vset.pattern.permute.xlu0 2
      %2799 = vperm.xlu0 %2798, %v2564
      %v2800 = vpop.permute.xlu0 %2799
      %2802 = vset.pattern.permute.xlu0 2
      %2803 = vperm.xlu0 %2802, %v2565
      %v2804 = vpop.permute.xlu0 %2803
      %2806 = vset.pattern.permute.xlu0 2
      %2807 = vperm.xlu0 %2806, %v2566
      %v2808 = vpop.permute.xlu0 %2807
      %v2810 = vlaneseq
      %v2811 = vshrl.u32 %v2810, 7
      %v2812 = vsub.s32 2, %v2811
      %v2813 = vrot.slane %v64, %v2812
      %v2814 = vlaneseq
      %v2815 = vshrl.u32 %v2814, 7
      %v2816 = vsub.s32 6, %v2815
      %v2817 = vrot.slane %v64, %v2816
      %v2818 = vlaneseq
      %v2819 = vshrl.u32 %v2818, 7
      %v2820 = vsub.s32 2, %v2819
      %v2821 = vrot.slane %v65, %v2820
      %v2822 = vlaneseq
      %v2823 = vshrl.u32 %v2822, 7
      %v2824 = vsub.s32 6, %v2823
      %v2825 = vrot.slane %v65, %v2824
      %v2826 = vlaneseq
      %v2827 = vshrl.u32 %v2826, 7
      %v2828 = vsub.s32 2, %v2827
      %v2829 = vrot.slane %v66, %v2828
      %v2830 = vlaneseq
      %v2831 = vshrl.u32 %v2830, 7
      %v2832 = vsub.s32 6, %v2831
      %v2833 = vrot.slane %v66, %v2832
      %v2834 = vlaneseq
      %v2835 = vshrl.u32 %v2834, 7
      %v2836 = vsub.s32 2, %v2835
      %v2837 = vrot.slane %v67, %v2836
      %v2845 = vlaneseq
      %v2846 = vshrl.u32 %v2845, 7
      %v2847 = vsub.s32 2, %v2846
      %v2848 = vrot.slane %v2813, %v2847
      %v2849 = vlaneseq
      %v2850 = vshrl.u32 %v2849, 7
      %v2851 = vsub.s32 2, %v2850
      %v2852 = vrot.slane %v2817, %v2851
      %v2853 = vlaneseq
      %v2854 = vshrl.u32 %v2853, 7
      %v2855 = vsub.s32 2, %v2854
      %v2856 = vrot.slane %v2821, %v2855
      %v2857 = vlaneseq
      %v2858 = vshrl.u32 %v2857, 7
      %v2859 = vsub.s32 2, %v2858
      %v2860 = vrot.slane %v2825, %v2859
      %v2861 = vlaneseq
      %v2862 = vshrl.u32 %v2861, 7
      %v2863 = vsub.s32 2, %v2862
      %v2864 = vrot.slane %v2829, %v2863
      %v2865 = vlaneseq
      %v2866 = vshrl.u32 %v2865, 7
      %v2867 = vsub.s32 2, %v2866
      %v2868 = vrot.slane %v2833, %v2867
      %v2869 = vlaneseq
      %v2870 = vshrl.u32 %v2869, 7
      %v2871 = vsub.s32 2, %v2870
      %v2872 = vrot.slane %v2837, %v2871
      %v2873 = vmul.f32 %v2800, %v2848
      %v2874 = vmul.f32 %v2800, %v2852
      %v2875 = vmul.f32 %v2800, %v2856
      %v2876 = vmul.f32 %v2800, %v2860
      %v2877 = vmul.f32 %v2800, %v2864
      %v2878 = vmul.f32 %v2800, %v2868
      %v2879 = vmul.f32 %v2800, %v2872
      %v2880 = vmul.f32 %v2804, %v2848
      %v2881 = vmul.f32 %v2804, %v2852
      %v2882 = vmul.f32 %v2804, %v2856
      %v2883 = vmul.f32 %v2804, %v2860
      %v2884 = vmul.f32 %v2804, %v2864
      %v2885 = vmul.f32 %v2804, %v2868
      %v2886 = vmul.f32 %v2804, %v2872
      %v2887 = vmul.f32 %v2808, %v2848
      %v2888 = vmul.f32 %v2808, %v2852
      %v2889 = vmul.f32 %v2808, %v2856
      %v2890 = vmul.f32 %v2808, %v2860
      %v2891 = vmul.f32 %v2808, %v2864
      %v2892 = vmul.f32 %v2808, %v2868
      %v2893 = vmul.f32 %v2808, %v2872
      %v2894 = vadd.f32 %v2777, %v2873
      %v2895 = vadd.f32 %v2778, %v2874
      %v2896 = vadd.f32 %v2779, %v2875
      %v2897 = vadd.f32 %v2780, %v2876
      %v2898 = vadd.f32 %v2781, %v2877
      %v2899 = vadd.f32 %v2782, %v2878
      %v2900 = vadd.f32 %v2783, %v2879
      %v2901 = vadd.f32 %v2784, %v2880
      %v2902 = vadd.f32 %v2785, %v2881
      %v2903 = vadd.f32 %v2786, %v2882
      %v2904 = vadd.f32 %v2787, %v2883
      %v2905 = vadd.f32 %v2788, %v2884
      %v2906 = vadd.f32 %v2789, %v2885
      %v2907 = vadd.f32 %v2790, %v2886
      %v2908 = vadd.f32 %v2791, %v2887
      %v2909 = vadd.f32 %v2792, %v2888
      %v2910 = vadd.f32 %v2793, %v2889
      %v2911 = vadd.f32 %v2794, %v2890
      %v2912 = vadd.f32 %v2795, %v2891
      %v2913 = vadd.f32 %v2796, %v2892
      %v2914 = vadd.f32 %v2797, %v2893
      %2915 = vset.pattern.permute.xlu0 3
      %2916 = vperm.xlu0 %2915, %v2564
      %v2917 = vpop.permute.xlu0 %2916
      %2919 = vset.pattern.permute.xlu0 3
      %2920 = vperm.xlu0 %2919, %v2565
      %v2921 = vpop.permute.xlu0 %2920
      %2923 = vset.pattern.permute.xlu0 3
      %2924 = vperm.xlu0 %2923, %v2566
      %v2925 = vpop.permute.xlu0 %2924
      %v2927 = vlaneseq
      %v2928 = vshrl.u32 %v2927, 7
      %v2929 = vsub.s32 3, %v2928
      %v2930 = vrot.slane %v64, %v2929
      %v2931 = vlaneseq
      %v2932 = vshrl.u32 %v2931, 7
      %v2933 = vsub.s32 7, %v2932
      %v2934 = vrot.slane %v64, %v2933
      %v2935 = vlaneseq
      %v2936 = vshrl.u32 %v2935, 7
      %v2937 = vsub.s32 3, %v2936
      %v2938 = vrot.slane %v65, %v2937
      %v2939 = vlaneseq
      %v2940 = vshrl.u32 %v2939, 7
      %v2941 = vsub.s32 7, %v2940
      %v2942 = vrot.slane %v65, %v2941
      %v2943 = vlaneseq
      %v2944 = vshrl.u32 %v2943, 7
      %v2945 = vsub.s32 3, %v2944
      %v2946 = vrot.slane %v66, %v2945
      %v2947 = vlaneseq
      %v2948 = vshrl.u32 %v2947, 7
      %v2949 = vsub.s32 7, %v2948
      %v2950 = vrot.slane %v66, %v2949
      %v2951 = vlaneseq
      %v2952 = vshrl.u32 %v2951, 7
      %v2953 = vsub.s32 3, %v2952
      %v2954 = vrot.slane %v67, %v2953
      %v2962 = vlaneseq
      %v2963 = vshrl.u32 %v2962, 7
      %v2964 = vsub.s32 3, %v2963
      %v2965 = vrot.slane %v2930, %v2964
      %v2966 = vlaneseq
      %v2967 = vshrl.u32 %v2966, 7
      %v2968 = vsub.s32 3, %v2967
      %v2969 = vrot.slane %v2934, %v2968
      %v2970 = vlaneseq
      %v2971 = vshrl.u32 %v2970, 7
      %v2972 = vsub.s32 3, %v2971
      %v2973 = vrot.slane %v2938, %v2972
      %v2974 = vlaneseq
      %v2975 = vshrl.u32 %v2974, 7
      %v2976 = vsub.s32 3, %v2975
      %v2977 = vrot.slane %v2942, %v2976
      %v2978 = vlaneseq
      %v2979 = vshrl.u32 %v2978, 7
      %v2980 = vsub.s32 3, %v2979
      %v2981 = vrot.slane %v2946, %v2980
      %v2982 = vlaneseq
      %v2983 = vshrl.u32 %v2982, 7
      %v2984 = vsub.s32 3, %v2983
      %v2985 = vrot.slane %v2950, %v2984
      %v2986 = vlaneseq
      %v2987 = vshrl.u32 %v2986, 7
      %v2988 = vsub.s32 3, %v2987
      %v2989 = vrot.slane %v2954, %v2988
      %v2990 = vmul.f32 %v2917, %v2965
      %v2991 = vmul.f32 %v2917, %v2969
      %v2992 = vmul.f32 %v2917, %v2973
      %v2993 = vmul.f32 %v2917, %v2977
      %v2994 = vmul.f32 %v2917, %v2981
      %v2995 = vmul.f32 %v2917, %v2985
      %v2996 = vmul.f32 %v2917, %v2989
      %v2997 = vmul.f32 %v2921, %v2965
      %v2998 = vmul.f32 %v2921, %v2969
      %v2999 = vmul.f32 %v2921, %v2973
      %v3000 = vmul.f32 %v2921, %v2977
      %v3001 = vmul.f32 %v2921, %v2981
      %v3002 = vmul.f32 %v2921, %v2985
      %v3003 = vmul.f32 %v2921, %v2989
      %v3004 = vmul.f32 %v2925, %v2965
      %v3005 = vmul.f32 %v2925, %v2969
      %v3006 = vmul.f32 %v2925, %v2973
      %v3007 = vmul.f32 %v2925, %v2977
      %v3008 = vmul.f32 %v2925, %v2981
      %v3009 = vmul.f32 %v2925, %v2985
      %v3010 = vmul.f32 %v2925, %v2989
      %v3011 = vadd.f32 %v2894, %v2990
      %v3012 = vadd.f32 %v2895, %v2991
      %v3013 = vadd.f32 %v2896, %v2992
      %v3014 = vadd.f32 %v2897, %v2993
      %v3015 = vadd.f32 %v2898, %v2994
      %v3016 = vadd.f32 %v2899, %v2995
      %v3017 = vadd.f32 %v2900, %v2996
      %v3018 = vadd.f32 %v2901, %v2997
      %v3019 = vadd.f32 %v2902, %v2998
      %v3020 = vadd.f32 %v2903, %v2999
      %v3021 = vadd.f32 %v2904, %v3000
      %v3022 = vadd.f32 %v2905, %v3001
      %v3023 = vadd.f32 %v2906, %v3002
      %v3024 = vadd.f32 %v2907, %v3003
      %v3025 = vadd.f32 %v2908, %v3004
      %v3026 = vadd.f32 %v2909, %v3005
      %v3027 = vadd.f32 %v2910, %v3006
      %v3028 = vadd.f32 %v2911, %v3007
      %v3029 = vadd.f32 %v2912, %v3008
      %v3030 = vadd.f32 %v2913, %v3009
      %v3031 = vadd.f32 %v2914, %v3010
      %v3032 = vadd.f32 %v3011, %v3012
      %v3033 = vadd.f32 %v3032, %v3013
      %v3034 = vadd.f32 %v3033, %v3014
      %v3035 = vadd.f32 %v3034, %v3015
      %v3036 = vadd.f32 %v3035, %v3016
      %v3037 = vadd.f32 %v3036, %v3017
      %3038 = vadd.xlane.f32.xlu0 %v3037
      %v3039 = vpop.xlane.xlu0 %3038
      %v3040 = vadd.f32 %v3018, %v3019
      %v3041 = vadd.f32 %v3040, %v3020
      %v3042 = vadd.f32 %v3041, %v3021
      %v3043 = vadd.f32 %v3042, %v3022
      %v3044 = vadd.f32 %v3043, %v3023
      %v3045 = vadd.f32 %v3044, %v3024
      %3046 = vadd.xlane.f32.xlu0 %v3045
      %v3047 = vpop.xlane.xlu0 %3046
      %v3048 = vadd.f32 %v3025, %v3026
      %v3049 = vadd.f32 %v3048, %v3027
      %v3050 = vadd.f32 %v3049, %v3028
      %v3051 = vadd.f32 %v3050, %v3029
      %v3052 = vadd.f32 %v3051, %v3030
      %v3053 = vadd.f32 %v3052, %v3031
      %3054 = vadd.xlane.f32.xlu0 %v3053
      %v3055 = vpop.xlane.xlu0 %3054
      %v3056 = vmul.f32 %v3011, %v3011
      %v3057 = vmul.f32 %v3012, %v3012
      %v3058 = vmul.f32 %v3013, %v3013
      %v3059 = vmul.f32 %v3014, %v3014
      %v3060 = vmul.f32 %v3015, %v3015
      %v3061 = vmul.f32 %v3016, %v3016
      %v3062 = vmul.f32 %v3017, %v3017
      %v3063 = vmul.f32 %v3018, %v3018
      %v3064 = vmul.f32 %v3019, %v3019
      %v3065 = vmul.f32 %v3020, %v3020
      %v3066 = vmul.f32 %v3021, %v3021
      %v3067 = vmul.f32 %v3022, %v3022
      %v3068 = vmul.f32 %v3023, %v3023
      %v3069 = vmul.f32 %v3024, %v3024
      %v3070 = vmul.f32 %v3025, %v3025
      %v3071 = vmul.f32 %v3026, %v3026
      %v3072 = vmul.f32 %v3027, %v3027
      %v3073 = vmul.f32 %v3028, %v3028
      %v3074 = vmul.f32 %v3029, %v3029
      %v3075 = vmul.f32 %v3030, %v3030
      %v3076 = vmul.f32 %v3031, %v3031
      %v3077 = vadd.f32 %v3056, %v3057
      %v3078 = vadd.f32 %v3077, %v3058
      %v3079 = vadd.f32 %v3078, %v3059
      %v3080 = vadd.f32 %v3079, %v3060
      %v3081 = vadd.f32 %v3080, %v3061
      %v3082 = vadd.f32 %v3081, %v3062
      %3083 = vadd.xlane.f32.xlu0 %v3082
      %v3084 = vpop.xlane.xlu0 %3083
      %v3085 = vadd.f32 %v3063, %v3064
      %v3086 = vadd.f32 %v3085, %v3065
      %v3087 = vadd.f32 %v3086, %v3066
      %v3088 = vadd.f32 %v3087, %v3067
      %v3089 = vadd.f32 %v3088, %v3068
      %v3090 = vadd.f32 %v3089, %v3069
      %3091 = vadd.xlane.f32.xlu0 %v3090
      %v3092 = vpop.xlane.xlu0 %3091
      %v3093 = vadd.f32 %v3070, %v3071
      %v3094 = vadd.f32 %v3093, %v3072
      %v3095 = vadd.f32 %v3094, %v3073
      %v3096 = vadd.f32 %v3095, %v3074
      %v3097 = vadd.f32 %v3096, %v3075
      %v3098 = vadd.f32 %v3097, %v3076
      %3099 = vadd.xlane.f32.xlu0 %v3098
      %v3100 = vpop.xlane.xlu0 %3099
      %v3101 = vmul.f32 %v3039, 0.001953125
      %v3102 = vmul.f32 %v3047, 0.001953125
      %v3103 = vmul.f32 %v3055, 0.001953125
      %v3104 = vmul.f32 %v3084, 0.001953125
      %v3105 = vmul.f32 %v3092, 0.001953125
      %v3106 = vmul.f32 %v3100, 0.001953125
      %v3107 = vmul.f32 %v3101, %v3101
      %v3108 = vmul.f32 %v3102, %v3102
      %v3109 = vmul.f32 %v3103, %v3103
      %v3110 = vsub.f32 %v3104, %v3107
      %v3111 = vsub.f32 %v3105, %v3108
      %v3112 = vsub.f32 %v3106, %v3109
      %v3113 = vsub.f32 %v3011, %v3101
      %v3114 = vsub.f32 %v3012, %v3101
      %v3115 = vsub.f32 %v3013, %v3101
      %v3116 = vsub.f32 %v3014, %v3101
      %v3117 = vsub.f32 %v3015, %v3101
      %v3118 = vsub.f32 %v3016, %v3101
      %v3119 = vsub.f32 %v3017, %v3101
      %v3120 = vsub.f32 %v3018, %v3102
      %v3121 = vsub.f32 %v3019, %v3102
      %v3122 = vsub.f32 %v3020, %v3102
      %v3123 = vsub.f32 %v3021, %v3102
      %v3124 = vsub.f32 %v3022, %v3102
      %v3125 = vsub.f32 %v3023, %v3102
      %v3126 = vsub.f32 %v3024, %v3102
      %v3127 = vsub.f32 %v3025, %v3103
      %v3128 = vsub.f32 %v3026, %v3103
      %v3129 = vsub.f32 %v3027, %v3103
      %v3130 = vsub.f32 %v3028, %v3103
      %v3131 = vsub.f32 %v3029, %v3103
      %v3132 = vsub.f32 %v3030, %v3103
      %v3133 = vsub.f32 %v3031, %v3103
      %v3134 = vadd.f32 %v3110, 1e-05
      %v3135 = vadd.f32 %v3111, 1e-05
      %v3136 = vadd.f32 %v3112, 1e-05
      %v3137 = vrsqrt.pop %v3134
      %v3138 = vrsqrt.pop %v3135
      %v3139 = vrsqrt.pop %v3136
      %v3140 = vmul.f32 %v3113, %v3137
      %v3141 = vmul.f32 %v3114, %v3137
      %v3142 = vmul.f32 %v3115, %v3137
      %v3143 = vmul.f32 %v3116, %v3137
      %v3144 = vmul.f32 %v3117, %v3137
      %v3145 = vmul.f32 %v3118, %v3137
      %v3146 = vmul.f32 %v3119, %v3137
      %v3147 = vmul.f32 %v3120, %v3138
      %v3148 = vmul.f32 %v3121, %v3138
      %v3149 = vmul.f32 %v3122, %v3138
      %v3150 = vmul.f32 %v3123, %v3138
      %v3151 = vmul.f32 %v3124, %v3138
      %v3152 = vmul.f32 %v3125, %v3138
      %v3153 = vmul.f32 %v3126, %v3138
      %v3154 = vmul.f32 %v3127, %v3139
      %v3155 = vmul.f32 %v3128, %v3139
      %v3156 = vmul.f32 %v3129, %v3139
      %v3157 = vmul.f32 %v3130, %v3139
      %v3158 = vmul.f32 %v3131, %v3139
      %v3159 = vmul.f32 %v3132, %v3139
      %v3160 = vmul.f32 %v3133, %v3139
      %3162 = vset.pattern.permute.xlu0 0
      %3163 = vperm.xlu0 %3162, %v2567
      %v3164 = vpop.permute.xlu0 %3163
      %3167 = vset.pattern.permute.xlu0 0
      %3168 = vperm.xlu0 %3167, %v2568
      %v3169 = vpop.permute.xlu0 %3168
      %3172 = vset.pattern.permute.xlu0 0
      %3173 = vperm.xlu0 %3172, %v2569
      %v3174 = vpop.permute.xlu0 %3173
      %v3176 = vmul.f32 %v3140, %v3164
      %v3177 = vmul.f32 %v3141, %v3164
      %v3178 = vmul.f32 %v3142, %v3164
      %v3179 = vmul.f32 %v3143, %v3164
      %v3180 = vmul.f32 %v3144, %v3164
      %v3181 = vmul.f32 %v3145, %v3164
      %v3182 = vmul.f32 %v3146, %v3164
      %v3183 = vmul.f32 %v3147, %v3169
      %v3184 = vmul.f32 %v3148, %v3169
      %v3185 = vmul.f32 %v3149, %v3169
      %v3186 = vmul.f32 %v3150, %v3169
      %v3187 = vmul.f32 %v3151, %v3169
      %v3188 = vmul.f32 %v3152, %v3169
      %v3189 = vmul.f32 %v3153, %v3169
      %v3190 = vmul.f32 %v3154, %v3174
      %v3191 = vmul.f32 %v3155, %v3174
      %v3192 = vmul.f32 %v3156, %v3174
      %v3193 = vmul.f32 %v3157, %v3174
      %v3194 = vmul.f32 %v3158, %v3174
      %v3195 = vmul.f32 %v3159, %v3174
      %v3196 = vmul.f32 %v3160, %v3174
      %3197 = vset.pattern.permute.xlu0 1
      %3198 = vperm.xlu0 %3197, %v2567
      %v3199 = vpop.permute.xlu0 %3198
      %3201 = vset.pattern.permute.xlu0 1
      %3202 = vperm.xlu0 %3201, %v2568
      %v3203 = vpop.permute.xlu0 %3202
      %3205 = vset.pattern.permute.xlu0 1
      %3206 = vperm.xlu0 %3205, %v2569
      %v3207 = vpop.permute.xlu0 %3206
      %v3209 = vadd.f32 %v3176, %v3199
      %v3210 = vadd.f32 %v3177, %v3199
      %v3211 = vadd.f32 %v3178, %v3199
      %v3212 = vadd.f32 %v3179, %v3199
      %v3213 = vadd.f32 %v3180, %v3199
      %v3214 = vadd.f32 %v3181, %v3199
      %v3215 = vadd.f32 %v3182, %v3199
      %v3216 = vadd.f32 %v3183, %v3203
      %v3217 = vadd.f32 %v3184, %v3203
      %v3218 = vadd.f32 %v3185, %v3203
      %v3219 = vadd.f32 %v3186, %v3203
      %v3220 = vadd.f32 %v3187, %v3203
      %v3221 = vadd.f32 %v3188, %v3203
      %v3222 = vadd.f32 %v3189, %v3203
      %v3223 = vadd.f32 %v3190, %v3207
      %v3224 = vadd.f32 %v3191, %v3207
      %v3225 = vadd.f32 %v3192, %v3207
      %v3226 = vadd.f32 %v3193, %v3207
      %v3227 = vadd.f32 %v3194, %v3207
      %v3228 = vadd.f32 %v3195, %v3207
      %v3229 = vadd.f32 %v3196, %v3207
      %v3230 = vmax.f32 %v3209, 0.0
      %v3231 = vmax.f32 %v3210, 0.0
      %v3232 = vmax.f32 %v3211, 0.0
      %v3233 = vmax.f32 %v3212, 0.0
      %v3234 = vmax.f32 %v3213, 0.0
      %v3235 = vmax.f32 %v3214, 0.0
      %v3236 = vmax.f32 %v3215, 0.0
      %v3237 = vmax.f32 %v3216, 0.0
      %v3238 = vmax.f32 %v3217, 0.0
      %v3239 = vmax.f32 %v3218, 0.0
      %v3240 = vmax.f32 %v3219, 0.0
      %v3241 = vmax.f32 %v3220, 0.0
      %v3242 = vmax.f32 %v3221, 0.0
      %v3243 = vmax.f32 %v3222, 0.0
      %v3244 = vmax.f32 %v3223, 0.0
      %v3245 = vmax.f32 %v3224, 0.0
      %v3246 = vmax.f32 %v3225, 0.0
      %v3247 = vmax.f32 %v3226, 0.0
      %v3248 = vmax.f32 %v3227, 0.0
      %v3249 = vmax.f32 %v3228, 0.0
      %v3250 = vmax.f32 %v3229, 0.0
      %v3251 = vmin.f32 %v3230, 6.0
      %v3252 = vmin.f32 %v3231, 6.0
      %v3253 = vmin.f32 %v3232, 6.0
      %v3254 = vmin.f32 %v3233, 6.0
      %v3255 = vmin.f32 %v3234, 6.0
      %v3256 = vmin.f32 %v3235, 6.0
      %v3257 = vmin.f32 %v3236, 6.0
      %v3258 = vmin.f32 %v3237, 6.0
      %v3259 = vmin.f32 %v3238, 6.0
      %v3260 = vmin.f32 %v3239, 6.0
      %v3261 = vmin.f32 %v3240, 6.0
      %v3262 = vmin.f32 %v3241, 6.0
      %v3263 = vmin.f32 %v3242, 6.0
      %v3264 = vmin.f32 %v3243, 6.0
      %v3265 = vmin.f32 %v3244, 6.0
      %v3266 = vmin.f32 %v3245, 6.0
      %v3267 = vmin.f32 %v3246, 6.0
      %v3268 = vmin.f32 %v3247, 6.0
      %v3269 = vmin.f32 %v3248, 6.0
      %v3270 = vmin.f32 %v3249, 6.0
      %v3271 = vmin.f32 %v3250, 6.0
      %v3273 = vlaneseq
      %v3274 = vshrl.u32 %v3273, 7
      %v3275 = vsub.s32 0, %v3274
      %v3276 = vrot.slane %v68, %v3275
      %v3277 = vlaneseq
      %v3278 = vshrl.u32 %v3277, 7
      %v3279 = vsub.s32 1, %v3278
      %v3280 = vrot.slane %v68, %v3279
      %v3281 = vlaneseq
      %v3282 = vshrl.u32 %v3281, 7
      %v3283 = vsub.s32 2, %v3282
      %v3284 = vrot.slane %v68, %v3283
      %v3285 = vlaneseq
      %v3286 = vshrl.u32 %v3285, 7
      %v3287 = vsub.s32 3, %v3286
      %v3288 = vrot.slane %v68, %v3287
      %v3289 = vlaneseq
      %v3290 = vshrl.u32 %v3289, 7
      %v3291 = vsub.s32 4, %v3290
      %v3292 = vrot.slane %v68, %v3291
      %v3293 = vlaneseq
      %v3294 = vshrl.u32 %v3293, 7
      %v3295 = vsub.s32 5, %v3294
      %v3296 = vrot.slane %v68, %v3295
      %v3297 = vlaneseq
      %v3298 = vshrl.u32 %v3297, 7
      %v3299 = vsub.s32 6, %v3298
      %v3300 = vrot.slane %v68, %v3299
      %v3308 = vmul.f32 %v3251, %v3276
      %v3309 = vmul.f32 %v3252, %v3280
      %v3310 = vmul.f32 %v3253, %v3284
      %v3311 = vmul.f32 %v3254, %v3288
      %v3312 = vmul.f32 %v3255, %v3292
      %v3313 = vmul.f32 %v3256, %v3296
      %v3314 = vmul.f32 %v3257, %v3300
      %v3315 = vmul.f32 %v3258, %v3276
      %v3316 = vmul.f32 %v3259, %v3280
      %v3317 = vmul.f32 %v3260, %v3284
      %v3318 = vmul.f32 %v3261, %v3288
      %v3319 = vmul.f32 %v3262, %v3292
      %v3320 = vmul.f32 %v3263, %v3296
      %v3321 = vmul.f32 %v3264, %v3300
      %v3322 = vmul.f32 %v3265, %v3276
      %v3323 = vmul.f32 %v3266, %v3280
      %v3324 = vmul.f32 %v3267, %v3284
      %v3325 = vmul.f32 %v3268, %v3288
      %v3326 = vmul.f32 %v3269, %v3292
      %v3327 = vmul.f32 %v3270, %v3296
      %v3328 = vmul.f32 %v3271, %v3300
      %3329 = vst [vmem:[#allocation2 + $0x8] sm:$0xff] %v3308
      %3330 = vst [vmem:[#allocation2 + $0x10] sm:$0xff] %v3309
      %3331 = vst [vmem:[#allocation2 + $0x18] sm:$0xff] %v3310
      %3332 = vst [vmem:[#allocation2 + $0x20] sm:$0xff] %v3311
      %3333 = vst [vmem:[#allocation2 + $0x28] sm:$0xff] %v3312
      %3334 = vst [vmem:[#allocation2 + $0x30] sm:$0xff] %v3313
      %3335 = vst [vmem:[#allocation2 + $0x38] sm:$0xff] %v3314
      %3336 = vst [vmem:[#allocation2 + $0x50] sm:$0xff] %v3315
      %3337 = vst [vmem:[#allocation2 + $0x58] sm:$0xff] %v3316
      %3338 = vst [vmem:[#allocation2 + $0x60] sm:$0xff] %v3317
      %3339 = vst [vmem:[#allocation2 + $0x68] sm:$0xff] %v3318
      %3340 = vst [vmem:[#allocation2 + $0x70] sm:$0xff] %v3319
      %3341 = vst [vmem:[#allocation2 + $0x78] sm:$0xff] %v3320
      %3342 = vst [vmem:[#allocation2 + $0x80] sm:$0xff] %v3321
      %3343 = vst [vmem:[#allocation2 + $0x98] sm:$0xff] %v3322
      %3344 = vst [vmem:[#allocation2 + $0xa0] sm:$0xff] %v3323
      %3345 = vst [vmem:[#allocation2 + $0xa8] sm:$0xff] %v3324
      %3346 = vst [vmem:[#allocation2 + $0xb0] sm:$0xff] %v3325
      %3347 = vst [vmem:[#allocation2 + $0xb8] sm:$0xff] %v3326
      %3348 = vst [vmem:[#allocation2 + $0xc0] sm:$0xff] %v3327
      %3349 = vst [vmem:[#allocation2 + $0xc8] sm:$0xff] %v3328
      %3351 = vset.pattern.permute.xlu0 12
      %3352 = vperm.xlu0 %3351, %v2570
      %v3353 = vpop.permute.xlu0 %3352
      %3356 = vset.pattern.permute.xlu0 12
      %3357 = vperm.xlu0 %3356, %v2571
      %v3358 = vpop.permute.xlu0 %3357
      %3361 = vset.pattern.permute.xlu0 12
      %3362 = vperm.xlu0 %3361, %v2572
      %v3363 = vpop.permute.xlu0 %3362
      %v3365 = vmul.f32 %v3353, %v3308
      %v3366 = vmul.f32 %v3353, %v3309
      %v3367 = vmul.f32 %v3353, %v3310
      %v3368 = vmul.f32 %v3353, %v3311
      %v3369 = vmul.f32 %v3353, %v3312
      %v3370 = vmul.f32 %v3353, %v3313
      %v3371 = vmul.f32 %v3353, %v3314
      %v3372 = vmul.f32 %v3358, %v3315
      %v3373 = vmul.f32 %v3358, %v3316
      %v3374 = vmul.f32 %v3358, %v3317
      %v3375 = vmul.f32 %v3358, %v3318
      %v3376 = vmul.f32 %v3358, %v3319
      %v3377 = vmul.f32 %v3358, %v3320
      %v3378 = vmul.f32 %v3358, %v3321
      %v3379 = vmul.f32 %v3363, %v3322
      %v3380 = vmul.f32 %v3363, %v3323
      %v3381 = vmul.f32 %v3363, %v3324
      %v3382 = vmul.f32 %v3363, %v3325
      %v3383 = vmul.f32 %v3363, %v3326
      %v3384 = vmul.f32 %v3363, %v3327
      %v3385 = vmul.f32 %v3363, %v3328
      %v3386 = vld [vmem:[#allocation2] sm:$0xff]
      %v3387 = vld [vmem:[#allocation2 + $0x8] sm:$0xff]
      %v3388 = vld [vmem:[#allocation2 + $0x10] sm:$0xff]
      %v3389 = vld [vmem:[#allocation2 + $0x18] sm:$0xff]
      %v3390 = vld [vmem:[#allocation2 + $0x20] sm:$0xff]
      %v3391 = vld [vmem:[#allocation2 + $0x28] sm:$0xff]
      %v3392 = vld [vmem:[#allocation2 + $0x30] sm:$0xff]
      %v3393 = vld [vmem:[#allocation2 + $0x38] sm:$0xff]
      %v3394 = vld [vmem:[#allocation2 + $0x48] sm:$0xff]
      %v3395 = vld [vmem:[#allocation2 + $0x50] sm:$0xff]
      %v3396 = vld [vmem:[#allocation2 + $0x58] sm:$0xff]
      %v3397 = vld [vmem:[#allocation2 + $0x60] sm:$0xff]
      %v3398 = vld [vmem:[#allocation2 + $0x68] sm:$0xff]
      %v3399 = vld [vmem:[#allocation2 + $0x70] sm:$0xff]
      %v3400 = vld [vmem:[#allocation2 + $0x78] sm:$0xff]
      %v3401 = vld [vmem:[#allocation2 + $0x80] sm:$0xff]
      %v3402 = vld [vmem:[#allocation2 + $0x90] sm:$0xff]
      %v3403 = vld [vmem:[#allocation2 + $0x98] sm:$0xff]
      %v3404 = vld [vmem:[#allocation2 + $0xa0] sm:$0xff]
      %v3405 = vld [vmem:[#allocation2 + $0xa8] sm:$0xff]
      %v3406 = vld [vmem:[#allocation2 + $0xb0] sm:$0xff]
      %v3407 = vld [vmem:[#allocation2 + $0xb8] sm:$0xff]
      %v3408 = vld [vmem:[#allocation2 + $0xc0] sm:$0xff]
      %v3409 = vld [vmem:[#allocation2 + $0xc8] sm:$0xff]
      %3410 = vset.pattern.permute.xlu0 0
      %3411 = vperm.xlu0 %3410, %v2570
      %v3412 = vpop.permute.xlu0 %3411
      %3414 = vset.pattern.permute.xlu0 0
      %3415 = vperm.xlu0 %3414, %v2571
      %v3416 = vpop.permute.xlu0 %3415
      %3418 = vset.pattern.permute.xlu0 0
      %3419 = vperm.xlu0 %3418, %v2572
      %v3420 = vpop.permute.xlu0 %3419
      %v3422 = vmul.f32 %v3412, %v3386
      %v3423 = vmul.f32 %v3412, %v3387
      %v3424 = vmul.f32 %v3412, %v3388
      %v3425 = vmul.f32 %v3412, %v3389
      %v3426 = vmul.f32 %v3412, %v3390
      %v3427 = vmul.f32 %v3412, %v3391
      %v3428 = vmul.f32 %v3412, %v3392
      %v3429 = vmul.f32 %v3412, %v3393
      %v3430 = vmul.f32 %v3416, %v3394
      %v3431 = vmul.f32 %v3416, %v3395
      %v3432 = vmul.f32 %v3416, %v3396
      %v3433 = vmul.f32 %v3416, %v3397
      %v3434 = vmul.f32 %v3416, %v3398
      %v3435 = vmul.f32 %v3416, %v3399
      %v3436 = vmul.f32 %v3416, %v3400
      %v3437 = vmul.f32 %v3416, %v3401
      %v3438 = vmul.f32 %v3420, %v3402
      %v3439 = vmul.f32 %v3420, %v3403
      %v3440 = vmul.f32 %v3420, %v3404
      %v3441 = vmul.f32 %v3420, %v3405
      %v3442 = vmul.f32 %v3420, %v3406
      %v3443 = vmul.f32 %v3420, %v3407
      %v3444 = vmul.f32 %v3420, %v3408
      %v3445 = vmul.f32 %v3420, %v3409
      %3470 = vrot.lane.b32.xlu0 %v3422, 84
      %v3471 = vpop.permute.xlu0 %3470
      %3472 = vrot.lane.b32.xlu0 %v3423, 84
      %v3473 = vpop.permute.xlu0 %3472
      %3474 = vrot.lane.b32.xlu0 %v3424, 84
      %v3475 = vpop.permute.xlu0 %3474
      %3476 = vrot.lane.b32.xlu0 %v3425, 84
      %v3477 = vpop.permute.xlu0 %3476
      %3478 = vrot.lane.b32.xlu0 %v3426, 84
      %v3479 = vpop.permute.xlu0 %3478
      %3480 = vrot.lane.b32.xlu0 %v3427, 84
      %v3481 = vpop.permute.xlu0 %3480
      %3482 = vrot.lane.b32.xlu0 %v3428, 84
      %v3483 = vpop.permute.xlu0 %3482
      %3484 = vrot.lane.b32.xlu0 %v3429, 84
      %v3485 = vpop.permute.xlu0 %3484
      %3486 = vrot.lane.b32.xlu0 %v3430, 84
      %v3487 = vpop.permute.xlu0 %3486
      %3488 = vrot.lane.b32.xlu0 %v3431, 84
      %v3489 = vpop.permute.xlu0 %3488
      %3490 = vrot.lane.b32.xlu0 %v3432, 84
      %v3491 = vpop.permute.xlu0 %3490
      %3492 = vrot.lane.b32.xlu0 %v3433, 84
      %v3493 = vpop.permute.xlu0 %3492
      %3494 = vrot.lane.b32.xlu0 %v3434, 84
      %v3495 = vpop.permute.xlu0 %3494
      %3496 = vrot.lane.b32.xlu0 %v3435, 84
      %v3497 = vpop.permute.xlu0 %3496
      %3498 = vrot.lane.b32.xlu0 %v3436, 84
      %v3499 = vpop.permute.xlu0 %3498
      %3500 = vrot.lane.b32.xlu0 %v3437, 84
      %v3501 = vpop.permute.xlu0 %3500
      %3502 = vrot.lane.b32.xlu0 %v3438, 84
      %v3503 = vpop.permute.xlu0 %3502
      %3504 = vrot.lane.b32.xlu0 %v3439, 84
      %v3505 = vpop.permute.xlu0 %3504
      %3506 = vrot.lane.b32.xlu0 %v3440, 84
      %v3507 = vpop.permute.xlu0 %3506
      %3508 = vrot.lane.b32.xlu0 %v3441, 84
      %v3509 = vpop.permute.xlu0 %3508
      %3510 = vrot.lane.b32.xlu0 %v3442, 84
      %v3511 = vpop.permute.xlu0 %3510
      %3512 = vrot.lane.b32.xlu0 %v3443, 84
      %v3513 = vpop.permute.xlu0 %3512
      %3514 = vrot.lane.b32.xlu0 %v3444, 84
      %v3515 = vpop.permute.xlu0 %3514
      %3516 = vrot.lane.b32.xlu0 %v3445, 84
      %v3517 = vpop.permute.xlu0 %3516
      %vm3518 = vcmask 687104
      %v3519 = vsel %vm3518, %v3471, %v3473
      %v3520 = vsel %vm3518, %v3473, %v3475
      %v3521 = vsel %vm3518, %v3475, %v3477
      %v3522 = vsel %vm3518, %v3477, %v3479
      %v3523 = vsel %vm3518, %v3479, %v3481
      %v3524 = vsel %vm3518, %v3481, %v3483
      %v3525 = vsel %vm3518, %v3483, %v3485
      %v3526 = vsel %vm3518, %v3487, %v3489
      %v3527 = vsel %vm3518, %v3489, %v3491
      %v3528 = vsel %vm3518, %v3491, %v3493
      %v3529 = vsel %vm3518, %v3493, %v3495
      %v3530 = vsel %vm3518, %v3495, %v3497
      %v3531 = vsel %vm3518, %v3497, %v3499
      %v3532 = vsel %vm3518, %v3499, %v3501
      %v3533 = vsel %vm3518, %v3503, %v3505
      %v3534 = vsel %vm3518, %v3505, %v3507
      %v3535 = vsel %vm3518, %v3507, %v3509
      %v3536 = vsel %vm3518, %v3509, %v3511
      %v3537 = vsel %vm3518, %v3511, %v3513
      %v3538 = vsel %vm3518, %v3513, %v3515
      %v3539 = vsel %vm3518, %v3515, %v3517
      %v3561 = vadd.f32 %v3365, %v3519
      %v3562 = vadd.f32 %v3366, %v3520
      %v3563 = vadd.f32 %v3367, %v3521
      %v3564 = vadd.f32 %v3368, %v3522
      %v3565 = vadd.f32 %v3369, %v3523
      %v3566 = vadd.f32 %v3370, %v3524
      %v3567 = vadd.f32 %v3371, %v3525
      %v3568 = vadd.f32 %v3372, %v3526
      %v3569 = vadd.f32 %v3373, %v3527
      %v3570 = vadd.f32 %v3374, %v3528
      %v3571 = vadd.f32 %v3375, %v3529
      %v3572 = vadd.f32 %v3376, %v3530
      %v3573 = vadd.f32 %v3377, %v3531
      %v3574 = vadd.f32 %v3378, %v3532
      %v3575 = vadd.f32 %v3379, %v3533
      %v3576 = vadd.f32 %v3380, %v3534
      %v3577 = vadd.f32 %v3381, %v3535
      %v3578 = vadd.f32 %v3382, %v3536
      %v3579 = vadd.f32 %v3383, %v3537
      %v3580 = vadd.f32 %v3384, %v3538
      %v3581 = vadd.f32 %v3385, %v3539
      %3582 = vset.pattern.permute.xlu0 1
      %3583 = vperm.xlu0 %3582, %v2570
      %v3584 = vpop.permute.xlu0 %3583
      %3586 = vset.pattern.permute.xlu0 1
      %3587 = vperm.xlu0 %3586, %v2571
      %v3588 = vpop.permute.xlu0 %3587
      %3590 = vset.pattern.permute.xlu0 1
      %3591 = vperm.xlu0 %3590, %v2572
      %v3592 = vpop.permute.xlu0 %3591
      %v3594 = vmul.f32 %v3584, %v3386
      %v3595 = vmul.f32 %v3584, %v3387
      %v3596 = vmul.f32 %v3584, %v3388
      %v3597 = vmul.f32 %v3584, %v3389
      %v3598 = vmul.f32 %v3584, %v3390
      %v3599 = vmul.f32 %v3584, %v3391
      %v3600 = vmul.f32 %v3584, %v3392
      %v3601 = vmul.f32 %v3584, %v3393
      %v3602 = vmul.f32 %v3588, %v3394
      %v3603 = vmul.f32 %v3588, %v3395
      %v3604 = vmul.f32 %v3588, %v3396
      %v3605 = vmul.f32 %v3588, %v3397
      %v3606 = vmul.f32 %v3588, %v3398
      %v3607 = vmul.f32 %v3588, %v3399
      %v3608 = vmul.f32 %v3588, %v3400
      %v3609 = vmul.f32 %v3588, %v3401
      %v3610 = vmul.f32 %v3592, %v3402
      %v3611 = vmul.f32 %v3592, %v3403
      %v3612 = vmul.f32 %v3592, %v3404
      %v3613 = vmul.f32 %v3592, %v3405
      %v3614 = vmul.f32 %v3592, %v3406
      %v3615 = vmul.f32 %v3592, %v3407
      %v3616 = vmul.f32 %v3592, %v3408
      %v3617 = vmul.f32 %v3592, %v3409
      %3642 = vrot.lane.b32.xlu0 %v3594, 82
      %v3643 = vpop.permute.xlu0 %3642
      %3644 = vrot.lane.b32.xlu0 %v3595, 82
      %v3645 = vpop.permute.xlu0 %3644
      %3646 = vrot.lane.b32.xlu0 %v3596, 82
      %v3647 = vpop.permute.xlu0 %3646
      %3648 = vrot.lane.b32.xlu0 %v3597, 82
      %v3649 = vpop.permute.xlu0 %3648
      %3650 = vrot.lane.b32.xlu0 %v3598, 82
      %v3651 = vpop.permute.xlu0 %3650
      %3652 = vrot.lane.b32.xlu0 %v3599, 82
      %v3653 = vpop.permute.xlu0 %3652
      %3654 = vrot.lane.b32.xlu0 %v3600, 82
      %v3655 = vpop.permute.xlu0 %3654
      %3656 = vrot.lane.b32.xlu0 %v3601, 82
      %v3657 = vpop.permute.xlu0 %3656
      %3658 = vrot.lane.b32.xlu0 %v3602, 82
      %v3659 = vpop.permute.xlu0 %3658
      %3660 = vrot.lane.b32.xlu0 %v3603, 82
      %v3661 = vpop.permute.xlu0 %3660
      %3662 = vrot.lane.b32.xlu0 %v3604, 82
      %v3663 = vpop.permute.xlu0 %3662
      %3664 = vrot.lane.b32.xlu0 %v3605, 82
      %v3665 = vpop.permute.xlu0 %3664
      %3666 = vrot.lane.b32.xlu0 %v3606, 82
      %v3667 = vpop.permute.xlu0 %3666
      %3668 = vrot.lane.b32.xlu0 %v3607, 82
      %v3669 = vpop.permute.xlu0 %3668
      %3670 = vrot.lane.b32.xlu0 %v3608, 82
      %v3671 = vpop.permute.xlu0 %3670
      %3672 = vrot.lane.b32.xlu0 %v3609, 82
      %v3673 = vpop.permute.xlu0 %3672
      %3674 = vrot.lane.b32.xlu0 %v3610, 82
      %v3675 = vpop.permute.xlu0 %3674
      %3676 = vrot.lane.b32.xlu0 %v3611, 82
      %v3677 = vpop.permute.xlu0 %3676
      %3678 = vrot.lane.b32.xlu0 %v3612, 82
      %v3679 = vpop.permute.xlu0 %3678
      %3680 = vrot.lane.b32.xlu0 %v3613, 82
      %v3681 = vpop.permute.xlu0 %3680
      %3682 = vrot.lane.b32.xlu0 %v3614, 82
      %v3683 = vpop.permute.xlu0 %3682
      %3684 = vrot.lane.b32.xlu0 %v3615, 82
      %v3685 = vpop.permute.xlu0 %3684
      %3686 = vrot.lane.b32.xlu0 %v3616, 82
      %v3687 = vpop.permute.xlu0 %3686
      %3688 = vrot.lane.b32.xlu0 %v3617, 82
      %v3689 = vpop.permute.xlu0 %3688
      %vm3690 = vcmask 670720
      %v3691 = vsel %vm3690, %v3643, %v3645
      %v3692 = vsel %vm3690, %v3645, %v3647
      %v3693 = vsel %vm3690, %v3647, %v3649
      %v3694 = vsel %vm3690, %v3649, %v3651
      %v3695 = vsel %vm3690, %v3651, %v3653
      %v3696 = vsel %vm3690, %v3653, %v3655
      %v3697 = vsel %vm3690, %v3655, %v3657
      %v3698 = vsel %vm3690, %v3659, %v3661
      %v3699 = vsel %vm3690, %v3661, %v3663
      %v3700 = vsel %vm3690, %v3663, %v3665
      %v3701 = vsel %vm3690, %v3665, %v3667
      %v3702 = vsel %vm3690, %v3667, %v3669
      %v3703 = vsel %vm3690, %v3669, %v3671
      %v3704 = vsel %vm3690, %v3671, %v3673
      %v3705 = vsel %vm3690, %v3675, %v3677
      %v3706 = vsel %vm3690, %v3677, %v3679
      %v3707 = vsel %vm3690, %v3679, %v3681
      %v3708 = vsel %vm3690, %v3681, %v3683
      %v3709 = vsel %vm3690, %v3683, %v3685
      %v3710 = vsel %vm3690, %v3685, %v3687
      %v3711 = vsel %vm3690, %v3687, %v3689
      %v3733 = vadd.f32 %v3561, %v3691
      %v3734 = vadd.f32 %v3562, %v3692
      %v3735 = vadd.f32 %v3563, %v3693
      %v3736 = vadd.f32 %v3564, %v3694
      %v3737 = vadd.f32 %v3565, %v3695
      %v3738 = vadd.f32 %v3566, %v3696
      %v3739 = vadd.f32 %v3567, %v3697
      %v3740 = vadd.f32 %v3568, %v3698
      %v3741 = vadd.f32 %v3569, %v3699
      %v3742 = vadd.f32 %v3570, %v3700
      %v3743 = vadd.f32 %v3571, %v3701
      %v3744 = vadd.f32 %v3572, %v3702
      %v3745 = vadd.f32 %v3573, %v3703
      %v3746 = vadd.f32 %v3574, %v3704
      %v3747 = vadd.f32 %v3575, %v3705
      %v3748 = vadd.f32 %v3576, %v3706
      %v3749 = vadd.f32 %v3577, %v3707
      %v3750 = vadd.f32 %v3578, %v3708
      %v3751 = vadd.f32 %v3579, %v3709
      %v3752 = vadd.f32 %v3580, %v3710
      %v3753 = vadd.f32 %v3581, %v3711
      %3754 = vset.pattern.permute.xlu0 2
      %3755 = vperm.xlu0 %3754, %v2570
      %v3756 = vpop.permute.xlu0 %3755
      %3758 = vset.pattern.permute.xlu0 2
      %3759 = vperm.xlu0 %3758, %v2571
      %v3760 = vpop.permute.xlu0 %3759
      %3762 = vset.pattern.permute.xlu0 2
      %3763 = vperm.xlu0 %3762, %v2572
      %v3764 = vpop.permute.xlu0 %3763
      %v3766 = vmul.f32 %v3756, %v3386
      %v3767 = vmul.f32 %v3756, %v3387
      %v3768 = vmul.f32 %v3756, %v3388
      %v3769 = vmul.f32 %v3756, %v3389
      %v3770 = vmul.f32 %v3756, %v3390
      %v3771 = vmul.f32 %v3756, %v3391
      %v3772 = vmul.f32 %v3756, %v3392
      %v3773 = vmul.f32 %v3756, %v3393
      %v3774 = vmul.f32 %v3760, %v3394
      %v3775 = vmul.f32 %v3760, %v3395
      %v3776 = vmul.f32 %v3760, %v3396
      %v3777 = vmul.f32 %v3760, %v3397
      %v3778 = vmul.f32 %v3760, %v3398
      %v3779 = vmul.f32 %v3760, %v3399
      %v3780 = vmul.f32 %v3760, %v3400
      %v3781 = vmul.f32 %v3760, %v3401
      %v3782 = vmul.f32 %v3764, %v3402
      %v3783 = vmul.f32 %v3764, %v3403
      %v3784 = vmul.f32 %v3764, %v3404
      %v3785 = vmul.f32 %v3764, %v3405
      %v3786 = vmul.f32 %v3764, %v3406
      %v3787 = vmul.f32 %v3764, %v3407
      %v3788 = vmul.f32 %v3764, %v3408
      %v3789 = vmul.f32 %v3764, %v3409
      %3814 = vrot.lane.b32.xlu0 %v3766, 80
      %v3815 = vpop.permute.xlu0 %3814
      %3816 = vrot.lane.b32.xlu0 %v3767, 80
      %v3817 = vpop.permute.xlu0 %3816
      %3818 = vrot.lane.b32.xlu0 %v3768, 80
      %v3819 = vpop.permute.xlu0 %3818
      %3820 = vrot.lane.b32.xlu0 %v3769, 80
      %v3821 = vpop.permute.xlu0 %3820
      %3822 = vrot.lane.b32.xlu0 %v3770, 80
      %v3823 = vpop.permute.xlu0 %3822
      %3824 = vrot.lane.b32.xlu0 %v3771, 80
      %v3825 = vpop.permute.xlu0 %3824
      %3826 = vrot.lane.b32.xlu0 %v3772, 80
      %v3827 = vpop.permute.xlu0 %3826
      %3828 = vrot.lane.b32.xlu0 %v3773, 80
      %v3829 = vpop.permute.xlu0 %3828
      %3830 = vrot.lane.b32.xlu0 %v3774, 80
      %v3831 = vpop.permute.xlu0 %3830
      %3832 = vrot.lane.b32.xlu0 %v3775, 80
      %v3833 = vpop.permute.xlu0 %3832
      %3834 = vrot.lane.b32.xlu0 %v3776, 80
      %v3835 = vpop.permute.xlu0 %3834
      %3836 = vrot.lane.b32.xlu0 %v3777, 80
      %v3837 = vpop.permute.xlu0 %3836
      %3838 = vrot.lane.b32.xlu0 %v3778, 80
      %v3839 = vpop.permute.xlu0 %3838
      %3840 = vrot.lane.b32.xlu0 %v3779, 80
      %v3841 = vpop.permute.xlu0 %3840
      %3842 = vrot.lane.b32.xlu0 %v3780, 80
      %v3843 = vpop.permute.xlu0 %3842
      %3844 = vrot.lane.b32.xlu0 %v3781, 80
      %v3845 = vpop.permute.xlu0 %3844
      %3846 = vrot.lane.b32.xlu0 %v3782, 80
      %v3847 = vpop.permute.xlu0 %3846
      %3848 = vrot.lane.b32.xlu0 %v3783, 80
      %v3849 = vpop.permute.xlu0 %3848
      %3850 = vrot.lane.b32.xlu0 %v3784, 80
      %v3851 = vpop.permute.xlu0 %3850
      %3852 = vrot.lane.b32.xlu0 %v3785, 80
      %v3853 = vpop.permute.xlu0 %3852
      %3854 = vrot.lane.b32.xlu0 %v3786, 80
      %v3855 = vpop.permute.xlu0 %3854
      %3856 = vrot.lane.b32.xlu0 %v3787, 80
      %v3857 = vpop.permute.xlu0 %3856
      %3858 = vrot.lane.b32.xlu0 %v3788, 80
      %v3859 = vpop.permute.xlu0 %3858
      %3860 = vrot.lane.b32.xlu0 %v3789, 80
      %v3861 = vpop.permute.xlu0 %3860
      %vm3862 = vcmask 654336
      %v3863 = vsel %vm3862, %v3815, %v3817
      %v3864 = vsel %vm3862, %v3817, %v3819
      %v3865 = vsel %vm3862, %v3819, %v3821
      %v3866 = vsel %vm3862, %v3821, %v3823
      %v3867 = vsel %vm3862, %v3823, %v3825
      %v3868 = vsel %vm3862, %v3825, %v3827
      %v3869 = vsel %vm3862, %v3827, %v3829
      %v3870 = vsel %vm3862, %v3831, %v3833
      %v3871 = vsel %vm3862, %v3833, %v3835
      %v3872 = vsel %vm3862, %v3835, %v3837
      %v3873 = vsel %vm3862, %v3837, %v3839
      %v3874 = vsel %vm3862, %v3839, %v3841
      %v3875 = vsel %vm3862, %v3841, %v3843
      %v3876 = vsel %vm3862, %v3843, %v3845
      %v3877 = vsel %vm3862, %v3847, %v3849
      %v3878 = vsel %vm3862, %v3849, %v3851
      %v3879 = vsel %vm3862, %v3851, %v3853
      %v3880 = vsel %vm3862, %v3853, %v3855
      %v3881 = vsel %vm3862, %v3855, %v3857
      %v3882 = vsel %vm3862, %v3857, %v3859
      %v3883 = vsel %vm3862, %v3859, %v3861
      %v3905 = vadd.f32 %v3733, %v3863
      %v3906 = vadd.f32 %v3734, %v3864
      %v3907 = vadd.f32 %v3735, %v3865
      %v3908 = vadd.f32 %v3736, %v3866
      %v3909 = vadd.f32 %v3737, %v3867
      %v3910 = vadd.f32 %v3738, %v3868
      %v3911 = vadd.f32 %v3739, %v3869
      %v3912 = vadd.f32 %v3740, %v3870
      %v3913 = vadd.f32 %v3741, %v3871
      %v3914 = vadd.f32 %v3742, %v3872
      %v3915 = vadd.f32 %v3743, %v3873
      %v3916 = vadd.f32 %v3744, %v3874
      %v3917 = vadd.f32 %v3745, %v3875
      %v3918 = vadd.f32 %v3746, %v3876
      %v3919 = vadd.f32 %v3747, %v3877
      %v3920 = vadd.f32 %v3748, %v3878
      %v3921 = vadd.f32 %v3749, %v3879
      %v3922 = vadd.f32 %v3750, %v3880
      %v3923 = vadd.f32 %v3751, %v3881
      %v3924 = vadd.f32 %v3752, %v3882
      %v3925 = vadd.f32 %v3753, %v3883
      %3926 = vset.pattern.permute.xlu0 3
      %3927 = vperm.xlu0 %3926, %v2570
      %v3928 = vpop.permute.xlu0 %3927
      %3930 = vset.pattern.permute.xlu0 3
      %3931 = vperm.xlu0 %3930, %v2571
      %v3932 = vpop.permute.xlu0 %3931
      %3934 = vset.pattern.permute.xlu0 3
      %3935 = vperm.xlu0 %3934, %v2572
      %v3936 = vpop.permute.xlu0 %3935
      %v3938 = vmul.f32 %v3928, %v3386
      %v3939 = vmul.f32 %v3928, %v3387
      %v3940 = vmul.f32 %v3928, %v3388
      %v3941 = vmul.f32 %v3928, %v3389
      %v3942 = vmul.f32 %v3928, %v3390
      %v3943 = vmul.f32 %v3928, %v3391
      %v3944 = vmul.f32 %v3928, %v3392
      %v3945 = vmul.f32 %v3928, %v3393
      %v3946 = vmul.f32 %v3932, %v3394
      %v3947 = vmul.f32 %v3932, %v3395
      %v3948 = vmul.f32 %v3932, %v3396
      %v3949 = vmul.f32 %v3932, %v3397
      %v3950 = vmul.f32 %v3932, %v3398
      %v3951 = vmul.f32 %v3932, %v3399
      %v3952 = vmul.f32 %v3932, %v3400
      %v3953 = vmul.f32 %v3932, %v3401
      %v3954 = vmul.f32 %v3936, %v3402
      %v3955 = vmul.f32 %v3936, %v3403
      %v3956 = vmul.f32 %v3936, %v3404
      %v3957 = vmul.f32 %v3936, %v3405
      %v3958 = vmul.f32 %v3936, %v3406
      %v3959 = vmul.f32 %v3936, %v3407
      %v3960 = vmul.f32 %v3936, %v3408
      %v3961 = vmul.f32 %v3936, %v3409
      %3986 = vrot.lane.b32.xlu0 %v3938, 78
      %v3987 = vpop.permute.xlu0 %3986
      %3988 = vrot.lane.b32.xlu0 %v3939, 78
      %v3989 = vpop.permute.xlu0 %3988
      %3990 = vrot.lane.b32.xlu0 %v3940, 78
      %v3991 = vpop.permute.xlu0 %3990
      %3992 = vrot.lane.b32.xlu0 %v3941, 78
      %v3993 = vpop.permute.xlu0 %3992
      %3994 = vrot.lane.b32.xlu0 %v3942, 78
      %v3995 = vpop.permute.xlu0 %3994
      %3996 = vrot.lane.b32.xlu0 %v3943, 78
      %v3997 = vpop.permute.xlu0 %3996
      %3998 = vrot.lane.b32.xlu0 %v3944, 78
      %v3999 = vpop.permute.xlu0 %3998
      %4000 = vrot.lane.b32.xlu0 %v3945, 78
      %v4001 = vpop.permute.xlu0 %4000
      %4002 = vrot.lane.b32.xlu0 %v3946, 78
      %v4003 = vpop.permute.xlu0 %4002
      %4004 = vrot.lane.b32.xlu0 %v3947, 78
      %v4005 = vpop.permute.xlu0 %4004
      %4006 = vrot.lane.b32.xlu0 %v3948, 78
      %v4007 = vpop.permute.xlu0 %4006
      %4008 = vrot.lane.b32.xlu0 %v3949, 78
      %v4009 = vpop.permute.xlu0 %4008
      %4010 = vrot.lane.b32.xlu0 %v3950, 78
      %v4011 = vpop.permute.xlu0 %4010
      %4012 = vrot.lane.b32.xlu0 %v3951, 78
      %v4013 = vpop.permute.xlu0 %4012
      %4014 = vrot.lane.b32.xlu0 %v3952, 78
      %v4015 = vpop.permute.xlu0 %4014
      %4016 = vrot.lane.b32.xlu0 %v3953, 78
      %v4017 = vpop.permute.xlu0 %4016
      %4018 = vrot.lane.b32.xlu0 %v3954, 78
      %v4019 = vpop.permute.xlu0 %4018
      %4020 = vrot.lane.b32.xlu0 %v3955, 78
      %v4021 = vpop.permute.xlu0 %4020
      %4022 = vrot.lane.b32.xlu0 %v3956, 78
      %v4023 = vpop.permute.xlu0 %4022
      %4024 = vrot.lane.b32.xlu0 %v3957, 78
      %v4025 = vpop.permute.xlu0 %4024
      %4026 = vrot.lane.b32.xlu0 %v3958, 78
      %v4027 = vpop.permute.xlu0 %4026
      %4028 = vrot.lane.b32.xlu0 %v3959, 78
      %v4029 = vpop.permute.xlu0 %4028
      %4030 = vrot.lane.b32.xlu0 %v3960, 78
      %v4031 = vpop.permute.xlu0 %4030
      %4032 = vrot.lane.b32.xlu0 %v3961, 78
      %v4033 = vpop.permute.xlu0 %4032
      %vm4034 = vcmask 637952
      %v4035 = vsel %vm4034, %v3987, %v3989
      %v4036 = vsel %vm4034, %v3989, %v3991
      %v4037 = vsel %vm4034, %v3991, %v3993
      %v4038 = vsel %vm4034, %v3993, %v3995
      %v4039 = vsel %vm4034, %v3995, %v3997
      %v4040 = vsel %vm4034, %v3997, %v3999
      %v4041 = vsel %vm4034, %v3999, %v4001
      %v4042 = vsel %vm4034, %v4003, %v4005
      %v4043 = vsel %vm4034, %v4005, %v4007
      %v4044 = vsel %vm4034, %v4007, %v4009
      %v4045 = vsel %vm4034, %v4009, %v4011
      %v4046 = vsel %vm4034, %v4011, %v4013
      %v4047 = vsel %vm4034, %v4013, %v4015
      %v4048 = vsel %vm4034, %v4015, %v4017
      %v4049 = vsel %vm4034, %v4019, %v4021
      %v4050 = vsel %vm4034, %v4021, %v4023
      %v4051 = vsel %vm4034, %v4023, %v4025
      %v4052 = vsel %vm4034, %v4025, %v4027
      %v4053 = vsel %vm4034, %v4027, %v4029
      %v4054 = vsel %vm4034, %v4029, %v4031
      %v4055 = vsel %vm4034, %v4031, %v4033
      %v4077 = vadd.f32 %v3905, %v4035
      %v4078 = vadd.f32 %v3906, %v4036
      %v4079 = vadd.f32 %v3907, %v4037
      %v4080 = vadd.f32 %v3908, %v4038
      %v4081 = vadd.f32 %v3909, %v4039
      %v4082 = vadd.f32 %v3910, %v4040
      %v4083 = vadd.f32 %v3911, %v4041
      %v4084 = vadd.f32 %v3912, %v4042
      %v4085 = vadd.f32 %v3913, %v4043
      %v4086 = vadd.f32 %v3914, %v4044
      %v4087 = vadd.f32 %v3915, %v4045
      %v4088 = vadd.f32 %v3916, %v4046
      %v4089 = vadd.f32 %v3917, %v4047
      %v4090 = vadd.f32 %v3918, %v4048
      %v4091 = vadd.f32 %v3919, %v4049
      %v4092 = vadd.f32 %v3920, %v4050
      %v4093 = vadd.f32 %v3921, %v4051
      %v4094 = vadd.f32 %v3922, %v4052
      %v4095 = vadd.f32 %v3923, %v4053
      %v4096 = vadd.f32 %v3924, %v4054
      %v4097 = vadd.f32 %v3925, %v4055
      %4098 = vset.pattern.permute.xlu0 4
      %4099 = vperm.xlu0 %4098, %v2570
      %v4100 = vpop.permute.xlu0 %4099
      %4102 = vset.pattern.permute.xlu0 4
      %4103 = vperm.xlu0 %4102, %v2571
      %v4104 = vpop.permute.xlu0 %4103
      %4106 = vset.pattern.permute.xlu0 4
      %4107 = vperm.xlu0 %4106, %v2572
      %v4108 = vpop.permute.xlu0 %4107
      %v4110 = vmul.f32 %v4100, %v3386
      %v4111 = vmul.f32 %v4100, %v3387
      %v4112 = vmul.f32 %v4100, %v3388
      %v4113 = vmul.f32 %v4100, %v3389
      %v4114 = vmul.f32 %v4100, %v3390
      %v4115 = vmul.f32 %v4100, %v3391
      %v4116 = vmul.f32 %v4100, %v3392
      %v4117 = vmul.f32 %v4100, %v3393
      %v4118 = vmul.f32 %v4104, %v3394
      %v4119 = vmul.f32 %v4104, %v3395
      %v4120 = vmul.f32 %v4104, %v3396
      %v4121 = vmul.f32 %v4104, %v3397
      %v4122 = vmul.f32 %v4104, %v3398
      %v4123 = vmul.f32 %v4104, %v3399
      %v4124 = vmul.f32 %v4104, %v3400
      %v4125 = vmul.f32 %v4104, %v3401
      %v4126 = vmul.f32 %v4108, %v3402
      %v4127 = vmul.f32 %v4108, %v3403
      %v4128 = vmul.f32 %v4108, %v3404
      %v4129 = vmul.f32 %v4108, %v3405
      %v4130 = vmul.f32 %v4108, %v3406
      %v4131 = vmul.f32 %v4108, %v3407
      %v4132 = vmul.f32 %v4108, %v3408
      %v4133 = vmul.f32 %v4108, %v3409
      %4158 = vrot.lane.b32.xlu0 %v4110, 76
      %v4159 = vpop.permute.xlu0 %4158
      %4160 = vrot.lane.b32.xlu0 %v4111, 76
      %v4161 = vpop.permute.xlu0 %4160
      %4162 = vrot.lane.b32.xlu0 %v4112, 76
      %v4163 = vpop.permute.xlu0 %4162
      %4164 = vrot.lane.b32.xlu0 %v4113, 76
      %v4165 = vpop.permute.xlu0 %4164
      %4166 = vrot.lane.b32.xlu0 %v4114, 76
      %v4167 = vpop.permute.xlu0 %4166
      %4168 = vrot.lane.b32.xlu0 %v4115, 76
      %v4169 = vpop.permute.xlu0 %4168
      %4170 = vrot.lane.b32.xlu0 %v4116, 76
      %v4171 = vpop.permute.xlu0 %4170
      %4172 = vrot.lane.b32.xlu0 %v4117, 76
      %v4173 = vpop.permute.xlu0 %4172
      %4174 = vrot.lane.b32.xlu0 %v4118, 76
      %v4175 = vpop.permute.xlu0 %4174
      %4176 = vrot.lane.b32.xlu0 %v4119, 76
      %v4177 = vpop.permute.xlu0 %4176
      %4178 = vrot.lane.b32.xlu0 %v4120, 76
      %v4179 = vpop.permute.xlu0 %4178
      %4180 = vrot.lane.b32.xlu0 %v4121, 76
      %v4181 = vpop.permute.xlu0 %4180
      %4182 = vrot.lane.b32.xlu0 %v4122, 76
      %v4183 = vpop.permute.xlu0 %4182
      %4184 = vrot.lane.b32.xlu0 %v4123, 76
      %v4185 = vpop.permute.xlu0 %4184
      %4186 = vrot.lane.b32.xlu0 %v4124, 76
      %v4187 = vpop.permute.xlu0 %4186
      %4188 = vrot.lane.b32.xlu0 %v4125, 76
      %v4189 = vpop.permute.xlu0 %4188
      %4190 = vrot.lane.b32.xlu0 %v4126, 76
      %v4191 = vpop.permute.xlu0 %4190
      %4192 = vrot.lane.b32.xlu0 %v4127, 76
      %v4193 = vpop.permute.xlu0 %4192
      %4194 = vrot.lane.b32.xlu0 %v4128, 76
      %v4195 = vpop.permute.xlu0 %4194
      %4196 = vrot.lane.b32.xlu0 %v4129, 76
      %v4197 = vpop.permute.xlu0 %4196
      %4198 = vrot.lane.b32.xlu0 %v4130, 76
      %v4199 = vpop.permute.xlu0 %4198
      %4200 = vrot.lane.b32.xlu0 %v4131, 76
      %v4201 = vpop.permute.xlu0 %4200
      %4202 = vrot.lane.b32.xlu0 %v4132, 76
      %v4203 = vpop.permute.xlu0 %4202
      %4204 = vrot.lane.b32.xlu0 %v4133, 76
      %v4205 = vpop.permute.xlu0 %4204
      %vm4206 = vcmask 621568
      %v4207 = vsel %vm4206, %v4159, %v4161
      %v4208 = vsel %vm4206, %v4161, %v4163
      %v4209 = vsel %vm4206, %v4163, %v4165
      %v4210 = vsel %vm4206, %v4165, %v4167
      %v4211 = vsel %vm4206, %v4167, %v4169
      %v4212 = vsel %vm4206, %v4169, %v4171
      %v4213 = vsel %vm4206, %v4171, %v4173
      %v4214 = vsel %vm4206, %v4175, %v4177
      %v4215 = vsel %vm4206, %v4177, %v4179
      %v4216 = vsel %vm4206, %v4179, %v4181
      %v4217 = vsel %vm4206, %v4181, %v4183
      %v4218 = vsel %vm4206, %v4183, %v4185
      %v4219 = vsel %vm4206, %v4185, %v4187
      %v4220 = vsel %vm4206, %v4187, %v4189
      %v4221 = vsel %vm4206, %v4191, %v4193
      %v4222 = vsel %vm4206, %v4193, %v4195
      %v4223 = vsel %vm4206, %v4195, %v4197
      %v4224 = vsel %vm4206, %v4197, %v4199
      %v4225 = vsel %vm4206, %v4199, %v4201
      %v4226 = vsel %vm4206, %v4201, %v4203
      %v4227 = vsel %vm4206, %v4203, %v4205
      %v4249 = vadd.f32 %v4077, %v4207
      %v4250 = vadd.f32 %v4078, %v4208
      %v4251 = vadd.f32 %v4079, %v4209
      %v4252 = vadd.f32 %v4080, %v4210
      %v4253 = vadd.f32 %v4081, %v4211
      %v4254 = vadd.f32 %v4082, %v4212
      %v4255 = vadd.f32 %v4083, %v4213
      %v4256 = vadd.f32 %v4084, %v4214
      %v4257 = vadd.f32 %v4085, %v4215
      %v4258 = vadd.f32 %v4086, %v4216
      %v4259 = vadd.f32 %v4087, %v4217
      %v4260 = vadd.f32 %v4088, %v4218
      %v4261 = vadd.f32 %v4089, %v4219
      %v4262 = vadd.f32 %v4090, %v4220
      %v4263 = vadd.f32 %v4091, %v4221
      %v4264 = vadd.f32 %v4092, %v4222
      %v4265 = vadd.f32 %v4093, %v4223
      %v4266 = vadd.f32 %v4094, %v4224
      %v4267 = vadd.f32 %v4095, %v4225
      %v4268 = vadd.f32 %v4096, %v4226
      %v4269 = vadd.f32 %v4097, %v4227
      %4270 = vset.pattern.permute.xlu0 5
      %4271 = vperm.xlu0 %4270, %v2570
      %v4272 = vpop.permute.xlu0 %4271
      %4274 = vset.pattern.permute.xlu0 5
      %4275 = vperm.xlu0 %4274, %v2571
      %v4276 = vpop.permute.xlu0 %4275
      %4278 = vset.pattern.permute.xlu0 5
      %4279 = vperm.xlu0 %4278, %v2572
      %v4280 = vpop.permute.xlu0 %4279
      %v4282 = vmul.f32 %v4272, %v3386
      %v4283 = vmul.f32 %v4272, %v3387
      %v4284 = vmul.f32 %v4272, %v3388
      %v4285 = vmul.f32 %v4272, %v3389
      %v4286 = vmul.f32 %v4272, %v3390
      %v4287 = vmul.f32 %v4272, %v3391
      %v4288 = vmul.f32 %v4272, %v3392
      %v4289 = vmul.f32 %v4272, %v3393
      %v4290 = vmul.f32 %v4276, %v3394
      %v4291 = vmul.f32 %v4276, %v3395
      %v4292 = vmul.f32 %v4276, %v3396
      %v4293 = vmul.f32 %v4276, %v3397
      %v4294 = vmul.f32 %v4276, %v3398
      %v4295 = vmul.f32 %v4276, %v3399
      %v4296 = vmul.f32 %v4276, %v3400
      %v4297 = vmul.f32 %v4276, %v3401
      %v4298 = vmul.f32 %v4280, %v3402
      %v4299 = vmul.f32 %v4280, %v3403
      %v4300 = vmul.f32 %v4280, %v3404
      %v4301 = vmul.f32 %v4280, %v3405
      %v4302 = vmul.f32 %v4280, %v3406
      %v4303 = vmul.f32 %v4280, %v3407
      %v4304 = vmul.f32 %v4280, %v3408
      %v4305 = vmul.f32 %v4280, %v3409
      %4330 = vrot.lane.b32.xlu0 %v4282, 44
      %v4331 = vpop.permute.xlu0 %4330
      %4332 = vrot.lane.b32.xlu0 %v4283, 44
      %v4333 = vpop.permute.xlu0 %4332
      %4334 = vrot.lane.b32.xlu0 %v4284, 44
      %v4335 = vpop.permute.xlu0 %4334
      %4336 = vrot.lane.b32.xlu0 %v4285, 44
      %v4337 = vpop.permute.xlu0 %4336
      %4338 = vrot.lane.b32.xlu0 %v4286, 44
      %v4339 = vpop.permute.xlu0 %4338
      %4340 = vrot.lane.b32.xlu0 %v4287, 44
      %v4341 = vpop.permute.xlu0 %4340
      %4342 = vrot.lane.b32.xlu0 %v4288, 44
      %v4343 = vpop.permute.xlu0 %4342
      %4344 = vrot.lane.b32.xlu0 %v4289, 44
      %v4345 = vpop.permute.xlu0 %4344
      %4346 = vrot.lane.b32.xlu0 %v4290, 44
      %v4347 = vpop.permute.xlu0 %4346
      %4348 = vrot.lane.b32.xlu0 %v4291, 44
      %v4349 = vpop.permute.xlu0 %4348
      %4350 = vrot.lane.b32.xlu0 %v4292, 44
      %v4351 = vpop.permute.xlu0 %4350
      %4352 = vrot.lane.b32.xlu0 %v4293, 44
      %v4353 = vpop.permute.xlu0 %4352
      %4354 = vrot.lane.b32.xlu0 %v4294, 44
      %v4355 = vpop.permute.xlu0 %4354
      %4356 = vrot.lane.b32.xlu0 %v4295, 44
      %v4357 = vpop.permute.xlu0 %4356
      %4358 = vrot.lane.b32.xlu0 %v4296, 44
      %v4359 = vpop.permute.xlu0 %4358
      %4360 = vrot.lane.b32.xlu0 %v4297, 44
      %v4361 = vpop.permute.xlu0 %4360
      %4362 = vrot.lane.b32.xlu0 %v4298, 44
      %v4363 = vpop.permute.xlu0 %4362
      %4364 = vrot.lane.b32.xlu0 %v4299, 44
      %v4365 = vpop.permute.xlu0 %4364
      %4366 = vrot.lane.b32.xlu0 %v4300, 44
      %v4367 = vpop.permute.xlu0 %4366
      %4368 = vrot.lane.b32.xlu0 %v4301, 44
      %v4369 = vpop.permute.xlu0 %4368
      %4370 = vrot.lane.b32.xlu0 %v4302, 44
      %v4371 = vpop.permute.xlu0 %4370
      %4372 = vrot.lane.b32.xlu0 %v4303, 44
      %v4373 = vpop.permute.xlu0 %4372
      %4374 = vrot.lane.b32.xlu0 %v4304, 44
      %v4375 = vpop.permute.xlu0 %4374
      %4376 = vrot.lane.b32.xlu0 %v4305, 44
      %v4377 = vpop.permute.xlu0 %4376
      %vm4378 = vcmask 359424
      %v4379 = vsel %vm4378, %v4331, %v4333
      %v4380 = vsel %vm4378, %v4333, %v4335
      %v4381 = vsel %vm4378, %v4335, %v4337
      %v4382 = vsel %vm4378, %v4337, %v4339
      %v4383 = vsel %vm4378, %v4339, %v4341
      %v4384 = vsel %vm4378, %v4341, %v4343
      %v4385 = vsel %vm4378, %v4343, %v4345
      %v4386 = vsel %vm4378, %v4347, %v4349
      %v4387 = vsel %vm4378, %v4349, %v4351
      %v4388 = vsel %vm4378, %v4351, %v4353
      %v4389 = vsel %vm4378, %v4353, %v4355
      %v4390 = vsel %vm4378, %v4355, %v4357
      %v4391 = vsel %vm4378, %v4357, %v4359
      %v4392 = vsel %vm4378, %v4359, %v4361
      %v4393 = vsel %vm4378, %v4363, %v4365
      %v4394 = vsel %vm4378, %v4365, %v4367
      %v4395 = vsel %vm4378, %v4367, %v4369
      %v4396 = vsel %vm4378, %v4369, %v4371
      %v4397 = vsel %vm4378, %v4371, %v4373
      %v4398 = vsel %vm4378, %v4373, %v4375
      %v4399 = vsel %vm4378, %v4375, %v4377
      %v4421 = vadd.f32 %v4249, %v4379
      %v4422 = vadd.f32 %v4250, %v4380
      %v4423 = vadd.f32 %v4251, %v4381
      %v4424 = vadd.f32 %v4252, %v4382
      %v4425 = vadd.f32 %v4253, %v4383
      %v4426 = vadd.f32 %v4254, %v4384
      %v4427 = vadd.f32 %v4255, %v4385
      %v4428 = vadd.f32 %v4256, %v4386
      %v4429 = vadd.f32 %v4257, %v4387
      %v4430 = vadd.f32 %v4258, %v4388
      %v4431 = vadd.f32 %v4259, %v4389
      %v4432 = vadd.f32 %v4260, %v4390
      %v4433 = vadd.f32 %v4261, %v4391
      %v4434 = vadd.f32 %v4262, %v4392
      %v4435 = vadd.f32 %v4263, %v4393
      %v4436 = vadd.f32 %v4264, %v4394
      %v4437 = vadd.f32 %v4265, %v4395
      %v4438 = vadd.f32 %v4266, %v4396
      %v4439 = vadd.f32 %v4267, %v4397
      %v4440 = vadd.f32 %v4268, %v4398
      %v4441 = vadd.f32 %v4269, %v4399
      %4442 = vset.pattern.permute.xlu0 6
      %4443 = vperm.xlu0 %4442, %v2570
      %v4444 = vpop.permute.xlu0 %4443
      %4446 = vset.pattern.permute.xlu0 6
      %4447 = vperm.xlu0 %4446, %v2571
      %v4448 = vpop.permute.xlu0 %4447
      %4450 = vset.pattern.permute.xlu0 6
      %4451 = vperm.xlu0 %4450, %v2572
      %v4452 = vpop.permute.xlu0 %4451
      %v4454 = vmul.f32 %v4444, %v3386
      %v4455 = vmul.f32 %v4444, %v3387
      %v4456 = vmul.f32 %v4444, %v3388
      %v4457 = vmul.f32 %v4444, %v3389
      %v4458 = vmul.f32 %v4444, %v3390
      %v4459 = vmul.f32 %v4444, %v3391
      %v4460 = vmul.f32 %v4444, %v3392
      %v4461 = vmul.f32 %v4444, %v3393
      %v4462 = vmul.f32 %v4448, %v3394
      %v4463 = vmul.f32 %v4448, %v3395
      %v4464 = vmul.f32 %v4448, %v3396
      %v4465 = vmul.f32 %v4448, %v3397
      %v4466 = vmul.f32 %v4448, %v3398
      %v4467 = vmul.f32 %v4448, %v3399
      %v4468 = vmul.f32 %v4448, %v3400
      %v4469 = vmul.f32 %v4448, %v3401
      %v4470 = vmul.f32 %v4452, %v3402
      %v4471 = vmul.f32 %v4452, %v3403
      %v4472 = vmul.f32 %v4452, %v3404
      %v4473 = vmul.f32 %v4452, %v3405
      %v4474 = vmul.f32 %v4452, %v3406
      %v4475 = vmul.f32 %v4452, %v3407
      %v4476 = vmul.f32 %v4452, %v3408
      %v4477 = vmul.f32 %v4452, %v3409
      %4502 = vrot.lane.b32.xlu0 %v4454, 42
      %v4503 = vpop.permute.xlu0 %4502
      %4504 = vrot.lane.b32.xlu0 %v4455, 42
      %v4505 = vpop.permute.xlu0 %4504
      %4506 = vrot.lane.b32.xlu0 %v4456, 42
      %v4507 = vpop.permute.xlu0 %4506
      %4508 = vrot.lane.b32.xlu0 %v4457, 42
      %v4509 = vpop.permute.xlu0 %4508
      %4510 = vrot.lane.b32.xlu0 %v4458, 42
      %v4511 = vpop.permute.xlu0 %4510
      %4512 = vrot.lane.b32.xlu0 %v4459, 42
      %v4513 = vpop.permute.xlu0 %4512
      %4514 = vrot.lane.b32.xlu0 %v4460, 42
      %v4515 = vpop.permute.xlu0 %4514
      %4516 = vrot.lane.b32.xlu0 %v4461, 42
      %v4517 = vpop.permute.xlu0 %4516
      %4518 = vrot.lane.b32.xlu0 %v4462, 42
      %v4519 = vpop.permute.xlu0 %4518
      %4520 = vrot.lane.b32.xlu0 %v4463, 42
      %v4521 = vpop.permute.xlu0 %4520
      %4522 = vrot.lane.b32.xlu0 %v4464, 42
      %v4523 = vpop.permute.xlu0 %4522
      %4524 = vrot.lane.b32.xlu0 %v4465, 42
      %v4525 = vpop.permute.xlu0 %4524
      %4526 = vrot.lane.b32.xlu0 %v4466, 42
      %v4527 = vpop.permute.xlu0 %4526
      %4528 = vrot.lane.b32.xlu0 %v4467, 42
      %v4529 = vpop.permute.xlu0 %4528
      %4530 = vrot.lane.b32.xlu0 %v4468, 42
      %v4531 = vpop.permute.xlu0 %4530
      %4532 = vrot.lane.b32.xlu0 %v4469, 42
      %v4533 = vpop.permute.xlu0 %4532
      %4534 = vrot.lane.b32.xlu0 %v4470, 42
      %v4535 = vpop.permute.xlu0 %4534
      %4536 = vrot.lane.b32.xlu0 %v4471, 42
      %v4537 = vpop.permute.xlu0 %4536
      %4538 = vrot.lane.b32.xlu0 %v4472, 42
      %v4539 = vpop.permute.xlu0 %4538
      %4540 = vrot.lane.b32.xlu0 %v4473, 42
      %v4541 = vpop.permute.xlu0 %4540
      %4542 = vrot.lane.b32.xlu0 %v4474, 42
      %v4543 = vpop.permute.xlu0 %4542
      %4544 = vrot.lane.b32.xlu0 %v4475, 42
      %v4545 = vpop.permute.xlu0 %4544
      %4546 = vrot.lane.b32.xlu0 %v4476, 42
      %v4547 = vpop.permute.xlu0 %4546
      %4548 = vrot.lane.b32.xlu0 %v4477, 42
      %v4549 = vpop.permute.xlu0 %4548
      %vm4550 = vcmask 343040
      %v4551 = vsel %vm4550, %v4503, %v4505
      %v4552 = vsel %vm4550, %v4505, %v4507
      %v4553 = vsel %vm4550, %v4507, %v4509
      %v4554 = vsel %vm4550, %v4509, %v4511
      %v4555 = vsel %vm4550, %v4511, %v4513
      %v4556 = vsel %vm4550, %v4513, %v4515
      %v4557 = vsel %vm4550, %v4515, %v4517
      %v4558 = vsel %vm4550, %v4519, %v4521
      %v4559 = vsel %vm4550, %v4521, %v4523
      %v4560 = vsel %vm4550, %v4523, %v4525
      %v4561 = vsel %vm4550, %v4525, %v4527
      %v4562 = vsel %vm4550, %v4527, %v4529
      %v4563 = vsel %vm4550, %v4529, %v4531
      %v4564 = vsel %vm4550, %v4531, %v4533
      %v4565 = vsel %vm4550, %v4535, %v4537
      %v4566 = vsel %vm4550, %v4537, %v4539
      %v4567 = vsel %vm4550, %v4539, %v4541
      %v4568 = vsel %vm4550, %v4541, %v4543
      %v4569 = vsel %vm4550, %v4543, %v4545
      %v4570 = vsel %vm4550, %v4545, %v4547
      %v4571 = vsel %vm4550, %v4547, %v4549
      %v4593 = vadd.f32 %v4421, %v4551
      %v4594 = vadd.f32 %v4422, %v4552
      %v4595 = vadd.f32 %v4423, %v4553
      %v4596 = vadd.f32 %v4424, %v4554
      %v4597 = vadd.f32 %v4425, %v4555
      %v4598 = vadd.f32 %v4426, %v4556
      %v4599 = vadd.f32 %v4427, %v4557
      %v4600 = vadd.f32 %v4428, %v4558
      %v4601 = vadd.f32 %v4429, %v4559
      %v4602 = vadd.f32 %v4430, %v4560
      %v4603 = vadd.f32 %v4431, %v4561
      %v4604 = vadd.f32 %v4432, %v4562
      %v4605 = vadd.f32 %v4433, %v4563
      %v4606 = vadd.f32 %v4434, %v4564
      %v4607 = vadd.f32 %v4435, %v4565
      %v4608 = vadd.f32 %v4436, %v4566
      %v4609 = vadd.f32 %v4437, %v4567
      %v4610 = vadd.f32 %v4438, %v4568
      %v4611 = vadd.f32 %v4439, %v4569
      %v4612 = vadd.f32 %v4440, %v4570
      %v4613 = vadd.f32 %v4441, %v4571
      %4614 = vset.pattern.permute.xlu0 7
      %4615 = vperm.xlu0 %4614, %v2570
      %v4616 = vpop.permute.xlu0 %4615
      %4618 = vset.pattern.permute.xlu0 7
      %4619 = vperm.xlu0 %4618, %v2571
      %v4620 = vpop.permute.xlu0 %4619
      %4622 = vset.pattern.permute.xlu0 7
      %4623 = vperm.xlu0 %4622, %v2572
      %v4624 = vpop.permute.xlu0 %4623
      %v4626 = vmul.f32 %v4616, %v3386
      %v4627 = vmul.f32 %v4616, %v3387
      %v4628 = vmul.f32 %v4616, %v3388
      %v4629 = vmul.f32 %v4616, %v3389
      %v4630 = vmul.f32 %v4616, %v3390
      %v4631 = vmul.f32 %v4616, %v3391
      %v4632 = vmul.f32 %v4616, %v3392
      %v4633 = vmul.f32 %v4616, %v3393
      %v4634 = vmul.f32 %v4620, %v3394
      %v4635 = vmul.f32 %v4620, %v3395
      %v4636 = vmul.f32 %v4620, %v3396
      %v4637 = vmul.f32 %v4620, %v3397
      %v4638 = vmul.f32 %v4620, %v3398
      %v4639 = vmul.f32 %v4620, %v3399
      %v4640 = vmul.f32 %v4620, %v3400
      %v4641 = vmul.f32 %v4620, %v3401
      %v4642 = vmul.f32 %v4624, %v3402
      %v4643 = vmul.f32 %v4624, %v3403
      %v4644 = vmul.f32 %v4624, %v3404
      %v4645 = vmul.f32 %v4624, %v3405
      %v4646 = vmul.f32 %v4624, %v3406
      %v4647 = vmul.f32 %v4624, %v3407
      %v4648 = vmul.f32 %v4624, %v3408
      %v4649 = vmul.f32 %v4624, %v3409
      %4674 = vrot.lane.b32.xlu0 %v4626, 40
      %v4675 = vpop.permute.xlu0 %4674
      %4676 = vrot.lane.b32.xlu0 %v4627, 40
      %v4677 = vpop.permute.xlu0 %4676
      %4678 = vrot.lane.b32.xlu0 %v4628, 40
      %v4679 = vpop.permute.xlu0 %4678
      %4680 = vrot.lane.b32.xlu0 %v4629, 40
      %v4681 = vpop.permute.xlu0 %4680
      %4682 = vrot.lane.b32.xlu0 %v4630, 40
      %v4683 = vpop.permute.xlu0 %4682
      %4684 = vrot.lane.b32.xlu0 %v4631, 40
      %v4685 = vpop.permute.xlu0 %4684
      %4686 = vrot.lane.b32.xlu0 %v4632, 40
      %v4687 = vpop.permute.xlu0 %4686
      %4688 = vrot.lane.b32.xlu0 %v4633, 40
      %v4689 = vpop.permute.xlu0 %4688
      %4690 = vrot.lane.b32.xlu0 %v4634, 40
      %v4691 = vpop.permute.xlu0 %4690
      %4692 = vrot.lane.b32.xlu0 %v4635, 40
      %v4693 = vpop.permute.xlu0 %4692
      %4694 = vrot.lane.b32.xlu0 %v4636, 40
      %v4695 = vpop.permute.xlu0 %4694
      %4696 = vrot.lane.b32.xlu0 %v4637, 40
      %v4697 = vpop.permute.xlu0 %4696
      %4698 = vrot.lane.b32.xlu0 %v4638, 40
      %v4699 = vpop.permute.xlu0 %4698
      %4700 = vrot.lane.b32.xlu0 %v4639, 40
      %v4701 = vpop.permute.xlu0 %4700
      %4702 = vrot.lane.b32.xlu0 %v4640, 40
      %v4703 = vpop.permute.xlu0 %4702
      %4704 = vrot.lane.b32.xlu0 %v4641, 40
      %v4705 = vpop.permute.xlu0 %4704
      %4706 = vrot.lane.b32.xlu0 %v4642, 40
      %v4707 = vpop.permute.xlu0 %4706
      %4708 = vrot.lane.b32.xlu0 %v4643, 40
      %v4709 = vpop.permute.xlu0 %4708
      %4710 = vrot.lane.b32.xlu0 %v4644, 40
      %v4711 = vpop.permute.xlu0 %4710
      %4712 = vrot.lane.b32.xlu0 %v4645, 40
      %v4713 = vpop.permute.xlu0 %4712
      %4714 = vrot.lane.b32.xlu0 %v4646, 40
      %v4715 = vpop.permute.xlu0 %4714
      %4716 = vrot.lane.b32.xlu0 %v4647, 40
      %v4717 = vpop.permute.xlu0 %4716
      %4718 = vrot.lane.b32.xlu0 %v4648, 40
      %v4719 = vpop.permute.xlu0 %4718
      %4720 = vrot.lane.b32.xlu0 %v4649, 40
      %v4721 = vpop.permute.xlu0 %4720
      %vm4722 = vcmask 326656
      %v4723 = vsel %vm4722, %v4675, %v4677
      %v4724 = vsel %vm4722, %v4677, %v4679
      %v4725 = vsel %vm4722, %v4679, %v4681
      %v4726 = vsel %vm4722, %v4681, %v4683
      %v4727 = vsel %vm4722, %v4683, %v4685
      %v4728 = vsel %vm4722, %v4685, %v4687
      %v4729 = vsel %vm4722, %v4687, %v4689
      %v4730 = vsel %vm4722, %v4691, %v4693
      %v4731 = vsel %vm4722, %v4693, %v4695
      %v4732 = vsel %vm4722, %v4695, %v4697
      %v4733 = vsel %vm4722, %v4697, %v4699
      %v4734 = vsel %vm4722, %v4699, %v4701
      %v4735 = vsel %vm4722, %v4701, %v4703
      %v4736 = vsel %vm4722, %v4703, %v4705
      %v4737 = vsel %vm4722, %v4707, %v4709
      %v4738 = vsel %vm4722, %v4709, %v4711
      %v4739 = vsel %vm4722, %v4711, %v4713
      %v4740 = vsel %vm4722, %v4713, %v4715
      %v4741 = vsel %vm4722, %v4715, %v4717
      %v4742 = vsel %vm4722, %v4717, %v4719
      %v4743 = vsel %vm4722, %v4719, %v4721
      %v4765 = vadd.f32 %v4593, %v4723
      %v4766 = vadd.f32 %v4594, %v4724
      %v4767 = vadd.f32 %v4595, %v4725
      %v4768 = vadd.f32 %v4596, %v4726
      %v4769 = vadd.f32 %v4597, %v4727
      %v4770 = vadd.f32 %v4598, %v4728
      %v4771 = vadd.f32 %v4599, %v4729
      %v4772 = vadd.f32 %v4600, %v4730
      %v4773 = vadd.f32 %v4601, %v4731
      %v4774 = vadd.f32 %v4602, %v4732
      %v4775 = vadd.f32 %v4603, %v4733
      %v4776 = vadd.f32 %v4604, %v4734
      %v4777 = vadd.f32 %v4605, %v4735
      %v4778 = vadd.f32 %v4606, %v4736
      %v4779 = vadd.f32 %v4607, %v4737
      %v4780 = vadd.f32 %v4608, %v4738
      %v4781 = vadd.f32 %v4609, %v4739
      %v4782 = vadd.f32 %v4610, %v4740
      %v4783 = vadd.f32 %v4611, %v4741
      %v4784 = vadd.f32 %v4612, %v4742
      %v4785 = vadd.f32 %v4613, %v4743
      %4786 = vset.pattern.permute.xlu0 8
      %4787 = vperm.xlu0 %4786, %v2570
      %v4788 = vpop.permute.xlu0 %4787
      %4790 = vset.pattern.permute.xlu0 8
      %4791 = vperm.xlu0 %4790, %v2571
      %v4792 = vpop.permute.xlu0 %4791
      %4794 = vset.pattern.permute.xlu0 8
      %4795 = vperm.xlu0 %4794, %v2572
      %v4796 = vpop.permute.xlu0 %4795
      %v4798 = vmul.f32 %v4788, %v3386
      %v4799 = vmul.f32 %v4788, %v3387
      %v4800 = vmul.f32 %v4788, %v3388
      %v4801 = vmul.f32 %v4788, %v3389
      %v4802 = vmul.f32 %v4788, %v3390
      %v4803 = vmul.f32 %v4788, %v3391
      %v4804 = vmul.f32 %v4788, %v3392
      %v4805 = vmul.f32 %v4788, %v3393
      %v4806 = vmul.f32 %v4792, %v3394
      %v4807 = vmul.f32 %v4792, %v3395
      %v4808 = vmul.f32 %v4792, %v3396
      %v4809 = vmul.f32 %v4792, %v3397
      %v4810 = vmul.f32 %v4792, %v3398
      %v4811 = vmul.f32 %v4792, %v3399
      %v4812 = vmul.f32 %v4792, %v3400
      %v4813 = vmul.f32 %v4792, %v3401
      %v4814 = vmul.f32 %v4796, %v3402
      %v4815 = vmul.f32 %v4796, %v3403
      %v4816 = vmul.f32 %v4796, %v3404
      %v4817 = vmul.f32 %v4796, %v3405
      %v4818 = vmul.f32 %v4796, %v3406
      %v4819 = vmul.f32 %v4796, %v3407
      %v4820 = vmul.f32 %v4796, %v3408
      %v4821 = vmul.f32 %v4796, %v3409
      %4846 = vrot.lane.b32.xlu0 %v4798, 38
      %v4847 = vpop.permute.xlu0 %4846
      %4848 = vrot.lane.b32.xlu0 %v4799, 38
      %v4849 = vpop.permute.xlu0 %4848
      %4850 = vrot.lane.b32.xlu0 %v4800, 38
      %v4851 = vpop.permute.xlu0 %4850
      %4852 = vrot.lane.b32.xlu0 %v4801, 38
      %v4853 = vpop.permute.xlu0 %4852
      %4854 = vrot.lane.b32.xlu0 %v4802, 38
      %v4855 = vpop.permute.xlu0 %4854
      %4856 = vrot.lane.b32.xlu0 %v4803, 38
      %v4857 = vpop.permute.xlu0 %4856
      %4858 = vrot.lane.b32.xlu0 %v4804, 38
      %v4859 = vpop.permute.xlu0 %4858
      %4860 = vrot.lane.b32.xlu0 %v4805, 38
      %v4861 = vpop.permute.xlu0 %4860
      %4862 = vrot.lane.b32.xlu0 %v4806, 38
      %v4863 = vpop.permute.xlu0 %4862
      %4864 = vrot.lane.b32.xlu0 %v4807, 38
      %v4865 = vpop.permute.xlu0 %4864
      %4866 = vrot.lane.b32.xlu0 %v4808, 38
      %v4867 = vpop.permute.xlu0 %4866
      %4868 = vrot.lane.b32.xlu0 %v4809, 38
      %v4869 = vpop.permute.xlu0 %4868
      %4870 = vrot.lane.b32.xlu0 %v4810, 38
      %v4871 = vpop.permute.xlu0 %4870
      %4872 = vrot.lane.b32.xlu0 %v4811, 38
      %v4873 = vpop.permute.xlu0 %4872
      %4874 = vrot.lane.b32.xlu0 %v4812, 38
      %v4875 = vpop.permute.xlu0 %4874
      %4876 = vrot.lane.b32.xlu0 %v4813, 38
      %v4877 = vpop.permute.xlu0 %4876
      %4878 = vrot.lane.b32.xlu0 %v4814, 38
      %v4879 = vpop.permute.xlu0 %4878
      %4880 = vrot.lane.b32.xlu0 %v4815, 38
      %v4881 = vpop.permute.xlu0 %4880
      %4882 = vrot.lane.b32.xlu0 %v4816, 38
      %v4883 = vpop.permute.xlu0 %4882
      %4884 = vrot.lane.b32.xlu0 %v4817, 38
      %v4885 = vpop.permute.xlu0 %4884
      %4886 = vrot.lane.b32.xlu0 %v4818, 38
      %v4887 = vpop.permute.xlu0 %4886
      %4888 = vrot.lane.b32.xlu0 %v4819, 38
      %v4889 = vpop.permute.xlu0 %4888
      %4890 = vrot.lane.b32.xlu0 %v4820, 38
      %v4891 = vpop.permute.xlu0 %4890
      %4892 = vrot.lane.b32.xlu0 %v4821, 38
      %v4893 = vpop.permute.xlu0 %4892
      %vm4894 = vcmask 310272
      %v4895 = vsel %vm4894, %v4847, %v4849
      %v4896 = vsel %vm4894, %v4849, %v4851
      %v4897 = vsel %vm4894, %v4851, %v4853
      %v4898 = vsel %vm4894, %v4853, %v4855
      %v4899 = vsel %vm4894, %v4855, %v4857
      %v4900 = vsel %vm4894, %v4857, %v4859
      %v4901 = vsel %vm4894, %v4859, %v4861
      %v4902 = vsel %vm4894, %v4863, %v4865
      %v4903 = vsel %vm4894, %v4865, %v4867
      %v4904 = vsel %vm4894, %v4867, %v4869
      %v4905 = vsel %vm4894, %v4869, %v4871
      %v4906 = vsel %vm4894, %v4871, %v4873
      %v4907 = vsel %vm4894, %v4873, %v4875
      %v4908 = vsel %vm4894, %v4875, %v4877
      %v4909 = vsel %vm4894, %v4879, %v4881
      %v4910 = vsel %vm4894, %v4881, %v4883
      %v4911 = vsel %vm4894, %v4883, %v4885
      %v4912 = vsel %vm4894, %v4885, %v4887
      %v4913 = vsel %vm4894, %v4887, %v4889
      %v4914 = vsel %vm4894, %v4889, %v4891
      %v4915 = vsel %vm4894, %v4891, %v4893
      %v4937 = vadd.f32 %v4765, %v4895
      %v4938 = vadd.f32 %v4766, %v4896
      %v4939 = vadd.f32 %v4767, %v4897
      %v4940 = vadd.f32 %v4768, %v4898
      %v4941 = vadd.f32 %v4769, %v4899
      %v4942 = vadd.f32 %v4770, %v4900
      %v4943 = vadd.f32 %v4771, %v4901
      %v4944 = vadd.f32 %v4772, %v4902
      %v4945 = vadd.f32 %v4773, %v4903
      %v4946 = vadd.f32 %v4774, %v4904
      %v4947 = vadd.f32 %v4775, %v4905
      %v4948 = vadd.f32 %v4776, %v4906
      %v4949 = vadd.f32 %v4777, %v4907
      %v4950 = vadd.f32 %v4778, %v4908
      %v4951 = vadd.f32 %v4779, %v4909
      %v4952 = vadd.f32 %v4780, %v4910
      %v4953 = vadd.f32 %v4781, %v4911
      %v4954 = vadd.f32 %v4782, %v4912
      %v4955 = vadd.f32 %v4783, %v4913
      %v4956 = vadd.f32 %v4784, %v4914
      %v4957 = vadd.f32 %v4785, %v4915
      %4958 = vset.pattern.permute.xlu0 9
      %4959 = vperm.xlu0 %4958, %v2570
      %v4960 = vpop.permute.xlu0 %4959
      %4962 = vset.pattern.permute.xlu0 9
      %4963 = vperm.xlu0 %4962, %v2571
      %v4964 = vpop.permute.xlu0 %4963
      %4966 = vset.pattern.permute.xlu0 9
      %4967 = vperm.xlu0 %4966, %v2572
      %v4968 = vpop.permute.xlu0 %4967
      %v4970 = vmul.f32 %v4960, %v3386
      %v4971 = vmul.f32 %v4960, %v3387
      %v4972 = vmul.f32 %v4960, %v3388
      %v4973 = vmul.f32 %v4960, %v3389
      %v4974 = vmul.f32 %v4960, %v3390
      %v4975 = vmul.f32 %v4960, %v3391
      %v4976 = vmul.f32 %v4960, %v3392
      %v4977 = vmul.f32 %v4960, %v3393
      %v4978 = vmul.f32 %v4964, %v3394
      %v4979 = vmul.f32 %v4964, %v3395
      %v4980 = vmul.f32 %v4964, %v3396
      %v4981 = vmul.f32 %v4964, %v3397
      %v4982 = vmul.f32 %v4964, %v3398
      %v4983 = vmul.f32 %v4964, %v3399
      %v4984 = vmul.f32 %v4964, %v3400
      %v4985 = vmul.f32 %v4964, %v3401
      %v4986 = vmul.f32 %v4968, %v3402
      %v4987 = vmul.f32 %v4968, %v3403
      %v4988 = vmul.f32 %v4968, %v3404
      %v4989 = vmul.f32 %v4968, %v3405
      %v4990 = vmul.f32 %v4968, %v3406
      %v4991 = vmul.f32 %v4968, %v3407
      %v4992 = vmul.f32 %v4968, %v3408
      %v4993 = vmul.f32 %v4968, %v3409
      %5018 = vrot.lane.b32.xlu0 %v4970, 36
      %v5019 = vpop.permute.xlu0 %5018
      %5020 = vrot.lane.b32.xlu0 %v4971, 36
      %v5021 = vpop.permute.xlu0 %5020
      %5022 = vrot.lane.b32.xlu0 %v4972, 36
      %v5023 = vpop.permute.xlu0 %5022
      %5024 = vrot.lane.b32.xlu0 %v4973, 36
      %v5025 = vpop.permute.xlu0 %5024
      %5026 = vrot.lane.b32.xlu0 %v4974, 36
      %v5027 = vpop.permute.xlu0 %5026
      %5028 = vrot.lane.b32.xlu0 %v4975, 36
      %v5029 = vpop.permute.xlu0 %5028
      %5030 = vrot.lane.b32.xlu0 %v4976, 36
      %v5031 = vpop.permute.xlu0 %5030
      %5032 = vrot.lane.b32.xlu0 %v4977, 36
      %v5033 = vpop.permute.xlu0 %5032
      %5034 = vrot.lane.b32.xlu0 %v4978, 36
      %v5035 = vpop.permute.xlu0 %5034
      %5036 = vrot.lane.b32.xlu0 %v4979, 36
      %v5037 = vpop.permute.xlu0 %5036
      %5038 = vrot.lane.b32.xlu0 %v4980, 36
      %v5039 = vpop.permute.xlu0 %5038
      %5040 = vrot.lane.b32.xlu0 %v4981, 36
      %v5041 = vpop.permute.xlu0 %5040
      %5042 = vrot.lane.b32.xlu0 %v4982, 36
      %v5043 = vpop.permute.xlu0 %5042
      %5044 = vrot.lane.b32.xlu0 %v4983, 36
      %v5045 = vpop.permute.xlu0 %5044
      %5046 = vrot.lane.b32.xlu0 %v4984, 36
      %v5047 = vpop.permute.xlu0 %5046
      %5048 = vrot.lane.b32.xlu0 %v4985, 36
      %v5049 = vpop.permute.xlu0 %5048
      %5050 = vrot.lane.b32.xlu0 %v4986, 36
      %v5051 = vpop.permute.xlu0 %5050
      %5052 = vrot.lane.b32.xlu0 %v4987, 36
      %v5053 = vpop.permute.xlu0 %5052
      %5054 = vrot.lane.b32.xlu0 %v4988, 36
      %v5055 = vpop.permute.xlu0 %5054
      %5056 = vrot.lane.b32.xlu0 %v4989, 36
      %v5057 = vpop.permute.xlu0 %5056
      %5058 = vrot.lane.b32.xlu0 %v4990, 36
      %v5059 = vpop.permute.xlu0 %5058
      %5060 = vrot.lane.b32.xlu0 %v4991, 36
      %v5061 = vpop.permute.xlu0 %5060
      %5062 = vrot.lane.b32.xlu0 %v4992, 36
      %v5063 = vpop.permute.xlu0 %5062
      %5064 = vrot.lane.b32.xlu0 %v4993, 36
      %v5065 = vpop.permute.xlu0 %5064
      %vm5066 = vcmask 293888
      %v5067 = vsel %vm5066, %v5019, %v5021
      %v5068 = vsel %vm5066, %v5021, %v5023
      %v5069 = vsel %vm5066, %v5023, %v5025
      %v5070 = vsel %vm5066, %v5025, %v5027
      %v5071 = vsel %vm5066, %v5027, %v5029
      %v5072 = vsel %vm5066, %v5029, %v5031
      %v5073 = vsel %vm5066, %v5031, %v5033
      %v5074 = vsel %vm5066, %v5035, %v5037
      %v5075 = vsel %vm5066, %v5037, %v5039
      %v5076 = vsel %vm5066, %v5039, %v5041
      %v5077 = vsel %vm5066, %v5041, %v5043
      %v5078 = vsel %vm5066, %v5043, %v5045
      %v5079 = vsel %vm5066, %v5045, %v5047
      %v5080 = vsel %vm5066, %v5047, %v5049
      %v5081 = vsel %vm5066, %v5051, %v5053
      %v5082 = vsel %vm5066, %v5053, %v5055
      %v5083 = vsel %vm5066, %v5055, %v5057
      %v5084 = vsel %vm5066, %v5057, %v5059
      %v5085 = vsel %vm5066, %v5059, %v5061
      %v5086 = vsel %vm5066, %v5061, %v5063
      %v5087 = vsel %vm5066, %v5063, %v5065
      %v5109 = vadd.f32 %v4937, %v5067
      %v5110 = vadd.f32 %v4938, %v5068
      %v5111 = vadd.f32 %v4939, %v5069
      %v5112 = vadd.f32 %v4940, %v5070
      %v5113 = vadd.f32 %v4941, %v5071
      %v5114 = vadd.f32 %v4942, %v5072
      %v5115 = vadd.f32 %v4943, %v5073
      %v5116 = vadd.f32 %v4944, %v5074
      %v5117 = vadd.f32 %v4945, %v5075
      %v5118 = vadd.f32 %v4946, %v5076
      %v5119 = vadd.f32 %v4947, %v5077
      %v5120 = vadd.f32 %v4948, %v5078
      %v5121 = vadd.f32 %v4949, %v5079
      %v5122 = vadd.f32 %v4950, %v5080
      %v5123 = vadd.f32 %v4951, %v5081
      %v5124 = vadd.f32 %v4952, %v5082
      %v5125 = vadd.f32 %v4953, %v5083
      %v5126 = vadd.f32 %v4954, %v5084
      %v5127 = vadd.f32 %v4955, %v5085
      %v5128 = vadd.f32 %v4956, %v5086
      %v5129 = vadd.f32 %v4957, %v5087
      %5130 = vset.pattern.permute.xlu0 10
      %5131 = vperm.xlu0 %5130, %v2570
      %v5132 = vpop.permute.xlu0 %5131
      %5134 = vset.pattern.permute.xlu0 10
      %5135 = vperm.xlu0 %5134, %v2571
      %v5136 = vpop.permute.xlu0 %5135
      %5138 = vset.pattern.permute.xlu0 10
      %5139 = vperm.xlu0 %5138, %v2572
      %v5140 = vpop.permute.xlu0 %5139
      %v5142 = vmul.f32 %v5132, %v3386
      %v5143 = vmul.f32 %v5132, %v3387
      %v5144 = vmul.f32 %v5132, %v3388
      %v5145 = vmul.f32 %v5132, %v3389
      %v5146 = vmul.f32 %v5132, %v3390
      %v5147 = vmul.f32 %v5132, %v3391
      %v5148 = vmul.f32 %v5132, %v3392
      %v5149 = vmul.f32 %v5132, %v3393
      %v5150 = vmul.f32 %v5136, %v3394
      %v5151 = vmul.f32 %v5136, %v3395
      %v5152 = vmul.f32 %v5136, %v3396
      %v5153 = vmul.f32 %v5136, %v3397
      %v5154 = vmul.f32 %v5136, %v3398
      %v5155 = vmul.f32 %v5136, %v3399
      %v5156 = vmul.f32 %v5136, %v3400
      %v5157 = vmul.f32 %v5136, %v3401
      %v5158 = vmul.f32 %v5140, %v3402
      %v5159 = vmul.f32 %v5140, %v3403
      %v5160 = vmul.f32 %v5140, %v3404
      %v5161 = vmul.f32 %v5140, %v3405
      %v5162 = vmul.f32 %v5140, %v3406
      %v5163 = vmul.f32 %v5140, %v3407
      %v5164 = vmul.f32 %v5140, %v3408
      %v5165 = vmul.f32 %v5140, %v3409
      %5190 = vrot.lane.b32.xlu0 %v5142, 4
      %v5191 = vpop.permute.xlu0 %5190
      %5192 = vrot.lane.b32.xlu0 %v5143, 4
      %v5193 = vpop.permute.xlu0 %5192
      %5194 = vrot.lane.b32.xlu0 %v5144, 4
      %v5195 = vpop.permute.xlu0 %5194
      %5196 = vrot.lane.b32.xlu0 %v5145, 4
      %v5197 = vpop.permute.xlu0 %5196
      %5198 = vrot.lane.b32.xlu0 %v5146, 4
      %v5199 = vpop.permute.xlu0 %5198
      %5200 = vrot.lane.b32.xlu0 %v5147, 4
      %v5201 = vpop.permute.xlu0 %5200
      %5202 = vrot.lane.b32.xlu0 %v5148, 4
      %v5203 = vpop.permute.xlu0 %5202
      %5204 = vrot.lane.b32.xlu0 %v5149, 4
      %v5205 = vpop.permute.xlu0 %5204
      %5206 = vrot.lane.b32.xlu0 %v5150, 4
      %v5207 = vpop.permute.xlu0 %5206
      %5208 = vrot.lane.b32.xlu0 %v5151, 4
      %v5209 = vpop.permute.xlu0 %5208
      %5210 = vrot.lane.b32.xlu0 %v5152, 4
      %v5211 = vpop.permute.xlu0 %5210
      %5212 = vrot.lane.b32.xlu0 %v5153, 4
      %v5213 = vpop.permute.xlu0 %5212
      %5214 = vrot.lane.b32.xlu0 %v5154, 4
      %v5215 = vpop.permute.xlu0 %5214
      %5216 = vrot.lane.b32.xlu0 %v5155, 4
      %v5217 = vpop.permute.xlu0 %5216
      %5218 = vrot.lane.b32.xlu0 %v5156, 4
      %v5219 = vpop.permute.xlu0 %5218
      %5220 = vrot.lane.b32.xlu0 %v5157, 4
      %v5221 = vpop.permute.xlu0 %5220
      %5222 = vrot.lane.b32.xlu0 %v5158, 4
      %v5223 = vpop.permute.xlu0 %5222
      %5224 = vrot.lane.b32.xlu0 %v5159, 4
      %v5225 = vpop.permute.xlu0 %5224
      %5226 = vrot.lane.b32.xlu0 %v5160, 4
      %v5227 = vpop.permute.xlu0 %5226
      %5228 = vrot.lane.b32.xlu0 %v5161, 4
      %v5229 = vpop.permute.xlu0 %5228
      %5230 = vrot.lane.b32.xlu0 %v5162, 4
      %v5231 = vpop.permute.xlu0 %5230
      %5232 = vrot.lane.b32.xlu0 %v5163, 4
      %v5233 = vpop.permute.xlu0 %5232
      %5234 = vrot.lane.b32.xlu0 %v5164, 4
      %v5235 = vpop.permute.xlu0 %5234
      %5236 = vrot.lane.b32.xlu0 %v5165, 4
      %v5237 = vpop.permute.xlu0 %5236
      %vm5238 = vcmask 31744
      %v5239 = vsel %vm5238, %v5191, %v5193
      %v5240 = vsel %vm5238, %v5193, %v5195
      %v5241 = vsel %vm5238, %v5195, %v5197
      %v5242 = vsel %vm5238, %v5197, %v5199
      %v5243 = vsel %vm5238, %v5199, %v5201
      %v5244 = vsel %vm5238, %v5201, %v5203
      %v5245 = vsel %vm5238, %v5203, %v5205
      %v5246 = vsel %vm5238, %v5207, %v5209
      %v5247 = vsel %vm5238, %v5209, %v5211
      %v5248 = vsel %vm5238, %v5211, %v5213
      %v5249 = vsel %vm5238, %v5213, %v5215
      %v5250 = vsel %vm5238, %v5215, %v5217
      %v5251 = vsel %vm5238, %v5217, %v5219
      %v5252 = vsel %vm5238, %v5219, %v5221
      %v5253 = vsel %vm5238, %v5223, %v5225
      %v5254 = vsel %vm5238, %v5225, %v5227
      %v5255 = vsel %vm5238, %v5227, %v5229
      %v5256 = vsel %vm5238, %v5229, %v5231
      %v5257 = vsel %vm5238, %v5231, %v5233
      %v5258 = vsel %vm5238, %v5233, %v5235
      %v5259 = vsel %vm5238, %v5235, %v5237
      %v5281 = vadd.f32 %v5109, %v5239
      %v5282 = vadd.f32 %v5110, %v5240
      %v5283 = vadd.f32 %v5111, %v5241
      %v5284 = vadd.f32 %v5112, %v5242
      %v5285 = vadd.f32 %v5113, %v5243
      %v5286 = vadd.f32 %v5114, %v5244
      %v5287 = vadd.f32 %v5115, %v5245
      %v5288 = vadd.f32 %v5116, %v5246
      %v5289 = vadd.f32 %v5117, %v5247
      %v5290 = vadd.f32 %v5118, %v5248
      %v5291 = vadd.f32 %v5119, %v5249
      %v5292 = vadd.f32 %v5120, %v5250
      %v5293 = vadd.f32 %v5121, %v5251
      %v5294 = vadd.f32 %v5122, %v5252
      %v5295 = vadd.f32 %v5123, %v5253
      %v5296 = vadd.f32 %v5124, %v5254
      %v5297 = vadd.f32 %v5125, %v5255
      %v5298 = vadd.f32 %v5126, %v5256
      %v5299 = vadd.f32 %v5127, %v5257
      %v5300 = vadd.f32 %v5128, %v5258
      %v5301 = vadd.f32 %v5129, %v5259
      %5302 = vset.pattern.permute.xlu0 11
      %5303 = vperm.xlu0 %5302, %v2570
      %v5304 = vpop.permute.xlu0 %5303
      %5306 = vset.pattern.permute.xlu0 11
      %5307 = vperm.xlu0 %5306, %v2571
      %v5308 = vpop.permute.xlu0 %5307
      %5310 = vset.pattern.permute.xlu0 11
      %5311 = vperm.xlu0 %5310, %v2572
      %v5312 = vpop.permute.xlu0 %5311
      %v5314 = vmul.f32 %v5304, %v3386
      %v5315 = vmul.f32 %v5304, %v3387
      %v5316 = vmul.f32 %v5304, %v3388
      %v5317 = vmul.f32 %v5304, %v3389
      %v5318 = vmul.f32 %v5304, %v3390
      %v5319 = vmul.f32 %v5304, %v3391
      %v5320 = vmul.f32 %v5304, %v3392
      %v5321 = vmul.f32 %v5304, %v3393
      %v5322 = vmul.f32 %v5308, %v3394
      %v5323 = vmul.f32 %v5308, %v3395
      %v5324 = vmul.f32 %v5308, %v3396
      %v5325 = vmul.f32 %v5308, %v3397
      %v5326 = vmul.f32 %v5308, %v3398
      %v5327 = vmul.f32 %v5308, %v3399
      %v5328 = vmul.f32 %v5308, %v3400
      %v5329 = vmul.f32 %v5308, %v3401
      %v5330 = vmul.f32 %v5312, %v3402
      %v5331 = vmul.f32 %v5312, %v3403
      %v5332 = vmul.f32 %v5312, %v3404
      %v5333 = vmul.f32 %v5312, %v3405
      %v5334 = vmul.f32 %v5312, %v3406
      %v5335 = vmul.f32 %v5312, %v3407
      %v5336 = vmul.f32 %v5312, %v3408
      %v5337 = vmul.f32 %v5312, %v3409
      %5362 = vrot.lane.b32.xlu0 %v5314, 2
      %v5363 = vpop.permute.xlu0 %5362
      %5364 = vrot.lane.b32.xlu0 %v5315, 2
      %v5365 = vpop.permute.xlu0 %5364
      %5366 = vrot.lane.b32.xlu0 %v5316, 2
      %v5367 = vpop.permute.xlu0 %5366
      %5368 = vrot.lane.b32.xlu0 %v5317, 2
      %v5369 = vpop.permute.xlu0 %5368
      %5370 = vrot.lane.b32.xlu0 %v5318, 2
      %v5371 = vpop.permute.xlu0 %5370
      %5372 = vrot.lane.b32.xlu0 %v5319, 2
      %v5373 = vpop.permute.xlu0 %5372
      %5374 = vrot.lane.b32.xlu0 %v5320, 2
      %v5375 = vpop.permute.xlu0 %5374
      %5376 = vrot.lane.b32.xlu0 %v5321, 2
      %v5377 = vpop.permute.xlu0 %5376
      %5378 = vrot.lane.b32.xlu0 %v5322, 2
      %v5379 = vpop.permute.xlu0 %5378
      %5380 = vrot.lane.b32.xlu0 %v5323, 2
      %v5381 = vpop.permute.xlu0 %5380
      %5382 = vrot.lane.b32.xlu0 %v5324, 2
      %v5383 = vpop.permute.xlu0 %5382
      %5384 = vrot.lane.b32.xlu0 %v5325, 2
      %v5385 = vpop.permute.xlu0 %5384
      %5386 = vrot.lane.b32.xlu0 %v5326, 2
      %v5387 = vpop.permute.xlu0 %5386
      %5388 = vrot.lane.b32.xlu0 %v5327, 2
      %v5389 = vpop.permute.xlu0 %5388
      %5390 = vrot.lane.b32.xlu0 %v5328, 2
      %v5391 = vpop.permute.xlu0 %5390
      %5392 = vrot.lane.b32.xlu0 %v5329, 2
      %v5393 = vpop.permute.xlu0 %5392
      %5394 = vrot.lane.b32.xlu0 %v5330, 2
      %v5395 = vpop.permute.xlu0 %5394
      %5396 = vrot.lane.b32.xlu0 %v5331, 2
      %v5397 = vpop.permute.xlu0 %5396
      %5398 = vrot.lane.b32.xlu0 %v5332, 2
      %v5399 = vpop.permute.xlu0 %5398
      %5400 = vrot.lane.b32.xlu0 %v5333, 2
      %v5401 = vpop.permute.xlu0 %5400
      %5402 = vrot.lane.b32.xlu0 %v5334, 2
      %v5403 = vpop.permute.xlu0 %5402
      %5404 = vrot.lane.b32.xlu0 %v5335, 2
      %v5405 = vpop.permute.xlu0 %5404
      %5406 = vrot.lane.b32.xlu0 %v5336, 2
      %v5407 = vpop.permute.xlu0 %5406
      %5408 = vrot.lane.b32.xlu0 %v5337, 2
      %v5409 = vpop.permute.xlu0 %5408
      %vm5410 = vcmask 15360
      %v5411 = vsel %vm5410, %v5363, %v5365
      %v5412 = vsel %vm5410, %v5365, %v5367
      %v5413 = vsel %vm5410, %v5367, %v5369
      %v5414 = vsel %vm5410, %v5369, %v5371
      %v5415 = vsel %vm5410, %v5371, %v5373
      %v5416 = vsel %vm5410, %v5373, %v5375
      %v5417 = vsel %vm5410, %v5375, %v5377
      %v5418 = vsel %vm5410, %v5379, %v5381
      %v5419 = vsel %vm5410, %v5381, %v5383
      %v5420 = vsel %vm5410, %v5383, %v5385
      %v5421 = vsel %vm5410, %v5385, %v5387
      %v5422 = vsel %vm5410, %v5387, %v5389
      %v5423 = vsel %vm5410, %v5389, %v5391
      %v5424 = vsel %vm5410, %v5391, %v5393
      %v5425 = vsel %vm5410, %v5395, %v5397
      %v5426 = vsel %vm5410, %v5397, %v5399
      %v5427 = vsel %vm5410, %v5399, %v5401
      %v5428 = vsel %vm5410, %v5401, %v5403
      %v5429 = vsel %vm5410, %v5403, %v5405
      %v5430 = vsel %vm5410, %v5405, %v5407
      %v5431 = vsel %vm5410, %v5407, %v5409
      %v5453 = vadd.f32 %v5281, %v5411
      %v5454 = vadd.f32 %v5282, %v5412
      %v5455 = vadd.f32 %v5283, %v5413
      %v5456 = vadd.f32 %v5284, %v5414
      %v5457 = vadd.f32 %v5285, %v5415
      %v5458 = vadd.f32 %v5286, %v5416
      %v5459 = vadd.f32 %v5287, %v5417
      %v5460 = vadd.f32 %v5288, %v5418
      %v5461 = vadd.f32 %v5289, %v5419
      %v5462 = vadd.f32 %v5290, %v5420
      %v5463 = vadd.f32 %v5291, %v5421
      %v5464 = vadd.f32 %v5292, %v5422
      %v5465 = vadd.f32 %v5293, %v5423
      %v5466 = vadd.f32 %v5294, %v5424
      %v5467 = vadd.f32 %v5295, %v5425
      %v5468 = vadd.f32 %v5296, %v5426
      %v5469 = vadd.f32 %v5297, %v5427
      %v5470 = vadd.f32 %v5298, %v5428
      %v5471 = vadd.f32 %v5299, %v5429
      %v5472 = vadd.f32 %v5300, %v5430
      %v5473 = vadd.f32 %v5301, %v5431
      %v5474 = vld [vmem:[#allocation2 + $0x8] sm:$0xff]
      %v5475 = vld [vmem:[#allocation2 + $0x10] sm:$0xff]
      %v5476 = vld [vmem:[#allocation2 + $0x18] sm:$0xff]
      %v5477 = vld [vmem:[#allocation2 + $0x20] sm:$0xff]
      %v5478 = vld [vmem:[#allocation2 + $0x28] sm:$0xff]
      %v5479 = vld [vmem:[#allocation2 + $0x30] sm:$0xff]
      %v5480 = vld [vmem:[#allocation2 + $0x38] sm:$0xff]
      %v5481 = vld [vmem:[#allocation2 + $0x40] sm:$0xff]
      %v5482 = vld [vmem:[#allocation2 + $0x50] sm:$0xff]
      %v5483 = vld [vmem:[#allocation2 + $0x58] sm:$0xff]
      %v5484 = vld [vmem:[#allocation2 + $0x60] sm:$0xff]
      %v5485 = vld [vmem:[#allocation2 + $0x68] sm:$0xff]
      %v5486 = vld [vmem:[#allocation2 + $0x70] sm:$0xff]
      %v5487 = vld [vmem:[#allocation2 + $0x78] sm:$0xff]
      %v5488 = vld [vmem:[#allocation2 + $0x80] sm:$0xff]
      %v5489 = vld [vmem:[#allocation2 + $0x88] sm:$0xff]
      %v5490 = vld [vmem:[#allocation2 + $0x98] sm:$0xff]
      %v5491 = vld [vmem:[#allocation2 + $0xa0] sm:$0xff]
      %v5492 = vld [vmem:[#allocation2 + $0xa8] sm:$0xff]
      %v5493 = vld [vmem:[#allocation2 + $0xb0] sm:$0xff]
      %v5494 = vld [vmem:[#allocation2 + $0xb8] sm:$0xff]
      %v5495 = vld [vmem:[#allocation2 + $0xc0] sm:$0xff]
      %v5496 = vld [vmem:[#allocation2 + $0xc8] sm:$0xff]
      %v5497 = vld [vmem:[#allocation2 + $0xd0] sm:$0xff]
      %5498 = vset.pattern.permute.xlu0 13
      %5499 = vperm.xlu0 %5498, %v2570
      %v5500 = vpop.permute.xlu0 %5499
      %5502 = vset.pattern.permute.xlu0 13
      %5503 = vperm.xlu0 %5502, %v2571
      %v5504 = vpop.permute.xlu0 %5503
      %5506 = vset.pattern.permute.xlu0 13
      %5507 = vperm.xlu0 %5506, %v2572
      %v5508 = vpop.permute.xlu0 %5507
      %v5510 = vmul.f32 %v5500, %v5474
      %v5511 = vmul.f32 %v5500, %v5475
      %v5512 = vmul.f32 %v5500, %v5476
      %v5513 = vmul.f32 %v5500, %v5477
      %v5514 = vmul.f32 %v5500, %v5478
      %v5515 = vmul.f32 %v5500, %v5479
      %v5516 = vmul.f32 %v5500, %v5480
      %v5517 = vmul.f32 %v5500, %v5481
      %v5518 = vmul.f32 %v5504, %v5482
      %v5519 = vmul.f32 %v5504, %v5483
      %v5520 = vmul.f32 %v5504, %v5484
      %v5521 = vmul.f32 %v5504, %v5485
      %v5522 = vmul.f32 %v5504, %v5486
      %v5523 = vmul.f32 %v5504, %v5487
      %v5524 = vmul.f32 %v5504, %v5488
      %v5525 = vmul.f32 %v5504, %v5489
      %v5526 = vmul.f32 %v5508, %v5490
      %v5527 = vmul.f32 %v5508, %v5491
      %v5528 = vmul.f32 %v5508, %v5492
      %v5529 = vmul.f32 %v5508, %v5493
      %v5530 = vmul.f32 %v5508, %v5494
      %v5531 = vmul.f32 %v5508, %v5495
      %v5532 = vmul.f32 %v5508, %v5496
      %v5533 = vmul.f32 %v5508, %v5497
      %5558 = vrot.lane.b32.xlu0 %v5510, 126
      %v5559 = vpop.permute.xlu0 %5558
      %5560 = vrot.lane.b32.xlu0 %v5511, 126
      %v5561 = vpop.permute.xlu0 %5560
      %5562 = vrot.lane.b32.xlu0 %v5512, 126
      %v5563 = vpop.permute.xlu0 %5562
      %5564 = vrot.lane.b32.xlu0 %v5513, 126
      %v5565 = vpop.permute.xlu0 %5564
      %5566 = vrot.lane.b32.xlu0 %v5514, 126
      %v5567 = vpop.permute.xlu0 %5566
      %5568 = vrot.lane.b32.xlu0 %v5515, 126
      %v5569 = vpop.permute.xlu0 %5568
      %5570 = vrot.lane.b32.xlu0 %v5516, 126
      %v5571 = vpop.permute.xlu0 %5570
      %5572 = vrot.lane.b32.xlu0 %v5517, 126
      %v5573 = vpop.permute.xlu0 %5572
      %5574 = vrot.lane.b32.xlu0 %v5518, 126
      %v5575 = vpop.permute.xlu0 %5574
      %5576 = vrot.lane.b32.xlu0 %v5519, 126
      %v5577 = vpop.permute.xlu0 %5576
      %5578 = vrot.lane.b32.xlu0 %v5520, 126
      %v5579 = vpop.permute.xlu0 %5578
      %5580 = vrot.lane.b32.xlu0 %v5521, 126
      %v5581 = vpop.permute.xlu0 %5580
      %5582 = vrot.lane.b32.xlu0 %v5522, 126
      %v5583 = vpop.permute.xlu0 %5582
      %5584 = vrot.lane.b32.xlu0 %v5523, 126
      %v5585 = vpop.permute.xlu0 %5584
      %5586 = vrot.lane.b32.xlu0 %v5524, 126
      %v5587 = vpop.permute.xlu0 %5586
      %5588 = vrot.lane.b32.xlu0 %v5525, 126
      %v5589 = vpop.permute.xlu0 %5588
      %5590 = vrot.lane.b32.xlu0 %v5526, 126
      %v5591 = vpop.permute.xlu0 %5590
      %5592 = vrot.lane.b32.xlu0 %v5527, 126
      %v5593 = vpop.permute.xlu0 %5592
      %5594 = vrot.lane.b32.xlu0 %v5528, 126
      %v5595 = vpop.permute.xlu0 %5594
      %5596 = vrot.lane.b32.xlu0 %v5529, 126
      %v5597 = vpop.permute.xlu0 %5596
      %5598 = vrot.lane.b32.xlu0 %v5530, 126
      %v5599 = vpop.permute.xlu0 %5598
      %5600 = vrot.lane.b32.xlu0 %v5531, 126
      %v5601 = vpop.permute.xlu0 %5600
      %5602 = vrot.lane.b32.xlu0 %v5532, 126
      %v5603 = vpop.permute.xlu0 %5602
      %5604 = vrot.lane.b32.xlu0 %v5533, 126
      %v5605 = vpop.permute.xlu0 %5604
      %vm5606 = vcmask 1031168
      %v5607 = vsel %vm5606, %v5559, %v5561
      %v5608 = vsel %vm5606, %v5561, %v5563
      %v5609 = vsel %vm5606, %v5563, %v5565
      %v5610 = vsel %vm5606, %v5565, %v5567
      %v5611 = vsel %vm5606, %v5567, %v5569
      %v5612 = vsel %vm5606, %v5569, %v5571
      %v5613 = vsel %vm5606, %v5571, %v5573
      %v5614 = vsel %vm5606, %v5575, %v5577
      %v5615 = vsel %vm5606, %v5577, %v5579
      %v5616 = vsel %vm5606, %v5579, %v5581
      %v5617 = vsel %vm5606, %v5581, %v5583
      %v5618 = vsel %vm5606, %v5583, %v5585
      %v5619 = vsel %vm5606, %v5585, %v5587
      %v5620 = vsel %vm5606, %v5587, %v5589
      %v5621 = vsel %vm5606, %v5591, %v5593
      %v5622 = vsel %vm5606, %v5593, %v5595
      %v5623 = vsel %vm5606, %v5595, %v5597
      %v5624 = vsel %vm5606, %v5597, %v5599
      %v5625 = vsel %vm5606, %v5599, %v5601
      %v5626 = vsel %vm5606, %v5601, %v5603
      %v5627 = vsel %vm5606, %v5603, %v5605
      %v5649 = vadd.f32 %v5453, %v5607
      %v5650 = vadd.f32 %v5454, %v5608
      %v5651 = vadd.f32 %v5455, %v5609
      %v5652 = vadd.f32 %v5456, %v5610
      %v5653 = vadd.f32 %v5457, %v5611
      %v5654 = vadd.f32 %v5458, %v5612
      %v5655 = vadd.f32 %v5459, %v5613
      %v5656 = vadd.f32 %v5460, %v5614
      %v5657 = vadd.f32 %v5461, %v5615
      %v5658 = vadd.f32 %v5462, %v5616
      %v5659 = vadd.f32 %v5463, %v5617
      %v5660 = vadd.f32 %v5464, %v5618
      %v5661 = vadd.f32 %v5465, %v5619
      %v5662 = vadd.f32 %v5466, %v5620
      %v5663 = vadd.f32 %v5467, %v5621
      %v5664 = vadd.f32 %v5468, %v5622
      %v5665 = vadd.f32 %v5469, %v5623
      %v5666 = vadd.f32 %v5470, %v5624
      %v5667 = vadd.f32 %v5471, %v5625
      %v5668 = vadd.f32 %v5472, %v5626
      %v5669 = vadd.f32 %v5473, %v5627
      %5670 = vset.pattern.permute.xlu0 14
      %5671 = vperm.xlu0 %5670, %v2570
      %v5672 = vpop.permute.xlu0 %5671
      %5674 = vset.pattern.permute.xlu0 14
      %5675 = vperm.xlu0 %5674, %v2571
      %v5676 = vpop.permute.xlu0 %5675
      %5678 = vset.pattern.permute.xlu0 14
      %5679 = vperm.xlu0 %5678, %v2572
      %v5680 = vpop.permute.xlu0 %5679
      %v5682 = vmul.f32 %v5672, %v5474
      %v5683 = vmul.f32 %v5672, %v5475
      %v5684 = vmul.f32 %v5672, %v5476
      %v5685 = vmul.f32 %v5672, %v5477
      %v5686 = vmul.f32 %v5672, %v5478
      %v5687 = vmul.f32 %v5672, %v5479
      %v5688 = vmul.f32 %v5672, %v5480
      %v5689 = vmul.f32 %v5672, %v5481
      %v5690 = vmul.f32 %v5676, %v5482
      %v5691 = vmul.f32 %v5676, %v5483
      %v5692 = vmul.f32 %v5676, %v5484
      %v5693 = vmul.f32 %v5676, %v5485
      %v5694 = vmul.f32 %v5676, %v5486
      %v5695 = vmul.f32 %v5676, %v5487
      %v5696 = vmul.f32 %v5676, %v5488
      %v5697 = vmul.f32 %v5676, %v5489
      %v5698 = vmul.f32 %v5680, %v5490
      %v5699 = vmul.f32 %v5680, %v5491
      %v5700 = vmul.f32 %v5680, %v5492
      %v5701 = vmul.f32 %v5680, %v5493
      %v5702 = vmul.f32 %v5680, %v5494
      %v5703 = vmul.f32 %v5680, %v5495
      %v5704 = vmul.f32 %v5680, %v5496
      %v5705 = vmul.f32 %v5680, %v5497
      %5730 = vrot.lane.b32.xlu0 %v5682, 124
      %v5731 = vpop.permute.xlu0 %5730
      %5732 = vrot.lane.b32.xlu0 %v5683, 124
      %v5733 = vpop.permute.xlu0 %5732
      %5734 = vrot.lane.b32.xlu0 %v5684, 124
      %v5735 = vpop.permute.xlu0 %5734
      %5736 = vrot.lane.b32.xlu0 %v5685, 124
      %v5737 = vpop.permute.xlu0 %5736
      %5738 = vrot.lane.b32.xlu0 %v5686, 124
      %v5739 = vpop.permute.xlu0 %5738
      %5740 = vrot.lane.b32.xlu0 %v5687, 124
      %v5741 = vpop.permute.xlu0 %5740
      %5742 = vrot.lane.b32.xlu0 %v5688, 124
      %v5743 = vpop.permute.xlu0 %5742
      %5744 = vrot.lane.b32.xlu0 %v5689, 124
      %v5745 = vpop.permute.xlu0 %5744
      %5746 = vrot.lane.b32.xlu0 %v5690, 124
      %v5747 = vpop.permute.xlu0 %5746
      %5748 = vrot.lane.b32.xlu0 %v5691, 124
      %v5749 = vpop.permute.xlu0 %5748
      %5750 = vrot.lane.b32.xlu0 %v5692, 124
      %v5751 = vpop.permute.xlu0 %5750
      %5752 = vrot.lane.b32.xlu0 %v5693, 124
      %v5753 = vpop.permute.xlu0 %5752
      %5754 = vrot.lane.b32.xlu0 %v5694, 124
      %v5755 = vpop.permute.xlu0 %5754
      %5756 = vrot.lane.b32.xlu0 %v5695, 124
      %v5757 = vpop.permute.xlu0 %5756
      %5758 = vrot.lane.b32.xlu0 %v5696, 124
      %v5759 = vpop.permute.xlu0 %5758
      %5760 = vrot.lane.b32.xlu0 %v5697, 124
      %v5761 = vpop.permute.xlu0 %5760
      %5762 = vrot.lane.b32.xlu0 %v5698, 124
      %v5763 = vpop.permute.xlu0 %5762
      %5764 = vrot.lane.b32.xlu0 %v5699, 124
      %v5765 = vpop.permute.xlu0 %5764
      %5766 = vrot.lane.b32.xlu0 %v5700, 124
      %v5767 = vpop.permute.xlu0 %5766
      %5768 = vrot.lane.b32.xlu0 %v5701, 124
      %v5769 = vpop.permute.xlu0 %5768
      %5770 = vrot.lane.b32.xlu0 %v5702, 124
      %v5771 = vpop.permute.xlu0 %5770
      %5772 = vrot.lane.b32.xlu0 %v5703, 124
      %v5773 = vpop.permute.xlu0 %5772
      %5774 = vrot.lane.b32.xlu0 %v5704, 124
      %v5775 = vpop.permute.xlu0 %5774
      %5776 = vrot.lane.b32.xlu0 %v5705, 124
      %v5777 = vpop.permute.xlu0 %5776
      %vm5778 = vcmask 1014784
      %v5779 = vsel %vm5778, %v5731, %v5733
      %v5780 = vsel %vm5778, %v5733, %v5735
      %v5781 = vsel %vm5778, %v5735, %v5737
      %v5782 = vsel %vm5778, %v5737, %v5739
      %v5783 = vsel %vm5778, %v5739, %v5741
      %v5784 = vsel %vm5778, %v5741, %v5743
      %v5785 = vsel %vm5778, %v5743, %v5745
      %v5786 = vsel %vm5778, %v5747, %v5749
      %v5787 = vsel %vm5778, %v5749, %v5751
      %v5788 = vsel %vm5778, %v5751, %v5753
      %v5789 = vsel %vm5778, %v5753, %v5755
      %v5790 = vsel %vm5778, %v5755, %v5757
      %v5791 = vsel %vm5778, %v5757, %v5759
      %v5792 = vsel %vm5778, %v5759, %v5761
      %v5793 = vsel %vm5778, %v5763, %v5765
      %v5794 = vsel %vm5778, %v5765, %v5767
      %v5795 = vsel %vm5778, %v5767, %v5769
      %v5796 = vsel %vm5778, %v5769, %v5771
      %v5797 = vsel %vm5778, %v5771, %v5773
      %v5798 = vsel %vm5778, %v5773, %v5775
      %v5799 = vsel %vm5778, %v5775, %v5777
      %v5821 = vadd.f32 %v5649, %v5779
      %v5822 = vadd.f32 %v5650, %v5780
      %v5823 = vadd.f32 %v5651, %v5781
      %v5824 = vadd.f32 %v5652, %v5782
      %v5825 = vadd.f32 %v5653, %v5783
      %v5826 = vadd.f32 %v5654, %v5784
      %v5827 = vadd.f32 %v5655, %v5785
      %v5828 = vadd.f32 %v5656, %v5786
      %v5829 = vadd.f32 %v5657, %v5787
      %v5830 = vadd.f32 %v5658, %v5788
      %v5831 = vadd.f32 %v5659, %v5789
      %v5832 = vadd.f32 %v5660, %v5790
      %v5833 = vadd.f32 %v5661, %v5791
      %v5834 = vadd.f32 %v5662, %v5792
      %v5835 = vadd.f32 %v5663, %v5793
      %v5836 = vadd.f32 %v5664, %v5794
      %v5837 = vadd.f32 %v5665, %v5795
      %v5838 = vadd.f32 %v5666, %v5796
      %v5839 = vadd.f32 %v5667, %v5797
      %v5840 = vadd.f32 %v5668, %v5798
      %v5841 = vadd.f32 %v5669, %v5799
      %5842 = vset.pattern.permute.xlu0 15
      %5843 = vperm.xlu0 %5842, %v2570
      %v5844 = vpop.permute.xlu0 %5843
      %5846 = vset.pattern.permute.xlu0 15
      %5847 = vperm.xlu0 %5846, %v2571
      %v5848 = vpop.permute.xlu0 %5847
      %5850 = vset.pattern.permute.xlu0 15
      %5851 = vperm.xlu0 %5850, %v2572
      %v5852 = vpop.permute.xlu0 %5851
      %v5854 = vmul.f32 %v5844, %v5474
      %v5855 = vmul.f32 %v5844, %v5475
      %v5856 = vmul.f32 %v5844, %v5476
      %v5857 = vmul.f32 %v5844, %v5477
      %v5858 = vmul.f32 %v5844, %v5478
      %v5859 = vmul.f32 %v5844, %v5479
      %v5860 = vmul.f32 %v5844, %v5480
      %v5861 = vmul.f32 %v5844, %v5481
      %v5862 = vmul.f32 %v5848, %v5482
      %v5863 = vmul.f32 %v5848, %v5483
      %v5864 = vmul.f32 %v5848, %v5484
      %v5865 = vmul.f32 %v5848, %v5485
      %v5866 = vmul.f32 %v5848, %v5486
      %v5867 = vmul.f32 %v5848, %v5487
      %v5868 = vmul.f32 %v5848, %v5488
      %v5869 = vmul.f32 %v5848, %v5489
      %v5870 = vmul.f32 %v5852, %v5490
      %v5871 = vmul.f32 %v5852, %v5491
      %v5872 = vmul.f32 %v5852, %v5492
      %v5873 = vmul.f32 %v5852, %v5493
      %v5874 = vmul.f32 %v5852, %v5494
      %v5875 = vmul.f32 %v5852, %v5495
      %v5876 = vmul.f32 %v5852, %v5496
      %v5877 = vmul.f32 %v5852, %v5497
      %5902 = vrot.lane.b32.xlu0 %v5854, 92
      %v5903 = vpop.permute.xlu0 %5902
      %5904 = vrot.lane.b32.xlu0 %v5855, 92
      %v5905 = vpop.permute.xlu0 %5904
      %5906 = vrot.lane.b32.xlu0 %v5856, 92
      %v5907 = vpop.permute.xlu0 %5906
      %5908 = vrot.lane.b32.xlu0 %v5857, 92
      %v5909 = vpop.permute.xlu0 %5908
      %5910 = vrot.lane.b32.xlu0 %v5858, 92
      %v5911 = vpop.permute.xlu0 %5910
      %5912 = vrot.lane.b32.xlu0 %v5859, 92
      %v5913 = vpop.permute.xlu0 %5912
      %5914 = vrot.lane.b32.xlu0 %v5860, 92
      %v5915 = vpop.permute.xlu0 %5914
      %5916 = vrot.lane.b32.xlu0 %v5861, 92
      %v5917 = vpop.permute.xlu0 %5916
      %5918 = vrot.lane.b32.xlu0 %v5862, 92
      %v5919 = vpop.permute.xlu0 %5918
      %5920 = vrot.lane.b32.xlu0 %v5863, 92
      %v5921 = vpop.permute.xlu0 %5920
      %5922 = vrot.lane.b32.xlu0 %v5864, 92
      %v5923 = vpop.permute.xlu0 %5922
      %5924 = vrot.lane.b32.xlu0 %v5865, 92
      %v5925 = vpop.permute.xlu0 %5924
      %5926 = vrot.lane.b32.xlu0 %v5866, 92
      %v5927 = vpop.permute.xlu0 %5926
      %5928 = vrot.lane.b32.xlu0 %v5867, 92
      %v5929 = vpop.permute.xlu0 %5928
      %5930 = vrot.lane.b32.xlu0 %v5868, 92
      %v5931 = vpop.permute.xlu0 %5930
      %5932 = vrot.lane.b32.xlu0 %v5869, 92
      %v5933 = vpop.permute.xlu0 %5932
      %5934 = vrot.lane.b32.xlu0 %v5870, 92
      %v5935 = vpop.permute.xlu0 %5934
      %5936 = vrot.lane.b32.xlu0 %v5871, 92
      %v5937 = vpop.permute.xlu0 %5936
      %5938 = vrot.lane.b32.xlu0 %v5872, 92
      %v5939 = vpop.permute.xlu0 %5938
      %5940 = vrot.lane.b32.xlu0 %v5873, 92
      %v5941 = vpop.permute.xlu0 %5940
      %5942 = vrot.lane.b32.xlu0 %v5874, 92
      %v5943 = vpop.permute.xlu0 %5942
      %5944 = vrot.lane.b32.xlu0 %v5875, 92
      %v5945 = vpop.permute.xlu0 %5944
      %5946 = vrot.lane.b32.xlu0 %v5876, 92
      %v5947 = vpop.permute.xlu0 %5946
      %5948 = vrot.lane.b32.xlu0 %v5877, 92
      %v5949 = vpop.permute.xlu0 %5948
      %vm5950 = vcmask 752640
      %v5951 = vsel %vm5950, %v5903, %v5905
      %v5952 = vsel %vm5950, %v5905, %v5907
      %v5953 = vsel %vm5950, %v5907, %v5909
      %v5954 = vsel %vm5950, %v5909, %v5911
      %v5955 = vsel %vm5950, %v5911, %v5913
      %v5956 = vsel %vm5950, %v5913, %v5915
      %v5957 = vsel %vm5950, %v5915, %v5917
      %v5958 = vsel %vm5950, %v5919, %v5921
      %v5959 = vsel %vm5950, %v5921, %v5923
      %v5960 = vsel %vm5950, %v5923, %v5925
      %v5961 = vsel %vm5950, %v5925, %v5927
      %v5962 = vsel %vm5950, %v5927, %v5929
      %v5963 = vsel %vm5950, %v5929, %v5931
      %v5964 = vsel %vm5950, %v5931, %v5933
      %v5965 = vsel %vm5950, %v5935, %v5937
      %v5966 = vsel %vm5950, %v5937, %v5939
      %v5967 = vsel %vm5950, %v5939, %v5941
      %v5968 = vsel %vm5950, %v5941, %v5943
      %v5969 = vsel %vm5950, %v5943, %v5945
      %v5970 = vsel %vm5950, %v5945, %v5947
      %v5971 = vsel %vm5950, %v5947, %v5949
      %v5993 = vadd.f32 %v5821, %v5951
      %v5994 = vadd.f32 %v5822, %v5952
      %v5995 = vadd.f32 %v5823, %v5953
      %v5996 = vadd.f32 %v5824, %v5954
      %v5997 = vadd.f32 %v5825, %v5955
      %v5998 = vadd.f32 %v5826, %v5956
      %v5999 = vadd.f32 %v5827, %v5957
      %v6000 = vadd.f32 %v5828, %v5958
      %v6001 = vadd.f32 %v5829, %v5959
      %v6002 = vadd.f32 %v5830, %v5960
      %v6003 = vadd.f32 %v5831, %v5961
      %v6004 = vadd.f32 %v5832, %v5962
      %v6005 = vadd.f32 %v5833, %v5963
      %v6006 = vadd.f32 %v5834, %v5964
      %v6007 = vadd.f32 %v5835, %v5965
      %v6008 = vadd.f32 %v5836, %v5966
      %v6009 = vadd.f32 %v5837, %v5967
      %v6010 = vadd.f32 %v5838, %v5968
      %v6011 = vadd.f32 %v5839, %v5969
      %v6012 = vadd.f32 %v5840, %v5970
      %v6013 = vadd.f32 %v5841, %v5971
      %6014 = vset.pattern.permute.xlu0 16
      %6015 = vperm.xlu0 %6014, %v2570
      %v6016 = vpop.permute.xlu0 %6015
      %6018 = vset.pattern.permute.xlu0 16
      %6019 = vperm.xlu0 %6018, %v2571
      %v6020 = vpop.permute.xlu0 %6019
      %6022 = vset.pattern.permute.xlu0 16
      %6023 = vperm.xlu0 %6022, %v2572
      %v6024 = vpop.permute.xlu0 %6023
      %v6026 = vmul.f32 %v6016, %v5474
      %v6027 = vmul.f32 %v6016, %v5475
      %v6028 = vmul.f32 %v6016, %v5476
      %v6029 = vmul.f32 %v6016, %v5477
      %v6030 = vmul.f32 %v6016, %v5478
      %v6031 = vmul.f32 %v6016, %v5479
      %v6032 = vmul.f32 %v6016, %v5480
      %v6033 = vmul.f32 %v6016, %v5481
      %v6034 = vmul.f32 %v6020, %v5482
      %v6035 = vmul.f32 %v6020, %v5483
      %v6036 = vmul.f32 %v6020, %v5484
      %v6037 = vmul.f32 %v6020, %v5485
      %v6038 = vmul.f32 %v6020, %v5486
      %v6039 = vmul.f32 %v6020, %v5487
      %v6040 = vmul.f32 %v6020, %v5488
      %v6041 = vmul.f32 %v6020, %v5489
      %v6042 = vmul.f32 %v6024, %v5490
      %v6043 = vmul.f32 %v6024, %v5491
      %v6044 = vmul.f32 %v6024, %v5492
      %v6045 = vmul.f32 %v6024, %v5493
      %v6046 = vmul.f32 %v6024, %v5494
      %v6047 = vmul.f32 %v6024, %v5495
      %v6048 = vmul.f32 %v6024, %v5496
      %v6049 = vmul.f32 %v6024, %v5497
      %6074 = vrot.lane.b32.xlu0 %v6026, 90
      %v6075 = vpop.permute.xlu0 %6074
      %6076 = vrot.lane.b32.xlu0 %v6027, 90
      %v6077 = vpop.permute.xlu0 %6076
      %6078 = vrot.lane.b32.xlu0 %v6028, 90
      %v6079 = vpop.permute.xlu0 %6078
      %6080 = vrot.lane.b32.xlu0 %v6029, 90
      %v6081 = vpop.permute.xlu0 %6080
      %6082 = vrot.lane.b32.xlu0 %v6030, 90
      %v6083 = vpop.permute.xlu0 %6082
      %6084 = vrot.lane.b32.xlu0 %v6031, 90
      %v6085 = vpop.permute.xlu0 %6084
      %6086 = vrot.lane.b32.xlu0 %v6032, 90
      %v6087 = vpop.permute.xlu0 %6086
      %6088 = vrot.lane.b32.xlu0 %v6033, 90
      %v6089 = vpop.permute.xlu0 %6088
      %6090 = vrot.lane.b32.xlu0 %v6034, 90
      %v6091 = vpop.permute.xlu0 %6090
      %6092 = vrot.lane.b32.xlu0 %v6035, 90
      %v6093 = vpop.permute.xlu0 %6092
      %6094 = vrot.lane.b32.xlu0 %v6036, 90
      %v6095 = vpop.permute.xlu0 %6094
      %6096 = vrot.lane.b32.xlu0 %v6037, 90
      %v6097 = vpop.permute.xlu0 %6096
      %6098 = vrot.lane.b32.xlu0 %v6038, 90
      %v6099 = vpop.permute.xlu0 %6098
      %6100 = vrot.lane.b32.xlu0 %v6039, 90
      %v6101 = vpop.permute.xlu0 %6100
      %6102 = vrot.lane.b32.xlu0 %v6040, 90
      %v6103 = vpop.permute.xlu0 %6102
      %6104 = vrot.lane.b32.xlu0 %v6041, 90
      %v6105 = vpop.permute.xlu0 %6104
      %6106 = vrot.lane.b32.xlu0 %v6042, 90
      %v6107 = vpop.permute.xlu0 %6106
      %6108 = vrot.lane.b32.xlu0 %v6043, 90
      %v6109 = vpop.permute.xlu0 %6108
      %6110 = vrot.lane.b32.xlu0 %v6044, 90
      %v6111 = vpop.permute.xlu0 %6110
      %6112 = vrot.lane.b32.xlu0 %v6045, 90
      %v6113 = vpop.permute.xlu0 %6112
      %6114 = vrot.lane.b32.xlu0 %v6046, 90
      %v6115 = vpop.permute.xlu0 %6114
      %6116 = vrot.lane.b32.xlu0 %v6047, 90
      %v6117 = vpop.permute.xlu0 %6116
      %6118 = vrot.lane.b32.xlu0 %v6048, 90
      %v6119 = vpop.permute.xlu0 %6118
      %6120 = vrot.lane.b32.xlu0 %v6049, 90
      %v6121 = vpop.permute.xlu0 %6120
      %vm6122 = vcmask 736256
      %v6123 = vsel %vm6122, %v6075, %v6077
      %v6124 = vsel %vm6122, %v6077, %v6079
      %v6125 = vsel %vm6122, %v6079, %v6081
      %v6126 = vsel %vm6122, %v6081, %v6083
      %v6127 = vsel %vm6122, %v6083, %v6085
      %v6128 = vsel %vm6122, %v6085, %v6087
      %v6129 = vsel %vm6122, %v6087, %v6089
      %v6130 = vsel %vm6122, %v6091, %v6093
      %v6131 = vsel %vm6122, %v6093, %v6095
      %v6132 = vsel %vm6122, %v6095, %v6097
      %v6133 = vsel %vm6122, %v6097, %v6099
      %v6134 = vsel %vm6122, %v6099, %v6101
      %v6135 = vsel %vm6122, %v6101, %v6103
      %v6136 = vsel %vm6122, %v6103, %v6105
      %v6137 = vsel %vm6122, %v6107, %v6109
      %v6138 = vsel %vm6122, %v6109, %v6111
      %v6139 = vsel %vm6122, %v6111, %v6113
      %v6140 = vsel %vm6122, %v6113, %v6115
      %v6141 = vsel %vm6122, %v6115, %v6117
      %v6142 = vsel %vm6122, %v6117, %v6119
      %v6143 = vsel %vm6122, %v6119, %v6121
      %v6165 = vadd.f32 %v5993, %v6123
      %v6166 = vadd.f32 %v5994, %v6124
      %v6167 = vadd.f32 %v5995, %v6125
      %v6168 = vadd.f32 %v5996, %v6126
      %v6169 = vadd.f32 %v5997, %v6127
      %v6170 = vadd.f32 %v5998, %v6128
      %v6171 = vadd.f32 %v5999, %v6129
      %v6172 = vadd.f32 %v6000, %v6130
      %v6173 = vadd.f32 %v6001, %v6131
      %v6174 = vadd.f32 %v6002, %v6132
      %v6175 = vadd.f32 %v6003, %v6133
      %v6176 = vadd.f32 %v6004, %v6134
      %v6177 = vadd.f32 %v6005, %v6135
      %v6178 = vadd.f32 %v6006, %v6136
      %v6179 = vadd.f32 %v6007, %v6137
      %v6180 = vadd.f32 %v6008, %v6138
      %v6181 = vadd.f32 %v6009, %v6139
      %v6182 = vadd.f32 %v6010, %v6140
      %v6183 = vadd.f32 %v6011, %v6141
      %v6184 = vadd.f32 %v6012, %v6142
      %v6185 = vadd.f32 %v6013, %v6143
      %6186 = vset.pattern.permute.xlu0 17
      %6187 = vperm.xlu0 %6186, %v2570
      %v6188 = vpop.permute.xlu0 %6187
      %6190 = vset.pattern.permute.xlu0 17
      %6191 = vperm.xlu0 %6190, %v2571
      %v6192 = vpop.permute.xlu0 %6191
      %6194 = vset.pattern.permute.xlu0 17
      %6195 = vperm.xlu0 %6194, %v2572
      %v6196 = vpop.permute.xlu0 %6195
      %v6198 = vmul.f32 %v6188, %v5474
      %v6199 = vmul.f32 %v6188, %v5475
      %v6200 = vmul.f32 %v6188, %v5476
      %v6201 = vmul.f32 %v6188, %v5477
      %v6202 = vmul.f32 %v6188, %v5478
      %v6203 = vmul.f32 %v6188, %v5479
      %v6204 = vmul.f32 %v6188, %v5480
      %v6205 = vmul.f32 %v6188, %v5481
      %v6206 = vmul.f32 %v6192, %v5482
      %v6207 = vmul.f32 %v6192, %v5483
      %v6208 = vmul.f32 %v6192, %v5484
      %v6209 = vmul.f32 %v6192, %v5485
      %v6210 = vmul.f32 %v6192, %v5486
      %v6211 = vmul.f32 %v6192, %v5487
      %v6212 = vmul.f32 %v6192, %v5488
      %v6213 = vmul.f32 %v6192, %v5489
      %v6214 = vmul.f32 %v6196, %v5490
      %v6215 = vmul.f32 %v6196, %v5491
      %v6216 = vmul.f32 %v6196, %v5492
      %v6217 = vmul.f32 %v6196, %v5493
      %v6218 = vmul.f32 %v6196, %v5494
      %v6219 = vmul.f32 %v6196, %v5495
      %v6220 = vmul.f32 %v6196, %v5496
      %v6221 = vmul.f32 %v6196, %v5497
      %6246 = vrot.lane.b32.xlu0 %v6198, 88
      %v6247 = vpop.permute.xlu0 %6246
      %6248 = vrot.lane.b32.xlu0 %v6199, 88
      %v6249 = vpop.permute.xlu0 %6248
      %6250 = vrot.lane.b32.xlu0 %v6200, 88
      %v6251 = vpop.permute.xlu0 %6250
      %6252 = vrot.lane.b32.xlu0 %v6201, 88
      %v6253 = vpop.permute.xlu0 %6252
      %6254 = vrot.lane.b32.xlu0 %v6202, 88
      %v6255 = vpop.permute.xlu0 %6254
      %6256 = vrot.lane.b32.xlu0 %v6203, 88
      %v6257 = vpop.permute.xlu0 %6256
      %6258 = vrot.lane.b32.xlu0 %v6204, 88
      %v6259 = vpop.permute.xlu0 %6258
      %6260 = vrot.lane.b32.xlu0 %v6205, 88
      %v6261 = vpop.permute.xlu0 %6260
      %6262 = vrot.lane.b32.xlu0 %v6206, 88
      %v6263 = vpop.permute.xlu0 %6262
      %6264 = vrot.lane.b32.xlu0 %v6207, 88
      %v6265 = vpop.permute.xlu0 %6264
      %6266 = vrot.lane.b32.xlu0 %v6208, 88
      %v6267 = vpop.permute.xlu0 %6266
      %6268 = vrot.lane.b32.xlu0 %v6209, 88
      %v6269 = vpop.permute.xlu0 %6268
      %6270 = vrot.lane.b32.xlu0 %v6210, 88
      %v6271 = vpop.permute.xlu0 %6270
      %6272 = vrot.lane.b32.xlu0 %v6211, 88
      %v6273 = vpop.permute.xlu0 %6272
      %6274 = vrot.lane.b32.xlu0 %v6212, 88
      %v6275 = vpop.permute.xlu0 %6274
      %6276 = vrot.lane.b32.xlu0 %v6213, 88
      %v6277 = vpop.permute.xlu0 %6276
      %6278 = vrot.lane.b32.xlu0 %v6214, 88
      %v6279 = vpop.permute.xlu0 %6278
      %6280 = vrot.lane.b32.xlu0 %v6215, 88
      %v6281 = vpop.permute.xlu0 %6280
      %6282 = vrot.lane.b32.xlu0 %v6216, 88
      %v6283 = vpop.permute.xlu0 %6282
      %6284 = vrot.lane.b32.xlu0 %v6217, 88
      %v6285 = vpop.permute.xlu0 %6284
      %6286 = vrot.lane.b32.xlu0 %v6218, 88
      %v6287 = vpop.permute.xlu0 %6286
      %6288 = vrot.lane.b32.xlu0 %v6219, 88
      %v6289 = vpop.permute.xlu0 %6288
      %6290 = vrot.lane.b32.xlu0 %v6220, 88
      %v6291 = vpop.permute.xlu0 %6290
      %6292 = vrot.lane.b32.xlu0 %v6221, 88
      %v6293 = vpop.permute.xlu0 %6292
      %vm6294 = vcmask 719872
      %v6295 = vsel %vm6294, %v6247, %v6249
      %v6296 = vsel %vm6294, %v6249, %v6251
      %v6297 = vsel %vm6294, %v6251, %v6253
      %v6298 = vsel %vm6294, %v6253, %v6255
      %v6299 = vsel %vm6294, %v6255, %v6257
      %v6300 = vsel %vm6294, %v6257, %v6259
      %v6301 = vsel %vm6294, %v6259, %v6261
      %v6302 = vsel %vm6294, %v6263, %v6265
      %v6303 = vsel %vm6294, %v6265, %v6267
      %v6304 = vsel %vm6294, %v6267, %v6269
      %v6305 = vsel %vm6294, %v6269, %v6271
      %v6306 = vsel %vm6294, %v6271, %v6273
      %v6307 = vsel %vm6294, %v6273, %v6275
      %v6308 = vsel %vm6294, %v6275, %v6277
      %v6309 = vsel %vm6294, %v6279, %v6281
      %v6310 = vsel %vm6294, %v6281, %v6283
      %v6311 = vsel %vm6294, %v6283, %v6285
      %v6312 = vsel %vm6294, %v6285, %v6287
      %v6313 = vsel %vm6294, %v6287, %v6289
      %v6314 = vsel %vm6294, %v6289, %v6291
      %v6315 = vsel %vm6294, %v6291, %v6293
      %v6337 = vadd.f32 %v6165, %v6295
      %v6338 = vadd.f32 %v6166, %v6296
      %v6339 = vadd.f32 %v6167, %v6297
      %v6340 = vadd.f32 %v6168, %v6298
      %v6341 = vadd.f32 %v6169, %v6299
      %v6342 = vadd.f32 %v6170, %v6300
      %v6343 = vadd.f32 %v6171, %v6301
      %v6344 = vadd.f32 %v6172, %v6302
      %v6345 = vadd.f32 %v6173, %v6303
      %v6346 = vadd.f32 %v6174, %v6304
      %v6347 = vadd.f32 %v6175, %v6305
      %v6348 = vadd.f32 %v6176, %v6306
      %v6349 = vadd.f32 %v6177, %v6307
      %v6350 = vadd.f32 %v6178, %v6308
      %v6351 = vadd.f32 %v6179, %v6309
      %v6352 = vadd.f32 %v6180, %v6310
      %v6353 = vadd.f32 %v6181, %v6311
      %v6354 = vadd.f32 %v6182, %v6312
      %v6355 = vadd.f32 %v6183, %v6313
      %v6356 = vadd.f32 %v6184, %v6314
      %v6357 = vadd.f32 %v6185, %v6315
      %6358 = vset.pattern.permute.xlu0 18
      %6359 = vperm.xlu0 %6358, %v2570
      %v6360 = vpop.permute.xlu0 %6359
      %6362 = vset.pattern.permute.xlu0 18
      %6363 = vperm.xlu0 %6362, %v2571
      %v6364 = vpop.permute.xlu0 %6363
      %6366 = vset.pattern.permute.xlu0 18
      %6367 = vperm.xlu0 %6366, %v2572
      %v6368 = vpop.permute.xlu0 %6367
      %v6370 = vmul.f32 %v6360, %v5474
      %v6371 = vmul.f32 %v6360, %v5475
      %v6372 = vmul.f32 %v6360, %v5476
      %v6373 = vmul.f32 %v6360, %v5477
      %v6374 = vmul.f32 %v6360, %v5478
      %v6375 = vmul.f32 %v6360, %v5479
      %v6376 = vmul.f32 %v6360, %v5480
      %v6377 = vmul.f32 %v6360, %v5481
      %v6378 = vmul.f32 %v6364, %v5482
      %v6379 = vmul.f32 %v6364, %v5483
      %v6380 = vmul.f32 %v6364, %v5484
      %v6381 = vmul.f32 %v6364, %v5485
      %v6382 = vmul.f32 %v6364, %v5486
      %v6383 = vmul.f32 %v6364, %v5487
      %v6384 = vmul.f32 %v6364, %v5488
      %v6385 = vmul.f32 %v6364, %v5489
      %v6386 = vmul.f32 %v6368, %v5490
      %v6387 = vmul.f32 %v6368, %v5491
      %v6388 = vmul.f32 %v6368, %v5492
      %v6389 = vmul.f32 %v6368, %v5493
      %v6390 = vmul.f32 %v6368, %v5494
      %v6391 = vmul.f32 %v6368, %v5495
      %v6392 = vmul.f32 %v6368, %v5496
      %v6393 = vmul.f32 %v6368, %v5497
      %6418 = vrot.lane.b32.xlu0 %v6370, 86
      %v6419 = vpop.permute.xlu0 %6418
      %6420 = vrot.lane.b32.xlu0 %v6371, 86
      %v6421 = vpop.permute.xlu0 %6420
      %6422 = vrot.lane.b32.xlu0 %v6372, 86
      %v6423 = vpop.permute.xlu0 %6422
      %6424 = vrot.lane.b32.xlu0 %v6373, 86
      %v6425 = vpop.permute.xlu0 %6424
      %6426 = vrot.lane.b32.xlu0 %v6374, 86
      %v6427 = vpop.permute.xlu0 %6426
      %6428 = vrot.lane.b32.xlu0 %v6375, 86
      %v6429 = vpop.permute.xlu0 %6428
      %6430 = vrot.lane.b32.xlu0 %v6376, 86
      %v6431 = vpop.permute.xlu0 %6430
      %6432 = vrot.lane.b32.xlu0 %v6377, 86
      %v6433 = vpop.permute.xlu0 %6432
      %6434 = vrot.lane.b32.xlu0 %v6378, 86
      %v6435 = vpop.permute.xlu0 %6434
      %6436 = vrot.lane.b32.xlu0 %v6379, 86
      %v6437 = vpop.permute.xlu0 %6436
      %6438 = vrot.lane.b32.xlu0 %v6380, 86
      %v6439 = vpop.permute.xlu0 %6438
      %6440 = vrot.lane.b32.xlu0 %v6381, 86
      %v6441 = vpop.permute.xlu0 %6440
      %6442 = vrot.lane.b32.xlu0 %v6382, 86
      %v6443 = vpop.permute.xlu0 %6442
      %6444 = vrot.lane.b32.xlu0 %v6383, 86
      %v6445 = vpop.permute.xlu0 %6444
      %6446 = vrot.lane.b32.xlu0 %v6384, 86
      %v6447 = vpop.permute.xlu0 %6446
      %6448 = vrot.lane.b32.xlu0 %v6385, 86
      %v6449 = vpop.permute.xlu0 %6448
      %6450 = vrot.lane.b32.xlu0 %v6386, 86
      %v6451 = vpop.permute.xlu0 %6450
      %6452 = vrot.lane.b32.xlu0 %v6387, 86
      %v6453 = vpop.permute.xlu0 %6452
      %6454 = vrot.lane.b32.xlu0 %v6388, 86
      %v6455 = vpop.permute.xlu0 %6454
      %6456 = vrot.lane.b32.xlu0 %v6389, 86
      %v6457 = vpop.permute.xlu0 %6456
      %6458 = vrot.lane.b32.xlu0 %v6390, 86
      %v6459 = vpop.permute.xlu0 %6458
      %6460 = vrot.lane.b32.xlu0 %v6391, 86
      %v6461 = vpop.permute.xlu0 %6460
      %6462 = vrot.lane.b32.xlu0 %v6392, 86
      %v6463 = vpop.permute.xlu0 %6462
      %6464 = vrot.lane.b32.xlu0 %v6393, 86
      %v6465 = vpop.permute.xlu0 %6464
      %vm6466 = vcmask 703488
      %v6467 = vsel %vm6466, %v6419, %v6421
      %v6468 = vsel %vm6466, %v6421, %v6423
      %v6469 = vsel %vm6466, %v6423, %v6425
      %v6470 = vsel %vm6466, %v6425, %v6427
      %v6471 = vsel %vm6466, %v6427, %v6429
      %v6472 = vsel %vm6466, %v6429, %v6431
      %v6473 = vsel %vm6466, %v6431, %v6433
      %v6474 = vsel %vm6466, %v6435, %v6437
      %v6475 = vsel %vm6466, %v6437, %v6439
      %v6476 = vsel %vm6466, %v6439, %v6441
      %v6477 = vsel %vm6466, %v6441, %v6443
      %v6478 = vsel %vm6466, %v6443, %v6445
      %v6479 = vsel %vm6466, %v6445, %v6447
      %v6480 = vsel %vm6466, %v6447, %v6449
      %v6481 = vsel %vm6466, %v6451, %v6453
      %v6482 = vsel %vm6466, %v6453, %v6455
      %v6483 = vsel %vm6466, %v6455, %v6457
      %v6484 = vsel %vm6466, %v6457, %v6459
      %v6485 = vsel %vm6466, %v6459, %v6461
      %v6486 = vsel %vm6466, %v6461, %v6463
      %v6487 = vsel %vm6466, %v6463, %v6465
      %v6509 = vadd.f32 %v6337, %v6467
      %v6510 = vadd.f32 %v6338, %v6468
      %v6511 = vadd.f32 %v6339, %v6469
      %v6512 = vadd.f32 %v6340, %v6470
      %v6513 = vadd.f32 %v6341, %v6471
      %v6514 = vadd.f32 %v6342, %v6472
      %v6515 = vadd.f32 %v6343, %v6473
      %v6516 = vadd.f32 %v6344, %v6474
      %v6517 = vadd.f32 %v6345, %v6475
      %v6518 = vadd.f32 %v6346, %v6476
      %v6519 = vadd.f32 %v6347, %v6477
      %v6520 = vadd.f32 %v6348, %v6478
      %v6521 = vadd.f32 %v6349, %v6479
      %v6522 = vadd.f32 %v6350, %v6480
      %v6523 = vadd.f32 %v6351, %v6481
      %v6524 = vadd.f32 %v6352, %v6482
      %v6525 = vadd.f32 %v6353, %v6483
      %v6526 = vadd.f32 %v6354, %v6484
      %v6527 = vadd.f32 %v6355, %v6485
      %v6528 = vadd.f32 %v6356, %v6486
      %v6529 = vadd.f32 %v6357, %v6487
      %6530 = vset.pattern.permute.xlu0 19
      %6531 = vperm.xlu0 %6530, %v2570
      %v6532 = vpop.permute.xlu0 %6531
      %6534 = vset.pattern.permute.xlu0 19
      %6535 = vperm.xlu0 %6534, %v2571
      %v6536 = vpop.permute.xlu0 %6535
      %6538 = vset.pattern.permute.xlu0 19
      %6539 = vperm.xlu0 %6538, %v2572
      %v6540 = vpop.permute.xlu0 %6539
      %v6542 = vmul.f32 %v6532, %v5474
      %v6543 = vmul.f32 %v6532, %v5475
      %v6544 = vmul.f32 %v6532, %v5476
      %v6545 = vmul.f32 %v6532, %v5477
      %v6546 = vmul.f32 %v6532, %v5478
      %v6547 = vmul.f32 %v6532, %v5479
      %v6548 = vmul.f32 %v6532, %v5480
      %v6549 = vmul.f32 %v6532, %v5481
      %v6550 = vmul.f32 %v6536, %v5482
      %v6551 = vmul.f32 %v6536, %v5483
      %v6552 = vmul.f32 %v6536, %v5484
      %v6553 = vmul.f32 %v6536, %v5485
      %v6554 = vmul.f32 %v6536, %v5486
      %v6555 = vmul.f32 %v6536, %v5487
      %v6556 = vmul.f32 %v6536, %v5488
      %v6557 = vmul.f32 %v6536, %v5489
      %v6558 = vmul.f32 %v6540, %v5490
      %v6559 = vmul.f32 %v6540, %v5491
      %v6560 = vmul.f32 %v6540, %v5492
      %v6561 = vmul.f32 %v6540, %v5493
      %v6562 = vmul.f32 %v6540, %v5494
      %v6563 = vmul.f32 %v6540, %v5495
      %v6564 = vmul.f32 %v6540, %v5496
      %v6565 = vmul.f32 %v6540, %v5497
      %6590 = vrot.lane.b32.xlu0 %v6542, 84
      %v6591 = vpop.permute.xlu0 %6590
      %6592 = vrot.lane.b32.xlu0 %v6543, 84
      %v6593 = vpop.permute.xlu0 %6592
      %6594 = vrot.lane.b32.xlu0 %v6544, 84
      %v6595 = vpop.permute.xlu0 %6594
      %6596 = vrot.lane.b32.xlu0 %v6545, 84
      %v6597 = vpop.permute.xlu0 %6596
      %6598 = vrot.lane.b32.xlu0 %v6546, 84
      %v6599 = vpop.permute.xlu0 %6598
      %6600 = vrot.lane.b32.xlu0 %v6547, 84
      %v6601 = vpop.permute.xlu0 %6600
      %6602 = vrot.lane.b32.xlu0 %v6548, 84
      %v6603 = vpop.permute.xlu0 %6602
      %6604 = vrot.lane.b32.xlu0 %v6549, 84
      %v6605 = vpop.permute.xlu0 %6604
      %6606 = vrot.lane.b32.xlu0 %v6550, 84
      %v6607 = vpop.permute.xlu0 %6606
      %6608 = vrot.lane.b32.xlu0 %v6551, 84
      %v6609 = vpop.permute.xlu0 %6608
      %6610 = vrot.lane.b32.xlu0 %v6552, 84
      %v6611 = vpop.permute.xlu0 %6610
      %6612 = vrot.lane.b32.xlu0 %v6553, 84
      %v6613 = vpop.permute.xlu0 %6612
      %6614 = vrot.lane.b32.xlu0 %v6554, 84
      %v6615 = vpop.permute.xlu0 %6614
      %6616 = vrot.lane.b32.xlu0 %v6555, 84
      %v6617 = vpop.permute.xlu0 %6616
      %6618 = vrot.lane.b32.xlu0 %v6556, 84
      %v6619 = vpop.permute.xlu0 %6618
      %6620 = vrot.lane.b32.xlu0 %v6557, 84
      %v6621 = vpop.permute.xlu0 %6620
      %6622 = vrot.lane.b32.xlu0 %v6558, 84
      %v6623 = vpop.permute.xlu0 %6622
      %6624 = vrot.lane.b32.xlu0 %v6559, 84
      %v6625 = vpop.permute.xlu0 %6624
      %6626 = vrot.lane.b32.xlu0 %v6560, 84
      %v6627 = vpop.permute.xlu0 %6626
      %6628 = vrot.lane.b32.xlu0 %v6561, 84
      %v6629 = vpop.permute.xlu0 %6628
      %6630 = vrot.lane.b32.xlu0 %v6562, 84
      %v6631 = vpop.permute.xlu0 %6630
      %6632 = vrot.lane.b32.xlu0 %v6563, 84
      %v6633 = vpop.permute.xlu0 %6632
      %6634 = vrot.lane.b32.xlu0 %v6564, 84
      %v6635 = vpop.permute.xlu0 %6634
      %6636 = vrot.lane.b32.xlu0 %v6565, 84
      %v6637 = vpop.permute.xlu0 %6636
      %v6638 = vsel %vm3518, %v6591, %v6593
      %v6639 = vsel %vm3518, %v6593, %v6595
      %v6640 = vsel %vm3518, %v6595, %v6597
      %v6641 = vsel %vm3518, %v6597, %v6599
      %v6642 = vsel %vm3518, %v6599, %v6601
      %v6643 = vsel %vm3518, %v6601, %v6603
      %v6644 = vsel %vm3518, %v6603, %v6605
      %v6645 = vsel %vm3518, %v6607, %v6609
      %v6646 = vsel %vm3518, %v6609, %v6611
      %v6647 = vsel %vm3518, %v6611, %v6613
      %v6648 = vsel %vm3518, %v6613, %v6615
      %v6649 = vsel %vm3518, %v6615, %v6617
      %v6650 = vsel %vm3518, %v6617, %v6619
      %v6651 = vsel %vm3518, %v6619, %v6621
      %v6652 = vsel %vm3518, %v6623, %v6625
      %v6653 = vsel %vm3518, %v6625, %v6627
      %v6654 = vsel %vm3518, %v6627, %v6629
      %v6655 = vsel %vm3518, %v6629, %v6631
      %v6656 = vsel %vm3518, %v6631, %v6633
      %v6657 = vsel %vm3518, %v6633, %v6635
      %v6658 = vsel %vm3518, %v6635, %v6637
      %v6680 = vadd.f32 %v6509, %v6638
      %v6681 = vadd.f32 %v6510, %v6639
      %v6682 = vadd.f32 %v6511, %v6640
      %v6683 = vadd.f32 %v6512, %v6641
      %v6684 = vadd.f32 %v6513, %v6642
      %v6685 = vadd.f32 %v6514, %v6643
      %v6686 = vadd.f32 %v6515, %v6644
      %v6687 = vadd.f32 %v6516, %v6645
      %v6688 = vadd.f32 %v6517, %v6646
      %v6689 = vadd.f32 %v6518, %v6647
      %v6690 = vadd.f32 %v6519, %v6648
      %v6691 = vadd.f32 %v6520, %v6649
      %v6692 = vadd.f32 %v6521, %v6650
      %v6693 = vadd.f32 %v6522, %v6651
      %v6694 = vadd.f32 %v6523, %v6652
      %v6695 = vadd.f32 %v6524, %v6653
      %v6696 = vadd.f32 %v6525, %v6654
      %v6697 = vadd.f32 %v6526, %v6655
      %v6698 = vadd.f32 %v6527, %v6656
      %v6699 = vadd.f32 %v6528, %v6657
      %v6700 = vadd.f32 %v6529, %v6658
      %6701 = vset.pattern.permute.xlu0 20
      %6702 = vperm.xlu0 %6701, %v2570
      %v6703 = vpop.permute.xlu0 %6702
      %6705 = vset.pattern.permute.xlu0 20
      %6706 = vperm.xlu0 %6705, %v2571
      %v6707 = vpop.permute.xlu0 %6706
      %6709 = vset.pattern.permute.xlu0 20
      %6710 = vperm.xlu0 %6709, %v2572
      %v6711 = vpop.permute.xlu0 %6710
      %v6713 = vmul.f32 %v6703, %v5474
      %v6714 = vmul.f32 %v6703, %v5475
      %v6715 = vmul.f32 %v6703, %v5476
      %v6716 = vmul.f32 %v6703, %v5477
      %v6717 = vmul.f32 %v6703, %v5478
      %v6718 = vmul.f32 %v6703, %v5479
      %v6719 = vmul.f32 %v6703, %v5480
      %v6720 = vmul.f32 %v6703, %v5481
      %v6721 = vmul.f32 %v6707, %v5482
      %v6722 = vmul.f32 %v6707, %v5483
      %v6723 = vmul.f32 %v6707, %v5484
      %v6724 = vmul.f32 %v6707, %v5485
      %v6725 = vmul.f32 %v6707, %v5486
      %v6726 = vmul.f32 %v6707, %v5487
      %v6727 = vmul.f32 %v6707, %v5488
      %v6728 = vmul.f32 %v6707, %v5489
      %v6729 = vmul.f32 %v6711, %v5490
      %v6730 = vmul.f32 %v6711, %v5491
      %v6731 = vmul.f32 %v6711, %v5492
      %v6732 = vmul.f32 %v6711, %v5493
      %v6733 = vmul.f32 %v6711, %v5494
      %v6734 = vmul.f32 %v6711, %v5495
      %v6735 = vmul.f32 %v6711, %v5496
      %v6736 = vmul.f32 %v6711, %v5497
      %6761 = vrot.lane.b32.xlu0 %v6713, 52
      %v6762 = vpop.permute.xlu0 %6761
      %6763 = vrot.lane.b32.xlu0 %v6714, 52
      %v6764 = vpop.permute.xlu0 %6763
      %6765 = vrot.lane.b32.xlu0 %v6715, 52
      %v6766 = vpop.permute.xlu0 %6765
      %6767 = vrot.lane.b32.xlu0 %v6716, 52
      %v6768 = vpop.permute.xlu0 %6767
      %6769 = vrot.lane.b32.xlu0 %v6717, 52
      %v6770 = vpop.permute.xlu0 %6769
      %6771 = vrot.lane.b32.xlu0 %v6718, 52
      %v6772 = vpop.permute.xlu0 %6771
      %6773 = vrot.lane.b32.xlu0 %v6719, 52
      %v6774 = vpop.permute.xlu0 %6773
      %6775 = vrot.lane.b32.xlu0 %v6720, 52
      %v6776 = vpop.permute.xlu0 %6775
      %6777 = vrot.lane.b32.xlu0 %v6721, 52
      %v6778 = vpop.permute.xlu0 %6777
      %6779 = vrot.lane.b32.xlu0 %v6722, 52
      %v6780 = vpop.permute.xlu0 %6779
      %6781 = vrot.lane.b32.xlu0 %v6723, 52
      %v6782 = vpop.permute.xlu0 %6781
      %6783 = vrot.lane.b32.xlu0 %v6724, 52
      %v6784 = vpop.permute.xlu0 %6783
      %6785 = vrot.lane.b32.xlu0 %v6725, 52
      %v6786 = vpop.permute.xlu0 %6785
      %6787 = vrot.lane.b32.xlu0 %v6726, 52
      %v6788 = vpop.permute.xlu0 %6787
      %6789 = vrot.lane.b32.xlu0 %v6727, 52
      %v6790 = vpop.permute.xlu0 %6789
      %6791 = vrot.lane.b32.xlu0 %v6728, 52
      %v6792 = vpop.permute.xlu0 %6791
      %6793 = vrot.lane.b32.xlu0 %v6729, 52
      %v6794 = vpop.permute.xlu0 %6793
      %6795 = vrot.lane.b32.xlu0 %v6730, 52
      %v6796 = vpop.permute.xlu0 %6795
      %6797 = vrot.lane.b32.xlu0 %v6731, 52
      %v6798 = vpop.permute.xlu0 %6797
      %6799 = vrot.lane.b32.xlu0 %v6732, 52
      %v6800 = vpop.permute.xlu0 %6799
      %6801 = vrot.lane.b32.xlu0 %v6733, 52
      %v6802 = vpop.permute.xlu0 %6801
      %6803 = vrot.lane.b32.xlu0 %v6734, 52
      %v6804 = vpop.permute.xlu0 %6803
      %6805 = vrot.lane.b32.xlu0 %v6735, 52
      %v6806 = vpop.permute.xlu0 %6805
      %6807 = vrot.lane.b32.xlu0 %v6736, 52
      %v6808 = vpop.permute.xlu0 %6807
      %vm6809 = vcmask 424960
      %v6810 = vsel %vm6809, %v6762, %v6764
      %v6811 = vsel %vm6809, %v6764, %v6766
      %v6812 = vsel %vm6809, %v6766, %v6768
      %v6813 = vsel %vm6809, %v6768, %v6770
      %v6814 = vsel %vm6809, %v6770, %v6772
      %v6815 = vsel %vm6809, %v6772, %v6774
      %v6816 = vsel %vm6809, %v6774, %v6776
      %v6817 = vsel %vm6809, %v6778, %v6780
      %v6818 = vsel %vm6809, %v6780, %v6782
      %v6819 = vsel %vm6809, %v6782, %v6784
      %v6820 = vsel %vm6809, %v6784, %v6786
      %v6821 = vsel %vm6809, %v6786, %v6788
      %v6822 = vsel %vm6809, %v6788, %v6790
      %v6823 = vsel %vm6809, %v6790, %v6792
      %v6824 = vsel %vm6809, %v6794, %v6796
      %v6825 = vsel %vm6809, %v6796, %v6798
      %v6826 = vsel %vm6809, %v6798, %v6800
      %v6827 = vsel %vm6809, %v6800, %v6802
      %v6828 = vsel %vm6809, %v6802, %v6804
      %v6829 = vsel %vm6809, %v6804, %v6806
      %v6830 = vsel %vm6809, %v6806, %v6808
      %v6852 = vadd.f32 %v6680, %v6810
      %v6853 = vadd.f32 %v6681, %v6811
      %v6854 = vadd.f32 %v6682, %v6812
      %v6855 = vadd.f32 %v6683, %v6813
      %v6856 = vadd.f32 %v6684, %v6814
      %v6857 = vadd.f32 %v6685, %v6815
      %v6858 = vadd.f32 %v6686, %v6816
      %v6859 = vadd.f32 %v6687, %v6817
      %v6860 = vadd.f32 %v6688, %v6818
      %v6861 = vadd.f32 %v6689, %v6819
      %v6862 = vadd.f32 %v6690, %v6820
      %v6863 = vadd.f32 %v6691, %v6821
      %v6864 = vadd.f32 %v6692, %v6822
      %v6865 = vadd.f32 %v6693, %v6823
      %v6866 = vadd.f32 %v6694, %v6824
      %v6867 = vadd.f32 %v6695, %v6825
      %v6868 = vadd.f32 %v6696, %v6826
      %v6869 = vadd.f32 %v6697, %v6827
      %v6870 = vadd.f32 %v6698, %v6828
      %v6871 = vadd.f32 %v6699, %v6829
      %v6872 = vadd.f32 %v6700, %v6830
      %6873 = vset.pattern.permute.xlu0 21
      %6874 = vperm.xlu0 %6873, %v2570
      %v6875 = vpop.permute.xlu0 %6874
      %6877 = vset.pattern.permute.xlu0 21
      %6878 = vperm.xlu0 %6877, %v2571
      %v6879 = vpop.permute.xlu0 %6878
      %6881 = vset.pattern.permute.xlu0 21
      %6882 = vperm.xlu0 %6881, %v2572
      %v6883 = vpop.permute.xlu0 %6882
      %v6885 = vmul.f32 %v6875, %v5474
      %v6886 = vmul.f32 %v6875, %v5475
      %v6887 = vmul.f32 %v6875, %v5476
      %v6888 = vmul.f32 %v6875, %v5477
      %v6889 = vmul.f32 %v6875, %v5478
      %v6890 = vmul.f32 %v6875, %v5479
      %v6891 = vmul.f32 %v6875, %v5480
      %v6892 = vmul.f32 %v6875, %v5481
      %v6893 = vmul.f32 %v6879, %v5482
      %v6894 = vmul.f32 %v6879, %v5483
      %v6895 = vmul.f32 %v6879, %v5484
      %v6896 = vmul.f32 %v6879, %v5485
      %v6897 = vmul.f32 %v6879, %v5486
      %v6898 = vmul.f32 %v6879, %v5487
      %v6899 = vmul.f32 %v6879, %v5488
      %v6900 = vmul.f32 %v6879, %v5489
      %v6901 = vmul.f32 %v6883, %v5490
      %v6902 = vmul.f32 %v6883, %v5491
      %v6903 = vmul.f32 %v6883, %v5492
      %v6904 = vmul.f32 %v6883, %v5493
      %v6905 = vmul.f32 %v6883, %v5494
      %v6906 = vmul.f32 %v6883, %v5495
      %v6907 = vmul.f32 %v6883, %v5496
      %v6908 = vmul.f32 %v6883, %v5497
      %6933 = vrot.lane.b32.xlu0 %v6885, 50
      %v6934 = vpop.permute.xlu0 %6933
      %6935 = vrot.lane.b32.xlu0 %v6886, 50
      %v6936 = vpop.permute.xlu0 %6935
      %6937 = vrot.lane.b32.xlu0 %v6887, 50
      %v6938 = vpop.permute.xlu0 %6937
      %6939 = vrot.lane.b32.xlu0 %v6888, 50
      %v6940 = vpop.permute.xlu0 %6939
      %6941 = vrot.lane.b32.xlu0 %v6889, 50
      %v6942 = vpop.permute.xlu0 %6941
      %6943 = vrot.lane.b32.xlu0 %v6890, 50
      %v6944 = vpop.permute.xlu0 %6943
      %6945 = vrot.lane.b32.xlu0 %v6891, 50
      %v6946 = vpop.permute.xlu0 %6945
      %6947 = vrot.lane.b32.xlu0 %v6892, 50
      %v6948 = vpop.permute.xlu0 %6947
      %6949 = vrot.lane.b32.xlu0 %v6893, 50
      %v6950 = vpop.permute.xlu0 %6949
      %6951 = vrot.lane.b32.xlu0 %v6894, 50
      %v6952 = vpop.permute.xlu0 %6951
      %6953 = vrot.lane.b32.xlu0 %v6895, 50
      %v6954 = vpop.permute.xlu0 %6953
      %6955 = vrot.lane.b32.xlu0 %v6896, 50
      %v6956 = vpop.permute.xlu0 %6955
      %6957 = vrot.lane.b32.xlu0 %v6897, 50
      %v6958 = vpop.permute.xlu0 %6957
      %6959 = vrot.lane.b32.xlu0 %v6898, 50
      %v6960 = vpop.permute.xlu0 %6959
      %6961 = vrot.lane.b32.xlu0 %v6899, 50
      %v6962 = vpop.permute.xlu0 %6961
      %6963 = vrot.lane.b32.xlu0 %v6900, 50
      %v6964 = vpop.permute.xlu0 %6963
      %6965 = vrot.lane.b32.xlu0 %v6901, 50
      %v6966 = vpop.permute.xlu0 %6965
      %6967 = vrot.lane.b32.xlu0 %v6902, 50
      %v6968 = vpop.permute.xlu0 %6967
      %6969 = vrot.lane.b32.xlu0 %v6903, 50
      %v6970 = vpop.permute.xlu0 %6969
      %6971 = vrot.lane.b32.xlu0 %v6904, 50
      %v6972 = vpop.permute.xlu0 %6971
      %6973 = vrot.lane.b32.xlu0 %v6905, 50
      %v6974 = vpop.permute.xlu0 %6973
      %6975 = vrot.lane.b32.xlu0 %v6906, 50
      %v6976 = vpop.permute.xlu0 %6975
      %6977 = vrot.lane.b32.xlu0 %v6907, 50
      %v6978 = vpop.permute.xlu0 %6977
      %6979 = vrot.lane.b32.xlu0 %v6908, 50
      %v6980 = vpop.permute.xlu0 %6979
      %vm6981 = vcmask 408576
      %v6982 = vsel %vm6981, %v6934, %v6936
      %v6983 = vsel %vm6981, %v6936, %v6938
      %v6984 = vsel %vm6981, %v6938, %v6940
      %v6985 = vsel %vm6981, %v6940, %v6942
      %v6986 = vsel %vm6981, %v6942, %v6944
      %v6987 = vsel %vm6981, %v6944, %v6946
      %v6988 = vsel %vm6981, %v6946, %v6948
      %v6989 = vsel %vm6981, %v6950, %v6952
      %v6990 = vsel %vm6981, %v6952, %v6954
      %v6991 = vsel %vm6981, %v6954, %v6956
      %v6992 = vsel %vm6981, %v6956, %v6958
      %v6993 = vsel %vm6981, %v6958, %v6960
      %v6994 = vsel %vm6981, %v6960, %v6962
      %v6995 = vsel %vm6981, %v6962, %v6964
      %v6996 = vsel %vm6981, %v6966, %v6968
      %v6997 = vsel %vm6981, %v6968, %v6970
      %v6998 = vsel %vm6981, %v6970, %v6972
      %v6999 = vsel %vm6981, %v6972, %v6974
      %v7000 = vsel %vm6981, %v6974, %v6976
      %v7001 = vsel %vm6981, %v6976, %v6978
      %v7002 = vsel %vm6981, %v6978, %v6980
      %v7024 = vadd.f32 %v6852, %v6982
      %v7025 = vadd.f32 %v6853, %v6983
      %v7026 = vadd.f32 %v6854, %v6984
      %v7027 = vadd.f32 %v6855, %v6985
      %v7028 = vadd.f32 %v6856, %v6986
      %v7029 = vadd.f32 %v6857, %v6987
      %v7030 = vadd.f32 %v6858, %v6988
      %v7031 = vadd.f32 %v6859, %v6989
      %v7032 = vadd.f32 %v6860, %v6990
      %v7033 = vadd.f32 %v6861, %v6991
      %v7034 = vadd.f32 %v6862, %v6992
      %v7035 = vadd.f32 %v6863, %v6993
      %v7036 = vadd.f32 %v6864, %v6994
      %v7037 = vadd.f32 %v6865, %v6995
      %v7038 = vadd.f32 %v6866, %v6996
      %v7039 = vadd.f32 %v6867, %v6997
      %v7040 = vadd.f32 %v6868, %v6998
      %v7041 = vadd.f32 %v6869, %v6999
      %v7042 = vadd.f32 %v6870, %v7000
      %v7043 = vadd.f32 %v6871, %v7001
      %v7044 = vadd.f32 %v6872, %v7002
      %7045 = vset.pattern.permute.xlu0 22
      %7046 = vperm.xlu0 %7045, %v2570
      %v7047 = vpop.permute.xlu0 %7046
      %7049 = vset.pattern.permute.xlu0 22
      %7050 = vperm.xlu0 %7049, %v2571
      %v7051 = vpop.permute.xlu0 %7050
      %7053 = vset.pattern.permute.xlu0 22
      %7054 = vperm.xlu0 %7053, %v2572
      %v7055 = vpop.permute.xlu0 %7054
      %v7057 = vmul.f32 %v7047, %v5474
      %v7058 = vmul.f32 %v7047, %v5475
      %v7059 = vmul.f32 %v7047, %v5476
      %v7060 = vmul.f32 %v7047, %v5477
      %v7061 = vmul.f32 %v7047, %v5478
      %v7062 = vmul.f32 %v7047, %v5479
      %v7063 = vmul.f32 %v7047, %v5480
      %v7064 = vmul.f32 %v7047, %v5481
      %v7065 = vmul.f32 %v7051, %v5482
      %v7066 = vmul.f32 %v7051, %v5483
      %v7067 = vmul.f32 %v7051, %v5484
      %v7068 = vmul.f32 %v7051, %v5485
      %v7069 = vmul.f32 %v7051, %v5486
      %v7070 = vmul.f32 %v7051, %v5487
      %v7071 = vmul.f32 %v7051, %v5488
      %v7072 = vmul.f32 %v7051, %v5489
      %v7073 = vmul.f32 %v7055, %v5490
      %v7074 = vmul.f32 %v7055, %v5491
      %v7075 = vmul.f32 %v7055, %v5492
      %v7076 = vmul.f32 %v7055, %v5493
      %v7077 = vmul.f32 %v7055, %v5494
      %v7078 = vmul.f32 %v7055, %v5495
      %v7079 = vmul.f32 %v7055, %v5496
      %v7080 = vmul.f32 %v7055, %v5497
      %7105 = vrot.lane.b32.xlu0 %v7057, 48
      %v7106 = vpop.permute.xlu0 %7105
      %7107 = vrot.lane.b32.xlu0 %v7058, 48
      %v7108 = vpop.permute.xlu0 %7107
      %7109 = vrot.lane.b32.xlu0 %v7059, 48
      %v7110 = vpop.permute.xlu0 %7109
      %7111 = vrot.lane.b32.xlu0 %v7060, 48
      %v7112 = vpop.permute.xlu0 %7111
      %7113 = vrot.lane.b32.xlu0 %v7061, 48
      %v7114 = vpop.permute.xlu0 %7113
      %7115 = vrot.lane.b32.xlu0 %v7062, 48
      %v7116 = vpop.permute.xlu0 %7115
      %7117 = vrot.lane.b32.xlu0 %v7063, 48
      %v7118 = vpop.permute.xlu0 %7117
      %7119 = vrot.lane.b32.xlu0 %v7064, 48
      %v7120 = vpop.permute.xlu0 %7119
      %7121 = vrot.lane.b32.xlu0 %v7065, 48
      %v7122 = vpop.permute.xlu0 %7121
      %7123 = vrot.lane.b32.xlu0 %v7066, 48
      %v7124 = vpop.permute.xlu0 %7123
      %7125 = vrot.lane.b32.xlu0 %v7067, 48
      %v7126 = vpop.permute.xlu0 %7125
      %7127 = vrot.lane.b32.xlu0 %v7068, 48
      %v7128 = vpop.permute.xlu0 %7127
      %7129 = vrot.lane.b32.xlu0 %v7069, 48
      %v7130 = vpop.permute.xlu0 %7129
      %7131 = vrot.lane.b32.xlu0 %v7070, 48
      %v7132 = vpop.permute.xlu0 %7131
      %7133 = vrot.lane.b32.xlu0 %v7071, 48
      %v7134 = vpop.permute.xlu0 %7133
      %7135 = vrot.lane.b32.xlu0 %v7072, 48
      %v7136 = vpop.permute.xlu0 %7135
      %7137 = vrot.lane.b32.xlu0 %v7073, 48
      %v7138 = vpop.permute.xlu0 %7137
      %7139 = vrot.lane.b32.xlu0 %v7074, 48
      %v7140 = vpop.permute.xlu0 %7139
      %7141 = vrot.lane.b32.xlu0 %v7075, 48
      %v7142 = vpop.permute.xlu0 %7141
      %7143 = vrot.lane.b32.xlu0 %v7076, 48
      %v7144 = vpop.permute.xlu0 %7143
      %7145 = vrot.lane.b32.xlu0 %v7077, 48
      %v7146 = vpop.permute.xlu0 %7145
      %7147 = vrot.lane.b32.xlu0 %v7078, 48
      %v7148 = vpop.permute.xlu0 %7147
      %7149 = vrot.lane.b32.xlu0 %v7079, 48
      %v7150 = vpop.permute.xlu0 %7149
      %7151 = vrot.lane.b32.xlu0 %v7080, 48
      %v7152 = vpop.permute.xlu0 %7151
      %vm7153 = vcmask 392192
      %v7154 = vsel %vm7153, %v7106, %v7108
      %v7155 = vsel %vm7153, %v7108, %v7110
      %v7156 = vsel %vm7153, %v7110, %v7112
      %v7157 = vsel %vm7153, %v7112, %v7114
      %v7158 = vsel %vm7153, %v7114, %v7116
      %v7159 = vsel %vm7153, %v7116, %v7118
      %v7160 = vsel %vm7153, %v7118, %v7120
      %v7161 = vsel %vm7153, %v7122, %v7124
      %v7162 = vsel %vm7153, %v7124, %v7126
      %v7163 = vsel %vm7153, %v7126, %v7128
      %v7164 = vsel %vm7153, %v7128, %v7130
      %v7165 = vsel %vm7153, %v7130, %v7132
      %v7166 = vsel %vm7153, %v7132, %v7134
      %v7167 = vsel %vm7153, %v7134, %v7136
      %v7168 = vsel %vm7153, %v7138, %v7140
      %v7169 = vsel %vm7153, %v7140, %v7142
      %v7170 = vsel %vm7153, %v7142, %v7144
      %v7171 = vsel %vm7153, %v7144, %v7146
      %v7172 = vsel %vm7153, %v7146, %v7148
      %v7173 = vsel %vm7153, %v7148, %v7150
      %v7174 = vsel %vm7153, %v7150, %v7152
      %v7196 = vadd.f32 %v7024, %v7154
      %v7197 = vadd.f32 %v7025, %v7155
      %v7198 = vadd.f32 %v7026, %v7156
      %v7199 = vadd.f32 %v7027, %v7157
      %v7200 = vadd.f32 %v7028, %v7158
      %v7201 = vadd.f32 %v7029, %v7159
      %v7202 = vadd.f32 %v7030, %v7160
      %v7203 = vadd.f32 %v7031, %v7161
      %v7204 = vadd.f32 %v7032, %v7162
      %v7205 = vadd.f32 %v7033, %v7163
      %v7206 = vadd.f32 %v7034, %v7164
      %v7207 = vadd.f32 %v7035, %v7165
      %v7208 = vadd.f32 %v7036, %v7166
      %v7209 = vadd.f32 %v7037, %v7167
      %v7210 = vadd.f32 %v7038, %v7168
      %v7211 = vadd.f32 %v7039, %v7169
      %v7212 = vadd.f32 %v7040, %v7170
      %v7213 = vadd.f32 %v7041, %v7171
      %v7214 = vadd.f32 %v7042, %v7172
      %v7215 = vadd.f32 %v7043, %v7173
      %v7216 = vadd.f32 %v7044, %v7174
      %7217 = vset.pattern.permute.xlu0 23
      %7218 = vperm.xlu0 %7217, %v2570
      %v7219 = vpop.permute.xlu0 %7218
      %7221 = vset.pattern.permute.xlu0 23
      %7222 = vperm.xlu0 %7221, %v2571
      %v7223 = vpop.permute.xlu0 %7222
      %7225 = vset.pattern.permute.xlu0 23
      %7226 = vperm.xlu0 %7225, %v2572
      %v7227 = vpop.permute.xlu0 %7226
      %v7229 = vmul.f32 %v7219, %v5474
      %v7230 = vmul.f32 %v7219, %v5475
      %v7231 = vmul.f32 %v7219, %v5476
      %v7232 = vmul.f32 %v7219, %v5477
      %v7233 = vmul.f32 %v7219, %v5478
      %v7234 = vmul.f32 %v7219, %v5479
      %v7235 = vmul.f32 %v7219, %v5480
      %v7236 = vmul.f32 %v7219, %v5481
      %v7237 = vmul.f32 %v7223, %v5482
      %v7238 = vmul.f32 %v7223, %v5483
      %v7239 = vmul.f32 %v7223, %v5484
      %v7240 = vmul.f32 %v7223, %v5485
      %v7241 = vmul.f32 %v7223, %v5486
      %v7242 = vmul.f32 %v7223, %v5487
      %v7243 = vmul.f32 %v7223, %v5488
      %v7244 = vmul.f32 %v7223, %v5489
      %v7245 = vmul.f32 %v7227, %v5490
      %v7246 = vmul.f32 %v7227, %v5491
      %v7247 = vmul.f32 %v7227, %v5492
      %v7248 = vmul.f32 %v7227, %v5493
      %v7249 = vmul.f32 %v7227, %v5494
      %v7250 = vmul.f32 %v7227, %v5495
      %v7251 = vmul.f32 %v7227, %v5496
      %v7252 = vmul.f32 %v7227, %v5497
      %7277 = vrot.lane.b32.xlu0 %v7229, 46
      %v7278 = vpop.permute.xlu0 %7277
      %7279 = vrot.lane.b32.xlu0 %v7230, 46
      %v7280 = vpop.permute.xlu0 %7279
      %7281 = vrot.lane.b32.xlu0 %v7231, 46
      %v7282 = vpop.permute.xlu0 %7281
      %7283 = vrot.lane.b32.xlu0 %v7232, 46
      %v7284 = vpop.permute.xlu0 %7283
      %7285 = vrot.lane.b32.xlu0 %v7233, 46
      %v7286 = vpop.permute.xlu0 %7285
      %7287 = vrot.lane.b32.xlu0 %v7234, 46
      %v7288 = vpop.permute.xlu0 %7287
      %7289 = vrot.lane.b32.xlu0 %v7235, 46
      %v7290 = vpop.permute.xlu0 %7289
      %7291 = vrot.lane.b32.xlu0 %v7236, 46
      %v7292 = vpop.permute.xlu0 %7291
      %7293 = vrot.lane.b32.xlu0 %v7237, 46
      %v7294 = vpop.permute.xlu0 %7293
      %7295 = vrot.lane.b32.xlu0 %v7238, 46
      %v7296 = vpop.permute.xlu0 %7295
      %7297 = vrot.lane.b32.xlu0 %v7239, 46
      %v7298 = vpop.permute.xlu0 %7297
      %7299 = vrot.lane.b32.xlu0 %v7240, 46
      %v7300 = vpop.permute.xlu0 %7299
      %7301 = vrot.lane.b32.xlu0 %v7241, 46
      %v7302 = vpop.permute.xlu0 %7301
      %7303 = vrot.lane.b32.xlu0 %v7242, 46
      %v7304 = vpop.permute.xlu0 %7303
      %7305 = vrot.lane.b32.xlu0 %v7243, 46
      %v7306 = vpop.permute.xlu0 %7305
      %7307 = vrot.lane.b32.xlu0 %v7244, 46
      %v7308 = vpop.permute.xlu0 %7307
      %7309 = vrot.lane.b32.xlu0 %v7245, 46
      %v7310 = vpop.permute.xlu0 %7309
      %7311 = vrot.lane.b32.xlu0 %v7246, 46
      %v7312 = vpop.permute.xlu0 %7311
      %7313 = vrot.lane.b32.xlu0 %v7247, 46
      %v7314 = vpop.permute.xlu0 %7313
      %7315 = vrot.lane.b32.xlu0 %v7248, 46
      %v7316 = vpop.permute.xlu0 %7315
      %7317 = vrot.lane.b32.xlu0 %v7249, 46
      %v7318 = vpop.permute.xlu0 %7317
      %7319 = vrot.lane.b32.xlu0 %v7250, 46
      %v7320 = vpop.permute.xlu0 %7319
      %7321 = vrot.lane.b32.xlu0 %v7251, 46
      %v7322 = vpop.permute.xlu0 %7321
      %7323 = vrot.lane.b32.xlu0 %v7252, 46
      %v7324 = vpop.permute.xlu0 %7323
      %vm7325 = vcmask 375808
      %v7326 = vsel %vm7325, %v7278, %v7280
      %v7327 = vsel %vm7325, %v7280, %v7282
      %v7328 = vsel %vm7325, %v7282, %v7284
      %v7329 = vsel %vm7325, %v7284, %v7286
      %v7330 = vsel %vm7325, %v7286, %v7288
      %v7331 = vsel %vm7325, %v7288, %v7290
      %v7332 = vsel %vm7325, %v7290, %v7292
      %v7333 = vsel %vm7325, %v7294, %v7296
      %v7334 = vsel %vm7325, %v7296, %v7298
      %v7335 = vsel %vm7325, %v7298, %v7300
      %v7336 = vsel %vm7325, %v7300, %v7302
      %v7337 = vsel %vm7325, %v7302, %v7304
      %v7338 = vsel %vm7325, %v7304, %v7306
      %v7339 = vsel %vm7325, %v7306, %v7308
      %v7340 = vsel %vm7325, %v7310, %v7312
      %v7341 = vsel %vm7325, %v7312, %v7314
      %v7342 = vsel %vm7325, %v7314, %v7316
      %v7343 = vsel %vm7325, %v7316, %v7318
      %v7344 = vsel %vm7325, %v7318, %v7320
      %v7345 = vsel %vm7325, %v7320, %v7322
      %v7346 = vsel %vm7325, %v7322, %v7324
      %v7368 = vadd.f32 %v7196, %v7326
      %v7369 = vadd.f32 %v7197, %v7327
      %v7370 = vadd.f32 %v7198, %v7328
      %v7371 = vadd.f32 %v7199, %v7329
      %v7372 = vadd.f32 %v7200, %v7330
      %v7373 = vadd.f32 %v7201, %v7331
      %v7374 = vadd.f32 %v7202, %v7332
      %v7375 = vadd.f32 %v7203, %v7333
      %v7376 = vadd.f32 %v7204, %v7334
      %v7377 = vadd.f32 %v7205, %v7335
      %v7378 = vadd.f32 %v7206, %v7336
      %v7379 = vadd.f32 %v7207, %v7337
      %v7380 = vadd.f32 %v7208, %v7338
      %v7381 = vadd.f32 %v7209, %v7339
      %v7382 = vadd.f32 %v7210, %v7340
      %v7383 = vadd.f32 %v7211, %v7341
      %v7384 = vadd.f32 %v7212, %v7342
      %v7385 = vadd.f32 %v7213, %v7343
      %v7386 = vadd.f32 %v7214, %v7344
      %v7387 = vadd.f32 %v7215, %v7345
      %v7388 = vadd.f32 %v7216, %v7346
      %7389 = vset.pattern.permute.xlu0 24
      %7390 = vperm.xlu0 %7389, %v2570
      %v7391 = vpop.permute.xlu0 %7390
      %7393 = vset.pattern.permute.xlu0 24
      %7394 = vperm.xlu0 %7393, %v2571
      %v7395 = vpop.permute.xlu0 %7394
      %7397 = vset.pattern.permute.xlu0 24
      %7398 = vperm.xlu0 %7397, %v2572
      %v7399 = vpop.permute.xlu0 %7398
      %v7401 = vmul.f32 %v7391, %v5474
      %v7402 = vmul.f32 %v7391, %v5475
      %v7403 = vmul.f32 %v7391, %v5476
      %v7404 = vmul.f32 %v7391, %v5477
      %v7405 = vmul.f32 %v7391, %v5478
      %v7406 = vmul.f32 %v7391, %v5479
      %v7407 = vmul.f32 %v7391, %v5480
      %v7408 = vmul.f32 %v7391, %v5481
      %v7409 = vmul.f32 %v7395, %v5482
      %v7410 = vmul.f32 %v7395, %v5483
      %v7411 = vmul.f32 %v7395, %v5484
      %v7412 = vmul.f32 %v7395, %v5485
      %v7413 = vmul.f32 %v7395, %v5486
      %v7414 = vmul.f32 %v7395, %v5487
      %v7415 = vmul.f32 %v7395, %v5488
      %v7416 = vmul.f32 %v7395, %v5489
      %v7417 = vmul.f32 %v7399, %v5490
      %v7418 = vmul.f32 %v7399, %v5491
      %v7419 = vmul.f32 %v7399, %v5492
      %v7420 = vmul.f32 %v7399, %v5493
      %v7421 = vmul.f32 %v7399, %v5494
      %v7422 = vmul.f32 %v7399, %v5495
      %v7423 = vmul.f32 %v7399, %v5496
      %v7424 = vmul.f32 %v7399, %v5497
      %7449 = vrot.lane.b32.xlu0 %v7401, 44
      %v7450 = vpop.permute.xlu0 %7449
      %7451 = vrot.lane.b32.xlu0 %v7402, 44
      %v7452 = vpop.permute.xlu0 %7451
      %7453 = vrot.lane.b32.xlu0 %v7403, 44
      %v7454 = vpop.permute.xlu0 %7453
      %7455 = vrot.lane.b32.xlu0 %v7404, 44
      %v7456 = vpop.permute.xlu0 %7455
      %7457 = vrot.lane.b32.xlu0 %v7405, 44
      %v7458 = vpop.permute.xlu0 %7457
      %7459 = vrot.lane.b32.xlu0 %v7406, 44
      %v7460 = vpop.permute.xlu0 %7459
      %7461 = vrot.lane.b32.xlu0 %v7407, 44
      %v7462 = vpop.permute.xlu0 %7461
      %7463 = vrot.lane.b32.xlu0 %v7408, 44
      %v7464 = vpop.permute.xlu0 %7463
      %7465 = vrot.lane.b32.xlu0 %v7409, 44
      %v7466 = vpop.permute.xlu0 %7465
      %7467 = vrot.lane.b32.xlu0 %v7410, 44
      %v7468 = vpop.permute.xlu0 %7467
      %7469 = vrot.lane.b32.xlu0 %v7411, 44
      %v7470 = vpop.permute.xlu0 %7469
      %7471 = vrot.lane.b32.xlu0 %v7412, 44
      %v7472 = vpop.permute.xlu0 %7471
      %7473 = vrot.lane.b32.xlu0 %v7413, 44
      %v7474 = vpop.permute.xlu0 %7473
      %7475 = vrot.lane.b32.xlu0 %v7414, 44
      %v7476 = vpop.permute.xlu0 %7475
      %7477 = vrot.lane.b32.xlu0 %v7415, 44
      %v7478 = vpop.permute.xlu0 %7477
      %7479 = vrot.lane.b32.xlu0 %v7416, 44
      %v7480 = vpop.permute.xlu0 %7479
      %7481 = vrot.lane.b32.xlu0 %v7417, 44
      %v7482 = vpop.permute.xlu0 %7481
      %7483 = vrot.lane.b32.xlu0 %v7418, 44
      %v7484 = vpop.permute.xlu0 %7483
      %7485 = vrot.lane.b32.xlu0 %v7419, 44
      %v7486 = vpop.permute.xlu0 %7485
      %7487 = vrot.lane.b32.xlu0 %v7420, 44
      %v7488 = vpop.permute.xlu0 %7487
      %7489 = vrot.lane.b32.xlu0 %v7421, 44
      %v7490 = vpop.permute.xlu0 %7489
      %7491 = vrot.lane.b32.xlu0 %v7422, 44
      %v7492 = vpop.permute.xlu0 %7491
      %7493 = vrot.lane.b32.xlu0 %v7423, 44
      %v7494 = vpop.permute.xlu0 %7493
      %7495 = vrot.lane.b32.xlu0 %v7424, 44
      %v7496 = vpop.permute.xlu0 %7495
      %v7497 = vsel %vm4378, %v7450, %v7452
      %v7498 = vsel %vm4378, %v7452, %v7454
      %v7499 = vsel %vm4378, %v7454, %v7456
      %v7500 = vsel %vm4378, %v7456, %v7458
      %v7501 = vsel %vm4378, %v7458, %v7460
      %v7502 = vsel %vm4378, %v7460, %v7462
      %v7503 = vsel %vm4378, %v7462, %v7464
      %v7504 = vsel %vm4378, %v7466, %v7468
      %v7505 = vsel %vm4378, %v7468, %v7470
      %v7506 = vsel %vm4378, %v7470, %v7472
      %v7507 = vsel %vm4378, %v7472, %v7474
      %v7508 = vsel %vm4378, %v7474, %v7476
      %v7509 = vsel %vm4378, %v7476, %v7478
      %v7510 = vsel %vm4378, %v7478, %v7480
      %v7511 = vsel %vm4378, %v7482, %v7484
      %v7512 = vsel %vm4378, %v7484, %v7486
      %v7513 = vsel %vm4378, %v7486, %v7488
      %v7514 = vsel %vm4378, %v7488, %v7490
      %v7515 = vsel %vm4378, %v7490, %v7492
      %v7516 = vsel %vm4378, %v7492, %v7494
      %v7517 = vsel %vm4378, %v7494, %v7496
      %v7539 = vadd.f32 %v7368, %v7497
      %v7540 = vadd.f32 %v7369, %v7498
      %v7541 = vadd.f32 %v7370, %v7499
      %v7542 = vadd.f32 %v7371, %v7500
      %v7543 = vadd.f32 %v7372, %v7501
      %v7544 = vadd.f32 %v7373, %v7502
      %v7545 = vadd.f32 %v7374, %v7503
      %v7546 = vadd.f32 %v7375, %v7504
      %v7547 = vadd.f32 %v7376, %v7505
      %v7548 = vadd.f32 %v7377, %v7506
      %v7549 = vadd.f32 %v7378, %v7507
      %v7550 = vadd.f32 %v7379, %v7508
      %v7551 = vadd.f32 %v7380, %v7509
      %v7552 = vadd.f32 %v7381, %v7510
      %v7553 = vadd.f32 %v7382, %v7511
      %v7554 = vadd.f32 %v7383, %v7512
      %v7555 = vadd.f32 %v7384, %v7513
      %v7556 = vadd.f32 %v7385, %v7514
      %v7557 = vadd.f32 %v7386, %v7515
      %v7558 = vadd.f32 %v7387, %v7516
      %v7559 = vadd.f32 %v7388, %v7517
      %v7560 = vmul.f32 %v7539, %v3276
      %v7561 = vmul.f32 %v7540, %v3280
      %v7562 = vmul.f32 %v7541, %v3284
      %v7563 = vmul.f32 %v7542, %v3288
      %v7564 = vmul.f32 %v7543, %v3292
      %v7565 = vmul.f32 %v7544, %v3296
      %v7566 = vmul.f32 %v7545, %v3300
      %v7567 = vmul.f32 %v7546, %v3276
      %v7568 = vmul.f32 %v7547, %v3280
      %v7569 = vmul.f32 %v7548, %v3284
      %v7570 = vmul.f32 %v7549, %v3288
      %v7571 = vmul.f32 %v7550, %v3292
      %v7572 = vmul.f32 %v7551, %v3296
      %v7573 = vmul.f32 %v7552, %v3300
      %v7574 = vmul.f32 %v7553, %v3276
      %v7575 = vmul.f32 %v7554, %v3280
      %v7576 = vmul.f32 %v7555, %v3284
      %v7577 = vmul.f32 %v7556, %v3288
      %v7578 = vmul.f32 %v7557, %v3292
      %v7579 = vmul.f32 %v7558, %v3296
      %v7580 = vmul.f32 %v7559, %v3300
      %v7581 = vadd.f32 %v7560, %v7561
      %v7582 = vadd.f32 %v7581, %v7562
      %v7583 = vadd.f32 %v7582, %v7563
      %v7584 = vadd.f32 %v7583, %v7564
      %v7585 = vadd.f32 %v7584, %v7565
      %v7586 = vadd.f32 %v7585, %v7566
      %7587 = vadd.xlane.f32.xlu0 %v7586
      %v7588 = vpop.xlane.xlu0 %7587
      %v7589 = vadd.f32 %v7567, %v7568
      %v7590 = vadd.f32 %v7589, %v7569
      %v7591 = vadd.f32 %v7590, %v7570
      %v7592 = vadd.f32 %v7591, %v7571
      %v7593 = vadd.f32 %v7592, %v7572
      %v7594 = vadd.f32 %v7593, %v7573
      %7595 = vadd.xlane.f32.xlu0 %v7594
      %v7596 = vpop.xlane.xlu0 %7595
      %v7597 = vadd.f32 %v7574, %v7575
      %v7598 = vadd.f32 %v7597, %v7576
      %v7599 = vadd.f32 %v7598, %v7577
      %v7600 = vadd.f32 %v7599, %v7578
      %v7601 = vadd.f32 %v7600, %v7579
      %v7602 = vadd.f32 %v7601, %v7580
      %7603 = vadd.xlane.f32.xlu0 %v7602
      %v7604 = vpop.xlane.xlu0 %7603
      %v7605 = vmul.f32 %v7560, %v7560
      %v7606 = vmul.f32 %v7561, %v7561
      %v7607 = vmul.f32 %v7562, %v7562
      %v7608 = vmul.f32 %v7563, %v7563
      %v7609 = vmul.f32 %v7564, %v7564
      %v7610 = vmul.f32 %v7565, %v7565
      %v7611 = vmul.f32 %v7566, %v7566
      %v7612 = vmul.f32 %v7567, %v7567
      %v7613 = vmul.f32 %v7568, %v7568
      %v7614 = vmul.f32 %v7569, %v7569
      %v7615 = vmul.f32 %v7570, %v7570
      %v7616 = vmul.f32 %v7571, %v7571
      %v7617 = vmul.f32 %v7572, %v7572
      %v7618 = vmul.f32 %v7573, %v7573
      %v7619 = vmul.f32 %v7574, %v7574
      %v7620 = vmul.f32 %v7575, %v7575
      %v7621 = vmul.f32 %v7576, %v7576
      %v7622 = vmul.f32 %v7577, %v7577
      %v7623 = vmul.f32 %v7578, %v7578
      %v7624 = vmul.f32 %v7579, %v7579
      %v7625 = vmul.f32 %v7580, %v7580
      %v7626 = vadd.f32 %v7605, %v7606
      %v7627 = vadd.f32 %v7626, %v7607
      %v7628 = vadd.f32 %v7627, %v7608
      %v7629 = vadd.f32 %v7628, %v7609
      %v7630 = vadd.f32 %v7629, %v7610
      %v7631 = vadd.f32 %v7630, %v7611
      %7632 = vadd.xlane.f32.xlu0 %v7631
      %v7633 = vpop.xlane.xlu0 %7632
      %v7634 = vadd.f32 %v7612, %v7613
      %v7635 = vadd.f32 %v7634, %v7614
      %v7636 = vadd.f32 %v7635, %v7615
      %v7637 = vadd.f32 %v7636, %v7616
      %v7638 = vadd.f32 %v7637, %v7617
      %v7639 = vadd.f32 %v7638, %v7618
      %7640 = vadd.xlane.f32.xlu0 %v7639
      %v7641 = vpop.xlane.xlu0 %7640
      %v7642 = vadd.f32 %v7619, %v7620
      %v7643 = vadd.f32 %v7642, %v7621
      %v7644 = vadd.f32 %v7643, %v7622
      %v7645 = vadd.f32 %v7644, %v7623
      %v7646 = vadd.f32 %v7645, %v7624
      %v7647 = vadd.f32 %v7646, %v7625
      %7648 = vadd.xlane.f32.xlu0 %v7647
      %v7649 = vpop.xlane.xlu0 %7648
      %v7650 = vmul.f32 %v7588, 0.001953125
      %v7651 = vmul.f32 %v7596, 0.001953125
      %v7652 = vmul.f32 %v7604, 0.001953125
      %v7653 = vmul.f32 %v7633, 0.001953125
      %v7654 = vmul.f32 %v7641, 0.001953125
      %v7655 = vmul.f32 %v7649, 0.001953125
      %v7656 = vmul.f32 %v7650, %v7650
      %v7657 = vmul.f32 %v7651, %v7651
      %v7658 = vmul.f32 %v7652, %v7652
      %v7659 = vsub.f32 %v7653, %v7656
      %v7660 = vsub.f32 %v7654, %v7657
      %v7661 = vsub.f32 %v7655, %v7658
      %v7662 = vsub.f32 %v7560, %v7650
      %v7663 = vsub.f32 %v7561, %v7650
      %v7664 = vsub.f32 %v7562, %v7650
      %v7665 = vsub.f32 %v7563, %v7650
      %v7666 = vsub.f32 %v7564, %v7650
      %v7667 = vsub.f32 %v7565, %v7650
      %v7668 = vsub.f32 %v7566, %v7650
      %v7669 = vsub.f32 %v7567, %v7651
      %v7670 = vsub.f32 %v7568, %v7651
      %v7671 = vsub.f32 %v7569, %v7651
      %v7672 = vsub.f32 %v7570, %v7651
      %v7673 = vsub.f32 %v7571, %v7651
      %v7674 = vsub.f32 %v7572, %v7651
      %v7675 = vsub.f32 %v7573, %v7651
      %v7676 = vsub.f32 %v7574, %v7652
      %v7677 = vsub.f32 %v7575, %v7652
      %v7678 = vsub.f32 %v7576, %v7652
      %v7679 = vsub.f32 %v7577, %v7652
      %v7680 = vsub.f32 %v7578, %v7652
      %v7681 = vsub.f32 %v7579, %v7652
      %v7682 = vsub.f32 %v7580, %v7652
      %v7683 = vadd.f32 %v7659, 1e-05
      %v7684 = vadd.f32 %v7660, 1e-05
      %v7685 = vadd.f32 %v7661, 1e-05
      %v7686 = vrsqrt.pop %v7683
      %v7687 = vrsqrt.pop %v7684
      %v7688 = vrsqrt.pop %v7685
      %v7689 = vmul.f32 %v7662, %v7686
      %v7690 = vmul.f32 %v7663, %v7686
      %v7691 = vmul.f32 %v7664, %v7686
      %v7692 = vmul.f32 %v7665, %v7686
      %v7693 = vmul.f32 %v7666, %v7686
      %v7694 = vmul.f32 %v7667, %v7686
      %v7695 = vmul.f32 %v7668, %v7686
      %v7696 = vmul.f32 %v7669, %v7687
      %v7697 = vmul.f32 %v7670, %v7687
      %v7698 = vmul.f32 %v7671, %v7687
      %v7699 = vmul.f32 %v7672, %v7687
      %v7700 = vmul.f32 %v7673, %v7687
      %v7701 = vmul.f32 %v7674, %v7687
      %v7702 = vmul.f32 %v7675, %v7687
      %v7703 = vmul.f32 %v7676, %v7688
      %v7704 = vmul.f32 %v7677, %v7688
      %v7705 = vmul.f32 %v7678, %v7688
      %v7706 = vmul.f32 %v7679, %v7688
      %v7707 = vmul.f32 %v7680, %v7688
      %v7708 = vmul.f32 %v7681, %v7688
      %v7709 = vmul.f32 %v7682, %v7688
      %7711 = vset.pattern.permute.xlu0 0
      %7712 = vperm.xlu0 %7711, %v2573
      %v7713 = vpop.permute.xlu0 %7712
      %7716 = vset.pattern.permute.xlu0 0
      %7717 = vperm.xlu0 %7716, %v2574
      %v7718 = vpop.permute.xlu0 %7717
      %7721 = vset.pattern.permute.xlu0 0
      %7722 = vperm.xlu0 %7721, %v2575
      %v7723 = vpop.permute.xlu0 %7722
      %v7725 = vmul.f32 %v7689, %v7713
      %v7726 = vmul.f32 %v7690, %v7713
      %v7727 = vmul.f32 %v7691, %v7713
      %v7728 = vmul.f32 %v7692, %v7713
      %v7729 = vmul.f32 %v7693, %v7713
      %v7730 = vmul.f32 %v7694, %v7713
      %v7731 = vmul.f32 %v7695, %v7713
      %v7732 = vmul.f32 %v7696, %v7718
      %v7733 = vmul.f32 %v7697, %v7718
      %v7734 = vmul.f32 %v7698, %v7718
      %v7735 = vmul.f32 %v7699, %v7718
      %v7736 = vmul.f32 %v7700, %v7718
      %v7737 = vmul.f32 %v7701, %v7718
      %v7738 = vmul.f32 %v7702, %v7718
      %v7739 = vmul.f32 %v7703, %v7723
      %v7740 = vmul.f32 %v7704, %v7723
      %v7741 = vmul.f32 %v7705, %v7723
      %v7742 = vmul.f32 %v7706, %v7723
      %v7743 = vmul.f32 %v7707, %v7723
      %v7744 = vmul.f32 %v7708, %v7723
      %v7745 = vmul.f32 %v7709, %v7723
      %7746 = vset.pattern.permute.xlu0 1
      %7747 = vperm.xlu0 %7746, %v2573
      %v7748 = vpop.permute.xlu0 %7747
      %7750 = vset.pattern.permute.xlu0 1
      %7751 = vperm.xlu0 %7750, %v2574
      %v7752 = vpop.permute.xlu0 %7751
      %7754 = vset.pattern.permute.xlu0 1
      %7755 = vperm.xlu0 %7754, %v2575
      %v7756 = vpop.permute.xlu0 %7755
      %v7758 = vadd.f32 %v7725, %v7748
      %v7759 = vadd.f32 %v7726, %v7748
      %v7760 = vadd.f32 %v7727, %v7748
      %v7761 = vadd.f32 %v7728, %v7748
      %v7762 = vadd.f32 %v7729, %v7748
      %v7763 = vadd.f32 %v7730, %v7748
      %v7764 = vadd.f32 %v7731, %v7748
      %v7765 = vadd.f32 %v7732, %v7752
      %v7766 = vadd.f32 %v7733, %v7752
      %v7767 = vadd.f32 %v7734, %v7752
      %v7768 = vadd.f32 %v7735, %v7752
      %v7769 = vadd.f32 %v7736, %v7752
      %v7770 = vadd.f32 %v7737, %v7752
      %v7771 = vadd.f32 %v7738, %v7752
      %v7772 = vadd.f32 %v7739, %v7756
      %v7773 = vadd.f32 %v7740, %v7756
      %v7774 = vadd.f32 %v7741, %v7756
      %v7775 = vadd.f32 %v7742, %v7756
      %v7776 = vadd.f32 %v7743, %v7756
      %v7777 = vadd.f32 %v7744, %v7756
      %v7778 = vadd.f32 %v7745, %v7756
      %v7779 = vmax.f32 %v7758, 0.0
      %v7780 = vmax.f32 %v7759, 0.0
      %v7781 = vmax.f32 %v7760, 0.0
      %v7782 = vmax.f32 %v7761, 0.0
      %v7783 = vmax.f32 %v7762, 0.0
      %v7784 = vmax.f32 %v7763, 0.0
      %v7785 = vmax.f32 %v7764, 0.0
      %v7786 = vmax.f32 %v7765, 0.0
      %v7787 = vmax.f32 %v7766, 0.0
      %v7788 = vmax.f32 %v7767, 0.0
      %v7789 = vmax.f32 %v7768, 0.0
      %v7790 = vmax.f32 %v7769, 0.0
      %v7791 = vmax.f32 %v7770, 0.0
      %v7792 = vmax.f32 %v7771, 0.0
      %v7793 = vmax.f32 %v7772, 0.0
      %v7794 = vmax.f32 %v7773, 0.0
      %v7795 = vmax.f32 %v7774, 0.0
      %v7796 = vmax.f32 %v7775, 0.0
      %v7797 = vmax.f32 %v7776, 0.0
      %v7798 = vmax.f32 %v7777, 0.0
      %v7799 = vmax.f32 %v7778, 0.0
      %v7800 = vmin.f32 %v7779, 6.0
      %v7801 = vmin.f32 %v7780, 6.0
      %v7802 = vmin.f32 %v7781, 6.0
      %v7803 = vmin.f32 %v7782, 6.0
      %v7804 = vmin.f32 %v7783, 6.0
      %v7805 = vmin.f32 %v7784, 6.0
      %v7806 = vmin.f32 %v7785, 6.0
      %v7807 = vmin.f32 %v7786, 6.0
      %v7808 = vmin.f32 %v7787, 6.0
      %v7809 = vmin.f32 %v7788, 6.0
      %v7810 = vmin.f32 %v7789, 6.0
      %v7811 = vmin.f32 %v7790, 6.0
      %v7812 = vmin.f32 %v7791, 6.0
      %v7813 = vmin.f32 %v7792, 6.0
      %v7814 = vmin.f32 %v7793, 6.0
      %v7815 = vmin.f32 %v7794, 6.0
      %v7816 = vmin.f32 %v7795, 6.0
      %v7817 = vmin.f32 %v7796, 6.0
      %v7818 = vmin.f32 %v7797, 6.0
      %v7819 = vmin.f32 %v7798, 6.0
      %v7820 = vmin.f32 %v7799, 6.0
      %v7821 = vmul.f32 %v7800, %v3276
      %v7822 = vmul.f32 %v7801, %v3280
      %v7823 = vmul.f32 %v7802, %v3284
      %v7824 = vmul.f32 %v7803, %v3288
      %v7825 = vmul.f32 %v7804, %v3292
      %v7826 = vmul.f32 %v7805, %v3296
      %v7827 = vmul.f32 %v7806, %v3300
      %v7828 = vmul.f32 %v7807, %v3276
      %v7829 = vmul.f32 %v7808, %v3280
      %v7830 = vmul.f32 %v7809, %v3284
      %v7831 = vmul.f32 %v7810, %v3288
      %v7832 = vmul.f32 %v7811, %v3292
      %v7833 = vmul.f32 %v7812, %v3296
      %v7834 = vmul.f32 %v7813, %v3300
      %v7835 = vmul.f32 %v7814, %v3276
      %v7836 = vmul.f32 %v7815, %v3280
      %v7837 = vmul.f32 %v7816, %v3284
      %v7838 = vmul.f32 %v7817, %v3288
      %v7839 = vmul.f32 %v7818, %v3292
      %v7840 = vmul.f32 %v7819, %v3296
      %v7841 = vmul.f32 %v7820, %v3300
      %7843 = vset.pattern.permute.xlu0 0
      %7844 = vperm.xlu0 %7843, %v2576
      %v7845 = vpop.permute.xlu0 %7844
      %v7847 = vlaneseq
      %v7848 = vshrl.u32 %v7847, 7
      %v7849 = vsub.s32 0, %v7848
      %v7850 = vrot.slane %v7821, %v7849
      %v7851 = vlaneseq
      %v7852 = vshrl.u32 %v7851, 7
      %v7853 = vsub.s32 0, %v7852
      %v7854 = vrot.slane %v7822, %v7853
      %v7855 = vlaneseq
      %v7856 = vshrl.u32 %v7855, 7
      %v7857 = vsub.s32 0, %v7856
      %v7858 = vrot.slane %v7823, %v7857
      %v7859 = vlaneseq
      %v7860 = vshrl.u32 %v7859, 7
      %v7861 = vsub.s32 0, %v7860
      %v7862 = vrot.slane %v7824, %v7861
      %v7863 = vlaneseq
      %v7864 = vshrl.u32 %v7863, 7
      %v7865 = vsub.s32 0, %v7864
      %v7866 = vrot.slane %v7825, %v7865
      %v7867 = vlaneseq
      %v7868 = vshrl.u32 %v7867, 7
      %v7869 = vsub.s32 0, %v7868
      %v7870 = vrot.slane %v7826, %v7869
      %v7871 = vlaneseq
      %v7872 = vshrl.u32 %v7871, 7
      %v7873 = vsub.s32 0, %v7872
      %v7874 = vrot.slane %v7827, %v7873
      %v7875 = vmul.f32 %v7845, %v7850
      %v7876 = vmul.f32 %v7845, %v7854
      %v7877 = vmul.f32 %v7845, %v7858
      %v7878 = vmul.f32 %v7845, %v7862
      %v7879 = vmul.f32 %v7845, %v7866
      %v7880 = vmul.f32 %v7845, %v7870
      %v7881 = vmul.f32 %v7845, %v7874
      %7882 = vset.pattern.permute.xlu0 1
      %7883 = vperm.xlu0 %7882, %v2576
      %v7884 = vpop.permute.xlu0 %7883
      %v7886 = vlaneseq
      %v7887 = vshrl.u32 %v7886, 7
      %v7888 = vsub.s32 1, %v7887
      %v7889 = vrot.slane %v7821, %v7888
      %v7890 = vlaneseq
      %v7891 = vshrl.u32 %v7890, 7
      %v7892 = vsub.s32 1, %v7891
      %v7893 = vrot.slane %v7822, %v7892
      %v7894 = vlaneseq
      %v7895 = vshrl.u32 %v7894, 7
      %v7896 = vsub.s32 1, %v7895
      %v7897 = vrot.slane %v7823, %v7896
      %v7898 = vlaneseq
      %v7899 = vshrl.u32 %v7898, 7
      %v7900 = vsub.s32 1, %v7899
      %v7901 = vrot.slane %v7824, %v7900
      %v7902 = vlaneseq
      %v7903 = vshrl.u32 %v7902, 7
      %v7904 = vsub.s32 1, %v7903
      %v7905 = vrot.slane %v7825, %v7904
      %v7906 = vlaneseq
      %v7907 = vshrl.u32 %v7906, 7
      %v7908 = vsub.s32 1, %v7907
      %v7909 = vrot.slane %v7826, %v7908
      %v7910 = vlaneseq
      %v7911 = vshrl.u32 %v7910, 7
      %v7912 = vsub.s32 1, %v7911
      %v7913 = vrot.slane %v7827, %v7912
      %v7914 = vmul.f32 %v7884, %v7889
      %v7915 = vmul.f32 %v7884, %v7893
      %v7916 = vmul.f32 %v7884, %v7897
      %v7917 = vmul.f32 %v7884, %v7901
      %v7918 = vmul.f32 %v7884, %v7905
      %v7919 = vmul.f32 %v7884, %v7909
      %v7920 = vmul.f32 %v7884, %v7913
      %v7921 = vadd.f32 %v7875, %v7914
      %v7922 = vadd.f32 %v7876, %v7915
      %v7923 = vadd.f32 %v7877, %v7916
      %v7924 = vadd.f32 %v7878, %v7917
      %v7925 = vadd.f32 %v7879, %v7918
      %v7926 = vadd.f32 %v7880, %v7919
      %v7927 = vadd.f32 %v7881, %v7920
      %7928 = vset.pattern.permute.xlu0 2
      %7929 = vperm.xlu0 %7928, %v2576
      %v7930 = vpop.permute.xlu0 %7929
      %v7932 = vlaneseq
      %v7933 = vshrl.u32 %v7932, 7
      %v7934 = vsub.s32 2, %v7933
      %v7935 = vrot.slane %v7821, %v7934
      %v7936 = vlaneseq
      %v7937 = vshrl.u32 %v7936, 7
      %v7938 = vsub.s32 2, %v7937
      %v7939 = vrot.slane %v7822, %v7938
      %v7940 = vlaneseq
      %v7941 = vshrl.u32 %v7940, 7
      %v7942 = vsub.s32 2, %v7941
      %v7943 = vrot.slane %v7823, %v7942
      %v7944 = vlaneseq
      %v7945 = vshrl.u32 %v7944, 7
      %v7946 = vsub.s32 2, %v7945
      %v7947 = vrot.slane %v7824, %v7946
      %v7948 = vlaneseq
      %v7949 = vshrl.u32 %v7948, 7
      %v7950 = vsub.s32 2, %v7949
      %v7951 = vrot.slane %v7825, %v7950
      %v7952 = vlaneseq
      %v7953 = vshrl.u32 %v7952, 7
      %v7954 = vsub.s32 2, %v7953
      %v7955 = vrot.slane %v7826, %v7954
      %v7956 = vlaneseq
      %v7957 = vshrl.u32 %v7956, 7
      %v7958 = vsub.s32 2, %v7957
      %v7959 = vrot.slane %v7827, %v7958
      %v7960 = vmul.f32 %v7930, %v7935
      %v7961 = vmul.f32 %v7930, %v7939
      %v7962 = vmul.f32 %v7930, %v7943
      %v7963 = vmul.f32 %v7930, %v7947
      %v7964 = vmul.f32 %v7930, %v7951
      %v7965 = vmul.f32 %v7930, %v7955
      %v7966 = vmul.f32 %v7930, %v7959
      %v7967 = vadd.f32 %v7921, %v7960
      %v7968 = vadd.f32 %v7922, %v7961
      %v7969 = vadd.f32 %v7923, %v7962
      %v7970 = vadd.f32 %v7924, %v7963
      %v7971 = vadd.f32 %v7925, %v7964
      %v7972 = vadd.f32 %v7926, %v7965
      %v7973 = vadd.f32 %v7927, %v7966
      %7974 = vset.pattern.permute.xlu0 3
      %7975 = vperm.xlu0 %7974, %v2576
      %v7976 = vpop.permute.xlu0 %7975
      %v7978 = vlaneseq
      %v7979 = vshrl.u32 %v7978, 7
      %v7980 = vsub.s32 3, %v7979
      %v7981 = vrot.slane %v7821, %v7980
      %v7982 = vlaneseq
      %v7983 = vshrl.u32 %v7982, 7
      %v7984 = vsub.s32 3, %v7983
      %v7985 = vrot.slane %v7822, %v7984
      %v7986 = vlaneseq
      %v7987 = vshrl.u32 %v7986, 7
      %v7988 = vsub.s32 3, %v7987
      %v7989 = vrot.slane %v7823, %v7988
      %v7990 = vlaneseq
      %v7991 = vshrl.u32 %v7990, 7
      %v7992 = vsub.s32 3, %v7991
      %v7993 = vrot.slane %v7824, %v7992
      %v7994 = vlaneseq
      %v7995 = vshrl.u32 %v7994, 7
      %v7996 = vsub.s32 3, %v7995
      %v7997 = vrot.slane %v7825, %v7996
      %v7998 = vlaneseq
      %v7999 = vshrl.u32 %v7998, 7
      %v8000 = vsub.s32 3, %v7999
      %v8001 = vrot.slane %v7826, %v8000
      %v8002 = vlaneseq
      %v8003 = vshrl.u32 %v8002, 7
      %v8004 = vsub.s32 3, %v8003
      %v8005 = vrot.slane %v7827, %v8004
      %v8006 = vmul.f32 %v7976, %v7981
      %v8007 = vmul.f32 %v7976, %v7985
      %v8008 = vmul.f32 %v7976, %v7989
      %v8009 = vmul.f32 %v7976, %v7993
      %v8010 = vmul.f32 %v7976, %v7997
      %v8011 = vmul.f32 %v7976, %v8001
      %v8012 = vmul.f32 %v7976, %v8005
      %v8013 = vadd.f32 %v7967, %v8006
      %v8014 = vadd.f32 %v7968, %v8007
      %v8015 = vadd.f32 %v7969, %v8008
      %v8016 = vadd.f32 %v7970, %v8009
      %v8017 = vadd.f32 %v7971, %v8010
      %v8018 = vadd.f32 %v7972, %v8011
      %v8019 = vadd.f32 %v7973, %v8012
      %8020 = vset.pattern.permute.xlu0 4
      %8021 = vperm.xlu0 %8020, %v2576
      %v8022 = vpop.permute.xlu0 %8021
      %v8024 = vlaneseq
      %v8025 = vshrl.u32 %v8024, 7
      %v8026 = vsub.s32 4, %v8025
      %v8027 = vrot.slane %v7821, %v8026
      %v8028 = vlaneseq
      %v8029 = vshrl.u32 %v8028, 7
      %v8030 = vsub.s32 4, %v8029
      %v8031 = vrot.slane %v7822, %v8030
      %v8032 = vlaneseq
      %v8033 = vshrl.u32 %v8032, 7
      %v8034 = vsub.s32 4, %v8033
      %v8035 = vrot.slane %v7823, %v8034
      %v8036 = vlaneseq
      %v8037 = vshrl.u32 %v8036, 7
      %v8038 = vsub.s32 4, %v8037
      %v8039 = vrot.slane %v7824, %v8038
      %v8040 = vlaneseq
      %v8041 = vshrl.u32 %v8040, 7
      %v8042 = vsub.s32 4, %v8041
      %v8043 = vrot.slane %v7825, %v8042
      %v8044 = vlaneseq
      %v8045 = vshrl.u32 %v8044, 7
      %v8046 = vsub.s32 4, %v8045
      %v8047 = vrot.slane %v7826, %v8046
      %v8048 = vlaneseq
      %v8049 = vshrl.u32 %v8048, 7
      %v8050 = vsub.s32 4, %v8049
      %v8051 = vrot.slane %v7827, %v8050
      %v8052 = vmul.f32 %v8022, %v8027
      %v8053 = vmul.f32 %v8022, %v8031
      %v8054 = vmul.f32 %v8022, %v8035
      %v8055 = vmul.f32 %v8022, %v8039
      %v8056 = vmul.f32 %v8022, %v8043
      %v8057 = vmul.f32 %v8022, %v8047
      %v8058 = vmul.f32 %v8022, %v8051
      %v8059 = vadd.f32 %v8013, %v8052
      %v8060 = vadd.f32 %v8014, %v8053
      %v8061 = vadd.f32 %v8015, %v8054
      %v8062 = vadd.f32 %v8016, %v8055
      %v8063 = vadd.f32 %v8017, %v8056
      %v8064 = vadd.f32 %v8018, %v8057
      %v8065 = vadd.f32 %v8019, %v8058
      %8066 = vset.pattern.permute.xlu0 5
      %8067 = vperm.xlu0 %8066, %v2576
      %v8068 = vpop.permute.xlu0 %8067
      %v8070 = vlaneseq
      %v8071 = vshrl.u32 %v8070, 7
      %v8072 = vsub.s32 5, %v8071
      %v8073 = vrot.slane %v7821, %v8072
      %v8074 = vlaneseq
      %v8075 = vshrl.u32 %v8074, 7
      %v8076 = vsub.s32 5, %v8075
      %v8077 = vrot.slane %v7822, %v8076
      %v8078 = vlaneseq
      %v8079 = vshrl.u32 %v8078, 7
      %v8080 = vsub.s32 5, %v8079
      %v8081 = vrot.slane %v7823, %v8080
      %v8082 = vlaneseq
      %v8083 = vshrl.u32 %v8082, 7
      %v8084 = vsub.s32 5, %v8083
      %v8085 = vrot.slane %v7824, %v8084
      %v8086 = vlaneseq
      %v8087 = vshrl.u32 %v8086, 7
      %v8088 = vsub.s32 5, %v8087
      %v8089 = vrot.slane %v7825, %v8088
      %v8090 = vlaneseq
      %v8091 = vshrl.u32 %v8090, 7
      %v8092 = vsub.s32 5, %v8091
      %v8093 = vrot.slane %v7826, %v8092
      %v8094 = vlaneseq
      %v8095 = vshrl.u32 %v8094, 7
      %v8096 = vsub.s32 5, %v8095
      %v8097 = vrot.slane %v7827, %v8096
      %v8098 = vmul.f32 %v8068, %v8073
      %v8099 = vmul.f32 %v8068, %v8077
      %v8100 = vmul.f32 %v8068, %v8081
      %v8101 = vmul.f32 %v8068, %v8085
      %v8102 = vmul.f32 %v8068, %v8089
      %v8103 = vmul.f32 %v8068, %v8093
      %v8104 = vmul.f32 %v8068, %v8097
      %v8105 = vadd.f32 %v8059, %v8098
      %v8106 = vadd.f32 %v8060, %v8099
      %v8107 = vadd.f32 %v8061, %v8100
      %v8108 = vadd.f32 %v8062, %v8101
      %v8109 = vadd.f32 %v8063, %v8102
      %v8110 = vadd.f32 %v8064, %v8103
      %v8111 = vadd.f32 %v8065, %v8104
      %8112 = vset.pattern.permute.xlu0 6
      %8113 = vperm.xlu0 %8112, %v2576
      %v8114 = vpop.permute.xlu0 %8113
      %v8116 = vlaneseq
      %v8117 = vshrl.u32 %v8116, 7
      %v8118 = vsub.s32 6, %v8117
      %v8119 = vrot.slane %v7821, %v8118
      %v8120 = vlaneseq
      %v8121 = vshrl.u32 %v8120, 7
      %v8122 = vsub.s32 6, %v8121
      %v8123 = vrot.slane %v7822, %v8122
      %v8124 = vlaneseq
      %v8125 = vshrl.u32 %v8124, 7
      %v8126 = vsub.s32 6, %v8125
      %v8127 = vrot.slane %v7823, %v8126
      %v8128 = vlaneseq
      %v8129 = vshrl.u32 %v8128, 7
      %v8130 = vsub.s32 6, %v8129
      %v8131 = vrot.slane %v7824, %v8130
      %v8132 = vlaneseq
      %v8133 = vshrl.u32 %v8132, 7
      %v8134 = vsub.s32 6, %v8133
      %v8135 = vrot.slane %v7825, %v8134
      %v8136 = vlaneseq
      %v8137 = vshrl.u32 %v8136, 7
      %v8138 = vsub.s32 6, %v8137
      %v8139 = vrot.slane %v7826, %v8138
      %v8140 = vlaneseq
      %v8141 = vshrl.u32 %v8140, 7
      %v8142 = vsub.s32 6, %v8141
      %v8143 = vrot.slane %v7827, %v8142
      %v8144 = vmul.f32 %v8114, %v8119
      %v8145 = vmul.f32 %v8114, %v8123
      %v8146 = vmul.f32 %v8114, %v8127
      %v8147 = vmul.f32 %v8114, %v8131
      %v8148 = vmul.f32 %v8114, %v8135
      %v8149 = vmul.f32 %v8114, %v8139
      %v8150 = vmul.f32 %v8114, %v8143
      %v8151 = vadd.f32 %v8105, %v8144
      %v8152 = vadd.f32 %v8106, %v8145
      %v8153 = vadd.f32 %v8107, %v8146
      %v8154 = vadd.f32 %v8108, %v8147
      %v8155 = vadd.f32 %v8109, %v8148
      %v8156 = vadd.f32 %v8110, %v8149
      %v8157 = vadd.f32 %v8111, %v8150
      %8158 = vset.pattern.permute.xlu0 7
      %8159 = vperm.xlu0 %8158, %v2576
      %v8160 = vpop.permute.xlu0 %8159
      %v8162 = vlaneseq
      %v8163 = vshrl.u32 %v8162, 7
      %v8164 = vsub.s32 7, %v8163
      %v8165 = vrot.slane %v7821, %v8164
      %v8166 = vlaneseq
      %v8167 = vshrl.u32 %v8166, 7
      %v8168 = vsub.s32 7, %v8167
      %v8169 = vrot.slane %v7822, %v8168
      %v8170 = vlaneseq
      %v8171 = vshrl.u32 %v8170, 7
      %v8172 = vsub.s32 7, %v8171
      %v8173 = vrot.slane %v7823, %v8172
      %v8174 = vlaneseq
      %v8175 = vshrl.u32 %v8174, 7
      %v8176 = vsub.s32 7, %v8175
      %v8177 = vrot.slane %v7824, %v8176
      %v8178 = vlaneseq
      %v8179 = vshrl.u32 %v8178, 7
      %v8180 = vsub.s32 7, %v8179
      %v8181 = vrot.slane %v7825, %v8180
      %v8182 = vlaneseq
      %v8183 = vshrl.u32 %v8182, 7
      %v8184 = vsub.s32 7, %v8183
      %v8185 = vrot.slane %v7826, %v8184
      %v8186 = vlaneseq
      %v8187 = vshrl.u32 %v8186, 7
      %v8188 = vsub.s32 7, %v8187
      %v8189 = vrot.slane %v7827, %v8188
      %v8190 = vmul.f32 %v8160, %v8165
      %v8191 = vmul.f32 %v8160, %v8169
      %v8192 = vmul.f32 %v8160, %v8173
      %v8193 = vmul.f32 %v8160, %v8177
      %v8194 = vmul.f32 %v8160, %v8181
      %v8195 = vmul.f32 %v8160, %v8185
      %v8196 = vmul.f32 %v8160, %v8189
      %v8197 = vadd.f32 %v8151, %v8190
      %v8198 = vadd.f32 %v8152, %v8191
      %v8199 = vadd.f32 %v8153, %v8192
      %v8200 = vadd.f32 %v8154, %v8193
      %v8201 = vadd.f32 %v8155, %v8194
      %v8202 = vadd.f32 %v8156, %v8195
      %v8203 = vadd.f32 %v8157, %v8196
      %8204 = vset.pattern.permute.xlu0 8
      %8205 = vperm.xlu0 %8204, %v2576
      %v8206 = vpop.permute.xlu0 %8205
      %v8208 = vlaneseq
      %v8209 = vshrl.u32 %v8208, 7
      %v8210 = vsub.s32 0, %v8209
      %v8211 = vrot.slane %v7828, %v8210
      %v8212 = vlaneseq
      %v8213 = vshrl.u32 %v8212, 7
      %v8214 = vsub.s32 0, %v8213
      %v8215 = vrot.slane %v7829, %v8214
      %v8216 = vlaneseq
      %v8217 = vshrl.u32 %v8216, 7
      %v8218 = vsub.s32 0, %v8217
      %v8219 = vrot.slane %v7830, %v8218
      %v8220 = vlaneseq
      %v8221 = vshrl.u32 %v8220, 7
      %v8222 = vsub.s32 0, %v8221
      %v8223 = vrot.slane %v7831, %v8222
      %v8224 = vlaneseq
      %v8225 = vshrl.u32 %v8224, 7
      %v8226 = vsub.s32 0, %v8225
      %v8227 = vrot.slane %v7832, %v8226
      %v8228 = vlaneseq
      %v8229 = vshrl.u32 %v8228, 7
      %v8230 = vsub.s32 0, %v8229
      %v8231 = vrot.slane %v7833, %v8230
      %v8232 = vlaneseq
      %v8233 = vshrl.u32 %v8232, 7
      %v8234 = vsub.s32 0, %v8233
      %v8235 = vrot.slane %v7834, %v8234
      %v8236 = vmul.f32 %v8206, %v8211
      %v8237 = vmul.f32 %v8206, %v8215
      %v8238 = vmul.f32 %v8206, %v8219
      %v8239 = vmul.f32 %v8206, %v8223
      %v8240 = vmul.f32 %v8206, %v8227
      %v8241 = vmul.f32 %v8206, %v8231
      %v8242 = vmul.f32 %v8206, %v8235
      %v8243 = vadd.f32 %v8197, %v8236
      %v8244 = vadd.f32 %v8198, %v8237
      %v8245 = vadd.f32 %v8199, %v8238
      %v8246 = vadd.f32 %v8200, %v8239
      %v8247 = vadd.f32 %v8201, %v8240
      %v8248 = vadd.f32 %v8202, %v8241
      %v8249 = vadd.f32 %v8203, %v8242
      %8250 = vset.pattern.permute.xlu0 9
      %8251 = vperm.xlu0 %8250, %v2576
      %v8252 = vpop.permute.xlu0 %8251
      %v8254 = vlaneseq
      %v8255 = vshrl.u32 %v8254, 7
      %v8256 = vsub.s32 1, %v8255
      %v8257 = vrot.slane %v7828, %v8256
      %v8258 = vlaneseq
      %v8259 = vshrl.u32 %v8258, 7
      %v8260 = vsub.s32 1, %v8259
      %v8261 = vrot.slane %v7829, %v8260
      %v8262 = vlaneseq
      %v8263 = vshrl.u32 %v8262, 7
      %v8264 = vsub.s32 1, %v8263
      %v8265 = vrot.slane %v7830, %v8264
      %v8266 = vlaneseq
      %v8267 = vshrl.u32 %v8266, 7
      %v8268 = vsub.s32 1, %v8267
      %v8269 = vrot.slane %v7831, %v8268
      %v8270 = vlaneseq
      %v8271 = vshrl.u32 %v8270, 7
      %v8272 = vsub.s32 1, %v8271
      %v8273 = vrot.slane %v7832, %v8272
      %v8274 = vlaneseq
      %v8275 = vshrl.u32 %v8274, 7
      %v8276 = vsub.s32 1, %v8275
      %v8277 = vrot.slane %v7833, %v8276
      %v8278 = vlaneseq
      %v8279 = vshrl.u32 %v8278, 7
      %v8280 = vsub.s32 1, %v8279
      %v8281 = vrot.slane %v7834, %v8280
      %v8282 = vmul.f32 %v8252, %v8257
      %v8283 = vmul.f32 %v8252, %v8261
      %v8284 = vmul.f32 %v8252, %v8265
      %v8285 = vmul.f32 %v8252, %v8269
      %v8286 = vmul.f32 %v8252, %v8273
      %v8287 = vmul.f32 %v8252, %v8277
      %v8288 = vmul.f32 %v8252, %v8281
      %v8289 = vadd.f32 %v8243, %v8282
      %v8290 = vadd.f32 %v8244, %v8283
      %v8291 = vadd.f32 %v8245, %v8284
      %v8292 = vadd.f32 %v8246, %v8285
      %v8293 = vadd.f32 %v8247, %v8286
      %v8294 = vadd.f32 %v8248, %v8287
      %v8295 = vadd.f32 %v8249, %v8288
      %8296 = vset.pattern.permute.xlu0 10
      %8297 = vperm.xlu0 %8296, %v2576
      %v8298 = vpop.permute.xlu0 %8297
      %v8300 = vlaneseq
      %v8301 = vshrl.u32 %v8300, 7
      %v8302 = vsub.s32 2, %v8301
      %v8303 = vrot.slane %v7828, %v8302
      %v8304 = vlaneseq
      %v8305 = vshrl.u32 %v8304, 7
      %v8306 = vsub.s32 2, %v8305
      %v8307 = vrot.slane %v7829, %v8306
      %v8308 = vlaneseq
      %v8309 = vshrl.u32 %v8308, 7
      %v8310 = vsub.s32 2, %v8309
      %v8311 = vrot.slane %v7830, %v8310
      %v8312 = vlaneseq
      %v8313 = vshrl.u32 %v8312, 7
      %v8314 = vsub.s32 2, %v8313
      %v8315 = vrot.slane %v7831, %v8314
      %v8316 = vlaneseq
      %v8317 = vshrl.u32 %v8316, 7
      %v8318 = vsub.s32 2, %v8317
      %v8319 = vrot.slane %v7832, %v8318
      %v8320 = vlaneseq
      %v8321 = vshrl.u32 %v8320, 7
      %v8322 = vsub.s32 2, %v8321
      %v8323 = vrot.slane %v7833, %v8322
      %v8324 = vlaneseq
      %v8325 = vshrl.u32 %v8324, 7
      %v8326 = vsub.s32 2, %v8325
      %v8327 = vrot.slane %v7834, %v8326
      %v8328 = vmul.f32 %v8298, %v8303
      %v8329 = vmul.f32 %v8298, %v8307
      %v8330 = vmul.f32 %v8298, %v8311
      %v8331 = vmul.f32 %v8298, %v8315
      %v8332 = vmul.f32 %v8298, %v8319
      %v8333 = vmul.f32 %v8298, %v8323
      %v8334 = vmul.f32 %v8298, %v8327
      %v8335 = vadd.f32 %v8289, %v8328
      %v8336 = vadd.f32 %v8290, %v8329
      %v8337 = vadd.f32 %v8291, %v8330
      %v8338 = vadd.f32 %v8292, %v8331
      %v8339 = vadd.f32 %v8293, %v8332
      %v8340 = vadd.f32 %v8294, %v8333
      %v8341 = vadd.f32 %v8295, %v8334
      %8342 = vset.pattern.permute.xlu0 11
      %8343 = vperm.xlu0 %8342, %v2576
      %v8344 = vpop.permute.xlu0 %8343
      %v8346 = vlaneseq
      %v8347 = vshrl.u32 %v8346, 7
      %v8348 = vsub.s32 3, %v8347
      %v8349 = vrot.slane %v7828, %v8348
      %v8350 = vlaneseq
      %v8351 = vshrl.u32 %v8350, 7
      %v8352 = vsub.s32 3, %v8351
      %v8353 = vrot.slane %v7829, %v8352
      %v8354 = vlaneseq
      %v8355 = vshrl.u32 %v8354, 7
      %v8356 = vsub.s32 3, %v8355
      %v8357 = vrot.slane %v7830, %v8356
      %v8358 = vlaneseq
      %v8359 = vshrl.u32 %v8358, 7
      %v8360 = vsub.s32 3, %v8359
      %v8361 = vrot.slane %v7831, %v8360
      %v8362 = vlaneseq
      %v8363 = vshrl.u32 %v8362, 7
      %v8364 = vsub.s32 3, %v8363
      %v8365 = vrot.slane %v7832, %v8364
      %v8366 = vlaneseq
      %v8367 = vshrl.u32 %v8366, 7
      %v8368 = vsub.s32 3, %v8367
      %v8369 = vrot.slane %v7833, %v8368
      %v8370 = vlaneseq
      %v8371 = vshrl.u32 %v8370, 7
      %v8372 = vsub.s32 3, %v8371
      %v8373 = vrot.slane %v7834, %v8372
      %v8374 = vmul.f32 %v8344, %v8349
      %v8375 = vmul.f32 %v8344, %v8353
      %v8376 = vmul.f32 %v8344, %v8357
      %v8377 = vmul.f32 %v8344, %v8361
      %v8378 = vmul.f32 %v8344, %v8365
      %v8379 = vmul.f32 %v8344, %v8369
      %v8380 = vmul.f32 %v8344, %v8373
      %v8381 = vadd.f32 %v8335, %v8374
      %v8382 = vadd.f32 %v8336, %v8375
      %v8383 = vadd.f32 %v8337, %v8376
      %v8384 = vadd.f32 %v8338, %v8377
      %v8385 = vadd.f32 %v8339, %v8378
      %v8386 = vadd.f32 %v8340, %v8379
      %v8387 = vadd.f32 %v8341, %v8380
      %8388 = vset.pattern.permute.xlu0 12
      %8389 = vperm.xlu0 %8388, %v2576
      %v8390 = vpop.permute.xlu0 %8389
      %v8392 = vlaneseq
      %v8393 = vshrl.u32 %v8392, 7
      %v8394 = vsub.s32 4, %v8393
      %v8395 = vrot.slane %v7828, %v8394
      %v8396 = vlaneseq
      %v8397 = vshrl.u32 %v8396, 7
      %v8398 = vsub.s32 4, %v8397
      %v8399 = vrot.slane %v7829, %v8398
      %v8400 = vlaneseq
      %v8401 = vshrl.u32 %v8400, 7
      %v8402 = vsub.s32 4, %v8401
      %v8403 = vrot.slane %v7830, %v8402
      %v8404 = vlaneseq
      %v8405 = vshrl.u32 %v8404, 7
      %v8406 = vsub.s32 4, %v8405
      %v8407 = vrot.slane %v7831, %v8406
      %v8408 = vlaneseq
      %v8409 = vshrl.u32 %v8408, 7
      %v8410 = vsub.s32 4, %v8409
      %v8411 = vrot.slane %v7832, %v8410
      %v8412 = vlaneseq
      %v8413 = vshrl.u32 %v8412, 7
      %v8414 = vsub.s32 4, %v8413
      %v8415 = vrot.slane %v7833, %v8414
      %v8416 = vlaneseq
      %v8417 = vshrl.u32 %v8416, 7
      %v8418 = vsub.s32 4, %v8417
      %v8419 = vrot.slane %v7834, %v8418
      %v8420 = vmul.f32 %v8390, %v8395
      %v8421 = vmul.f32 %v8390, %v8399
      %v8422 = vmul.f32 %v8390, %v8403
      %v8423 = vmul.f32 %v8390, %v8407
      %v8424 = vmul.f32 %v8390, %v8411
      %v8425 = vmul.f32 %v8390, %v8415
      %v8426 = vmul.f32 %v8390, %v8419
      %v8427 = vadd.f32 %v8381, %v8420
      %v8428 = vadd.f32 %v8382, %v8421
      %v8429 = vadd.f32 %v8383, %v8422
      %v8430 = vadd.f32 %v8384, %v8423
      %v8431 = vadd.f32 %v8385, %v8424
      %v8432 = vadd.f32 %v8386, %v8425
      %v8433 = vadd.f32 %v8387, %v8426
      %8434 = vset.pattern.permute.xlu0 13
      %8435 = vperm.xlu0 %8434, %v2576
      %v8436 = vpop.permute.xlu0 %8435
      %v8438 = vlaneseq
      %v8439 = vshrl.u32 %v8438, 7
      %v8440 = vsub.s32 5, %v8439
      %v8441 = vrot.slane %v7828, %v8440
      %v8442 = vlaneseq
      %v8443 = vshrl.u32 %v8442, 7
      %v8444 = vsub.s32 5, %v8443
      %v8445 = vrot.slane %v7829, %v8444
      %v8446 = vlaneseq
      %v8447 = vshrl.u32 %v8446, 7
      %v8448 = vsub.s32 5, %v8447
      %v8449 = vrot.slane %v7830, %v8448
      %v8450 = vlaneseq
      %v8451 = vshrl.u32 %v8450, 7
      %v8452 = vsub.s32 5, %v8451
      %v8453 = vrot.slane %v7831, %v8452
      %v8454 = vlaneseq
      %v8455 = vshrl.u32 %v8454, 7
      %v8456 = vsub.s32 5, %v8455
      %v8457 = vrot.slane %v7832, %v8456
      %v8458 = vlaneseq
      %v8459 = vshrl.u32 %v8458, 7
      %v8460 = vsub.s32 5, %v8459
      %v8461 = vrot.slane %v7833, %v8460
      %v8462 = vlaneseq
      %v8463 = vshrl.u32 %v8462, 7
      %v8464 = vsub.s32 5, %v8463
      %v8465 = vrot.slane %v7834, %v8464
      %v8466 = vmul.f32 %v8436, %v8441
      %v8467 = vmul.f32 %v8436, %v8445
      %v8468 = vmul.f32 %v8436, %v8449
      %v8469 = vmul.f32 %v8436, %v8453
      %v8470 = vmul.f32 %v8436, %v8457
      %v8471 = vmul.f32 %v8436, %v8461
      %v8472 = vmul.f32 %v8436, %v8465
      %v8473 = vadd.f32 %v8427, %v8466
      %v8474 = vadd.f32 %v8428, %v8467
      %v8475 = vadd.f32 %v8429, %v8468
      %v8476 = vadd.f32 %v8430, %v8469
      %v8477 = vadd.f32 %v8431, %v8470
      %v8478 = vadd.f32 %v8432, %v8471
      %v8479 = vadd.f32 %v8433, %v8472
      %8480 = vset.pattern.permute.xlu0 14
      %8481 = vperm.xlu0 %8480, %v2576
      %v8482 = vpop.permute.xlu0 %8481
      %v8484 = vlaneseq
      %v8485 = vshrl.u32 %v8484, 7
      %v8486 = vsub.s32 6, %v8485
      %v8487 = vrot.slane %v7828, %v8486
      %v8488 = vlaneseq
      %v8489 = vshrl.u32 %v8488, 7
      %v8490 = vsub.s32 6, %v8489
      %v8491 = vrot.slane %v7829, %v8490
      %v8492 = vlaneseq
      %v8493 = vshrl.u32 %v8492, 7
      %v8494 = vsub.s32 6, %v8493
      %v8495 = vrot.slane %v7830, %v8494
      %v8496 = vlaneseq
      %v8497 = vshrl.u32 %v8496, 7
      %v8498 = vsub.s32 6, %v8497
      %v8499 = vrot.slane %v7831, %v8498
      %v8500 = vlaneseq
      %v8501 = vshrl.u32 %v8500, 7
      %v8502 = vsub.s32 6, %v8501
      %v8503 = vrot.slane %v7832, %v8502
      %v8504 = vlaneseq
      %v8505 = vshrl.u32 %v8504, 7
      %v8506 = vsub.s32 6, %v8505
      %v8507 = vrot.slane %v7833, %v8506
      %v8508 = vlaneseq
      %v8509 = vshrl.u32 %v8508, 7
      %v8510 = vsub.s32 6, %v8509
      %v8511 = vrot.slane %v7834, %v8510
      %v8512 = vmul.f32 %v8482, %v8487
      %v8513 = vmul.f32 %v8482, %v8491
      %v8514 = vmul.f32 %v8482, %v8495
      %v8515 = vmul.f32 %v8482, %v8499
      %v8516 = vmul.f32 %v8482, %v8503
      %v8517 = vmul.f32 %v8482, %v8507
      %v8518 = vmul.f32 %v8482, %v8511
      %v8519 = vadd.f32 %v8473, %v8512
      %v8520 = vadd.f32 %v8474, %v8513
      %v8521 = vadd.f32 %v8475, %v8514
      %v8522 = vadd.f32 %v8476, %v8515
      %v8523 = vadd.f32 %v8477, %v8516
      %v8524 = vadd.f32 %v8478, %v8517
      %v8525 = vadd.f32 %v8479, %v8518
      %8526 = vset.pattern.permute.xlu0 15
      %8527 = vperm.xlu0 %8526, %v2576
      %v8528 = vpop.permute.xlu0 %8527
      %v8530 = vlaneseq
      %v8531 = vshrl.u32 %v8530, 7
      %v8532 = vsub.s32 7, %v8531
      %v8533 = vrot.slane %v7828, %v8532
      %v8534 = vlaneseq
      %v8535 = vshrl.u32 %v8534, 7
      %v8536 = vsub.s32 7, %v8535
      %v8537 = vrot.slane %v7829, %v8536
      %v8538 = vlaneseq
      %v8539 = vshrl.u32 %v8538, 7
      %v8540 = vsub.s32 7, %v8539
      %v8541 = vrot.slane %v7830, %v8540
      %v8542 = vlaneseq
      %v8543 = vshrl.u32 %v8542, 7
      %v8544 = vsub.s32 7, %v8543
      %v8545 = vrot.slane %v7831, %v8544
      %v8546 = vlaneseq
      %v8547 = vshrl.u32 %v8546, 7
      %v8548 = vsub.s32 7, %v8547
      %v8549 = vrot.slane %v7832, %v8548
      %v8550 = vlaneseq
      %v8551 = vshrl.u32 %v8550, 7
      %v8552 = vsub.s32 7, %v8551
      %v8553 = vrot.slane %v7833, %v8552
      %v8554 = vlaneseq
      %v8555 = vshrl.u32 %v8554, 7
      %v8556 = vsub.s32 7, %v8555
      %v8557 = vrot.slane %v7834, %v8556
      %v8558 = vmul.f32 %v8528, %v8533
      %v8559 = vmul.f32 %v8528, %v8537
      %v8560 = vmul.f32 %v8528, %v8541
      %v8561 = vmul.f32 %v8528, %v8545
      %v8562 = vmul.f32 %v8528, %v8549
      %v8563 = vmul.f32 %v8528, %v8553
      %v8564 = vmul.f32 %v8528, %v8557
      %v8565 = vadd.f32 %v8519, %v8558
      %v8566 = vadd.f32 %v8520, %v8559
      %v8567 = vadd.f32 %v8521, %v8560
      %v8568 = vadd.f32 %v8522, %v8561
      %v8569 = vadd.f32 %v8523, %v8562
      %v8570 = vadd.f32 %v8524, %v8563
      %v8571 = vadd.f32 %v8525, %v8564
      %8572 = vset.pattern.permute.xlu0 16
      %8573 = vperm.xlu0 %8572, %v2576
      %v8574 = vpop.permute.xlu0 %8573
      %v8576 = vlaneseq
      %v8577 = vshrl.u32 %v8576, 7
      %v8578 = vsub.s32 0, %v8577
      %v8579 = vrot.slane %v7835, %v8578
      %v8580 = vlaneseq
      %v8581 = vshrl.u32 %v8580, 7
      %v8582 = vsub.s32 0, %v8581
      %v8583 = vrot.slane %v7836, %v8582
      %v8584 = vlaneseq
      %v8585 = vshrl.u32 %v8584, 7
      %v8586 = vsub.s32 0, %v8585
      %v8587 = vrot.slane %v7837, %v8586
      %v8588 = vlaneseq
      %v8589 = vshrl.u32 %v8588, 7
      %v8590 = vsub.s32 0, %v8589
      %v8591 = vrot.slane %v7838, %v8590
      %v8592 = vlaneseq
      %v8593 = vshrl.u32 %v8592, 7
      %v8594 = vsub.s32 0, %v8593
      %v8595 = vrot.slane %v7839, %v8594
      %v8596 = vlaneseq
      %v8597 = vshrl.u32 %v8596, 7
      %v8598 = vsub.s32 0, %v8597
      %v8599 = vrot.slane %v7840, %v8598
      %v8600 = vlaneseq
      %v8601 = vshrl.u32 %v8600, 7
      %v8602 = vsub.s32 0, %v8601
      %v8603 = vrot.slane %v7841, %v8602
      %v8604 = vmul.f32 %v8574, %v8579
      %v8605 = vmul.f32 %v8574, %v8583
      %v8606 = vmul.f32 %v8574, %v8587
      %v8607 = vmul.f32 %v8574, %v8591
      %v8608 = vmul.f32 %v8574, %v8595
      %v8609 = vmul.f32 %v8574, %v8599
      %v8610 = vmul.f32 %v8574, %v8603
      %v8611 = vadd.f32 %v8565, %v8604
      %v8612 = vadd.f32 %v8566, %v8605
      %v8613 = vadd.f32 %v8567, %v8606
      %v8614 = vadd.f32 %v8568, %v8607
      %v8615 = vadd.f32 %v8569, %v8608
      %v8616 = vadd.f32 %v8570, %v8609
      %v8617 = vadd.f32 %v8571, %v8610
      %8618 = vset.pattern.permute.xlu0 17
      %8619 = vperm.xlu0 %8618, %v2576
      %v8620 = vpop.permute.xlu0 %8619
      %v8622 = vlaneseq
      %v8623 = vshrl.u32 %v8622, 7
      %v8624 = vsub.s32 1, %v8623
      %v8625 = vrot.slane %v7835, %v8624
      %v8626 = vlaneseq
      %v8627 = vshrl.u32 %v8626, 7
      %v8628 = vsub.s32 1, %v8627
      %v8629 = vrot.slane %v7836, %v8628
      %v8630 = vlaneseq
      %v8631 = vshrl.u32 %v8630, 7
      %v8632 = vsub.s32 1, %v8631
      %v8633 = vrot.slane %v7837, %v8632
      %v8634 = vlaneseq
      %v8635 = vshrl.u32 %v8634, 7
      %v8636 = vsub.s32 1, %v8635
      %v8637 = vrot.slane %v7838, %v8636
      %v8638 = vlaneseq
      %v8639 = vshrl.u32 %v8638, 7
      %v8640 = vsub.s32 1, %v8639
      %v8641 = vrot.slane %v7839, %v8640
      %v8642 = vlaneseq
      %v8643 = vshrl.u32 %v8642, 7
      %v8644 = vsub.s32 1, %v8643
      %v8645 = vrot.slane %v7840, %v8644
      %v8646 = vlaneseq
      %v8647 = vshrl.u32 %v8646, 7
      %v8648 = vsub.s32 1, %v8647
      %v8649 = vrot.slane %v7841, %v8648
      %v8650 = vmul.f32 %v8620, %v8625
      %v8651 = vmul.f32 %v8620, %v8629
      %v8652 = vmul.f32 %v8620, %v8633
      %v8653 = vmul.f32 %v8620, %v8637
      %v8654 = vmul.f32 %v8620, %v8641
      %v8655 = vmul.f32 %v8620, %v8645
      %v8656 = vmul.f32 %v8620, %v8649
      %v8657 = vadd.f32 %v8611, %v8650
      %v8658 = vadd.f32 %v8612, %v8651
      %v8659 = vadd.f32 %v8613, %v8652
      %v8660 = vadd.f32 %v8614, %v8653
      %v8661 = vadd.f32 %v8615, %v8654
      %v8662 = vadd.f32 %v8616, %v8655
      %v8663 = vadd.f32 %v8617, %v8656
      %8664 = vset.pattern.permute.xlu0 18
      %8665 = vperm.xlu0 %8664, %v2576
      %v8666 = vpop.permute.xlu0 %8665
      %v8668 = vlaneseq
      %v8669 = vshrl.u32 %v8668, 7
      %v8670 = vsub.s32 2, %v8669
      %v8671 = vrot.slane %v7835, %v8670
      %v8672 = vlaneseq
      %v8673 = vshrl.u32 %v8672, 7
      %v8674 = vsub.s32 2, %v8673
      %v8675 = vrot.slane %v7836, %v8674
      %v8676 = vlaneseq
      %v8677 = vshrl.u32 %v8676, 7
      %v8678 = vsub.s32 2, %v8677
      %v8679 = vrot.slane %v7837, %v8678
      %v8680 = vlaneseq
      %v8681 = vshrl.u32 %v8680, 7
      %v8682 = vsub.s32 2, %v8681
      %v8683 = vrot.slane %v7838, %v8682
      %v8684 = vlaneseq
      %v8685 = vshrl.u32 %v8684, 7
      %v8686 = vsub.s32 2, %v8685
      %v8687 = vrot.slane %v7839, %v8686
      %v8688 = vlaneseq
      %v8689 = vshrl.u32 %v8688, 7
      %v8690 = vsub.s32 2, %v8689
      %v8691 = vrot.slane %v7840, %v8690
      %v8692 = vlaneseq
      %v8693 = vshrl.u32 %v8692, 7
      %v8694 = vsub.s32 2, %v8693
      %v8695 = vrot.slane %v7841, %v8694
      %v8696 = vmul.f32 %v8666, %v8671
      %v8697 = vmul.f32 %v8666, %v8675
      %v8698 = vmul.f32 %v8666, %v8679
      %v8699 = vmul.f32 %v8666, %v8683
      %v8700 = vmul.f32 %v8666, %v8687
      %v8701 = vmul.f32 %v8666, %v8691
      %v8702 = vmul.f32 %v8666, %v8695
      %v8703 = vadd.f32 %v8657, %v8696
      %v8704 = vadd.f32 %v8658, %v8697
      %v8705 = vadd.f32 %v8659, %v8698
      %v8706 = vadd.f32 %v8660, %v8699
      %v8707 = vadd.f32 %v8661, %v8700
      %v8708 = vadd.f32 %v8662, %v8701
      %v8709 = vadd.f32 %v8663, %v8702
      %8710 = vset.pattern.permute.xlu0 19
      %8711 = vperm.xlu0 %8710, %v2576
      %v8712 = vpop.permute.xlu0 %8711
      %v8714 = vlaneseq
      %v8715 = vshrl.u32 %v8714, 7
      %v8716 = vsub.s32 3, %v8715
      %v8717 = vrot.slane %v7835, %v8716
      %v8718 = vlaneseq
      %v8719 = vshrl.u32 %v8718, 7
      %v8720 = vsub.s32 3, %v8719
      %v8721 = vrot.slane %v7836, %v8720
      %v8722 = vlaneseq
      %v8723 = vshrl.u32 %v8722, 7
      %v8724 = vsub.s32 3, %v8723
      %v8725 = vrot.slane %v7837, %v8724
      %v8726 = vlaneseq
      %v8727 = vshrl.u32 %v8726, 7
      %v8728 = vsub.s32 3, %v8727
      %v8729 = vrot.slane %v7838, %v8728
      %v8730 = vlaneseq
      %v8731 = vshrl.u32 %v8730, 7
      %v8732 = vsub.s32 3, %v8731
      %v8733 = vrot.slane %v7839, %v8732
      %v8734 = vlaneseq
      %v8735 = vshrl.u32 %v8734, 7
      %v8736 = vsub.s32 3, %v8735
      %v8737 = vrot.slane %v7840, %v8736
      %v8738 = vlaneseq
      %v8739 = vshrl.u32 %v8738, 7
      %v8740 = vsub.s32 3, %v8739
      %v8741 = vrot.slane %v7841, %v8740
      %v8742 = vmul.f32 %v8712, %v8717
      %v8743 = vmul.f32 %v8712, %v8721
      %v8744 = vmul.f32 %v8712, %v8725
      %v8745 = vmul.f32 %v8712, %v8729
      %v8746 = vmul.f32 %v8712, %v8733
      %v8747 = vmul.f32 %v8712, %v8737
      %v8748 = vmul.f32 %v8712, %v8741
      %v8749 = vadd.f32 %v8703, %v8742
      %v8750 = vadd.f32 %v8704, %v8743
      %v8751 = vadd.f32 %v8705, %v8744
      %v8752 = vadd.f32 %v8706, %v8745
      %v8753 = vadd.f32 %v8707, %v8746
      %v8754 = vadd.f32 %v8708, %v8747
      %v8755 = vadd.f32 %v8709, %v8748
      %8756 = vset.pattern.permute.xlu0 20
      %8757 = vperm.xlu0 %8756, %v2576
      %v8758 = vpop.permute.xlu0 %8757
      %v8760 = vlaneseq
      %v8761 = vshrl.u32 %v8760, 7
      %v8762 = vsub.s32 4, %v8761
      %v8763 = vrot.slane %v7835, %v8762
      %v8764 = vlaneseq
      %v8765 = vshrl.u32 %v8764, 7
      %v8766 = vsub.s32 4, %v8765
      %v8767 = vrot.slane %v7836, %v8766
      %v8768 = vlaneseq
      %v8769 = vshrl.u32 %v8768, 7
      %v8770 = vsub.s32 4, %v8769
      %v8771 = vrot.slane %v7837, %v8770
      %v8772 = vlaneseq
      %v8773 = vshrl.u32 %v8772, 7
      %v8774 = vsub.s32 4, %v8773
      %v8775 = vrot.slane %v7838, %v8774
      %v8776 = vlaneseq
      %v8777 = vshrl.u32 %v8776, 7
      %v8778 = vsub.s32 4, %v8777
      %v8779 = vrot.slane %v7839, %v8778
      %v8780 = vlaneseq
      %v8781 = vshrl.u32 %v8780, 7
      %v8782 = vsub.s32 4, %v8781
      %v8783 = vrot.slane %v7840, %v8782
      %v8784 = vlaneseq
      %v8785 = vshrl.u32 %v8784, 7
      %v8786 = vsub.s32 4, %v8785
      %v8787 = vrot.slane %v7841, %v8786
      %v8788 = vmul.f32 %v8758, %v8763
      %v8789 = vmul.f32 %v8758, %v8767
      %v8790 = vmul.f32 %v8758, %v8771
      %v8791 = vmul.f32 %v8758, %v8775
      %v8792 = vmul.f32 %v8758, %v8779
      %v8793 = vmul.f32 %v8758, %v8783
      %v8794 = vmul.f32 %v8758, %v8787
      %v8795 = vadd.f32 %v8749, %v8788
      %v8796 = vadd.f32 %v8750, %v8789
      %v8797 = vadd.f32 %v8751, %v8790
      %v8798 = vadd.f32 %v8752, %v8791
      %v8799 = vadd.f32 %v8753, %v8792
      %v8800 = vadd.f32 %v8754, %v8793
      %v8801 = vadd.f32 %v8755, %v8794
      %8802 = vset.pattern.permute.xlu0 21
      %8803 = vperm.xlu0 %8802, %v2576
      %v8804 = vpop.permute.xlu0 %8803
      %v8806 = vlaneseq
      %v8807 = vshrl.u32 %v8806, 7
      %v8808 = vsub.s32 5, %v8807
      %v8809 = vrot.slane %v7835, %v8808
      %v8810 = vlaneseq
      %v8811 = vshrl.u32 %v8810, 7
      %v8812 = vsub.s32 5, %v8811
      %v8813 = vrot.slane %v7836, %v8812
      %v8814 = vlaneseq
      %v8815 = vshrl.u32 %v8814, 7
      %v8816 = vsub.s32 5, %v8815
      %v8817 = vrot.slane %v7837, %v8816
      %v8818 = vlaneseq
      %v8819 = vshrl.u32 %v8818, 7
      %v8820 = vsub.s32 5, %v8819
      %v8821 = vrot.slane %v7838, %v8820
      %v8822 = vlaneseq
      %v8823 = vshrl.u32 %v8822, 7
      %v8824 = vsub.s32 5, %v8823
      %v8825 = vrot.slane %v7839, %v8824
      %v8826 = vlaneseq
      %v8827 = vshrl.u32 %v8826, 7
      %v8828 = vsub.s32 5, %v8827
      %v8829 = vrot.slane %v7840, %v8828
      %v8830 = vlaneseq
      %v8831 = vshrl.u32 %v8830, 7
      %v8832 = vsub.s32 5, %v8831
      %v8833 = vrot.slane %v7841, %v8832
      %v8834 = vmul.f32 %v8804, %v8809
      %v8835 = vmul.f32 %v8804, %v8813
      %v8836 = vmul.f32 %v8804, %v8817
      %v8837 = vmul.f32 %v8804, %v8821
      %v8838 = vmul.f32 %v8804, %v8825
      %v8839 = vmul.f32 %v8804, %v8829
      %v8840 = vmul.f32 %v8804, %v8833
      %v8841 = vadd.f32 %v8795, %v8834
      %v8842 = vadd.f32 %v8796, %v8835
      %v8843 = vadd.f32 %v8797, %v8836
      %v8844 = vadd.f32 %v8798, %v8837
      %v8845 = vadd.f32 %v8799, %v8838
      %v8846 = vadd.f32 %v8800, %v8839
      %v8847 = vadd.f32 %v8801, %v8840
      %8848 = vset.pattern.permute.xlu0 22
      %8849 = vperm.xlu0 %8848, %v2576
      %v8850 = vpop.permute.xlu0 %8849
      %v8852 = vlaneseq
      %v8853 = vshrl.u32 %v8852, 7
      %v8854 = vsub.s32 6, %v8853
      %v8855 = vrot.slane %v7835, %v8854
      %v8856 = vlaneseq
      %v8857 = vshrl.u32 %v8856, 7
      %v8858 = vsub.s32 6, %v8857
      %v8859 = vrot.slane %v7836, %v8858
      %v8860 = vlaneseq
      %v8861 = vshrl.u32 %v8860, 7
      %v8862 = vsub.s32 6, %v8861
      %v8863 = vrot.slane %v7837, %v8862
      %v8864 = vlaneseq
      %v8865 = vshrl.u32 %v8864, 7
      %v8866 = vsub.s32 6, %v8865
      %v8867 = vrot.slane %v7838, %v8866
      %v8868 = vlaneseq
      %v8869 = vshrl.u32 %v8868, 7
      %v8870 = vsub.s32 6, %v8869
      %v8871 = vrot.slane %v7839, %v8870
      %v8872 = vlaneseq
      %v8873 = vshrl.u32 %v8872, 7
      %v8874 = vsub.s32 6, %v8873
      %v8875 = vrot.slane %v7840, %v8874
      %v8876 = vlaneseq
      %v8877 = vshrl.u32 %v8876, 7
      %v8878 = vsub.s32 6, %v8877
      %v8879 = vrot.slane %v7841, %v8878
      %v8880 = vmul.f32 %v8850, %v8855
      %v8881 = vmul.f32 %v8850, %v8859
      %v8882 = vmul.f32 %v8850, %v8863
      %v8883 = vmul.f32 %v8850, %v8867
      %v8884 = vmul.f32 %v8850, %v8871
      %v8885 = vmul.f32 %v8850, %v8875
      %v8886 = vmul.f32 %v8850, %v8879
      %v8887 = vadd.f32 %v8841, %v8880
      %v8888 = vadd.f32 %v8842, %v8881
      %v8889 = vadd.f32 %v8843, %v8882
      %v8890 = vadd.f32 %v8844, %v8883
      %v8891 = vadd.f32 %v8845, %v8884
      %v8892 = vadd.f32 %v8846, %v8885
      %v8893 = vadd.f32 %v8847, %v8886
      %8894 = vset.pattern.permute.xlu0 23
      %8895 = vperm.xlu0 %8894, %v2576
      %v8896 = vpop.permute.xlu0 %8895
      %v8898 = vlaneseq
      %v8899 = vshrl.u32 %v8898, 7
      %v8900 = vsub.s32 7, %v8899
      %v8901 = vrot.slane %v7835, %v8900
      %v8902 = vlaneseq
      %v8903 = vshrl.u32 %v8902, 7
      %v8904 = vsub.s32 7, %v8903
      %v8905 = vrot.slane %v7836, %v8904
      %v8906 = vlaneseq
      %v8907 = vshrl.u32 %v8906, 7
      %v8908 = vsub.s32 7, %v8907
      %v8909 = vrot.slane %v7837, %v8908
      %v8910 = vlaneseq
      %v8911 = vshrl.u32 %v8910, 7
      %v8912 = vsub.s32 7, %v8911
      %v8913 = vrot.slane %v7838, %v8912
      %v8914 = vlaneseq
      %v8915 = vshrl.u32 %v8914, 7
      %v8916 = vsub.s32 7, %v8915
      %v8917 = vrot.slane %v7839, %v8916
      %v8918 = vlaneseq
      %v8919 = vshrl.u32 %v8918, 7
      %v8920 = vsub.s32 7, %v8919
      %v8921 = vrot.slane %v7840, %v8920
      %v8922 = vlaneseq
      %v8923 = vshrl.u32 %v8922, 7
      %v8924 = vsub.s32 7, %v8923
      %v8925 = vrot.slane %v7841, %v8924
      %v8926 = vmul.f32 %v8896, %v8901
      %v8927 = vmul.f32 %v8896, %v8905
      %v8928 = vmul.f32 %v8896, %v8909
      %v8929 = vmul.f32 %v8896, %v8913
      %v8930 = vmul.f32 %v8896, %v8917
      %v8931 = vmul.f32 %v8896, %v8921
      %v8932 = vmul.f32 %v8896, %v8925
      %v8933 = vadd.f32 %v8887, %v8926
      %v8934 = vadd.f32 %v8888, %v8927
      %v8935 = vadd.f32 %v8889, %v8928
      %v8936 = vadd.f32 %v8890, %v8929
      %v8937 = vadd.f32 %v8891, %v8930
      %v8938 = vadd.f32 %v8892, %v8931
      %v8939 = vadd.f32 %v8893, %v8932
      %v8940 = vstv %s71
      %v8941 = vmul.f32 %v2577, %v8940
      %vm8942 = vcmask 1043456
      %v8943 = vsel %vm8942, %v8933, 0.0
      %v8944 = vsel %vm8942, %v8934, 0.0
      %v8945 = vadd.f32 %v8943, %v8944
      %v8946 = vsel %vm8942, %v8935, 0.0
      %v8947 = vadd.f32 %v8945, %v8946
      %v8948 = vsel %vm8942, %v8936, 0.0
      %v8949 = vadd.f32 %v8947, %v8948
      %v8950 = vsel %vm8942, %v8937, 0.0
      %v8951 = vadd.f32 %v8949, %v8950
      %v8952 = vsel %vm8942, %v8938, 0.0
      %v8953 = vadd.f32 %v8951, %v8952
      %v8954 = vsel %vm8942, %v8939, 0.0
      %v8955 = vadd.f32 %v8953, %v8954
      %8956 = vadd.xlane.f32.xlu0 %v8955
      %v8957 = vpop.xlane.xlu0 %8956
      %v8958 = vmul.f32 %v8933, %v8933
      %v8959 = vmul.f32 %v8934, %v8934
      %v8960 = vmul.f32 %v8935, %v8935
      %v8961 = vmul.f32 %v8936, %v8936
      %v8962 = vmul.f32 %v8937, %v8937
      %v8963 = vmul.f32 %v8938, %v8938
      %v8964 = vmul.f32 %v8939, %v8939
      %v8965 = vsel %vm8942, %v8958, 0.0
      %v8966 = vsel %vm8942, %v8959, 0.0
      %v8967 = vadd.f32 %v8965, %v8966
      %v8968 = vsel %vm8942, %v8960, 0.0
      %v8969 = vadd.f32 %v8967, %v8968
      %v8970 = vsel %vm8942, %v8961, 0.0
      %v8971 = vadd.f32 %v8969, %v8970
      %v8972 = vsel %vm8942, %v8962, 0.0
      %v8973 = vadd.f32 %v8971, %v8972
      %v8974 = vsel %vm8942, %v8963, 0.0
      %v8975 = vadd.f32 %v8973, %v8974
      %v8976 = vsel %vm8942, %v8964, 0.0
      %v8977 = vadd.f32 %v8975, %v8976
      %8978 = vadd.xlane.f32.xlu0 %v8977
      %v8979 = vpop.xlane.xlu0 %8978
      %v8980 = vmul.f32 %v8957, 0.001953125
      %v8981 = vmul.f32 %v8979, 0.001953125
      %v8982 = vmul.f32 %v8980, %v8980
      %v8983 = vsub.f32 %v8981, %v8982
      %v8984 = vsub.f32 %v8933, %v8980
      %v8985 = vsub.f32 %v8934, %v8980
      %v8986 = vsub.f32 %v8935, %v8980
      %v8987 = vsub.f32 %v8936, %v8980
      %v8988 = vsub.f32 %v8937, %v8980
      %v8989 = vsub.f32 %v8938, %v8980
      %v8990 = vsub.f32 %v8939, %v8980
      %v8991 = vadd.f32 %v8983, 1e-05
      %v8992 = vrsqrt.pop %v8991
      %v8993 = vmul.f32 %v8984, %v8992
      %v8994 = vmul.f32 %v8985, %v8992
      %v8995 = vmul.f32 %v8986, %v8992
      %v8996 = vmul.f32 %v8987, %v8992
      %v8997 = vmul.f32 %v8988, %v8992
      %v8998 = vmul.f32 %v8989, %v8992
      %v8999 = vmul.f32 %v8990, %v8992
      %9001 = vset.pattern.permute.xlu0 0
      %9002 = vperm.xlu0 %9001, %v8941
      %v9003 = vpop.permute.xlu0 %9002
      %v9005 = vmul.f32 %v8993, %v9003
      %v9006 = vmul.f32 %v8994, %v9003
      %v9007 = vmul.f32 %v8995, %v9003
      %v9008 = vmul.f32 %v8996, %v9003
      %v9009 = vmul.f32 %v8997, %v9003
      %v9010 = vmul.f32 %v8998, %v9003
      %v9011 = vmul.f32 %v8999, %v9003
      %9012 = vset.pattern.permute.xlu0 1
      %9013 = vperm.xlu0 %9012, %v8941
      %v9014 = vpop.permute.xlu0 %9013
      %v9016 = vadd.f32 %v9005, %v9014
      %v9017 = vadd.f32 %v9006, %v9014
      %v9018 = vadd.f32 %v9007, %v9014
      %v9019 = vadd.f32 %v9008, %v9014
      %v9020 = vadd.f32 %v9009, %v9014
      %v9021 = vadd.f32 %v9010, %v9014
      %v9022 = vadd.f32 %v9011, %v9014
      %v9023 = vld [vmem:[#allocation6] sm:$0xff]
      %v9024 = vld [vmem:[#allocation6 + $0x8] sm:$0xff]
      %v9025 = vld [vmem:[#allocation6 + $0x10] sm:$0xff]
      %v9026 = vld [vmem:[#allocation6 + $0x18] sm:$0xf]
      %v9033 = vcombine.low %v9016, %v9017
      %v9034 = vcombine.low %v9018, %v9019
      %v9035 = vcombine.low %v9020, %v9021
      %v9039 = vadd.f32 %v9023, %v9033
      %v9040 = vadd.f32 %v9024, %v9034
      %v9041 = vadd.f32 %v9025, %v9035
      %v9042 = vadd.f32 %v9026, %v9022
      %9043 = vst [vmem:[#allocation6] sm:$0xff] %v9039
      %9044 = vst [vmem:[#allocation6 + $0x8] sm:$0xff] %v9040
      %9045 = vst [vmem:[#allocation6 + $0x10] sm:$0xff] %v9041
      %9046 = vst [vmem:[#allocation6 + $0x18] sm:$0xf] %v9042
    $region73: #{tpu_custom_call.1} parent=1 // pred_fallthru
      _
    // Predicated region
    $region74: #{tpu_custom_call.1} parent=1 // pred_check
      _
    $region75: #{tpu_custom_call.1} parent=1 // pred_check_branch
      %9048 = sbr.rel (0) target = $region77
    $region76: #{tpu_custom_call.1} parent=1 // pred_region
      %s9050 = ssub.s32 448, 448
      %9051 = vsyncadd [#allocation4], %s9050
      %s9053 = sshll.u32 [#allocation6], 4
      %s9054 = int_to_ptr.vmem [resolvable:$true] %s9053
      %9056 = dma.vmem_to_hbm [thread:$0]  %s9054, 448, %s15, [#allocation4]
    $region77: #{tpu_custom_call.1} parent=1 // pred_fallthru
      _
    // Predicated region
    $region78: #{tpu_custom_call.1} parent=1 // pred_check
      _
    $region79: #{tpu_custom_call.1} parent=1 // pred_check_branch
      %9058 = sbr.rel (0) target = $region81
    $region80: #{tpu_custom_call.1} parent=1 // pred_region
      %9059 = dma.done [#allocation4], 448
    $region81: #{tpu_custom_call.1} parent=1 // pred_fallthru
      _
    %9060 = vsyncpa [#allocation4], 1
    %9061 = vsyncpa [#allocation5], 1

</llo_original>
